<compile_context>
chip_gen: v6e
topology: v6e:2x2x1
jax: 0.10.0
libtpu: 0.0.40
codegen_flags: <defaults>
</compile_context>

<pallas_src>
import functools

import jax
import jax.numpy as jnp
from jax import lax
from jax.experimental import pallas as pl
from jax.experimental.pallas import tpu as pltpu


MAX_ITERS = 32          # cfg.max_iters
LANES = 128             # vreg lane width (rays on the lane axis)
CHUNK_R = 32            # sublane rows per vreg-resident inner chunk (32*128 = 4096 rays)
CHUNKS_PER_TILE = 16    # target inner chunks per grid step -> 65536 rays / grid step
NEAR, FAR = 0.0, 10.0   # cfg.near / cfg.far (unused by forward, kept for parity)
SDF_EPS = 1e-4


def _sphere_trace_kernel(params_ref, o_ref, d_ref, color_ref):
    """params_ref: SMEM f32[16] = [cx, cy, cz, r, W(9 row-major), b(3)]
    o_ref, d_ref, color_ref: VMEM f32[3, chunks_per_tile, CHUNK_R, LANES]
    (coordinate, chunk, sublane-row, lane)."""
    # Scalar reads hoisted once (outside every loop).
    cx = params_ref[0]
    cy = params_ref[1]
    cz = params_ref[2]
    rad = params_ref[3]
    w = [params_ref[4 + i] for i in range(9)]
    b = [params_ref[13 + i] for i in range(3)]

    # Static per-coordinate ref views (zero-cost).
    ox_r, oy_r, oz_r = o_ref.at[0], o_ref.at[1], o_ref.at[2]
    dx_r, dy_r, dz_r = d_ref.at[0], d_ref.at[1], d_ref.at[2]
    cr_r, cg_r, cb_r = color_ref.at[0], color_ref.at[1], color_ref.at[2]

    n_chunks = o_ref.shape[1]

    @pl.loop(0, n_chunks)
    def _chunk(ci):
        # --- Precompute: consume o/d into completed-square coefficients so they are
        #     NOT live across the unrolled march (register-pressure fix). ---
        ox = ox_r[ci]                      # (CHUNK_R, LANES) full vregs
        oy = oy_r[ci]
        oz = oz_r[ci]
        dx = dx_r[ci]
        dy = dy_r[ci]
        dz = dz_r[ci]

        rx = ox - cx
        ry = oy - cy
        rz = oz - cz
        A = rx * rx + ry * ry + rz * rz          # ||o - c||^2
        Bv = rx * dx + ry * dy + rz * dz         # (o - c) . d
        C = dx * dx + dy * dy + dz * dz          # ||d||^2

        # Complete the square once per ray:  ||o + t d - c||^2 = C*(t + B/C)^2 + K.
        t0 = Bv / C                              # one division per ray, outside loop
        K = A - Bv * t0

        # Single hoisted splat per chunk (never re-broadcast inside the loop).
        radv = jnp.full_like(K, rad)

        # March tp = t + t0.  Per iteration: 3 VALU poly + max + sub + add, 1 EUP sqrt.
        def body(_, carry):
            tp, _ = carry
            q = C * tp * tp + K
            # TODO(synk): if bundle dumps show the guarded sqrt expanding into extra
            # VALU ops, try q * lax.rsqrt(max(q, tiny)) and re-verify the 1e-4 mask.
            sdf = jnp.sqrt(jnp.maximum(q, 0.0)) - radv
            return tp + sdf, sdf

        tp, sdf = lax.fori_loop(0, MAX_ITERS, body, (t0, jnp.zeros_like(t0)),
                                unroll=True)

        # NOTE: matches PyTorch exactly -- the mask uses the sdf evaluated at the
        # points *before* the final update; the color uses the final marched points.
        hit = sdf < SDF_EPS
        t = tp - t0

        # Re-load o/d AFTER the loop (a handful of vlds, ~free) instead of keeping
        # six arrays live across the 32 unrolled iterations.
        dx = dx_r[ci]
        dy = dy_r[ci]
        dz = dz_r[ci]
        px = ox_r[ci] + t * dx
        py = oy_r[ci] + t * dy
        pz = oz_r[ci] + t * dz

        # 3x3 linear + sigmoid color head, kept on the VPU (MXU would be mostly pad).
        cr = jax.nn.sigmoid(w[0] * px + w[1] * py + w[2] * pz + b[0])
        cg = jax.nn.sigmoid(w[3] * px + w[4] * py + w[5] * pz + b[1])
        cb = jax.nn.sigmoid(w[6] * px + w[7] * py + w[8] * pz + b[2])

        # color[mask] = isect_color ; zeros elsewhere.  Per-channel full-vreg stores.
        cr_r[ci] = jnp.where(hit, cr, 0.0)
        cg_r[ci] = jnp.where(hit, cg, 0.0)
        cb_r[ci] = jnp.where(hit, cb, 0.0)


def _pick_chunks_per_tile(n_chunks_total, target):
    """Largest divisor of n_chunks_total <= target keeping grid length >= 2
    (v7x shards the parallel grid axis across its 2 TensorCores)."""
    best = 1
    for c in range(1, min(target, n_chunks_total) + 1):
        if n_chunks_total % c == 0 and n_chunks_total // c >= 2:
            best = c
    return best


@functools.partial(jax.jit, static_argnames=("chunks_per_tile",))
def sphere_tracing_render(origins, directions, params, *, chunks_per_tile=None):
    """origins, directions: (N, 3) float32.  Returns {'color': (N, 3) float32}."""
    n = origins.shape[0]
    rays_per_chunk = CHUNK_R * LANES
    assert n % rays_per_chunk == 0, "pad N to a multiple of 32*128 rays"
    n_chunks_total = n // rays_per_chunk
    if chunks_per_tile is None:
        chunks_per_tile = _pick_chunks_per_tile(n_chunks_total, CHUNKS_PER_TILE)
    assert n_chunks_total % chunks_per_tile == 0

    # (N, 3) -> (3, n_chunks, CHUNK_R, LANES): rays on lanes, coordinates separated.
    # TODO(synk): these transposes (and the output one) are standalone HBM passes;
    # callers that can produce/consume planar (3, N) rays should skip them.
    o4 = origins.T.astype(jnp.float32).reshape(3, n_chunks_total, CHUNK_R, LANES)
    d4 = directions.T.astype(jnp.float32).reshape(3, n_chunks_total, CHUNK_R, LANES)

    block = (3, chunks_per_tile, CHUNK_R, LANES)

    # 3 arrays x 2 pipeline buffers x block bytes; only crosses the default scoped
    # VMEM (16 MiB on v5e) for very large chunks_per_tile -- raise the limit then.
    block_bytes = 3 * chunks_per_tile * CHUNK_R * LANES * 4
    working_set = 3 * 2 * block_bytes
    vmem_limit = working_set + (4 << 20) if working_set > (12 << 20) else None

    # Compute-bound kernel (~36 B/ray moved vs ~230 flops + 36 transcendentals/ray).
    cost = pl.CostEstimate(
        flops=(6 * MAX_ITERS + 40) * n,
        transcendentals=(MAX_ITERS + 4) * n,
        bytes_accessed=36 * n,
    )

    color4 = pl.pallas_call(
        _sphere_trace_kernel,
        out_shape=jax.ShapeDtypeStruct((3, n_chunks_total, CHUNK_R, LANES),
                                       jnp.float32),
        grid_spec=pltpu.PrefetchScalarGridSpec(
            num_scalar_prefetch=0,
            grid=(n_chunks_total // chunks_per_tile,),
            in_specs=[
                pl.BlockSpec(memory_space=pltpu.MemorySpace.SMEM),   # params (16,)
                pl.BlockSpec(block, lambda i: (0, i, 0, 0)),         # origins
                pl.BlockSpec(block, lambda i: (0, i, 0, 0)),         # directions
            ],
            out_specs=pl.BlockSpec(block, lambda i: (0, i, 0, 0)),   # color
        ),
        compiler_params=pltpu.CompilerParams(
            dimension_semantics=("parallel",),
            vmem_limit_bytes=vmem_limit),
        cost_estimate=cost,
    )(params, o4, d4)

    return {"color": color4.reshape(3, n).T}


@jax.jit
def _reference(origins, directions, params):
    """Pure-JAX reference mirroring the PyTorch forward (coordinate-space loop)."""
    c = params[0:3]
    r = params[3]
    w = params[4:13].reshape(3, 3)
    b = params[13:16]

    pts = origins
    sdf = jnp.zeros((origins.shape[0], 1), jnp.float32)
    for _ in range(MAX_ITERS):
        sdf = jnp.linalg.norm(pts - c[None, :], axis=-1, keepdims=True) - r
        pts = pts + sdf * directions
    mask = sdf < SDF_EPS                                        # (N, 1)
    col = jax.nn.sigmoid(pts @ w.T + b[None, :])
    return jnp.where(mask, col, 0.0)


if __name__ == "__main__":
    key = jax.random.PRNGKey(0)
    k1, k2 = jax.random.split(key)

    # Two grid steps of 16 chunks x (32, 128) rays = 131072 rays (~362x362 image):
    # big per-step tiles while keeping the v7x grid at 2 parallel steps.
    N = 2 * CHUNKS_PER_TILE * CHUNK_R * LANES

    # Camera near (0, 0, -3) with slight per-ray jitter.
    origins = (jnp.tile(jnp.array([0.0, 0.0, -3.0], jnp.float32), (N, 1))
               + 0.01 * jax.random.normal(k1, (N, 3), jnp.float32))

    # Half the rays aim at the unit sphere (clear hits), half are offset well away
    # from it (clear misses).  Avoiding grazing rays keeps the hit mask identical
    # between the coordinate-space reference and the in-kernel t-march (both
    # branches of `color[mask] = ...` are still exercised).
    jitter = 0.03 * jax.random.normal(k2, (N, 2), jnp.float32)
    miss_offset = jnp.where((jnp.arange(N) % 2 == 1)[:, None],
                            jnp.array([[1.5, 0.0]], jnp.float32), 0.0)
    raw_dirs = jnp.concatenate(
        [jitter + miss_offset, jnp.ones((N, 1), jnp.float32)], axis=-1)
    directions = raw_dirs / jnp.linalg.norm(raw_dirs, axis=-1, keepdims=True)

    # Deterministic implicit_fn parameters: unit sphere at origin + linear color head.
    center = jnp.array([0.0, 0.0, 0.0], jnp.float32)
    radius = jnp.array([1.0], jnp.float32)
    w_color = (jnp.arange(9, dtype=jnp.float32) - 4.0) / 10.0               # (9,)
    b_color = jnp.array([0.1, -0.2, 0.3], jnp.float32)                      # (3,)
    params = jnp.concatenate([center, radius, w_color, b_color])            # (16,)

    out = sphere_tracing_render(origins, directions, params)
    color = jax.block_until_ready(out["color"])

    ref = _reference(origins, directions, params)
    assert color.shape == (N, 3) and color.dtype == jnp.float32
    # Both mask branches are present in the reference.
    assert bool(jnp.any(ref > 0.0)) and bool(jnp.any(jnp.all(ref == 0.0, axis=-1)))
    max_err = float(jnp.max(jnp.abs(color - ref)))
    assert max_err < 1e-4, f"max err {max_err}"

    print("KERNEL_OK")
</pallas_src>

<mosaic_0001>
module attributes {stable_mosaic.version = 11 : i64} {
  func.func @_sphere_trace_kernel(%arg0: i32, %arg1: memref<16xf32, #tpu.memory_space<smem>>, %arg2: memref<3x16x32x128xf32, #tpu.memory_space<vmem>>, %arg3: memref<3x16x32x128xf32, #tpu.memory_space<vmem>>, %arg4: memref<3x16x32x128xf32, #tpu.memory_space<vmem>>) attributes {dimension_semantics = [#tpu.dimension_semantics<parallel>], iteration_bounds = array<i64: 2>, scalar_prefetch = 0 : i64, scratch_operands = 0 : i64, tpu.core_type = #tpu.core_type<tc>, window_params = [{transform_indices = @transform_0, window_bounds = array<i64: 16>}, {transform_indices = @transform_1, window_bounds = array<i64: 3, 16, 32, 128>}, {transform_indices = @transform_2, window_bounds = array<i64: 3, 16, 32, 128>}, {transform_indices = @transform_3, window_bounds = array<i64: 3, 16, 32, 128>}]} {
    %c0 = arith.constant 0 : index
    %0 = memref.load %arg1[%c0] : memref<16xf32, #tpu.memory_space<smem>>
    %c1 = arith.constant 1 : index
    %1 = memref.load %arg1[%c1] : memref<16xf32, #tpu.memory_space<smem>>
    %c2 = arith.constant 2 : index
    %2 = memref.load %arg1[%c2] : memref<16xf32, #tpu.memory_space<smem>>
    %c3 = arith.constant 3 : index
    %3 = memref.load %arg1[%c3] : memref<16xf32, #tpu.memory_space<smem>>
    %c4 = arith.constant 4 : index
    %4 = memref.load %arg1[%c4] : memref<16xf32, #tpu.memory_space<smem>>
    %c5 = arith.constant 5 : index
    %5 = memref.load %arg1[%c5] : memref<16xf32, #tpu.memory_space<smem>>
    %c6 = arith.constant 6 : index
    %6 = memref.load %arg1[%c6] : memref<16xf32, #tpu.memory_space<smem>>
    %c7 = arith.constant 7 : index
    %7 = memref.load %arg1[%c7] : memref<16xf32, #tpu.memory_space<smem>>
    %c8 = arith.constant 8 : index
    %8 = memref.load %arg1[%c8] : memref<16xf32, #tpu.memory_space<smem>>
    %c9 = arith.constant 9 : index
    %9 = memref.load %arg1[%c9] : memref<16xf32, #tpu.memory_space<smem>>
    %c10 = arith.constant 10 : index
    %10 = memref.load %arg1[%c10] : memref<16xf32, #tpu.memory_space<smem>>
    %c11 = arith.constant 11 : index
    %11 = memref.load %arg1[%c11] : memref<16xf32, #tpu.memory_space<smem>>
    %c12 = arith.constant 12 : index
    %12 = memref.load %arg1[%c12] : memref<16xf32, #tpu.memory_space<smem>>
    %c13 = arith.constant 13 : index
    %13 = memref.load %arg1[%c13] : memref<16xf32, #tpu.memory_space<smem>>
    %c14 = arith.constant 14 : index
    %14 = memref.load %arg1[%c14] : memref<16xf32, #tpu.memory_space<smem>>
    %c15 = arith.constant 15 : index
    %15 = memref.load %arg1[%c15] : memref<16xf32, #tpu.memory_space<smem>>
    %c0_i32 = arith.constant 0 : i32
    %c1_i32 = arith.constant 1 : i32
    %c2_i32 = arith.constant 2 : i32
    %c0_i32_0 = arith.constant 0 : i32
    %c1_i32_1 = arith.constant 1 : i32
    %c2_i32_2 = arith.constant 2 : i32
    %c0_i32_3 = arith.constant 0 : i32
    %c1_i32_4 = arith.constant 1 : i32
    %c2_i32_5 = arith.constant 2 : i32
    %c0_i32_6 = arith.constant 0 : i32
    %c16_i32 = arith.constant 16 : i32
    %16 = arith.addi %c0_i32_6, %c16_i32 : i32
    %c1_i32_7 = arith.constant 1 : i32
    scf.for %arg5 = %c0_i32_6 to %16 step %c1_i32_7  : i32 {
      %c1_i32_9 = arith.constant 1 : i32
      %17 = arith.muli %arg5, %c1_i32_9 : i32
      %c0_i32_10 = arith.constant 0 : i32
      %18 = arith.addi %c0_i32_10, %17 : i32
      %c0_i32_11 = arith.constant 0 : i32
      %c0_i32_12 = arith.constant 0 : i32
      %c0_i32_13 = arith.constant 0 : i32
      %19 = tpu.memref_slice %arg2[%c0_i32, %c0_i32_11, %c0_i32_12, %c0_i32_13] : memref<3x16x32x128xf32, #tpu.memory_space<vmem>> -> memref<1x16x32x128xf32, #tpu.memory_space<vmem>>
      %20 = tpu.memref_squeeze %19 : memref<1x16x32x128xf32, #tpu.memory_space<vmem>> -> memref<16x32x128xf32, #tpu.memory_space<vmem>>
      %21 = arith.index_cast %18 : i32 to index
      %c0_14 = arith.constant 0 : index
      %c0_15 = arith.constant 0 : index
      %22 = vector.load %20[%21, %c0_14, %c0_15] : memref<16x32x128xf32, #tpu.memory_space<vmem>>, vector<1x32x128xf32>
      %23 = vector.shape_cast %22 : vector<1x32x128xf32> to vector<32x128xf32>
      %c0_i32_16 = arith.constant 0 : i32
      %c0_i32_17 = arith.constant 0 : i32
      %c0_i32_18 = arith.constant 0 : i32
      %24 = tpu.memref_slice %arg2[%c1_i32, %c0_i32_16, %c0_i32_17, %c0_i32_18] : memref<3x16x32x128xf32, #tpu.memory_space<vmem>> -> memref<1x16x32x128xf32, #tpu.memory_space<vmem>>
      %25 = tpu.memref_squeeze %24 : memref<1x16x32x128xf32, #tpu.memory_space<vmem>> -> memref<16x32x128xf32, #tpu.memory_space<vmem>>
      %26 = arith.index_cast %18 : i32 to index
      %c0_19 = arith.constant 0 : index
      %c0_20 = arith.constant 0 : index
      %27 = vector.load %25[%26, %c0_19, %c0_20] : memref<16x32x128xf32, #tpu.memory_space<vmem>>, vector<1x32x128xf32>
      %28 = vector.shape_cast %27 : vector<1x32x128xf32> to vector<32x128xf32>
      %c0_i32_21 = arith.constant 0 : i32
      %c0_i32_22 = arith.constant 0 : i32
      %c0_i32_23 = arith.constant 0 : i32
      %29 = tpu.memref_slice %arg2[%c2_i32, %c0_i32_21, %c0_i32_22, %c0_i32_23] : memref<3x16x32x128xf32, #tpu.memory_space<vmem>> -> memref<1x16x32x128xf32, #tpu.memory_space<vmem>>
      %30 = tpu.memref_squeeze %29 : memref<1x16x32x128xf32, #tpu.memory_space<vmem>> -> memref<16x32x128xf32, #tpu.memory_space<vmem>>
      %31 = arith.index_cast %18 : i32 to index
      %c0_24 = arith.constant 0 : index
      %c0_25 = arith.constant 0 : index
      %32 = vector.load %30[%31, %c0_24, %c0_25] : memref<16x32x128xf32, #tpu.memory_space<vmem>>, vector<1x32x128xf32>
      %33 = vector.shape_cast %32 : vector<1x32x128xf32> to vector<32x128xf32>
      %c0_i32_26 = arith.constant 0 : i32
      %c0_i32_27 = arith.constant 0 : i32
      %c0_i32_28 = arith.constant 0 : i32
      %34 = tpu.memref_slice %arg3[%c0_i32_0, %c0_i32_26, %c0_i32_27, %c0_i32_28] : memref<3x16x32x128xf32, #tpu.memory_space<vmem>> -> memref<1x16x32x128xf32, #tpu.memory_space<vmem>>
      %35 = tpu.memref_squeeze %34 : memref<1x16x32x128xf32, #tpu.memory_space<vmem>> -> memref<16x32x128xf32, #tpu.memory_space<vmem>>
      %36 = arith.index_cast %18 : i32 to index
      %c0_29 = arith.constant 0 : index
      %c0_30 = arith.constant 0 : index
      %37 = vector.load %35[%36, %c0_29, %c0_30] : memref<16x32x128xf32, #tpu.memory_space<vmem>>, vector<1x32x128xf32>
      %38 = vector.shape_cast %37 : vector<1x32x128xf32> to vector<32x128xf32>
      %c0_i32_31 = arith.constant 0 : i32
      %c0_i32_32 = arith.constant 0 : i32
      %c0_i32_33 = arith.constant 0 : i32
      %39 = tpu.memref_slice %arg3[%c1_i32_1, %c0_i32_31, %c0_i32_32, %c0_i32_33] : memref<3x16x32x128xf32, #tpu.memory_space<vmem>> -> memref<1x16x32x128xf32, #tpu.memory_space<vmem>>
      %40 = tpu.memref_squeeze %39 : memref<1x16x32x128xf32, #tpu.memory_space<vmem>> -> memref<16x32x128xf32, #tpu.memory_space<vmem>>
      %41 = arith.index_cast %18 : i32 to index
      %c0_34 = arith.constant 0 : index
      %c0_35 = arith.constant 0 : index
      %42 = vector.load %40[%41, %c0_34, %c0_35] : memref<16x32x128xf32, #tpu.memory_space<vmem>>, vector<1x32x128xf32>
      %43 = vector.shape_cast %42 : vector<1x32x128xf32> to vector<32x128xf32>
      %c0_i32_36 = arith.constant 0 : i32
      %c0_i32_37 = arith.constant 0 : i32
      %c0_i32_38 = arith.constant 0 : i32
      %44 = tpu.memref_slice %arg3[%c2_i32_2, %c0_i32_36, %c0_i32_37, %c0_i32_38] : memref<3x16x32x128xf32, #tpu.memory_space<vmem>> -> memref<1x16x32x128xf32, #tpu.memory_space<vmem>>
      %45 = tpu.memref_squeeze %44 : memref<1x16x32x128xf32, #tpu.memory_space<vmem>> -> memref<16x32x128xf32, #tpu.memory_space<vmem>>
      %46 = arith.index_cast %18 : i32 to index
      %c0_39 = arith.constant 0 : index
      %c0_40 = arith.constant 0 : index
      %47 = vector.load %45[%46, %c0_39, %c0_40] : memref<16x32x128xf32, #tpu.memory_space<vmem>>, vector<1x32x128xf32>
      %48 = vector.shape_cast %47 : vector<1x32x128xf32> to vector<32x128xf32>
      %49 = vector.broadcast %0 : f32 to vector<32x128xf32>
      %50 = arith.subf %23, %49 : vector<32x128xf32>
      %51 = vector.broadcast %1 : f32 to vector<32x128xf32>
      %52 = arith.subf %28, %51 : vector<32x128xf32>
      %53 = vector.broadcast %2 : f32 to vector<32x128xf32>
      %54 = arith.subf %33, %53 : vector<32x128xf32>
      %55 = arith.mulf %50, %50 : vector<32x128xf32>
      %56 = arith.mulf %52, %52 : vector<32x128xf32>
      %57 = arith.addf %55, %56 : vector<32x128xf32>
      %58 = arith.mulf %54, %54 : vector<32x128xf32>
      %59 = arith.addf %57, %58 : vector<32x128xf32>
      %60 = arith.mulf %50, %38 : vector<32x128xf32>
      %61 = arith.mulf %52, %43 : vector<32x128xf32>
      %62 = arith.addf %60, %61 : vector<32x128xf32>
      %63 = arith.mulf %54, %48 : vector<32x128xf32>
      %64 = arith.addf %62, %63 : vector<32x128xf32>
      %65 = arith.mulf %38, %38 : vector<32x128xf32>
      %66 = arith.mulf %43, %43 : vector<32x128xf32>
      %67 = arith.addf %65, %66 : vector<32x128xf32>
      %68 = arith.mulf %48, %48 : vector<32x128xf32>
      %69 = arith.addf %67, %68 : vector<32x128xf32>
      %70 = arith.divf %64, %69 : vector<32x128xf32>
      %71 = arith.mulf %64, %70 : vector<32x128xf32>
      %72 = arith.subf %59, %71 : vector<32x128xf32>
      %73 = vector.broadcast %3 : f32 to vector<32x128xf32>
      %cst = arith.constant 0.000000e+00 : f32
      %74 = vector.broadcast %cst : f32 to vector<32x128xf32>
      %c0_i32_41 = arith.constant 0 : i32
      %75 = arith.mulf %69, %70 : vector<32x128xf32>
      %76 = arith.mulf %75, %70 : vector<32x128xf32>
      %77 = arith.addf %76, %72 : vector<32x128xf32>
      %cst_42 = arith.constant 0.000000e+00 : f32
      %78 = vector.broadcast %cst_42 : f32 to vector<32x128xf32>
      %79 = arith.maximumf %77, %78 : vector<32x128xf32>
      %80 = math.sqrt %79 : vector<32x128xf32>
      %81 = arith.subf %80, %73 : vector<32x128xf32>
      %82 = arith.addf %70, %81 : vector<32x128xf32>
      %c1_i32_43 = arith.constant 1 : i32
      %83 = arith.mulf %69, %82 : vector<32x128xf32>
      %84 = arith.mulf %83, %82 : vector<32x128xf32>
      %85 = arith.addf %84, %72 : vector<32x128xf32>
      %cst_44 = arith.constant 0.000000e+00 : f32
      %86 = vector.broadcast %cst_44 : f32 to vector<32x128xf32>
      %87 = arith.maximumf %85, %86 : vector<32x128xf32>
      %88 = math.sqrt %87 : vector<32x128xf32>
      %89 = arith.subf %88, %73 : vector<32x128xf32>
      %90 = arith.addf %82, %89 : vector<32x128xf32>
      %c2_i32_45 = arith.constant 2 : i32
      %91 = arith.mulf %69, %90 : vector<32x128xf32>
      %92 = arith.mulf %91, %90 : vector<32x128xf32>
      %93 = arith.addf %92, %72 : vector<32x128xf32>
      %cst_46 = arith.constant 0.000000e+00 : f32
      %94 = vector.broadcast %cst_46 : f32 to vector<32x128xf32>
      %95 = arith.maximumf %93, %94 : vector<32x128xf32>
      %96 = math.sqrt %95 : vector<32x128xf32>
      %97 = arith.subf %96, %73 : vector<32x128xf32>
      %98 = arith.addf %90, %97 : vector<32x128xf32>
      %c3_i32 = arith.constant 3 : i32
      %99 = arith.mulf %69, %98 : vector<32x128xf32>
      %100 = arith.mulf %99, %98 : vector<32x128xf32>
      %101 = arith.addf %100, %72 : vector<32x128xf32>
      %cst_47 = arith.constant 0.000000e+00 : f32
      %102 = vector.broadcast %cst_47 : f32 to vector<32x128xf32>
      %103 = arith.maximumf %101, %102 : vector<32x128xf32>
      %104 = math.sqrt %103 : vector<32x128xf32>
      %105 = arith.subf %104, %73 : vector<32x128xf32>
      %106 = arith.addf %98, %105 : vector<32x128xf32>
      %c4_i32 = arith.constant 4 : i32
      %107 = arith.mulf %69, %106 : vector<32x128xf32>
      %108 = arith.mulf %107, %106 : vector<32x128xf32>
      %109 = arith.addf %108, %72 : vector<32x128xf32>
      %cst_48 = arith.constant 0.000000e+00 : f32
      %110 = vector.broadcast %cst_48 : f32 to vector<32x128xf32>
      %111 = arith.maximumf %109, %110 : vector<32x128xf32>
      %112 = math.sqrt %111 : vector<32x128xf32>
      %113 = arith.subf %112, %73 : vector<32x128xf32>
      %114 = arith.addf %106, %113 : vector<32x128xf32>
      %c5_i32 = arith.constant 5 : i32
      %115 = arith.mulf %69, %114 : vector<32x128xf32>
      %116 = arith.mulf %115, %114 : vector<32x128xf32>
      %117 = arith.addf %116, %72 : vector<32x128xf32>
      %cst_49 = arith.constant 0.000000e+00 : f32
      %118 = vector.broadcast %cst_49 : f32 to vector<32x128xf32>
      %119 = arith.maximumf %117, %118 : vector<32x128xf32>
      %120 = math.sqrt %119 : vector<32x128xf32>
      %121 = arith.subf %120, %73 : vector<32x128xf32>
      %122 = arith.addf %114, %121 : vector<32x128xf32>
      %c6_i32 = arith.constant 6 : i32
      %123 = arith.mulf %69, %122 : vector<32x128xf32>
      %124 = arith.mulf %123, %122 : vector<32x128xf32>
      %125 = arith.addf %124, %72 : vector<32x128xf32>
      %cst_50 = arith.constant 0.000000e+00 : f32
      %126 = vector.broadcast %cst_50 : f32 to vector<32x128xf32>
      %127 = arith.maximumf %125, %126 : vector<32x128xf32>
      %128 = math.sqrt %127 : vector<32x128xf32>
      %129 = arith.subf %128, %73 : vector<32x128xf32>
      %130 = arith.addf %122, %129 : vector<32x128xf32>
      %c7_i32 = arith.constant 7 : i32
      %131 = arith.mulf %69, %130 : vector<32x128xf32>
      %132 = arith.mulf %131, %130 : vector<32x128xf32>
      %133 = arith.addf %132, %72 : vector<32x128xf32>
      %cst_51 = arith.constant 0.000000e+00 : f32
      %134 = vector.broadcast %cst_51 : f32 to vector<32x128xf32>
      %135 = arith.maximumf %133, %134 : vector<32x128xf32>
      %136 = math.sqrt %135 : vector<32x128xf32>
      %137 = arith.subf %136, %73 : vector<32x128xf32>
      %138 = arith.addf %130, %137 : vector<32x128xf32>
      %c8_i32 = arith.constant 8 : i32
      %139 = arith.mulf %69, %138 : vector<32x128xf32>
      %140 = arith.mulf %139, %138 : vector<32x128xf32>
      %141 = arith.addf %140, %72 : vector<32x128xf32>
      %cst_52 = arith.constant 0.000000e+00 : f32
      %142 = vector.broadcast %cst_52 : f32 to vector<32x128xf32>
      %143 = arith.maximumf %141, %142 : vector<32x128xf32>
      %144 = math.sqrt %143 : vector<32x128xf32>
      %145 = arith.subf %144, %73 : vector<32x128xf32>
      %146 = arith.addf %138, %145 : vector<32x128xf32>
      %c9_i32 = arith.constant 9 : i32
      %147 = arith.mulf %69, %146 : vector<32x128xf32>
      %148 = arith.mulf %147, %146 : vector<32x128xf32>
      %149 = arith.addf %148, %72 : vector<32x128xf32>
      %cst_53 = arith.constant 0.000000e+00 : f32
      %150 = vector.broadcast %cst_53 : f32 to vector<32x128xf32>
      %151 = arith.maximumf %149, %150 : vector<32x128xf32>
      %152 = math.sqrt %151 : vector<32x128xf32>
      %153 = arith.subf %152, %73 : vector<32x128xf32>
      %154 = arith.addf %146, %153 : vector<32x128xf32>
      %c10_i32 = arith.constant 10 : i32
      %155 = arith.mulf %69, %154 : vector<32x128xf32>
      %156 = arith.mulf %155, %154 : vector<32x128xf32>
      %157 = arith.addf %156, %72 : vector<32x128xf32>
      %cst_54 = arith.constant 0.000000e+00 : f32
      %158 = vector.broadcast %cst_54 : f32 to vector<32x128xf32>
      %159 = arith.maximumf %157, %158 : vector<32x128xf32>
      %160 = math.sqrt %159 : vector<32x128xf32>
      %161 = arith.subf %160, %73 : vector<32x128xf32>
      %162 = arith.addf %154, %161 : vector<32x128xf32>
      %c11_i32 = arith.constant 11 : i32
      %163 = arith.mulf %69, %162 : vector<32x128xf32>
      %164 = arith.mulf %163, %162 : vector<32x128xf32>
      %165 = arith.addf %164, %72 : vector<32x128xf32>
      %cst_55 = arith.constant 0.000000e+00 : f32
      %166 = vector.broadcast %cst_55 : f32 to vector<32x128xf32>
      %167 = arith.maximumf %165, %166 : vector<32x128xf32>
      %168 = math.sqrt %167 : vector<32x128xf32>
      %169 = arith.subf %168, %73 : vector<32x128xf32>
      %170 = arith.addf %162, %169 : vector<32x128xf32>
      %c12_i32 = arith.constant 12 : i32
      %171 = arith.mulf %69, %170 : vector<32x128xf32>
      %172 = arith.mulf %171, %170 : vector<32x128xf32>
      %173 = arith.addf %172, %72 : vector<32x128xf32>
      %cst_56 = arith.constant 0.000000e+00 : f32
      %174 = vector.broadcast %cst_56 : f32 to vector<32x128xf32>
      %175 = arith.maximumf %173, %174 : vector<32x128xf32>
      %176 = math.sqrt %175 : vector<32x128xf32>
      %177 = arith.subf %176, %73 : vector<32x128xf32>
      %178 = arith.addf %170, %177 : vector<32x128xf32>
      %c13_i32 = arith.constant 13 : i32
      %179 = arith.mulf %69, %178 : vector<32x128xf32>
      %180 = arith.mulf %179, %178 : vector<32x128xf32>
      %181 = arith.addf %180, %72 : vector<32x128xf32>
      %cst_57 = arith.constant 0.000000e+00 : f32
      %182 = vector.broadcast %cst_57 : f32 to vector<32x128xf32>
      %183 = arith.maximumf %181, %182 : vector<32x128xf32>
      %184 = math.sqrt %183 : vector<32x128xf32>
      %185 = arith.subf %184, %73 : vector<32x128xf32>
      %186 = arith.addf %178, %185 : vector<32x128xf32>
      %c14_i32 = arith.constant 14 : i32
      %187 = arith.mulf %69, %186 : vector<32x128xf32>
      %188 = arith.mulf %187, %186 : vector<32x128xf32>
      %189 = arith.addf %188, %72 : vector<32x128xf32>
      %cst_58 = arith.constant 0.000000e+00 : f32
      %190 = vector.broadcast %cst_58 : f32 to vector<32x128xf32>
      %191 = arith.maximumf %189, %190 : vector<32x128xf32>
      %192 = math.sqrt %191 : vector<32x128xf32>
      %193 = arith.subf %192, %73 : vector<32x128xf32>
      %194 = arith.addf %186, %193 : vector<32x128xf32>
      %c15_i32 = arith.constant 15 : i32
      %195 = arith.mulf %69, %194 : vector<32x128xf32>
      %196 = arith.mulf %195, %194 : vector<32x128xf32>
      %197 = arith.addf %196, %72 : vector<32x128xf32>
      %cst_59 = arith.constant 0.000000e+00 : f32
      %198 = vector.broadcast %cst_59 : f32 to vector<32x128xf32>
      %199 = arith.maximumf %197, %198 : vector<32x128xf32>
      %200 = math.sqrt %199 : vector<32x128xf32>
      %201 = arith.subf %200, %73 : vector<32x128xf32>
      %202 = arith.addf %194, %201 : vector<32x128xf32>
      %c16_i32_60 = arith.constant 16 : i32
      %203 = arith.mulf %69, %202 : vector<32x128xf32>
      %204 = arith.mulf %203, %202 : vector<32x128xf32>
      %205 = arith.addf %204, %72 : vector<32x128xf32>
      %cst_61 = arith.constant 0.000000e+00 : f32
      %206 = vector.broadcast %cst_61 : f32 to vector<32x128xf32>
      %207 = arith.maximumf %205, %206 : vector<32x128xf32>
      %208 = math.sqrt %207 : vector<32x128xf32>
      %209 = arith.subf %208, %73 : vector<32x128xf32>
      %210 = arith.addf %202, %209 : vector<32x128xf32>
      %c17_i32 = arith.constant 17 : i32
      %211 = arith.mulf %69, %210 : vector<32x128xf32>
      %212 = arith.mulf %211, %210 : vector<32x128xf32>
      %213 = arith.addf %212, %72 : vector<32x128xf32>
      %cst_62 = arith.constant 0.000000e+00 : f32
      %214 = vector.broadcast %cst_62 : f32 to vector<32x128xf32>
      %215 = arith.maximumf %213, %214 : vector<32x128xf32>
      %216 = math.sqrt %215 : vector<32x128xf32>
      %217 = arith.subf %216, %73 : vector<32x128xf32>
      %218 = arith.addf %210, %217 : vector<32x128xf32>
      %c18_i32 = arith.constant 18 : i32
      %219 = arith.mulf %69, %218 : vector<32x128xf32>
      %220 = arith.mulf %219, %218 : vector<32x128xf32>
      %221 = arith.addf %220, %72 : vector<32x128xf32>
      %cst_63 = arith.constant 0.000000e+00 : f32
      %222 = vector.broadcast %cst_63 : f32 to vector<32x128xf32>
      %223 = arith.maximumf %221, %222 : vector<32x128xf32>
      %224 = math.sqrt %223 : vector<32x128xf32>
      %225 = arith.subf %224, %73 : vector<32x128xf32>
      %226 = arith.addf %218, %225 : vector<32x128xf32>
      %c19_i32 = arith.constant 19 : i32
      %227 = arith.mulf %69, %226 : vector<32x128xf32>
      %228 = arith.mulf %227, %226 : vector<32x128xf32>
      %229 = arith.addf %228, %72 : vector<32x128xf32>
      %cst_64 = arith.constant 0.000000e+00 : f32
      %230 = vector.broadcast %cst_64 : f32 to vector<32x128xf32>
      %231 = arith.maximumf %229, %230 : vector<32x128xf32>
      %232 = math.sqrt %231 : vector<32x128xf32>
      %233 = arith.subf %232, %73 : vector<32x128xf32>
      %234 = arith.addf %226, %233 : vector<32x128xf32>
      %c20_i32 = arith.constant 20 : i32
      %235 = arith.mulf %69, %234 : vector<32x128xf32>
      %236 = arith.mulf %235, %234 : vector<32x128xf32>
      %237 = arith.addf %236, %72 : vector<32x128xf32>
      %cst_65 = arith.constant 0.000000e+00 : f32
      %238 = vector.broadcast %cst_65 : f32 to vector<32x128xf32>
      %239 = arith.maximumf %237, %238 : vector<32x128xf32>
      %240 = math.sqrt %239 : vector<32x128xf32>
      %241 = arith.subf %240, %73 : vector<32x128xf32>
      %242 = arith.addf %234, %241 : vector<32x128xf32>
      %c21_i32 = arith.constant 21 : i32
      %243 = arith.mulf %69, %242 : vector<32x128xf32>
      %244 = arith.mulf %243, %242 : vector<32x128xf32>
      %245 = arith.addf %244, %72 : vector<32x128xf32>
      %cst_66 = arith.constant 0.000000e+00 : f32
      %246 = vector.broadcast %cst_66 : f32 to vector<32x128xf32>
      %247 = arith.maximumf %245, %246 : vector<32x128xf32>
      %248 = math.sqrt %247 : vector<32x128xf32>
      %249 = arith.subf %248, %73 : vector<32x128xf32>
      %250 = arith.addf %242, %249 : vector<32x128xf32>
      %c22_i32 = arith.constant 22 : i32
      %251 = arith.mulf %69, %250 : vector<32x128xf32>
      %252 = arith.mulf %251, %250 : vector<32x128xf32>
      %253 = arith.addf %252, %72 : vector<32x128xf32>
      %cst_67 = arith.constant 0.000000e+00 : f32
      %254 = vector.broadcast %cst_67 : f32 to vector<32x128xf32>
      %255 = arith.maximumf %253, %254 : vector<32x128xf32>
      %256 = math.sqrt %255 : vector<32x128xf32>
      %257 = arith.subf %256, %73 : vector<32x128xf32>
      %258 = arith.addf %250, %257 : vector<32x128xf32>
      %c23_i32 = arith.constant 23 : i32
      %259 = arith.mulf %69, %258 : vector<32x128xf32>
      %260 = arith.mulf %259, %258 : vector<32x128xf32>
      %261 = arith.addf %260, %72 : vector<32x128xf32>
      %cst_68 = arith.constant 0.000000e+00 : f32
      %262 = vector.broadcast %cst_68 : f32 to vector<32x128xf32>
      %263 = arith.maximumf %261, %262 : vector<32x128xf32>
      %264 = math.sqrt %263 : vector<32x128xf32>
      %265 = arith.subf %264, %73 : vector<32x128xf32>
      %266 = arith.addf %258, %265 : vector<32x128xf32>
      %c24_i32 = arith.constant 24 : i32
      %267 = arith.mulf %69, %266 : vector<32x128xf32>
      %268 = arith.mulf %267, %266 : vector<32x128xf32>
      %269 = arith.addf %268, %72 : vector<32x128xf32>
      %cst_69 = arith.constant 0.000000e+00 : f32
      %270 = vector.broadcast %cst_69 : f32 to vector<32x128xf32>
      %271 = arith.maximumf %269, %270 : vector<32x128xf32>
      %272 = math.sqrt %271 : vector<32x128xf32>
      %273 = arith.subf %272, %73 : vector<32x128xf32>
      %274 = arith.addf %266, %273 : vector<32x128xf32>
      %c25_i32 = arith.constant 25 : i32
      %275 = arith.mulf %69, %274 : vector<32x128xf32>
      %276 = arith.mulf %275, %274 : vector<32x128xf32>
      %277 = arith.addf %276, %72 : vector<32x128xf32>
      %cst_70 = arith.constant 0.000000e+00 : f32
      %278 = vector.broadcast %cst_70 : f32 to vector<32x128xf32>
      %279 = arith.maximumf %277, %278 : vector<32x128xf32>
      %280 = math.sqrt %279 : vector<32x128xf32>
      %281 = arith.subf %280, %73 : vector<32x128xf32>
      %282 = arith.addf %274, %281 : vector<32x128xf32>
      %c26_i32 = arith.constant 26 : i32
      %283 = arith.mulf %69, %282 : vector<32x128xf32>
      %284 = arith.mulf %283, %282 : vector<32x128xf32>
      %285 = arith.addf %284, %72 : vector<32x128xf32>
      %cst_71 = arith.constant 0.000000e+00 : f32
      %286 = vector.broadcast %cst_71 : f32 to vector<32x128xf32>
      %287 = arith.maximumf %285, %286 : vector<32x128xf32>
      %288 = math.sqrt %287 : vector<32x128xf32>
      %289 = arith.subf %288, %73 : vector<32x128xf32>
      %290 = arith.addf %282, %289 : vector<32x128xf32>
      %c27_i32 = arith.constant 27 : i32
      %291 = arith.mulf %69, %290 : vector<32x128xf32>
      %292 = arith.mulf %291, %290 : vector<32x128xf32>
      %293 = arith.addf %292, %72 : vector<32x128xf32>
      %cst_72 = arith.constant 0.000000e+00 : f32
      %294 = vector.broadcast %cst_72 : f32 to vector<32x128xf32>
      %295 = arith.maximumf %293, %294 : vector<32x128xf32>
      %296 = math.sqrt %295 : vector<32x128xf32>
      %297 = arith.subf %296, %73 : vector<32x128xf32>
      %298 = arith.addf %290, %297 : vector<32x128xf32>
      %c28_i32 = arith.constant 28 : i32
      %299 = arith.mulf %69, %298 : vector<32x128xf32>
      %300 = arith.mulf %299, %298 : vector<32x128xf32>
      %301 = arith.addf %300, %72 : vector<32x128xf32>
      %cst_73 = arith.constant 0.000000e+00 : f32
      %302 = vector.broadcast %cst_73 : f32 to vector<32x128xf32>
      %303 = arith.maximumf %301, %302 : vector<32x128xf32>
      %304 = math.sqrt %303 : vector<32x128xf32>
      %305 = arith.subf %304, %73 : vector<32x128xf32>
      %306 = arith.addf %298, %305 : vector<32x128xf32>
      %c29_i32 = arith.constant 29 : i32
      %307 = arith.mulf %69, %306 : vector<32x128xf32>
      %308 = arith.mulf %307, %306 : vector<32x128xf32>
      %309 = arith.addf %308, %72 : vector<32x128xf32>
      %cst_74 = arith.constant 0.000000e+00 : f32
      %310 = vector.broadcast %cst_74 : f32 to vector<32x128xf32>
      %311 = arith.maximumf %309, %310 : vector<32x128xf32>
      %312 = math.sqrt %311 : vector<32x128xf32>
      %313 = arith.subf %312, %73 : vector<32x128xf32>
      %314 = arith.addf %306, %313 : vector<32x128xf32>
      %c30_i32 = arith.constant 30 : i32
      %315 = arith.mulf %69, %314 : vector<32x128xf32>
      %316 = arith.mulf %315, %314 : vector<32x128xf32>
      %317 = arith.addf %316, %72 : vector<32x128xf32>
      %cst_75 = arith.constant 0.000000e+00 : f32
      %318 = vector.broadcast %cst_75 : f32 to vector<32x128xf32>
      %319 = arith.maximumf %317, %318 : vector<32x128xf32>
      %320 = math.sqrt %319 : vector<32x128xf32>
      %321 = arith.subf %320, %73 : vector<32x128xf32>
      %322 = arith.addf %314, %321 : vector<32x128xf32>
      %c31_i32 = arith.constant 31 : i32
      %323 = arith.mulf %69, %322 : vector<32x128xf32>
      %324 = arith.mulf %323, %322 : vector<32x128xf32>
      %325 = arith.addf %324, %72 : vector<32x128xf32>
      %cst_76 = arith.constant 0.000000e+00 : f32
      %326 = vector.broadcast %cst_76 : f32 to vector<32x128xf32>
      %327 = arith.maximumf %325, %326 : vector<32x128xf32>
      %328 = math.sqrt %327 : vector<32x128xf32>
      %329 = arith.subf %328, %73 : vector<32x128xf32>
      %330 = arith.addf %322, %329 : vector<32x128xf32>
      %cst_77 = arith.constant 9.99999974E-5 : f32
      %331 = vector.broadcast %cst_77 : f32 to vector<32x128xf32>
      %332 = arith.cmpf olt, %329, %331 : vector<32x128xf32>
      %333 = arith.subf %330, %70 : vector<32x128xf32>
      %c0_i32_78 = arith.constant 0 : i32
      %c0_i32_79 = arith.constant 0 : i32
      %c0_i32_80 = arith.constant 0 : i32
      %334 = tpu.memref_slice %arg3[%c0_i32_0, %c0_i32_78, %c0_i32_79, %c0_i32_80] : memref<3x16x32x128xf32, #tpu.memory_space<vmem>> -> memref<1x16x32x128xf32, #tpu.memory_space<vmem>>
      %335 = tpu.memref_squeeze %334 : memref<1x16x32x128xf32, #tpu.memory_space<vmem>> -> memref<16x32x128xf32, #tpu.memory_space<vmem>>
      %336 = arith.index_cast %18 : i32 to index
      %c0_81 = arith.constant 0 : index
      %c0_82 = arith.constant 0 : index
      %337 = vector.load %335[%336, %c0_81, %c0_82] : memref<16x32x128xf32, #tpu.memory_space<vmem>>, vector<1x32x128xf32>
      %338 = vector.shape_cast %337 : vector<1x32x128xf32> to vector<32x128xf32>
      %c0_i32_83 = arith.constant 0 : i32
      %c0_i32_84 = arith.constant 0 : i32
      %c0_i32_85 = arith.constant 0 : i32
      %339 = tpu.memref_slice %arg3[%c1_i32_1, %c0_i32_83, %c0_i32_84, %c0_i32_85] : memref<3x16x32x128xf32, #tpu.memory_space<vmem>> -> memref<1x16x32x128xf32, #tpu.memory_space<vmem>>
      %340 = tpu.memref_squeeze %339 : memref<1x16x32x128xf32, #tpu.memory_space<vmem>> -> memref<16x32x128xf32, #tpu.memory_space<vmem>>
      %341 = arith.index_cast %18 : i32 to index
      %c0_86 = arith.constant 0 : index
      %c0_87 = arith.constant 0 : index
      %342 = vector.load %340[%341, %c0_86, %c0_87] : memref<16x32x128xf32, #tpu.memory_space<vmem>>, vector<1x32x128xf32>
      %343 = vector.shape_cast %342 : vector<1x32x128xf32> to vector<32x128xf32>
      %c0_i32_88 = arith.constant 0 : i32
      %c0_i32_89 = arith.constant 0 : i32
      %c0_i32_90 = arith.constant 0 : i32
      %344 = tpu.memref_slice %arg3[%c2_i32_2, %c0_i32_88, %c0_i32_89, %c0_i32_90] : memref<3x16x32x128xf32, #tpu.memory_space<vmem>> -> memref<1x16x32x128xf32, #tpu.memory_space<vmem>>
      %345 = tpu.memref_squeeze %344 : memref<1x16x32x128xf32, #tpu.memory_space<vmem>> -> memref<16x32x128xf32, #tpu.memory_space<vmem>>
      %346 = arith.index_cast %18 : i32 to index
      %c0_91 = arith.constant 0 : index
      %c0_92 = arith.constant 0 : index
      %347 = vector.load %345[%346, %c0_91, %c0_92] : memref<16x32x128xf32, #tpu.memory_space<vmem>>, vector<1x32x128xf32>
      %348 = vector.shape_cast %347 : vector<1x32x128xf32> to vector<32x128xf32>
      %c0_i32_93 = arith.constant 0 : i32
      %c0_i32_94 = arith.constant 0 : i32
      %c0_i32_95 = arith.constant 0 : i32
      %349 = tpu.memref_slice %arg2[%c0_i32, %c0_i32_93, %c0_i32_94, %c0_i32_95] : memref<3x16x32x128xf32, #tpu.memory_space<vmem>> -> memref<1x16x32x128xf32, #tpu.memory_space<vmem>>
      %350 = tpu.memref_squeeze %349 : memref<1x16x32x128xf32, #tpu.memory_space<vmem>> -> memref<16x32x128xf32, #tpu.memory_space<vmem>>
      %351 = arith.index_cast %18 : i32 to index
      %c0_96 = arith.constant 0 : index
      %c0_97 = arith.constant 0 : index
      %352 = vector.load %350[%351, %c0_96, %c0_97] : memref<16x32x128xf32, #tpu.memory_space<vmem>>, vector<1x32x128xf32>
      %353 = vector.shape_cast %352 : vector<1x32x128xf32> to vector<32x128xf32>
      %354 = arith.mulf %333, %338 : vector<32x128xf32>
      %355 = arith.addf %353, %354 : vector<32x128xf32>
      %c0_i32_98 = arith.constant 0 : i32
      %c0_i32_99 = arith.constant 0 : i32
      %c0_i32_100 = arith.constant 0 : i32
      %356 = tpu.memref_slice %arg2[%c1_i32, %c0_i32_98, %c0_i32_99, %c0_i32_100] : memref<3x16x32x128xf32, #tpu.memory_space<vmem>> -> memref<1x16x32x128xf32, #tpu.memory_space<vmem>>
      %357 = tpu.memref_squeeze %356 : memref<1x16x32x128xf32, #tpu.memory_space<vmem>> -> memref<16x32x128xf32, #tpu.memory_space<vmem>>
      %358 = arith.index_cast %18 : i32 to index
      %c0_101 = arith.constant 0 : index
      %c0_102 = arith.constant 0 : index
      %359 = vector.load %357[%358, %c0_101, %c0_102] : memref<16x32x128xf32, #tpu.memory_space<vmem>>, vector<1x32x128xf32>
      %360 = vector.shape_cast %359 : vector<1x32x128xf32> to vector<32x128xf32>
      %361 = arith.mulf %333, %343 : vector<32x128xf32>
      %362 = arith.addf %360, %361 : vector<32x128xf32>
      %c0_i32_103 = arith.constant 0 : i32
      %c0_i32_104 = arith.constant 0 : i32
      %c0_i32_105 = arith.constant 0 : i32
      %363 = tpu.memref_slice %arg2[%c2_i32, %c0_i32_103, %c0_i32_104, %c0_i32_105] : memref<3x16x32x128xf32, #tpu.memory_space<vmem>> -> memref<1x16x32x128xf32, #tpu.memory_space<vmem>>
      %364 = tpu.memref_squeeze %363 : memref<1x16x32x128xf32, #tpu.memory_space<vmem>> -> memref<16x32x128xf32, #tpu.memory_space<vmem>>
      %365 = arith.index_cast %18 : i32 to index
      %c0_106 = arith.constant 0 : index
      %c0_107 = arith.constant 0 : index
      %366 = vector.load %364[%365, %c0_106, %c0_107] : memref<16x32x128xf32, #tpu.memory_space<vmem>>, vector<1x32x128xf32>
      %367 = vector.shape_cast %366 : vector<1x32x128xf32> to vector<32x128xf32>
      %368 = arith.mulf %333, %348 : vector<32x128xf32>
      %369 = arith.addf %367, %368 : vector<32x128xf32>
      %370 = vector.broadcast %4 : f32 to vector<32x128xf32>
      %371 = arith.mulf %370, %355 : vector<32x128xf32>
      %372 = vector.broadcast %5 : f32 to vector<32x128xf32>
      %373 = arith.mulf %372, %362 : vector<32x128xf32>
      %374 = arith.addf %371, %373 : vector<32x128xf32>
      %375 = vector.broadcast %6 : f32 to vector<32x128xf32>
      %376 = arith.mulf %375, %369 : vector<32x128xf32>
      %377 = arith.addf %374, %376 : vector<32x128xf32>
      %378 = vector.broadcast %13 : f32 to vector<32x128xf32>
      %379 = arith.addf %377, %378 : vector<32x128xf32>
      %380 = arith.negf %379 : vector<32x128xf32>
      %381 = math.exp %380 : vector<32x128xf32>
      %cst_108 = arith.constant 1.000000e+00 : f32
      %382 = vector.broadcast %cst_108 : f32 to vector<32x128xf32>
      %383 = arith.addf %382, %381 : vector<32x128xf32>
      %384 = arith.divf %382, %383 : vector<32x128xf32>
      %385 = vector.broadcast %7 : f32 to vector<32x128xf32>
      %386 = arith.mulf %385, %355 : vector<32x128xf32>
      %387 = vector.broadcast %8 : f32 to vector<32x128xf32>
      %388 = arith.mulf %387, %362 : vector<32x128xf32>
      %389 = arith.addf %386, %388 : vector<32x128xf32>
      %390 = vector.broadcast %9 : f32 to vector<32x128xf32>
      %391 = arith.mulf %390, %369 : vector<32x128xf32>
      %392 = arith.addf %389, %391 : vector<32x128xf32>
      %393 = vector.broadcast %14 : f32 to vector<32x128xf32>
      %394 = arith.addf %392, %393 : vector<32x128xf32>
      %395 = arith.negf %394 : vector<32x128xf32>
      %396 = math.exp %395 : vector<32x128xf32>
      %cst_109 = arith.constant 1.000000e+00 : f32
      %397 = vector.broadcast %cst_109 : f32 to vector<32x128xf32>
      %398 = arith.addf %397, %396 : vector<32x128xf32>
      %399 = arith.divf %397, %398 : vector<32x128xf32>
      %400 = vector.broadcast %10 : f32 to vector<32x128xf32>
      %401 = arith.mulf %400, %355 : vector<32x128xf32>
      %402 = vector.broadcast %11 : f32 to vector<32x128xf32>
      %403 = arith.mulf %402, %362 : vector<32x128xf32>
      %404 = arith.addf %401, %403 : vector<32x128xf32>
      %405 = vector.broadcast %12 : f32 to vector<32x128xf32>
      %406 = arith.mulf %405, %369 : vector<32x128xf32>
      %407 = arith.addf %404, %406 : vector<32x128xf32>
      %408 = vector.broadcast %15 : f32 to vector<32x128xf32>
      %409 = arith.addf %407, %408 : vector<32x128xf32>
      %410 = arith.negf %409 : vector<32x128xf32>
      %411 = math.exp %410 : vector<32x128xf32>
      %cst_110 = arith.constant 1.000000e+00 : f32
      %412 = vector.broadcast %cst_110 : f32 to vector<32x128xf32>
      %413 = arith.addf %412, %411 : vector<32x128xf32>
      %414 = arith.divf %412, %413 : vector<32x128xf32>
      %cst_111 = arith.constant 0.000000e+00 : f32
      %415 = vector.broadcast %cst_111 : f32 to vector<32x128xf32>
      %416 = arith.select %332, %384, %415 : vector<32x128xi1>, vector<32x128xf32>
      %c0_i32_112 = arith.constant 0 : i32
      %c0_i32_113 = arith.constant 0 : i32
      %c0_i32_114 = arith.constant 0 : i32
      %417 = tpu.memref_slice %arg4[%c0_i32_3, %c0_i32_112, %c0_i32_113, %c0_i32_114] : memref<3x16x32x128xf32, #tpu.memory_space<vmem>> -> memref<1x16x32x128xf32, #tpu.memory_space<vmem>>
      %418 = tpu.memref_squeeze %417 : memref<1x16x32x128xf32, #tpu.memory_space<vmem>> -> memref<16x32x128xf32, #tpu.memory_space<vmem>>
      %419 = arith.index_cast %18 : i32 to index
      %c0_115 = arith.constant 0 : index
      %c0_116 = arith.constant 0 : index
      %420 = vector.load %418[%419, %c0_115, %c0_116] : memref<16x32x128xf32, #tpu.memory_space<vmem>>, vector<1x32x128xf32>
      %421 = vector.shape_cast %420 : vector<1x32x128xf32> to vector<32x128xf32>
      %422 = vector.shape_cast %416 : vector<32x128xf32> to vector<1x32x128xf32>
      tpu.vector_store %418[%419, %c0_115, %c0_116], %422 {strides = array<i32>} : memref<16x32x128xf32, #tpu.memory_space<vmem>>, vector<1x32x128xf32>,
      %cst_117 = arith.constant 0.000000e+00 : f32
      %423 = vector.broadcast %cst_117 : f32 to vector<32x128xf32>
      %424 = arith.select %332, %399, %423 : vector<32x128xi1>, vector<32x128xf32>
      %c0_i32_118 = arith.constant 0 : i32
      %c0_i32_119 = arith.constant 0 : i32
      %c0_i32_120 = arith.constant 0 : i32
      %425 = tpu.memref_slice %arg4[%c1_i32_4, %c0_i32_118, %c0_i32_119, %c0_i32_120] : memref<3x16x32x128xf32, #tpu.memory_space<vmem>> -> memref<1x16x32x128xf32, #tpu.memory_space<vmem>>
      %426 = tpu.memref_squeeze %425 : memref<1x16x32x128xf32, #tpu.memory_space<vmem>> -> memref<16x32x128xf32, #tpu.memory_space<vmem>>
      %427 = arith.index_cast %18 : i32 to index
      %c0_121 = arith.constant 0 : index
      %c0_122 = arith.constant 0 : index
      %428 = vector.load %426[%427, %c0_121, %c0_122] : memref<16x32x128xf32, #tpu.memory_space<vmem>>, vector<1x32x128xf32>
      %429 = vector.shape_cast %428 : vector<1x32x128xf32> to vector<32x128xf32>
      %430 = vector.shape_cast %424 : vector<32x128xf32> to vector<1x32x128xf32>
      tpu.vector_store %426[%427, %c0_121, %c0_122], %430 {strides = array<i32>} : memref<16x32x128xf32, #tpu.memory_space<vmem>>, vector<1x32x128xf32>,
      %cst_123 = arith.constant 0.000000e+00 : f32
      %431 = vector.broadcast %cst_123 : f32 to vector<32x128xf32>
      %432 = arith.select %332, %414, %431 : vector<32x128xi1>, vector<32x128xf32>
      %c0_i32_124 = arith.constant 0 : i32
      %c0_i32_125 = arith.constant 0 : i32
      %c0_i32_126 = arith.constant 0 : i32
      %433 = tpu.memref_slice %arg4[%c2_i32_5, %c0_i32_124, %c0_i32_125, %c0_i32_126] : memref<3x16x32x128xf32, #tpu.memory_space<vmem>> -> memref<1x16x32x128xf32, #tpu.memory_space<vmem>>
      %434 = tpu.memref_squeeze %433 : memref<1x16x32x128xf32, #tpu.memory_space<vmem>> -> memref<16x32x128xf32, #tpu.memory_space<vmem>>
      %435 = arith.index_cast %18 : i32 to index
      %c0_127 = arith.constant 0 : index
      %c0_128 = arith.constant 0 : index
      %436 = vector.load %434[%435, %c0_127, %c0_128] : memref<16x32x128xf32, #tpu.memory_space<vmem>>, vector<1x32x128xf32>
      %437 = vector.shape_cast %436 : vector<1x32x128xf32> to vector<32x128xf32>
      %438 = vector.shape_cast %432 : vector<32x128xf32> to vector<1x32x128xf32>
      tpu.vector_store %434[%435, %c0_127, %c0_128], %438 {strides = array<i32>} : memref<16x32x128xf32, #tpu.memory_space<vmem>>, vector<1x32x128xf32>,
    }
    %c16_i32_8 = arith.constant 16 : i32
    return
  }
  func.func @transform_0(%arg0: i32) -> i32 {
    %c0_i32 = arith.constant 0 : i32
    %c0_i32_0 = arith.constant 0 : i32
    return %c0_i32 : i32
  }
  func.func @transform_1(%arg0: i32) -> (i32, i32, i32, i32) {
    %c0_i32 = arith.constant 0 : i32
    %c0_i32_0 = arith.constant 0 : i32
    %c0_i32_1 = arith.constant 0 : i32
    %c0_i32_2 = arith.constant 0 : i32
    return %c0_i32, %arg0, %c0_i32_0, %c0_i32_1 : i32, i32, i32, i32
  }
  func.func @transform_2(%arg0: i32) -> (i32, i32, i32, i32) {
    %c0_i32 = arith.constant 0 : i32
    %c0_i32_0 = arith.constant 0 : i32
    %c0_i32_1 = arith.constant 0 : i32
    %c0_i32_2 = arith.constant 0 : i32
    return %c0_i32, %arg0, %c0_i32_0, %c0_i32_1 : i32, i32, i32, i32
  }
  func.func @transform_3(%arg0: i32) -> (i32, i32, i32, i32) {
    %c0_i32 = arith.constant 0 : i32
    %c0_i32_0 = arith.constant 0 : i32
    %c0_i32_1 = arith.constant 0 : i32
    %c0_i32_2 = arith.constant 0 : i32
    return %c0_i32, %arg0, %c0_i32_0, %c0_i32_1 : i32, i32, i32, i32
  }
}

</mosaic_0001>

<llo_original>
// kernel: sphere_tracing_render.1
$region0: #{sphere_tracing_render.1}
  #allocation0 [shape = 'u32[]', space=smem, size = 0x4, offset = 0x4, fixed_abs, tag = 'smem constant byte address 0x4 - core index']
  #allocation1 [shape = 'u32[144,128]{1,0:T(1,128)}', space=vmem, size = 0x12000, scoped, tag = 'internal scratch']
  %s0 = inlined_call_operand.vmem [shape: f32[16], index: 0, kind: input, shape index: {}]
  %s1 = inlined_call_operand.vmem [shape: f32[3,32,32,128], index: 1, kind: input, shape index: {}]
  %s2 = inlined_call_operand.vmem [shape: f32[3,32,32,128], index: 2, kind: input, shape index: {}]
  %s3 = inlined_call_operand.vmem [shape: f32[3,32,32,128], index: 3, kind: output, shape index: {}]
  %s4 = sld [smem:[#allocation0]]
  $region166: #{sphere_tracing_render.1} parent=0
    _
  %s6 = ssub.s32 1, %s4
  %s7 = scalar_select 0, %s6, %s4
  $region1: #{sphere_tracing_render.1} parent=0
    #allocation2 [shape = 'u8[512]{0}', space=smem, size = 0x200, scoped, tag = 'input window, operand 0, single buffered']
    #allocation3 [shape = 's32[2]{0}', space=sflag, size = 0x8, scoped, tag = 'scoped memory for sphere_tracing_render.1']
    #allocation4 [shape = 'u8[1572864]{0}', space=vmem, size = 0x180000, scoped, tag = 'input window, operand 1']
    #allocation5 [shape = 'u8[1572864]{0}', space=vmem, size = 0x180000, scoped, tag = 'input window, operand 2']
    #allocation6 [shape = 'u8[1572864]{0}', space=vmem, size = 0x180000, scoped, tag = 'output window, operand 0']
    %8 = vsyncpa [#allocation3], 0
    loop: start=0, step=1, limit=4
    $region2: #{sphere_tracing_render.1} parent=1 // loop_pre_header
      _
    $region3: #{sphere_tracing_render.1} parent=1 // loop_header
      %s10 = sphi 0, %s14
      %p11 = scmp.ge.s32.totalorder %s10, 4
      %s18 = sphi 0, %s18
      %s20 = sphi 0, %s18
      %s21 = sphi 0, %s20
      %s35 = sphi 0, %s21
      %s41 = sphi 0, %s43
      %s44 = sphi 0, %s41
      %s45 = sphi 0, %s44
      %s61 = sphi 0, %s45
      %s67 = sphi 0, %s69
      %s70 = sphi 0, %s67
      %s71 = sphi 0, %s70
      %s87 = sphi 0, %s71
      %s93 = sphi 0, %s95
      %s96 = sphi 0, %s93
      %s97 = sphi 0, %s96
      %s113 = sphi 0, %s97
    $region4: #{sphere_tracing_render.1} parent=1 // loop_header_branch
      %13 = sbr.rel (%p11) target = $region8
    $region5: #{sphere_tracing_render.1} parent=1 // loop_body
      %s15 = ssub.s32 %s10, 1
      %s16 = ssub.s32 %s10, 2
      %s17 = sadd.s32 %s10, 1
      %s19 = sadd.s32 %s18, 1
      %p22 = scmp.eq.s32.totalorder %s10, 1
      %p23 = scmp.ne.s32.totalorder %s18, %s20
      %p24 = scmp.eq.s32.totalorder %s10, 0
      %p25 = por %p23, %p24
      %p26 = scmp.ne.s32.totalorder %s18, %s20
      %p27 = scmp.eq.s32.totalorder %s15, 1
      %p28 = por %p26, %p27
      %p29 = scmp.ne.s32.totalorder %s20, %s21
      %p30 = scmp.eq.s32.totalorder %s15, 0
      %p31 = por %p29, %p30
      %p32 = scmp.ne.s32.totalorder %s20, %s21
      %p33 = scmp.eq.s32.totalorder %s16, 1
      %p34 = por %p32, %p33
      %p36 = scmp.ne.s32.totalorder %s21, %s35
      %p37 = scmp.eq.s32.totalorder %s16, 0
      %p38 = por %p36, %p37
      %s39 = ssub.s32 %s10, %s17
      %p40 = scmp.eq.s32.totalorder %s39, 0
      %s42 = sadd.s32 %s41, 1
      %s43 = scalar_select %p40, %s41, %s42
      %p46 = pneg %p40
      %p47 = scmp.eq.s32.totalorder %s10, 1
      %p48 = por %p46, %p47
      %p49 = scmp.ne.s32.totalorder %s41, %s44
      %p50 = scmp.eq.s32.totalorder %s10, 0
      %p51 = por %p49, %p50
      %p52 = scmp.ne.s32.totalorder %s41, %s44
      %p53 = scmp.eq.s32.totalorder %s15, 1
      %p54 = por %p52, %p53
      %p55 = scmp.ne.s32.totalorder %s44, %s45
      %p56 = scmp.eq.s32.totalorder %s15, 0
      %p57 = por %p55, %p56
      %p58 = scmp.ne.s32.totalorder %s44, %s45
      %p59 = scmp.eq.s32.totalorder %s16, 1
      %p60 = por %p58, %p59
      %p62 = scmp.ne.s32.totalorder %s45, %s61
      %p63 = scmp.eq.s32.totalorder %s16, 0
      %p64 = por %p62, %p63
      %s65 = ssub.s32 %s10, %s17
      %p66 = scmp.eq.s32.totalorder %s65, 0
      %s68 = sadd.s32 %s67, 1
      %s69 = scalar_select %p66, %s67, %s68
      %p72 = pneg %p66
      %p73 = scmp.eq.s32.totalorder %s10, 1
      %p74 = por %p72, %p73
      %p75 = scmp.ne.s32.totalorder %s67, %s70
      %p76 = scmp.eq.s32.totalorder %s10, 0
      %p77 = por %p75, %p76
      %p78 = scmp.ne.s32.totalorder %s67, %s70
      %p79 = scmp.eq.s32.totalorder %s15, 1
      %p80 = por %p78, %p79
      %p81 = scmp.ne.s32.totalorder %s70, %s71
      %p82 = scmp.eq.s32.totalorder %s15, 0
      %p83 = por %p81, %p82
      %p84 = scmp.ne.s32.totalorder %s70, %s71
      %p85 = scmp.eq.s32.totalorder %s16, 1
      %p86 = por %p84, %p85
      %p88 = scmp.ne.s32.totalorder %s71, %s87
      %p89 = scmp.eq.s32.totalorder %s16, 0
      %p90 = por %p88, %p89
      %s91 = ssub.s32 %s10, %s17
      %p92 = scmp.eq.s32.totalorder %s91, 0
      %s94 = sadd.s32 %s93, 1
      %s95 = scalar_select %p92, %s93, %s94
      %p98 = pneg %p92
      %p99 = scmp.eq.s32.totalorder %s10, 1
      %p100 = por %p98, %p99
      %p101 = scmp.ne.s32.totalorder %s93, %s96
      %p102 = scmp.eq.s32.totalorder %s10, 0
      %p103 = por %p101, %p102
      %p104 = scmp.ne.s32.totalorder %s93, %s96
      %p105 = scmp.eq.s32.totalorder %s15, 1
      %p106 = por %p104, %p105
      %p107 = scmp.ne.s32.totalorder %s96, %s97
      %p108 = scmp.eq.s32.totalorder %s15, 0
      %p109 = por %p107, %p108
      %p110 = scmp.ne.s32.totalorder %s96, %s97
      %p111 = scmp.eq.s32.totalorder %s16, 1
      %p112 = por %p110, %p111
      %p114 = scmp.ne.s32.totalorder %s97, %s113
      %p115 = scmp.eq.s32.totalorder %s16, 0
      %p116 = por %p114, %p115
      %p117 = scmp.le.s32.totalorder 1, %s10
      %p118 = scmp.lt.s32.totalorder %s10, 3
      %p119 = pnand %p117, %p118
      %p120 = pneg %p119
      // Predicated region
      $region9: #{sphere_tracing_render.1} parent=5 // pred_check
        _
      $region10: #{sphere_tracing_render.1} parent=5 // pred_check_branch
        %122 = sbr.rel (%p119) target = $region12
      $region11: #{sphere_tracing_render.1} parent=5 // pred_region
        %s123 = ssub.s32 %s10, 1
        // Predicated region
        $region13: #{sphere_tracing_render.1} parent=11 // pred_check
          %p124 = pneg %p31
        $region14: #{sphere_tracing_render.1} parent=11 // pred_check_branch
          %126 = sbr.rel (%p124) target = $region16
        $region15: #{sphere_tracing_render.1} parent=11 // pred_region
          %s128 = ssub.s32 16, 16
          %129 = vsyncadd [#allocation3], %s128
          %s131 = sshll.u32 %s0, 4
          %s132 = int_to_ptr.vmem [resolvable:$true] %s131
          %134 = dma.vmem_to_smem %s132, 16, [#allocation2], [#allocation3]
        $region16: #{sphere_tracing_render.1} parent=11 // pred_fallthru
          _
      $region12: #{sphere_tracing_render.1} parent=5 // pred_fallthru
        _
      %p135 = scmp.lt.s32.totalorder %s10, 2
      // Predicated region
      $region17: #{sphere_tracing_render.1} parent=5 // pred_check
        %p136 = pneg %p135
      $region18: #{sphere_tracing_render.1} parent=5 // pred_check_branch
        %138 = sbr.rel (%p136) target = $region20
      $region19: #{sphere_tracing_render.1} parent=5 // pred_region
        // Predicated region
        $region21: #{sphere_tracing_render.1} parent=19 // pred_check
          %p139 = pneg %p51
        $region22: #{sphere_tracing_render.1} parent=19 // pred_check_branch
          %141 = sbr.rel (%p139) target = $region24
        $region23: #{sphere_tracing_render.1} parent=19 // pred_region
          %s142 = sand.u32 %s41, 1
          %s143 = sand.u32 %s41, 1
          %s144 = smul.addr %s143, 1536
          %s145 = scalar_lea.vmem [#allocation4], %s144
          %s146 = smul.u32 16, %s10
          %s147 = smul.addr %s146, 4
          %s148 = smul.addr %s147, 8
          %s149 = scalar_lea.vmem %s1, %s148
          // Predicated region
          $region25: #{sphere_tracing_render.1} parent=23 // pred_check
            _
          $region26: #{sphere_tracing_render.1} parent=23 // pred_check_branch
            %151 = sbr.rel (0) target = $region28
          $region27: #{sphere_tracing_render.1} parent=23 // pred_region
            // Predicated region
            $region29: #{sphere_tracing_render.1} parent=27 // pred_check
              _
            $region30: #{sphere_tracing_render.1} parent=27 // pred_check_branch
              %153 = sbr.rel (0) target = $region32
            $region31: #{sphere_tracing_render.1} parent=27 // pred_region
              // Predicated region
              $region44: #{sphere_tracing_render.1} parent=31 // pred_check
                _
              $region45: #{sphere_tracing_render.1} parent=31 // pred_check_branch
                %551 = sbr.rel (0) target = $region47
              $region46: #{sphere_tracing_render.1} parent=31 // pred_region
                loop: start=0, step=1, limit=1
                $region48: #{sphere_tracing_render.1} parent=46 // loop_pre_header
                  _
                $region49: #{sphere_tracing_render.1} parent=46 // loop_header
                  %s553 = sphi 0, %s557
                  %p554 = scmp.ge.s32.totalorder %s553, 1
                  %s558 = sphi %s149, %s149
                  %s559 = sphi %s145, %s145
                $region50: #{sphere_tracing_render.1} parent=46 // loop_header_branch
                  %556 = sbr.rel (%p554) target = $region54
                $region51: #{sphere_tracing_render.1} parent=46 // loop_body
                  %v560 = vld [vmem:[%s558] sm:$0xff]
                  %561 = vst [vmem:[%s559] sm:$0xff] %v560
                  %v562 = vld [vmem:[%s558 + $0x8] sm:$0xff]
                  %563 = vst [vmem:[%s559 + $0x8] sm:$0xff] %v562
                  %v564 = vld [vmem:[%s558 + $0x10] sm:$0xff]
                  %565 = vst [vmem:[%s559 + $0x10] sm:$0xff] %v564
                  %v566 = vld [vmem:[%s558 + $0x18] sm:$0xff]
                  %567 = vst [vmem:[%s559 + $0x18] sm:$0xff] %v566
                  %v568 = vld [vmem:[%s558 + $0x20] sm:$0xff]
                  %569 = vst [vmem:[%s559 + $0x20] sm:$0xff] %v568
                  %v570 = vld [vmem:[%s558 + $0x28] sm:$0xff]
                  %571 = vst [vmem:[%s559 + $0x28] sm:$0xff] %v570
                  %v572 = vld [vmem:[%s558 + $0x30] sm:$0xff]
                  %573 = vst [vmem:[%s559 + $0x30] sm:$0xff] %v572
                  %v574 = vld [vmem:[%s558 + $0x38] sm:$0xff]
                  %575 = vst [vmem:[%s559 + $0x38] sm:$0xff] %v574
                  %v576 = vld [vmem:[%s558 + $0x40] sm:$0xff]
                  %577 = vst [vmem:[%s559 + $0x40] sm:$0xff] %v576
                  %v578 = vld [vmem:[%s558 + $0x48] sm:$0xff]
                  %579 = vst [vmem:[%s559 + $0x48] sm:$0xff] %v578
                  %v580 = vld [vmem:[%s558 + $0x50] sm:$0xff]
                  %581 = vst [vmem:[%s559 + $0x50] sm:$0xff] %v580
                  %v582 = vld [vmem:[%s558 + $0x58] sm:$0xff]
                  %583 = vst [vmem:[%s559 + $0x58] sm:$0xff] %v582
                  %v584 = vld [vmem:[%s558 + $0x60] sm:$0xff]
                  %585 = vst [vmem:[%s559 + $0x60] sm:$0xff] %v584
                  %v586 = vld [vmem:[%s558 + $0x68] sm:$0xff]
                  %587 = vst [vmem:[%s559 + $0x68] sm:$0xff] %v586
                  %v588 = vld [vmem:[%s558 + $0x70] sm:$0xff]
                  %589 = vst [vmem:[%s559 + $0x70] sm:$0xff] %v588
                  %v590 = vld [vmem:[%s558 + $0x78] sm:$0xff]
                  %591 = vst [vmem:[%s559 + $0x78] sm:$0xff] %v590
                  %v592 = vld [vmem:[%s558 + $0x80] sm:$0xff]
                  %593 = vst [vmem:[%s559 + $0x80] sm:$0xff] %v592
                  %v594 = vld [vmem:[%s558 + $0x88] sm:$0xff]
                  %595 = vst [vmem:[%s559 + $0x88] sm:$0xff] %v594
                  %v596 = vld [vmem:[%s558 + $0x90] sm:$0xff]
                  %597 = vst [vmem:[%s559 + $0x90] sm:$0xff] %v596
                  %v598 = vld [vmem:[%s558 + $0x98] sm:$0xff]
                  %599 = vst [vmem:[%s559 + $0x98] sm:$0xff] %v598
                  %v600 = vld [vmem:[%s558 + $0xa0] sm:$0xff]
                  %601 = vst [vmem:[%s559 + $0xa0] sm:$0xff] %v600
                  %v602 = vld [vmem:[%s558 + $0xa8] sm:$0xff]
                  %603 = vst [vmem:[%s559 + $0xa8] sm:$0xff] %v602
                  %v604 = vld [vmem:[%s558 + $0xb0] sm:$0xff]
                  %605 = vst [vmem:[%s559 + $0xb0] sm:$0xff] %v604
                  %v606 = vld [vmem:[%s558 + $0xb8] sm:$0xff]
                  %607 = vst [vmem:[%s559 + $0xb8] sm:$0xff] %v606
                  %v608 = vld [vmem:[%s558 + $0xc0] sm:$0xff]
                  %609 = vst [vmem:[%s559 + $0xc0] sm:$0xff] %v608
                  %v610 = vld [vmem:[%s558 + $0xc8] sm:$0xff]
                  %611 = vst [vmem:[%s559 + $0xc8] sm:$0xff] %v610
                  %v612 = vld [vmem:[%s558 + $0xd0] sm:$0xff]
                  %613 = vst [vmem:[%s559 + $0xd0] sm:$0xff] %v612
                  %v614 = vld [vmem:[%s558 + $0xd8] sm:$0xff]
                  %615 = vst [vmem:[%s559 + $0xd8] sm:$0xff] %v614
                  %v616 = vld [vmem:[%s558 + $0xe0] sm:$0xff]
                  %617 = vst [vmem:[%s559 + $0xe0] sm:$0xff] %v616
                  %v618 = vld [vmem:[%s558 + $0xe8] sm:$0xff]
                  %619 = vst [vmem:[%s559 + $0xe8] sm:$0xff] %v618
                  %v620 = vld [vmem:[%s558 + $0xf0] sm:$0xff]
                  %621 = vst [vmem:[%s559 + $0xf0] sm:$0xff] %v620
                  %v622 = vld [vmem:[%s558 + $0xf8] sm:$0xff]
                  %623 = vst [vmem:[%s559 + $0xf8] sm:$0xff] %v622
                  %v624 = vld [vmem:[%s558 + $0x100] sm:$0xff]
                  %625 = vst [vmem:[%s559 + $0x100] sm:$0xff] %v624
                  %v626 = vld [vmem:[%s558 + $0x108] sm:$0xff]
                  %627 = vst [vmem:[%s559 + $0x108] sm:$0xff] %v626
                  %v628 = vld [vmem:[%s558 + $0x110] sm:$0xff]
                  %629 = vst [vmem:[%s559 + $0x110] sm:$0xff] %v628
                  %v630 = vld [vmem:[%s558 + $0x118] sm:$0xff]
                  %631 = vst [vmem:[%s559 + $0x118] sm:$0xff] %v630
                  %v632 = vld [vmem:[%s558 + $0x120] sm:$0xff]
                  %633 = vst [vmem:[%s559 + $0x120] sm:$0xff] %v632
                  %v634 = vld [vmem:[%s558 + $0x128] sm:$0xff]
                  %635 = vst [vmem:[%s559 + $0x128] sm:$0xff] %v634
                  %v636 = vld [vmem:[%s558 + $0x130] sm:$0xff]
                  %637 = vst [vmem:[%s559 + $0x130] sm:$0xff] %v636
                  %v638 = vld [vmem:[%s558 + $0x138] sm:$0xff]
                  %639 = vst [vmem:[%s559 + $0x138] sm:$0xff] %v638
                  %v640 = vld [vmem:[%s558 + $0x140] sm:$0xff]
                  %641 = vst [vmem:[%s559 + $0x140] sm:$0xff] %v640
                  %v642 = vld [vmem:[%s558 + $0x148] sm:$0xff]
                  %643 = vst [vmem:[%s559 + $0x148] sm:$0xff] %v642
                  %v644 = vld [vmem:[%s558 + $0x150] sm:$0xff]
                  %645 = vst [vmem:[%s559 + $0x150] sm:$0xff] %v644
                  %v646 = vld [vmem:[%s558 + $0x158] sm:$0xff]
                  %647 = vst [vmem:[%s559 + $0x158] sm:$0xff] %v646
                  %v648 = vld [vmem:[%s558 + $0x160] sm:$0xff]
                  %649 = vst [vmem:[%s559 + $0x160] sm:$0xff] %v648
                  %v650 = vld [vmem:[%s558 + $0x168] sm:$0xff]
                  %651 = vst [vmem:[%s559 + $0x168] sm:$0xff] %v650
                  %v652 = vld [vmem:[%s558 + $0x170] sm:$0xff]
                  %653 = vst [vmem:[%s559 + $0x170] sm:$0xff] %v652
                  %v654 = vld [vmem:[%s558 + $0x178] sm:$0xff]
                  %655 = vst [vmem:[%s559 + $0x178] sm:$0xff] %v654
                  %v656 = vld [vmem:[%s558 + $0x180] sm:$0xff]
                  %657 = vst [vmem:[%s559 + $0x180] sm:$0xff] %v656
                  %v658 = vld [vmem:[%s558 + $0x188] sm:$0xff]
                  %659 = vst [vmem:[%s559 + $0x188] sm:$0xff] %v658
                  %v660 = vld [vmem:[%s558 + $0x190] sm:$0xff]
                  %661 = vst [vmem:[%s559 + $0x190] sm:$0xff] %v660
                  %v662 = vld [vmem:[%s558 + $0x198] sm:$0xff]
                  %663 = vst [vmem:[%s559 + $0x198] sm:$0xff] %v662
                  %v664 = vld [vmem:[%s558 + $0x1a0] sm:$0xff]
                  %665 = vst [vmem:[%s559 + $0x1a0] sm:$0xff] %v664
                  %v666 = vld [vmem:[%s558 + $0x1a8] sm:$0xff]
                  %667 = vst [vmem:[%s559 + $0x1a8] sm:$0xff] %v666
                  %v668 = vld [vmem:[%s558 + $0x1b0] sm:$0xff]
                  %669 = vst [vmem:[%s559 + $0x1b0] sm:$0xff] %v668
                  %v670 = vld [vmem:[%s558 + $0x1b8] sm:$0xff]
                  %671 = vst [vmem:[%s559 + $0x1b8] sm:$0xff] %v670
                  %v672 = vld [vmem:[%s558 + $0x1c0] sm:$0xff]
                  %673 = vst [vmem:[%s559 + $0x1c0] sm:$0xff] %v672
                  %v674 = vld [vmem:[%s558 + $0x1c8] sm:$0xff]
                  %675 = vst [vmem:[%s559 + $0x1c8] sm:$0xff] %v674
                  %v676 = vld [vmem:[%s558 + $0x1d0] sm:$0xff]
                  %677 = vst [vmem:[%s559 + $0x1d0] sm:$0xff] %v676
                  %v678 = vld [vmem:[%s558 + $0x1d8] sm:$0xff]
                  %679 = vst [vmem:[%s559 + $0x1d8] sm:$0xff] %v678
                  %v680 = vld [vmem:[%s558 + $0x1e0] sm:$0xff]
                  %681 = vst [vmem:[%s559 + $0x1e0] sm:$0xff] %v680
                  %v682 = vld [vmem:[%s558 + $0x1e8] sm:$0xff]
                  %683 = vst [vmem:[%s559 + $0x1e8] sm:$0xff] %v682
                  %v684 = vld [vmem:[%s558 + $0x1f0] sm:$0xff]
                  %685 = vst [vmem:[%s559 + $0x1f0] sm:$0xff] %v684
                  %v686 = vld [vmem:[%s558 + $0x1f8] sm:$0xff]
                  %687 = vst [vmem:[%s559 + $0x1f8] sm:$0xff] %v686
                  %v688 = vld [vmem:[%s558 + $0x400] sm:$0xff]
                  %689 = vst [vmem:[%s559 + $0x200] sm:$0xff] %v688
                  %v690 = vld [vmem:[%s558 + $0x408] sm:$0xff]
                  %691 = vst [vmem:[%s559 + $0x208] sm:$0xff] %v690
                  %v692 = vld [vmem:[%s558 + $0x410] sm:$0xff]
                  %693 = vst [vmem:[%s559 + $0x210] sm:$0xff] %v692
                  %v694 = vld [vmem:[%s558 + $0x418] sm:$0xff]
                  %695 = vst [vmem:[%s559 + $0x218] sm:$0xff] %v694
                  %v696 = vld [vmem:[%s558 + $0x420] sm:$0xff]
                  %697 = vst [vmem:[%s559 + $0x220] sm:$0xff] %v696
                  %v698 = vld [vmem:[%s558 + $0x428] sm:$0xff]
                  %699 = vst [vmem:[%s559 + $0x228] sm:$0xff] %v698
                  %v700 = vld [vmem:[%s558 + $0x430] sm:$0xff]
                  %701 = vst [vmem:[%s559 + $0x230] sm:$0xff] %v700
                  %v702 = vld [vmem:[%s558 + $0x438] sm:$0xff]
                  %703 = vst [vmem:[%s559 + $0x238] sm:$0xff] %v702
                  %v704 = vld [vmem:[%s558 + $0x440] sm:$0xff]
                  %705 = vst [vmem:[%s559 + $0x240] sm:$0xff] %v704
                  %v706 = vld [vmem:[%s558 + $0x448] sm:$0xff]
                  %707 = vst [vmem:[%s559 + $0x248] sm:$0xff] %v706
                  %v708 = vld [vmem:[%s558 + $0x450] sm:$0xff]
                  %709 = vst [vmem:[%s559 + $0x250] sm:$0xff] %v708
                  %v710 = vld [vmem:[%s558 + $0x458] sm:$0xff]
                  %711 = vst [vmem:[%s559 + $0x258] sm:$0xff] %v710
                  %v712 = vld [vmem:[%s558 + $0x460] sm:$0xff]
                  %713 = vst [vmem:[%s559 + $0x260] sm:$0xff] %v712
                  %v714 = vld [vmem:[%s558 + $0x468] sm:$0xff]
                  %715 = vst [vmem:[%s559 + $0x268] sm:$0xff] %v714
                  %v716 = vld [vmem:[%s558 + $0x470] sm:$0xff]
                  %717 = vst [vmem:[%s559 + $0x270] sm:$0xff] %v716
                  %v718 = vld [vmem:[%s558 + $0x478] sm:$0xff]
                  %719 = vst [vmem:[%s559 + $0x278] sm:$0xff] %v718
                  %v720 = vld [vmem:[%s558 + $0x480] sm:$0xff]
                  %721 = vst [vmem:[%s559 + $0x280] sm:$0xff] %v720
                  %v722 = vld [vmem:[%s558 + $0x488] sm:$0xff]
                  %723 = vst [vmem:[%s559 + $0x288] sm:$0xff] %v722
                  %v724 = vld [vmem:[%s558 + $0x490] sm:$0xff]
                  %725 = vst [vmem:[%s559 + $0x290] sm:$0xff] %v724
                  %v726 = vld [vmem:[%s558 + $0x498] sm:$0xff]
                  %727 = vst [vmem:[%s559 + $0x298] sm:$0xff] %v726
                  %v728 = vld [vmem:[%s558 + $0x4a0] sm:$0xff]
                  %729 = vst [vmem:[%s559 + $0x2a0] sm:$0xff] %v728
                  %v730 = vld [vmem:[%s558 + $0x4a8] sm:$0xff]
                  %731 = vst [vmem:[%s559 + $0x2a8] sm:$0xff] %v730
                  %v732 = vld [vmem:[%s558 + $0x4b0] sm:$0xff]
                  %733 = vst [vmem:[%s559 + $0x2b0] sm:$0xff] %v732
                  %v734 = vld [vmem:[%s558 + $0x4b8] sm:$0xff]
                  %735 = vst [vmem:[%s559 + $0x2b8] sm:$0xff] %v734
                  %v736 = vld [vmem:[%s558 + $0x4c0] sm:$0xff]
                  %737 = vst [vmem:[%s559 + $0x2c0] sm:$0xff] %v736
                  %v738 = vld [vmem:[%s558 + $0x4c8] sm:$0xff]
                  %739 = vst [vmem:[%s559 + $0x2c8] sm:$0xff] %v738
                  %v740 = vld [vmem:[%s558 + $0x4d0] sm:$0xff]
                  %741 = vst [vmem:[%s559 + $0x2d0] sm:$0xff] %v740
                  %v742 = vld [vmem:[%s558 + $0x4d8] sm:$0xff]
                  %743 = vst [vmem:[%s559 + $0x2d8] sm:$0xff] %v742
                  %v744 = vld [vmem:[%s558 + $0x4e0] sm:$0xff]
                  %745 = vst [vmem:[%s559 + $0x2e0] sm:$0xff] %v744
                  %v746 = vld [vmem:[%s558 + $0x4e8] sm:$0xff]
                  %747 = vst [vmem:[%s559 + $0x2e8] sm:$0xff] %v746
                  %v748 = vld [vmem:[%s558 + $0x4f0] sm:$0xff]
                  %749 = vst [vmem:[%s559 + $0x2f0] sm:$0xff] %v748
                  %v750 = vld [vmem:[%s558 + $0x4f8] sm:$0xff]
                  %751 = vst [vmem:[%s559 + $0x2f8] sm:$0xff] %v750
                  %v752 = vld [vmem:[%s558 + $0x500] sm:$0xff]
                  %753 = vst [vmem:[%s559 + $0x300] sm:$0xff] %v752
                  %v754 = vld [vmem:[%s558 + $0x508] sm:$0xff]
                  %755 = vst [vmem:[%s559 + $0x308] sm:$0xff] %v754
                  %v756 = vld [vmem:[%s558 + $0x510] sm:$0xff]
                  %757 = vst [vmem:[%s559 + $0x310] sm:$0xff] %v756
                  %v758 = vld [vmem:[%s558 + $0x518] sm:$0xff]
                  %759 = vst [vmem:[%s559 + $0x318] sm:$0xff] %v758
                  %v760 = vld [vmem:[%s558 + $0x520] sm:$0xff]
                  %761 = vst [vmem:[%s559 + $0x320] sm:$0xff] %v760
                  %v762 = vld [vmem:[%s558 + $0x528] sm:$0xff]
                  %763 = vst [vmem:[%s559 + $0x328] sm:$0xff] %v762
                  %v764 = vld [vmem:[%s558 + $0x530] sm:$0xff]
                  %765 = vst [vmem:[%s559 + $0x330] sm:$0xff] %v764
                  %v766 = vld [vmem:[%s558 + $0x538] sm:$0xff]
                  %767 = vst [vmem:[%s559 + $0x338] sm:$0xff] %v766
                  %v768 = vld [vmem:[%s558 + $0x540] sm:$0xff]
                  %769 = vst [vmem:[%s559 + $0x340] sm:$0xff] %v768
                  %v770 = vld [vmem:[%s558 + $0x548] sm:$0xff]
                  %771 = vst [vmem:[%s559 + $0x348] sm:$0xff] %v770
                  %v772 = vld [vmem:[%s558 + $0x550] sm:$0xff]
                  %773 = vst [vmem:[%s559 + $0x350] sm:$0xff] %v772
                  %v774 = vld [vmem:[%s558 + $0x558] sm:$0xff]
                  %775 = vst [vmem:[%s559 + $0x358] sm:$0xff] %v774
                  %v776 = vld [vmem:[%s558 + $0x560] sm:$0xff]
                  %777 = vst [vmem:[%s559 + $0x360] sm:$0xff] %v776
                  %v778 = vld [vmem:[%s558 + $0x568] sm:$0xff]
                  %779 = vst [vmem:[%s559 + $0x368] sm:$0xff] %v778
                  %v780 = vld [vmem:[%s558 + $0x570] sm:$0xff]
                  %781 = vst [vmem:[%s559 + $0x370] sm:$0xff] %v780
                  %v782 = vld [vmem:[%s558 + $0x578] sm:$0xff]
                  %783 = vst [vmem:[%s559 + $0x378] sm:$0xff] %v782
                  %v784 = vld [vmem:[%s558 + $0x580] sm:$0xff]
                  %785 = vst [vmem:[%s559 + $0x380] sm:$0xff] %v784
                  %v786 = vld [vmem:[%s558 + $0x588] sm:$0xff]
                  %787 = vst [vmem:[%s559 + $0x388] sm:$0xff] %v786
                  %v788 = vld [vmem:[%s558 + $0x590] sm:$0xff]
                  %789 = vst [vmem:[%s559 + $0x390] sm:$0xff] %v788
                  %v790 = vld [vmem:[%s558 + $0x598] sm:$0xff]
                  %791 = vst [vmem:[%s559 + $0x398] sm:$0xff] %v790
                  %v792 = vld [vmem:[%s558 + $0x5a0] sm:$0xff]
                  %793 = vst [vmem:[%s559 + $0x3a0] sm:$0xff] %v792
                  %v794 = vld [vmem:[%s558 + $0x5a8] sm:$0xff]
                  %795 = vst [vmem:[%s559 + $0x3a8] sm:$0xff] %v794
                  %v796 = vld [vmem:[%s558 + $0x5b0] sm:$0xff]
                  %797 = vst [vmem:[%s559 + $0x3b0] sm:$0xff] %v796
                  %v798 = vld [vmem:[%s558 + $0x5b8] sm:$0xff]
                  %799 = vst [vmem:[%s559 + $0x3b8] sm:$0xff] %v798
                  %v800 = vld [vmem:[%s558 + $0x5c0] sm:$0xff]
                  %801 = vst [vmem:[%s559 + $0x3c0] sm:$0xff] %v800
                  %v802 = vld [vmem:[%s558 + $0x5c8] sm:$0xff]
                  %803 = vst [vmem:[%s559 + $0x3c8] sm:$0xff] %v802
                  %v804 = vld [vmem:[%s558 + $0x5d0] sm:$0xff]
                  %805 = vst [vmem:[%s559 + $0x3d0] sm:$0xff] %v804
                  %v806 = vld [vmem:[%s558 + $0x5d8] sm:$0xff]
                  %807 = vst [vmem:[%s559 + $0x3d8] sm:$0xff] %v806
                  %v808 = vld [vmem:[%s558 + $0x5e0] sm:$0xff]
                  %809 = vst [vmem:[%s559 + $0x3e0] sm:$0xff] %v808
                  %v810 = vld [vmem:[%s558 + $0x5e8] sm:$0xff]
                  %811 = vst [vmem:[%s559 + $0x3e8] sm:$0xff] %v810
                  %v812 = vld [vmem:[%s558 + $0x5f0] sm:$0xff]
                  %813 = vst [vmem:[%s559 + $0x3f0] sm:$0xff] %v812
                  %v814 = vld [vmem:[%s558 + $0x5f8] sm:$0xff]
                  %815 = vst [vmem:[%s559 + $0x3f8] sm:$0xff] %v814
                  %v816 = vld [vmem:[%s558 + $0x800] sm:$0xff]
                  %817 = vst [vmem:[%s559 + $0x400] sm:$0xff] %v816
                  %v818 = vld [vmem:[%s558 + $0x808] sm:$0xff]
                  %819 = vst [vmem:[%s559 + $0x408] sm:$0xff] %v818
                  %v820 = vld [vmem:[%s558 + $0x810] sm:$0xff]
                  %821 = vst [vmem:[%s559 + $0x410] sm:$0xff] %v820
                  %v822 = vld [vmem:[%s558 + $0x818] sm:$0xff]
                  %823 = vst [vmem:[%s559 + $0x418] sm:$0xff] %v822
                  %v824 = vld [vmem:[%s558 + $0x820] sm:$0xff]
                  %825 = vst [vmem:[%s559 + $0x420] sm:$0xff] %v824
                  %v826 = vld [vmem:[%s558 + $0x828] sm:$0xff]
                  %827 = vst [vmem:[%s559 + $0x428] sm:$0xff] %v826
                  %v828 = vld [vmem:[%s558 + $0x830] sm:$0xff]
                  %829 = vst [vmem:[%s559 + $0x430] sm:$0xff] %v828
                  %v830 = vld [vmem:[%s558 + $0x838] sm:$0xff]
                  %831 = vst [vmem:[%s559 + $0x438] sm:$0xff] %v830
                  %v832 = vld [vmem:[%s558 + $0x840] sm:$0xff]
                  %833 = vst [vmem:[%s559 + $0x440] sm:$0xff] %v832
                  %v834 = vld [vmem:[%s558 + $0x848] sm:$0xff]
                  %835 = vst [vmem:[%s559 + $0x448] sm:$0xff] %v834
                  %v836 = vld [vmem:[%s558 + $0x850] sm:$0xff]
                  %837 = vst [vmem:[%s559 + $0x450] sm:$0xff] %v836
                  %v838 = vld [vmem:[%s558 + $0x858] sm:$0xff]
                  %839 = vst [vmem:[%s559 + $0x458] sm:$0xff] %v838
                  %v840 = vld [vmem:[%s558 + $0x860] sm:$0xff]
                  %841 = vst [vmem:[%s559 + $0x460] sm:$0xff] %v840
                  %v842 = vld [vmem:[%s558 + $0x868] sm:$0xff]
                  %843 = vst [vmem:[%s559 + $0x468] sm:$0xff] %v842
                  %v844 = vld [vmem:[%s558 + $0x870] sm:$0xff]
                  %845 = vst [vmem:[%s559 + $0x470] sm:$0xff] %v844
                  %v846 = vld [vmem:[%s558 + $0x878] sm:$0xff]
                  %847 = vst [vmem:[%s559 + $0x478] sm:$0xff] %v846
                  %v848 = vld [vmem:[%s558 + $0x880] sm:$0xff]
                  %849 = vst [vmem:[%s559 + $0x480] sm:$0xff] %v848
                  %v850 = vld [vmem:[%s558 + $0x888] sm:$0xff]
                  %851 = vst [vmem:[%s559 + $0x488] sm:$0xff] %v850
                  %v852 = vld [vmem:[%s558 + $0x890] sm:$0xff]
                  %853 = vst [vmem:[%s559 + $0x490] sm:$0xff] %v852
                  %v854 = vld [vmem:[%s558 + $0x898] sm:$0xff]
                  %855 = vst [vmem:[%s559 + $0x498] sm:$0xff] %v854
                  %v856 = vld [vmem:[%s558 + $0x8a0] sm:$0xff]
                  %857 = vst [vmem:[%s559 + $0x4a0] sm:$0xff] %v856
                  %v858 = vld [vmem:[%s558 + $0x8a8] sm:$0xff]
                  %859 = vst [vmem:[%s559 + $0x4a8] sm:$0xff] %v858
                  %v860 = vld [vmem:[%s558 + $0x8b0] sm:$0xff]
                  %861 = vst [vmem:[%s559 + $0x4b0] sm:$0xff] %v860
                  %v862 = vld [vmem:[%s558 + $0x8b8] sm:$0xff]
                  %863 = vst [vmem:[%s559 + $0x4b8] sm:$0xff] %v862
                  %v864 = vld [vmem:[%s558 + $0x8c0] sm:$0xff]
                  %865 = vst [vmem:[%s559 + $0x4c0] sm:$0xff] %v864
                  %v866 = vld [vmem:[%s558 + $0x8c8] sm:$0xff]
                  %867 = vst [vmem:[%s559 + $0x4c8] sm:$0xff] %v866
                  %v868 = vld [vmem:[%s558 + $0x8d0] sm:$0xff]
                  %869 = vst [vmem:[%s559 + $0x4d0] sm:$0xff] %v868
                  %v870 = vld [vmem:[%s558 + $0x8d8] sm:$0xff]
                  %871 = vst [vmem:[%s559 + $0x4d8] sm:$0xff] %v870
                  %v872 = vld [vmem:[%s558 + $0x8e0] sm:$0xff]
                  %873 = vst [vmem:[%s559 + $0x4e0] sm:$0xff] %v872
                  %v874 = vld [vmem:[%s558 + $0x8e8] sm:$0xff]
                  %875 = vst [vmem:[%s559 + $0x4e8] sm:$0xff] %v874
                  %v876 = vld [vmem:[%s558 + $0x8f0] sm:$0xff]
                  %877 = vst [vmem:[%s559 + $0x4f0] sm:$0xff] %v876
                  %v878 = vld [vmem:[%s558 + $0x8f8] sm:$0xff]
                  %879 = vst [vmem:[%s559 + $0x4f8] sm:$0xff] %v878
                  %v880 = vld [vmem:[%s558 + $0x900] sm:$0xff]
                  %881 = vst [vmem:[%s559 + $0x500] sm:$0xff] %v880
                  %v882 = vld [vmem:[%s558 + $0x908] sm:$0xff]
                  %883 = vst [vmem:[%s559 + $0x508] sm:$0xff] %v882
                  %v884 = vld [vmem:[%s558 + $0x910] sm:$0xff]
                  %885 = vst [vmem:[%s559 + $0x510] sm:$0xff] %v884
                  %v886 = vld [vmem:[%s558 + $0x918] sm:$0xff]
                  %887 = vst [vmem:[%s559 + $0x518] sm:$0xff] %v886
                  %v888 = vld [vmem:[%s558 + $0x920] sm:$0xff]
                  %889 = vst [vmem:[%s559 + $0x520] sm:$0xff] %v888
                  %v890 = vld [vmem:[%s558 + $0x928] sm:$0xff]
                  %891 = vst [vmem:[%s559 + $0x528] sm:$0xff] %v890
                  %v892 = vld [vmem:[%s558 + $0x930] sm:$0xff]
                  %893 = vst [vmem:[%s559 + $0x530] sm:$0xff] %v892
                  %v894 = vld [vmem:[%s558 + $0x938] sm:$0xff]
                  %895 = vst [vmem:[%s559 + $0x538] sm:$0xff] %v894
                  %v896 = vld [vmem:[%s558 + $0x940] sm:$0xff]
                  %897 = vst [vmem:[%s559 + $0x540] sm:$0xff] %v896
                  %v898 = vld [vmem:[%s558 + $0x948] sm:$0xff]
                  %899 = vst [vmem:[%s559 + $0x548] sm:$0xff] %v898
                  %v900 = vld [vmem:[%s558 + $0x950] sm:$0xff]
                  %901 = vst [vmem:[%s559 + $0x550] sm:$0xff] %v900
                  %v902 = vld [vmem:[%s558 + $0x958] sm:$0xff]
                  %903 = vst [vmem:[%s559 + $0x558] sm:$0xff] %v902
                  %v904 = vld [vmem:[%s558 + $0x960] sm:$0xff]
                  %905 = vst [vmem:[%s559 + $0x560] sm:$0xff] %v904
                  %v906 = vld [vmem:[%s558 + $0x968] sm:$0xff]
                  %907 = vst [vmem:[%s559 + $0x568] sm:$0xff] %v906
                  %v908 = vld [vmem:[%s558 + $0x970] sm:$0xff]
                  %909 = vst [vmem:[%s559 + $0x570] sm:$0xff] %v908
                  %v910 = vld [vmem:[%s558 + $0x978] sm:$0xff]
                  %911 = vst [vmem:[%s559 + $0x578] sm:$0xff] %v910
                  %v912 = vld [vmem:[%s558 + $0x980] sm:$0xff]
                  %913 = vst [vmem:[%s559 + $0x580] sm:$0xff] %v912
                  %v914 = vld [vmem:[%s558 + $0x988] sm:$0xff]
                  %915 = vst [vmem:[%s559 + $0x588] sm:$0xff] %v914
                  %v916 = vld [vmem:[%s558 + $0x990] sm:$0xff]
                  %917 = vst [vmem:[%s559 + $0x590] sm:$0xff] %v916
                  %v918 = vld [vmem:[%s558 + $0x998] sm:$0xff]
                  %919 = vst [vmem:[%s559 + $0x598] sm:$0xff] %v918
                  %v920 = vld [vmem:[%s558 + $0x9a0] sm:$0xff]
                  %921 = vst [vmem:[%s559 + $0x5a0] sm:$0xff] %v920
                  %v922 = vld [vmem:[%s558 + $0x9a8] sm:$0xff]
                  %923 = vst [vmem:[%s559 + $0x5a8] sm:$0xff] %v922
                  %v924 = vld [vmem:[%s558 + $0x9b0] sm:$0xff]
                  %925 = vst [vmem:[%s559 + $0x5b0] sm:$0xff] %v924
                  %v926 = vld [vmem:[%s558 + $0x9b8] sm:$0xff]
                  %927 = vst [vmem:[%s559 + $0x5b8] sm:$0xff] %v926
                  %v928 = vld [vmem:[%s558 + $0x9c0] sm:$0xff]
                  %929 = vst [vmem:[%s559 + $0x5c0] sm:$0xff] %v928
                  %v930 = vld [vmem:[%s558 + $0x9c8] sm:$0xff]
                  %931 = vst [vmem:[%s559 + $0x5c8] sm:$0xff] %v930
                  %v932 = vld [vmem:[%s558 + $0x9d0] sm:$0xff]
                  %933 = vst [vmem:[%s559 + $0x5d0] sm:$0xff] %v932
                  %v934 = vld [vmem:[%s558 + $0x9d8] sm:$0xff]
                  %935 = vst [vmem:[%s559 + $0x5d8] sm:$0xff] %v934
                  %v936 = vld [vmem:[%s558 + $0x9e0] sm:$0xff]
                  %937 = vst [vmem:[%s559 + $0x5e0] sm:$0xff] %v936
                  %v938 = vld [vmem:[%s558 + $0x9e8] sm:$0xff]
                  %939 = vst [vmem:[%s559 + $0x5e8] sm:$0xff] %v938
                  %v940 = vld [vmem:[%s558 + $0x9f0] sm:$0xff]
                  %941 = vst [vmem:[%s559 + $0x5f0] sm:$0xff] %v940
                  %v942 = vld [vmem:[%s558 + $0x9f8] sm:$0xff]
                  %943 = vst [vmem:[%s559 + $0x5f8] sm:$0xff] %v942
                $region52: #{sphere_tracing_render.1} parent=46 // loop_footer
                  %s557 = sadd.s32 1, %s553
                $region53: #{sphere_tracing_render.1} parent=46 // loop_footer_branch
                  %552 = sbr.rel target = $region49
                $region54: #{sphere_tracing_render.1} parent=46 // loop_exit
                  _
              $region47: #{sphere_tracing_render.1} parent=31 // pred_fallthru
                _
              // Predicated region
              $region55: #{sphere_tracing_render.1} parent=31 // pred_check
                _
              $region56: #{sphere_tracing_render.1} parent=31 // pred_check_branch
                %945 = sbr.rel target = $region58
              $region57: #{sphere_tracing_render.1} parent=31 // pred_region
                _
              $region58: #{sphere_tracing_render.1} parent=31 // pred_fallthru
                _
            $region32: #{sphere_tracing_render.1} parent=27 // pred_fallthru
              _
            // Predicated region
            $region33: #{sphere_tracing_render.1} parent=27 // pred_check
              _
            $region34: #{sphere_tracing_render.1} parent=27 // pred_check_branch
              %155 = sbr.rel target = $region36
            $region35: #{sphere_tracing_render.1} parent=27 // pred_region
              %s157 = ssub.s32 256, 1
              loop: start=0, step=1, limit=1
              $region37: #{sphere_tracing_render.1} parent=35 // loop_pre_header
                _
              $region38: #{sphere_tracing_render.1} parent=35 // loop_header
                %s159 = sphi 0, %s163
                %p160 = scmp.ge.s32.totalorder %s159, 1
                %s164 = sphi %s149, %s149
                %s165 = sphi %s145, %s145
              $region39: #{sphere_tracing_render.1} parent=35 // loop_header_branch
                %162 = sbr.rel (%p160) target = $region43
              $region40: #{sphere_tracing_render.1} parent=35 // loop_body
                %v166 = vld [vmem:[%s164] sm:%s157]
                %167 = vst [vmem:[%s165] sm:%s157] %v166
                %v168 = vld [vmem:[%s164 + $0x8] sm:%s157]
                %169 = vst [vmem:[%s165 + $0x8] sm:%s157] %v168
                %v170 = vld [vmem:[%s164 + $0x10] sm:%s157]
                %171 = vst [vmem:[%s165 + $0x10] sm:%s157] %v170
                %v172 = vld [vmem:[%s164 + $0x18] sm:%s157]
                %173 = vst [vmem:[%s165 + $0x18] sm:%s157] %v172
                %v174 = vld [vmem:[%s164 + $0x20] sm:%s157]
                %175 = vst [vmem:[%s165 + $0x20] sm:%s157] %v174
                %v176 = vld [vmem:[%s164 + $0x28] sm:%s157]
                %177 = vst [vmem:[%s165 + $0x28] sm:%s157] %v176
                %v178 = vld [vmem:[%s164 + $0x30] sm:%s157]
                %179 = vst [vmem:[%s165 + $0x30] sm:%s157] %v178
                %v180 = vld [vmem:[%s164 + $0x38] sm:%s157]
                %181 = vst [vmem:[%s165 + $0x38] sm:%s157] %v180
                %v182 = vld [vmem:[%s164 + $0x40] sm:%s157]
                %183 = vst [vmem:[%s165 + $0x40] sm:%s157] %v182
                %v184 = vld [vmem:[%s164 + $0x48] sm:%s157]
                %185 = vst [vmem:[%s165 + $0x48] sm:%s157] %v184
                %v186 = vld [vmem:[%s164 + $0x50] sm:%s157]
                %187 = vst [vmem:[%s165 + $0x50] sm:%s157] %v186
                %v188 = vld [vmem:[%s164 + $0x58] sm:%s157]
                %189 = vst [vmem:[%s165 + $0x58] sm:%s157] %v188
                %v190 = vld [vmem:[%s164 + $0x60] sm:%s157]
                %191 = vst [vmem:[%s165 + $0x60] sm:%s157] %v190
                %v192 = vld [vmem:[%s164 + $0x68] sm:%s157]
                %193 = vst [vmem:[%s165 + $0x68] sm:%s157] %v192
                %v194 = vld [vmem:[%s164 + $0x70] sm:%s157]
                %195 = vst [vmem:[%s165 + $0x70] sm:%s157] %v194
                %v196 = vld [vmem:[%s164 + $0x78] sm:%s157]
                %197 = vst [vmem:[%s165 + $0x78] sm:%s157] %v196
                %v198 = vld [vmem:[%s164 + $0x80] sm:%s157]
                %199 = vst [vmem:[%s165 + $0x80] sm:%s157] %v198
                %v200 = vld [vmem:[%s164 + $0x88] sm:%s157]
                %201 = vst [vmem:[%s165 + $0x88] sm:%s157] %v200
                %v202 = vld [vmem:[%s164 + $0x90] sm:%s157]
                %203 = vst [vmem:[%s165 + $0x90] sm:%s157] %v202
                %v204 = vld [vmem:[%s164 + $0x98] sm:%s157]
                %205 = vst [vmem:[%s165 + $0x98] sm:%s157] %v204
                %v206 = vld [vmem:[%s164 + $0xa0] sm:%s157]
                %207 = vst [vmem:[%s165 + $0xa0] sm:%s157] %v206
                %v208 = vld [vmem:[%s164 + $0xa8] sm:%s157]
                %209 = vst [vmem:[%s165 + $0xa8] sm:%s157] %v208
                %v210 = vld [vmem:[%s164 + $0xb0] sm:%s157]
                %211 = vst [vmem:[%s165 + $0xb0] sm:%s157] %v210
                %v212 = vld [vmem:[%s164 + $0xb8] sm:%s157]
                %213 = vst [vmem:[%s165 + $0xb8] sm:%s157] %v212
                %v214 = vld [vmem:[%s164 + $0xc0] sm:%s157]
                %215 = vst [vmem:[%s165 + $0xc0] sm:%s157] %v214
                %v216 = vld [vmem:[%s164 + $0xc8] sm:%s157]
                %217 = vst [vmem:[%s165 + $0xc8] sm:%s157] %v216
                %v218 = vld [vmem:[%s164 + $0xd0] sm:%s157]
                %219 = vst [vmem:[%s165 + $0xd0] sm:%s157] %v218
                %v220 = vld [vmem:[%s164 + $0xd8] sm:%s157]
                %221 = vst [vmem:[%s165 + $0xd8] sm:%s157] %v220
                %v222 = vld [vmem:[%s164 + $0xe0] sm:%s157]
                %223 = vst [vmem:[%s165 + $0xe0] sm:%s157] %v222
                %v224 = vld [vmem:[%s164 + $0xe8] sm:%s157]
                %225 = vst [vmem:[%s165 + $0xe8] sm:%s157] %v224
                %v226 = vld [vmem:[%s164 + $0xf0] sm:%s157]
                %227 = vst [vmem:[%s165 + $0xf0] sm:%s157] %v226
                %v228 = vld [vmem:[%s164 + $0xf8] sm:%s157]
                %229 = vst [vmem:[%s165 + $0xf8] sm:%s157] %v228
                %v230 = vld [vmem:[%s164 + $0x100] sm:%s157]
                %231 = vst [vmem:[%s165 + $0x100] sm:%s157] %v230
                %v232 = vld [vmem:[%s164 + $0x108] sm:%s157]
                %233 = vst [vmem:[%s165 + $0x108] sm:%s157] %v232
                %v234 = vld [vmem:[%s164 + $0x110] sm:%s157]
                %235 = vst [vmem:[%s165 + $0x110] sm:%s157] %v234
                %v236 = vld [vmem:[%s164 + $0x118] sm:%s157]
                %237 = vst [vmem:[%s165 + $0x118] sm:%s157] %v236
                %v238 = vld [vmem:[%s164 + $0x120] sm:%s157]
                %239 = vst [vmem:[%s165 + $0x120] sm:%s157] %v238
                %v240 = vld [vmem:[%s164 + $0x128] sm:%s157]
                %241 = vst [vmem:[%s165 + $0x128] sm:%s157] %v240
                %v242 = vld [vmem:[%s164 + $0x130] sm:%s157]
                %243 = vst [vmem:[%s165 + $0x130] sm:%s157] %v242
                %v244 = vld [vmem:[%s164 + $0x138] sm:%s157]
                %245 = vst [vmem:[%s165 + $0x138] sm:%s157] %v244
                %v246 = vld [vmem:[%s164 + $0x140] sm:%s157]
                %247 = vst [vmem:[%s165 + $0x140] sm:%s157] %v246
                %v248 = vld [vmem:[%s164 + $0x148] sm:%s157]
                %249 = vst [vmem:[%s165 + $0x148] sm:%s157] %v248
                %v250 = vld [vmem:[%s164 + $0x150] sm:%s157]
                %251 = vst [vmem:[%s165 + $0x150] sm:%s157] %v250
                %v252 = vld [vmem:[%s164 + $0x158] sm:%s157]
                %253 = vst [vmem:[%s165 + $0x158] sm:%s157] %v252
                %v254 = vld [vmem:[%s164 + $0x160] sm:%s157]
                %255 = vst [vmem:[%s165 + $0x160] sm:%s157] %v254
                %v256 = vld [vmem:[%s164 + $0x168] sm:%s157]
                %257 = vst [vmem:[%s165 + $0x168] sm:%s157] %v256
                %v258 = vld [vmem:[%s164 + $0x170] sm:%s157]
                %259 = vst [vmem:[%s165 + $0x170] sm:%s157] %v258
                %v260 = vld [vmem:[%s164 + $0x178] sm:%s157]
                %261 = vst [vmem:[%s165 + $0x178] sm:%s157] %v260
                %v262 = vld [vmem:[%s164 + $0x180] sm:%s157]
                %263 = vst [vmem:[%s165 + $0x180] sm:%s157] %v262
                %v264 = vld [vmem:[%s164 + $0x188] sm:%s157]
                %265 = vst [vmem:[%s165 + $0x188] sm:%s157] %v264
                %v266 = vld [vmem:[%s164 + $0x190] sm:%s157]
                %267 = vst [vmem:[%s165 + $0x190] sm:%s157] %v266
                %v268 = vld [vmem:[%s164 + $0x198] sm:%s157]
                %269 = vst [vmem:[%s165 + $0x198] sm:%s157] %v268
                %v270 = vld [vmem:[%s164 + $0x1a0] sm:%s157]
                %271 = vst [vmem:[%s165 + $0x1a0] sm:%s157] %v270
                %v272 = vld [vmem:[%s164 + $0x1a8] sm:%s157]
                %273 = vst [vmem:[%s165 + $0x1a8] sm:%s157] %v272
                %v274 = vld [vmem:[%s164 + $0x1b0] sm:%s157]
                %275 = vst [vmem:[%s165 + $0x1b0] sm:%s157] %v274
                %v276 = vld [vmem:[%s164 + $0x1b8] sm:%s157]
                %277 = vst [vmem:[%s165 + $0x1b8] sm:%s157] %v276
                %v278 = vld [vmem:[%s164 + $0x1c0] sm:%s157]
                %279 = vst [vmem:[%s165 + $0x1c0] sm:%s157] %v278
                %v280 = vld [vmem:[%s164 + $0x1c8] sm:%s157]
                %281 = vst [vmem:[%s165 + $0x1c8] sm:%s157] %v280
                %v282 = vld [vmem:[%s164 + $0x1d0] sm:%s157]
                %283 = vst [vmem:[%s165 + $0x1d0] sm:%s157] %v282
                %v284 = vld [vmem:[%s164 + $0x1d8] sm:%s157]
                %285 = vst [vmem:[%s165 + $0x1d8] sm:%s157] %v284
                %v286 = vld [vmem:[%s164 + $0x1e0] sm:%s157]
                %287 = vst [vmem:[%s165 + $0x1e0] sm:%s157] %v286
                %v288 = vld [vmem:[%s164 + $0x1e8] sm:%s157]
                %289 = vst [vmem:[%s165 + $0x1e8] sm:%s157] %v288
                %v290 = vld [vmem:[%s164 + $0x1f0] sm:%s157]
                %291 = vst [vmem:[%s165 + $0x1f0] sm:%s157] %v290
                %v292 = vld [vmem:[%s164 + $0x1f8] sm:%s157]
                %293 = vst [vmem:[%s165 + $0x1f8] sm:%s157] %v292
                %v294 = vld [vmem:[%s164 + $0x400] sm:%s157]
                %295 = vst [vmem:[%s165 + $0x200] sm:%s157] %v294
                %v296 = vld [vmem:[%s164 + $0x408] sm:%s157]
                %297 = vst [vmem:[%s165 + $0x208] sm:%s157] %v296
                %v298 = vld [vmem:[%s164 + $0x410] sm:%s157]
                %299 = vst [vmem:[%s165 + $0x210] sm:%s157] %v298
                %v300 = vld [vmem:[%s164 + $0x418] sm:%s157]
                %301 = vst [vmem:[%s165 + $0x218] sm:%s157] %v300
                %v302 = vld [vmem:[%s164 + $0x420] sm:%s157]
                %303 = vst [vmem:[%s165 + $0x220] sm:%s157] %v302
                %v304 = vld [vmem:[%s164 + $0x428] sm:%s157]
                %305 = vst [vmem:[%s165 + $0x228] sm:%s157] %v304
                %v306 = vld [vmem:[%s164 + $0x430] sm:%s157]
                %307 = vst [vmem:[%s165 + $0x230] sm:%s157] %v306
                %v308 = vld [vmem:[%s164 + $0x438] sm:%s157]
                %309 = vst [vmem:[%s165 + $0x238] sm:%s157] %v308
                %v310 = vld [vmem:[%s164 + $0x440] sm:%s157]
                %311 = vst [vmem:[%s165 + $0x240] sm:%s157] %v310
                %v312 = vld [vmem:[%s164 + $0x448] sm:%s157]
                %313 = vst [vmem:[%s165 + $0x248] sm:%s157] %v312
                %v314 = vld [vmem:[%s164 + $0x450] sm:%s157]
                %315 = vst [vmem:[%s165 + $0x250] sm:%s157] %v314
                %v316 = vld [vmem:[%s164 + $0x458] sm:%s157]
                %317 = vst [vmem:[%s165 + $0x258] sm:%s157] %v316
                %v318 = vld [vmem:[%s164 + $0x460] sm:%s157]
                %319 = vst [vmem:[%s165 + $0x260] sm:%s157] %v318
                %v320 = vld [vmem:[%s164 + $0x468] sm:%s157]
                %321 = vst [vmem:[%s165 + $0x268] sm:%s157] %v320
                %v322 = vld [vmem:[%s164 + $0x470] sm:%s157]
                %323 = vst [vmem:[%s165 + $0x270] sm:%s157] %v322
                %v324 = vld [vmem:[%s164 + $0x478] sm:%s157]
                %325 = vst [vmem:[%s165 + $0x278] sm:%s157] %v324
                %v326 = vld [vmem:[%s164 + $0x480] sm:%s157]
                %327 = vst [vmem:[%s165 + $0x280] sm:%s157] %v326
                %v328 = vld [vmem:[%s164 + $0x488] sm:%s157]
                %329 = vst [vmem:[%s165 + $0x288] sm:%s157] %v328
                %v330 = vld [vmem:[%s164 + $0x490] sm:%s157]
                %331 = vst [vmem:[%s165 + $0x290] sm:%s157] %v330
                %v332 = vld [vmem:[%s164 + $0x498] sm:%s157]
                %333 = vst [vmem:[%s165 + $0x298] sm:%s157] %v332
                %v334 = vld [vmem:[%s164 + $0x4a0] sm:%s157]
                %335 = vst [vmem:[%s165 + $0x2a0] sm:%s157] %v334
                %v336 = vld [vmem:[%s164 + $0x4a8] sm:%s157]
                %337 = vst [vmem:[%s165 + $0x2a8] sm:%s157] %v336
                %v338 = vld [vmem:[%s164 + $0x4b0] sm:%s157]
                %339 = vst [vmem:[%s165 + $0x2b0] sm:%s157] %v338
                %v340 = vld [vmem:[%s164 + $0x4b8] sm:%s157]
                %341 = vst [vmem:[%s165 + $0x2b8] sm:%s157] %v340
                %v342 = vld [vmem:[%s164 + $0x4c0] sm:%s157]
                %343 = vst [vmem:[%s165 + $0x2c0] sm:%s157] %v342
                %v344 = vld [vmem:[%s164 + $0x4c8] sm:%s157]
                %345 = vst [vmem:[%s165 + $0x2c8] sm:%s157] %v344
                %v346 = vld [vmem:[%s164 + $0x4d0] sm:%s157]
                %347 = vst [vmem:[%s165 + $0x2d0] sm:%s157] %v346
                %v348 = vld [vmem:[%s164 + $0x4d8] sm:%s157]
                %349 = vst [vmem:[%s165 + $0x2d8] sm:%s157] %v348
                %v350 = vld [vmem:[%s164 + $0x4e0] sm:%s157]
                %351 = vst [vmem:[%s165 + $0x2e0] sm:%s157] %v350
                %v352 = vld [vmem:[%s164 + $0x4e8] sm:%s157]
                %353 = vst [vmem:[%s165 + $0x2e8] sm:%s157] %v352
                %v354 = vld [vmem:[%s164 + $0x4f0] sm:%s157]
                %355 = vst [vmem:[%s165 + $0x2f0] sm:%s157] %v354
                %v356 = vld [vmem:[%s164 + $0x4f8] sm:%s157]
                %357 = vst [vmem:[%s165 + $0x2f8] sm:%s157] %v356
                %v358 = vld [vmem:[%s164 + $0x500] sm:%s157]
                %359 = vst [vmem:[%s165 + $0x300] sm:%s157] %v358
                %v360 = vld [vmem:[%s164 + $0x508] sm:%s157]
                %361 = vst [vmem:[%s165 + $0x308] sm:%s157] %v360
                %v362 = vld [vmem:[%s164 + $0x510] sm:%s157]
                %363 = vst [vmem:[%s165 + $0x310] sm:%s157] %v362
                %v364 = vld [vmem:[%s164 + $0x518] sm:%s157]
                %365 = vst [vmem:[%s165 + $0x318] sm:%s157] %v364
                %v366 = vld [vmem:[%s164 + $0x520] sm:%s157]
                %367 = vst [vmem:[%s165 + $0x320] sm:%s157] %v366
                %v368 = vld [vmem:[%s164 + $0x528] sm:%s157]
                %369 = vst [vmem:[%s165 + $0x328] sm:%s157] %v368
                %v370 = vld [vmem:[%s164 + $0x530] sm:%s157]
                %371 = vst [vmem:[%s165 + $0x330] sm:%s157] %v370
                %v372 = vld [vmem:[%s164 + $0x538] sm:%s157]
                %373 = vst [vmem:[%s165 + $0x338] sm:%s157] %v372
                %v374 = vld [vmem:[%s164 + $0x540] sm:%s157]
                %375 = vst [vmem:[%s165 + $0x340] sm:%s157] %v374
                %v376 = vld [vmem:[%s164 + $0x548] sm:%s157]
                %377 = vst [vmem:[%s165 + $0x348] sm:%s157] %v376
                %v378 = vld [vmem:[%s164 + $0x550] sm:%s157]
                %379 = vst [vmem:[%s165 + $0x350] sm:%s157] %v378
                %v380 = vld [vmem:[%s164 + $0x558] sm:%s157]
                %381 = vst [vmem:[%s165 + $0x358] sm:%s157] %v380
                %v382 = vld [vmem:[%s164 + $0x560] sm:%s157]
                %383 = vst [vmem:[%s165 + $0x360] sm:%s157] %v382
                %v384 = vld [vmem:[%s164 + $0x568] sm:%s157]
                %385 = vst [vmem:[%s165 + $0x368] sm:%s157] %v384
                %v386 = vld [vmem:[%s164 + $0x570] sm:%s157]
                %387 = vst [vmem:[%s165 + $0x370] sm:%s157] %v386
                %v388 = vld [vmem:[%s164 + $0x578] sm:%s157]
                %389 = vst [vmem:[%s165 + $0x378] sm:%s157] %v388
                %v390 = vld [vmem:[%s164 + $0x580] sm:%s157]
                %391 = vst [vmem:[%s165 + $0x380] sm:%s157] %v390
                %v392 = vld [vmem:[%s164 + $0x588] sm:%s157]
                %393 = vst [vmem:[%s165 + $0x388] sm:%s157] %v392
                %v394 = vld [vmem:[%s164 + $0x590] sm:%s157]
                %395 = vst [vmem:[%s165 + $0x390] sm:%s157] %v394
                %v396 = vld [vmem:[%s164 + $0x598] sm:%s157]
                %397 = vst [vmem:[%s165 + $0x398] sm:%s157] %v396
                %v398 = vld [vmem:[%s164 + $0x5a0] sm:%s157]
                %399 = vst [vmem:[%s165 + $0x3a0] sm:%s157] %v398
                %v400 = vld [vmem:[%s164 + $0x5a8] sm:%s157]
                %401 = vst [vmem:[%s165 + $0x3a8] sm:%s157] %v400
                %v402 = vld [vmem:[%s164 + $0x5b0] sm:%s157]
                %403 = vst [vmem:[%s165 + $0x3b0] sm:%s157] %v402
                %v404 = vld [vmem:[%s164 + $0x5b8] sm:%s157]
                %405 = vst [vmem:[%s165 + $0x3b8] sm:%s157] %v404
                %v406 = vld [vmem:[%s164 + $0x5c0] sm:%s157]
                %407 = vst [vmem:[%s165 + $0x3c0] sm:%s157] %v406
                %v408 = vld [vmem:[%s164 + $0x5c8] sm:%s157]
                %409 = vst [vmem:[%s165 + $0x3c8] sm:%s157] %v408
                %v410 = vld [vmem:[%s164 + $0x5d0] sm:%s157]
                %411 = vst [vmem:[%s165 + $0x3d0] sm:%s157] %v410
                %v412 = vld [vmem:[%s164 + $0x5d8] sm:%s157]
                %413 = vst [vmem:[%s165 + $0x3d8] sm:%s157] %v412
                %v414 = vld [vmem:[%s164 + $0x5e0] sm:%s157]
                %415 = vst [vmem:[%s165 + $0x3e0] sm:%s157] %v414
                %v416 = vld [vmem:[%s164 + $0x5e8] sm:%s157]
                %417 = vst [vmem:[%s165 + $0x3e8] sm:%s157] %v416
                %v418 = vld [vmem:[%s164 + $0x5f0] sm:%s157]
                %419 = vst [vmem:[%s165 + $0x3f0] sm:%s157] %v418
                %v420 = vld [vmem:[%s164 + $0x5f8] sm:%s157]
                %421 = vst [vmem:[%s165 + $0x3f8] sm:%s157] %v420
                %v422 = vld [vmem:[%s164 + $0x800] sm:%s157]
                %423 = vst [vmem:[%s165 + $0x400] sm:%s157] %v422
                %v424 = vld [vmem:[%s164 + $0x808] sm:%s157]
                %425 = vst [vmem:[%s165 + $0x408] sm:%s157] %v424
                %v426 = vld [vmem:[%s164 + $0x810] sm:%s157]
                %427 = vst [vmem:[%s165 + $0x410] sm:%s157] %v426
                %v428 = vld [vmem:[%s164 + $0x818] sm:%s157]
                %429 = vst [vmem:[%s165 + $0x418] sm:%s157] %v428
                %v430 = vld [vmem:[%s164 + $0x820] sm:%s157]
                %431 = vst [vmem:[%s165 + $0x420] sm:%s157] %v430
                %v432 = vld [vmem:[%s164 + $0x828] sm:%s157]
                %433 = vst [vmem:[%s165 + $0x428] sm:%s157] %v432
                %v434 = vld [vmem:[%s164 + $0x830] sm:%s157]
                %435 = vst [vmem:[%s165 + $0x430] sm:%s157] %v434
                %v436 = vld [vmem:[%s164 + $0x838] sm:%s157]
                %437 = vst [vmem:[%s165 + $0x438] sm:%s157] %v436
                %v438 = vld [vmem:[%s164 + $0x840] sm:%s157]
                %439 = vst [vmem:[%s165 + $0x440] sm:%s157] %v438
                %v440 = vld [vmem:[%s164 + $0x848] sm:%s157]
                %441 = vst [vmem:[%s165 + $0x448] sm:%s157] %v440
                %v442 = vld [vmem:[%s164 + $0x850] sm:%s157]
                %443 = vst [vmem:[%s165 + $0x450] sm:%s157] %v442
                %v444 = vld [vmem:[%s164 + $0x858] sm:%s157]
                %445 = vst [vmem:[%s165 + $0x458] sm:%s157] %v444
                %v446 = vld [vmem:[%s164 + $0x860] sm:%s157]
                %447 = vst [vmem:[%s165 + $0x460] sm:%s157] %v446
                %v448 = vld [vmem:[%s164 + $0x868] sm:%s157]
                %449 = vst [vmem:[%s165 + $0x468] sm:%s157] %v448
                %v450 = vld [vmem:[%s164 + $0x870] sm:%s157]
                %451 = vst [vmem:[%s165 + $0x470] sm:%s157] %v450
                %v452 = vld [vmem:[%s164 + $0x878] sm:%s157]
                %453 = vst [vmem:[%s165 + $0x478] sm:%s157] %v452
                %v454 = vld [vmem:[%s164 + $0x880] sm:%s157]
                %455 = vst [vmem:[%s165 + $0x480] sm:%s157] %v454
                %v456 = vld [vmem:[%s164 + $0x888] sm:%s157]
                %457 = vst [vmem:[%s165 + $0x488] sm:%s157] %v456
                %v458 = vld [vmem:[%s164 + $0x890] sm:%s157]
                %459 = vst [vmem:[%s165 + $0x490] sm:%s157] %v458
                %v460 = vld [vmem:[%s164 + $0x898] sm:%s157]
                %461 = vst [vmem:[%s165 + $0x498] sm:%s157] %v460
                %v462 = vld [vmem:[%s164 + $0x8a0] sm:%s157]
                %463 = vst [vmem:[%s165 + $0x4a0] sm:%s157] %v462
                %v464 = vld [vmem:[%s164 + $0x8a8] sm:%s157]
                %465 = vst [vmem:[%s165 + $0x4a8] sm:%s157] %v464
                %v466 = vld [vmem:[%s164 + $0x8b0] sm:%s157]
                %467 = vst [vmem:[%s165 + $0x4b0] sm:%s157] %v466
                %v468 = vld [vmem:[%s164 + $0x8b8] sm:%s157]
                %469 = vst [vmem:[%s165 + $0x4b8] sm:%s157] %v468
                %v470 = vld [vmem:[%s164 + $0x8c0] sm:%s157]
                %471 = vst [vmem:[%s165 + $0x4c0] sm:%s157] %v470
                %v472 = vld [vmem:[%s164 + $0x8c8] sm:%s157]
                %473 = vst [vmem:[%s165 + $0x4c8] sm:%s157] %v472
                %v474 = vld [vmem:[%s164 + $0x8d0] sm:%s157]
                %475 = vst [vmem:[%s165 + $0x4d0] sm:%s157] %v474
                %v476 = vld [vmem:[%s164 + $0x8d8] sm:%s157]
                %477 = vst [vmem:[%s165 + $0x4d8] sm:%s157] %v476
                %v478 = vld [vmem:[%s164 + $0x8e0] sm:%s157]
                %479 = vst [vmem:[%s165 + $0x4e0] sm:%s157] %v478
                %v480 = vld [vmem:[%s164 + $0x8e8] sm:%s157]
                %481 = vst [vmem:[%s165 + $0x4e8] sm:%s157] %v480
                %v482 = vld [vmem:[%s164 + $0x8f0] sm:%s157]
                %483 = vst [vmem:[%s165 + $0x4f0] sm:%s157] %v482
                %v484 = vld [vmem:[%s164 + $0x8f8] sm:%s157]
                %485 = vst [vmem:[%s165 + $0x4f8] sm:%s157] %v484
                %v486 = vld [vmem:[%s164 + $0x900] sm:%s157]
                %487 = vst [vmem:[%s165 + $0x500] sm:%s157] %v486
                %v488 = vld [vmem:[%s164 + $0x908] sm:%s157]
                %489 = vst [vmem:[%s165 + $0x508] sm:%s157] %v488
                %v490 = vld [vmem:[%s164 + $0x910] sm:%s157]
                %491 = vst [vmem:[%s165 + $0x510] sm:%s157] %v490
                %v492 = vld [vmem:[%s164 + $0x918] sm:%s157]
                %493 = vst [vmem:[%s165 + $0x518] sm:%s157] %v492
                %v494 = vld [vmem:[%s164 + $0x920] sm:%s157]
                %495 = vst [vmem:[%s165 + $0x520] sm:%s157] %v494
                %v496 = vld [vmem:[%s164 + $0x928] sm:%s157]
                %497 = vst [vmem:[%s165 + $0x528] sm:%s157] %v496
                %v498 = vld [vmem:[%s164 + $0x930] sm:%s157]
                %499 = vst [vmem:[%s165 + $0x530] sm:%s157] %v498
                %v500 = vld [vmem:[%s164 + $0x938] sm:%s157]
                %501 = vst [vmem:[%s165 + $0x538] sm:%s157] %v500
                %v502 = vld [vmem:[%s164 + $0x940] sm:%s157]
                %503 = vst [vmem:[%s165 + $0x540] sm:%s157] %v502
                %v504 = vld [vmem:[%s164 + $0x948] sm:%s157]
                %505 = vst [vmem:[%s165 + $0x548] sm:%s157] %v504
                %v506 = vld [vmem:[%s164 + $0x950] sm:%s157]
                %507 = vst [vmem:[%s165 + $0x550] sm:%s157] %v506
                %v508 = vld [vmem:[%s164 + $0x958] sm:%s157]
                %509 = vst [vmem:[%s165 + $0x558] sm:%s157] %v508
                %v510 = vld [vmem:[%s164 + $0x960] sm:%s157]
                %511 = vst [vmem:[%s165 + $0x560] sm:%s157] %v510
                %v512 = vld [vmem:[%s164 + $0x968] sm:%s157]
                %513 = vst [vmem:[%s165 + $0x568] sm:%s157] %v512
                %v514 = vld [vmem:[%s164 + $0x970] sm:%s157]
                %515 = vst [vmem:[%s165 + $0x570] sm:%s157] %v514
                %v516 = vld [vmem:[%s164 + $0x978] sm:%s157]
                %517 = vst [vmem:[%s165 + $0x578] sm:%s157] %v516
                %v518 = vld [vmem:[%s164 + $0x980] sm:%s157]
                %519 = vst [vmem:[%s165 + $0x580] sm:%s157] %v518
                %v520 = vld [vmem:[%s164 + $0x988] sm:%s157]
                %521 = vst [vmem:[%s165 + $0x588] sm:%s157] %v520
                %v522 = vld [vmem:[%s164 + $0x990] sm:%s157]
                %523 = vst [vmem:[%s165 + $0x590] sm:%s157] %v522
                %v524 = vld [vmem:[%s164 + $0x998] sm:%s157]
                %525 = vst [vmem:[%s165 + $0x598] sm:%s157] %v524
                %v526 = vld [vmem:[%s164 + $0x9a0] sm:%s157]
                %527 = vst [vmem:[%s165 + $0x5a0] sm:%s157] %v526
                %v528 = vld [vmem:[%s164 + $0x9a8] sm:%s157]
                %529 = vst [vmem:[%s165 + $0x5a8] sm:%s157] %v528
                %v530 = vld [vmem:[%s164 + $0x9b0] sm:%s157]
                %531 = vst [vmem:[%s165 + $0x5b0] sm:%s157] %v530
                %v532 = vld [vmem:[%s164 + $0x9b8] sm:%s157]
                %533 = vst [vmem:[%s165 + $0x5b8] sm:%s157] %v532
                %v534 = vld [vmem:[%s164 + $0x9c0] sm:%s157]
                %535 = vst [vmem:[%s165 + $0x5c0] sm:%s157] %v534
                %v536 = vld [vmem:[%s164 + $0x9c8] sm:%s157]
                %537 = vst [vmem:[%s165 + $0x5c8] sm:%s157] %v536
                %v538 = vld [vmem:[%s164 + $0x9d0] sm:%s157]
                %539 = vst [vmem:[%s165 + $0x5d0] sm:%s157] %v538
                %v540 = vld [vmem:[%s164 + $0x9d8] sm:%s157]
                %541 = vst [vmem:[%s165 + $0x5d8] sm:%s157] %v540
                %v542 = vld [vmem:[%s164 + $0x9e0] sm:%s157]
                %543 = vst [vmem:[%s165 + $0x5e0] sm:%s157] %v542
                %v544 = vld [vmem:[%s164 + $0x9e8] sm:%s157]
                %545 = vst [vmem:[%s165 + $0x5e8] sm:%s157] %v544
                %v546 = vld [vmem:[%s164 + $0x9f0] sm:%s157]
                %547 = vst [vmem:[%s165 + $0x5f0] sm:%s157] %v546
                %v548 = vld [vmem:[%s164 + $0x9f8] sm:%s157]
                %549 = vst [vmem:[%s165 + $0x5f8] sm:%s157] %v548
              $region41: #{sphere_tracing_render.1} parent=35 // loop_footer
                %s163 = sadd.s32 1, %s159
              $region42: #{sphere_tracing_render.1} parent=35 // loop_footer_branch
                %158 = sbr.rel target = $region38
              $region43: #{sphere_tracing_render.1} parent=35 // loop_exit
                _
            $region36: #{sphere_tracing_render.1} parent=27 // pred_fallthru
              _
          $region28: #{sphere_tracing_render.1} parent=23 // pred_fallthru
            _
          %946 = vnop
        $region24: #{sphere_tracing_render.1} parent=19 // pred_fallthru
          _
        // Predicated region
        $region59: #{sphere_tracing_render.1} parent=19 // pred_check
          %p947 = pneg %p77
        $region60: #{sphere_tracing_render.1} parent=19 // pred_check_branch
          %949 = sbr.rel (%p947) target = $region62
        $region61: #{sphere_tracing_render.1} parent=19 // pred_region
          %s950 = sand.u32 %s67, 1
          %s951 = sand.u32 %s67, 1
          %s952 = smul.addr %s951, 1536
          %s953 = scalar_lea.vmem [#allocation5], %s952
          %s954 = smul.u32 16, %s10
          %s955 = smul.addr %s954, 4
          %s956 = smul.addr %s955, 8
          %s957 = scalar_lea.vmem %s2, %s956
          // Predicated region
          $region63: #{sphere_tracing_render.1} parent=61 // pred_check
            _
          $region64: #{sphere_tracing_render.1} parent=61 // pred_check_branch
            %959 = sbr.rel (0) target = $region66
          $region65: #{sphere_tracing_render.1} parent=61 // pred_region
            // Predicated region
            $region67: #{sphere_tracing_render.1} parent=65 // pred_check
              _
            $region68: #{sphere_tracing_render.1} parent=65 // pred_check_branch
              %961 = sbr.rel (0) target = $region70
            $region69: #{sphere_tracing_render.1} parent=65 // pred_region
              // Predicated region
              $region82: #{sphere_tracing_render.1} parent=69 // pred_check
                _
              $region83: #{sphere_tracing_render.1} parent=69 // pred_check_branch
                %1359 = sbr.rel (0) target = $region85
              $region84: #{sphere_tracing_render.1} parent=69 // pred_region
                loop: start=0, step=1, limit=1
                $region86: #{sphere_tracing_render.1} parent=84 // loop_pre_header
                  _
                $region87: #{sphere_tracing_render.1} parent=84 // loop_header
                  %s1361 = sphi 0, %s1365
                  %p1362 = scmp.ge.s32.totalorder %s1361, 1
                  %s1366 = sphi %s957, %s957
                  %s1367 = sphi %s953, %s953
                $region88: #{sphere_tracing_render.1} parent=84 // loop_header_branch
                  %1364 = sbr.rel (%p1362) target = $region92
                $region89: #{sphere_tracing_render.1} parent=84 // loop_body
                  %v1368 = vld [vmem:[%s1366] sm:$0xff]
                  %1369 = vst [vmem:[%s1367] sm:$0xff] %v1368
                  %v1370 = vld [vmem:[%s1366 + $0x8] sm:$0xff]
                  %1371 = vst [vmem:[%s1367 + $0x8] sm:$0xff] %v1370
                  %v1372 = vld [vmem:[%s1366 + $0x10] sm:$0xff]
                  %1373 = vst [vmem:[%s1367 + $0x10] sm:$0xff] %v1372
                  %v1374 = vld [vmem:[%s1366 + $0x18] sm:$0xff]
                  %1375 = vst [vmem:[%s1367 + $0x18] sm:$0xff] %v1374
                  %v1376 = vld [vmem:[%s1366 + $0x20] sm:$0xff]
                  %1377 = vst [vmem:[%s1367 + $0x20] sm:$0xff] %v1376
                  %v1378 = vld [vmem:[%s1366 + $0x28] sm:$0xff]
                  %1379 = vst [vmem:[%s1367 + $0x28] sm:$0xff] %v1378
                  %v1380 = vld [vmem:[%s1366 + $0x30] sm:$0xff]
                  %1381 = vst [vmem:[%s1367 + $0x30] sm:$0xff] %v1380
                  %v1382 = vld [vmem:[%s1366 + $0x38] sm:$0xff]
                  %1383 = vst [vmem:[%s1367 + $0x38] sm:$0xff] %v1382
                  %v1384 = vld [vmem:[%s1366 + $0x40] sm:$0xff]
                  %1385 = vst [vmem:[%s1367 + $0x40] sm:$0xff] %v1384
                  %v1386 = vld [vmem:[%s1366 + $0x48] sm:$0xff]
                  %1387 = vst [vmem:[%s1367 + $0x48] sm:$0xff] %v1386
                  %v1388 = vld [vmem:[%s1366 + $0x50] sm:$0xff]
                  %1389 = vst [vmem:[%s1367 + $0x50] sm:$0xff] %v1388
                  %v1390 = vld [vmem:[%s1366 + $0x58] sm:$0xff]
                  %1391 = vst [vmem:[%s1367 + $0x58] sm:$0xff] %v1390
                  %v1392 = vld [vmem:[%s1366 + $0x60] sm:$0xff]
                  %1393 = vst [vmem:[%s1367 + $0x60] sm:$0xff] %v1392
                  %v1394 = vld [vmem:[%s1366 + $0x68] sm:$0xff]
                  %1395 = vst [vmem:[%s1367 + $0x68] sm:$0xff] %v1394
                  %v1396 = vld [vmem:[%s1366 + $0x70] sm:$0xff]
                  %1397 = vst [vmem:[%s1367 + $0x70] sm:$0xff] %v1396
                  %v1398 = vld [vmem:[%s1366 + $0x78] sm:$0xff]
                  %1399 = vst [vmem:[%s1367 + $0x78] sm:$0xff] %v1398
                  %v1400 = vld [vmem:[%s1366 + $0x80] sm:$0xff]
                  %1401 = vst [vmem:[%s1367 + $0x80] sm:$0xff] %v1400
                  %v1402 = vld [vmem:[%s1366 + $0x88] sm:$0xff]
                  %1403 = vst [vmem:[%s1367 + $0x88] sm:$0xff] %v1402
                  %v1404 = vld [vmem:[%s1366 + $0x90] sm:$0xff]
                  %1405 = vst [vmem:[%s1367 + $0x90] sm:$0xff] %v1404
                  %v1406 = vld [vmem:[%s1366 + $0x98] sm:$0xff]
                  %1407 = vst [vmem:[%s1367 + $0x98] sm:$0xff] %v1406
                  %v1408 = vld [vmem:[%s1366 + $0xa0] sm:$0xff]
                  %1409 = vst [vmem:[%s1367 + $0xa0] sm:$0xff] %v1408
                  %v1410 = vld [vmem:[%s1366 + $0xa8] sm:$0xff]
                  %1411 = vst [vmem:[%s1367 + $0xa8] sm:$0xff] %v1410
                  %v1412 = vld [vmem:[%s1366 + $0xb0] sm:$0xff]
                  %1413 = vst [vmem:[%s1367 + $0xb0] sm:$0xff] %v1412
                  %v1414 = vld [vmem:[%s1366 + $0xb8] sm:$0xff]
                  %1415 = vst [vmem:[%s1367 + $0xb8] sm:$0xff] %v1414
                  %v1416 = vld [vmem:[%s1366 + $0xc0] sm:$0xff]
                  %1417 = vst [vmem:[%s1367 + $0xc0] sm:$0xff] %v1416
                  %v1418 = vld [vmem:[%s1366 + $0xc8] sm:$0xff]
                  %1419 = vst [vmem:[%s1367 + $0xc8] sm:$0xff] %v1418
                  %v1420 = vld [vmem:[%s1366 + $0xd0] sm:$0xff]
                  %1421 = vst [vmem:[%s1367 + $0xd0] sm:$0xff] %v1420
                  %v1422 = vld [vmem:[%s1366 + $0xd8] sm:$0xff]
                  %1423 = vst [vmem:[%s1367 + $0xd8] sm:$0xff] %v1422
                  %v1424 = vld [vmem:[%s1366 + $0xe0] sm:$0xff]
                  %1425 = vst [vmem:[%s1367 + $0xe0] sm:$0xff] %v1424
                  %v1426 = vld [vmem:[%s1366 + $0xe8] sm:$0xff]
                  %1427 = vst [vmem:[%s1367 + $0xe8] sm:$0xff] %v1426
                  %v1428 = vld [vmem:[%s1366 + $0xf0] sm:$0xff]
                  %1429 = vst [vmem:[%s1367 + $0xf0] sm:$0xff] %v1428
                  %v1430 = vld [vmem:[%s1366 + $0xf8] sm:$0xff]
                  %1431 = vst [vmem:[%s1367 + $0xf8] sm:$0xff] %v1430
                  %v1432 = vld [vmem:[%s1366 + $0x100] sm:$0xff]
                  %1433 = vst [vmem:[%s1367 + $0x100] sm:$0xff] %v1432
                  %v1434 = vld [vmem:[%s1366 + $0x108] sm:$0xff]
                  %1435 = vst [vmem:[%s1367 + $0x108] sm:$0xff] %v1434
                  %v1436 = vld [vmem:[%s1366 + $0x110] sm:$0xff]
                  %1437 = vst [vmem:[%s1367 + $0x110] sm:$0xff] %v1436
                  %v1438 = vld [vmem:[%s1366 + $0x118] sm:$0xff]
                  %1439 = vst [vmem:[%s1367 + $0x118] sm:$0xff] %v1438
                  %v1440 = vld [vmem:[%s1366 + $0x120] sm:$0xff]
                  %1441 = vst [vmem:[%s1367 + $0x120] sm:$0xff] %v1440
                  %v1442 = vld [vmem:[%s1366 + $0x128] sm:$0xff]
                  %1443 = vst [vmem:[%s1367 + $0x128] sm:$0xff] %v1442
                  %v1444 = vld [vmem:[%s1366 + $0x130] sm:$0xff]
                  %1445 = vst [vmem:[%s1367 + $0x130] sm:$0xff] %v1444
                  %v1446 = vld [vmem:[%s1366 + $0x138] sm:$0xff]
                  %1447 = vst [vmem:[%s1367 + $0x138] sm:$0xff] %v1446
                  %v1448 = vld [vmem:[%s1366 + $0x140] sm:$0xff]
                  %1449 = vst [vmem:[%s1367 + $0x140] sm:$0xff] %v1448
                  %v1450 = vld [vmem:[%s1366 + $0x148] sm:$0xff]
                  %1451 = vst [vmem:[%s1367 + $0x148] sm:$0xff] %v1450
                  %v1452 = vld [vmem:[%s1366 + $0x150] sm:$0xff]
                  %1453 = vst [vmem:[%s1367 + $0x150] sm:$0xff] %v1452
                  %v1454 = vld [vmem:[%s1366 + $0x158] sm:$0xff]
                  %1455 = vst [vmem:[%s1367 + $0x158] sm:$0xff] %v1454
                  %v1456 = vld [vmem:[%s1366 + $0x160] sm:$0xff]
                  %1457 = vst [vmem:[%s1367 + $0x160] sm:$0xff] %v1456
                  %v1458 = vld [vmem:[%s1366 + $0x168] sm:$0xff]
                  %1459 = vst [vmem:[%s1367 + $0x168] sm:$0xff] %v1458
                  %v1460 = vld [vmem:[%s1366 + $0x170] sm:$0xff]
                  %1461 = vst [vmem:[%s1367 + $0x170] sm:$0xff] %v1460
                  %v1462 = vld [vmem:[%s1366 + $0x178] sm:$0xff]
                  %1463 = vst [vmem:[%s1367 + $0x178] sm:$0xff] %v1462
                  %v1464 = vld [vmem:[%s1366 + $0x180] sm:$0xff]
                  %1465 = vst [vmem:[%s1367 + $0x180] sm:$0xff] %v1464
                  %v1466 = vld [vmem:[%s1366 + $0x188] sm:$0xff]
                  %1467 = vst [vmem:[%s1367 + $0x188] sm:$0xff] %v1466
                  %v1468 = vld [vmem:[%s1366 + $0x190] sm:$0xff]
                  %1469 = vst [vmem:[%s1367 + $0x190] sm:$0xff] %v1468
                  %v1470 = vld [vmem:[%s1366 + $0x198] sm:$0xff]
                  %1471 = vst [vmem:[%s1367 + $0x198] sm:$0xff] %v1470
                  %v1472 = vld [vmem:[%s1366 + $0x1a0] sm:$0xff]
                  %1473 = vst [vmem:[%s1367 + $0x1a0] sm:$0xff] %v1472
                  %v1474 = vld [vmem:[%s1366 + $0x1a8] sm:$0xff]
                  %1475 = vst [vmem:[%s1367 + $0x1a8] sm:$0xff] %v1474
                  %v1476 = vld [vmem:[%s1366 + $0x1b0] sm:$0xff]
                  %1477 = vst [vmem:[%s1367 + $0x1b0] sm:$0xff] %v1476
                  %v1478 = vld [vmem:[%s1366 + $0x1b8] sm:$0xff]
                  %1479 = vst [vmem:[%s1367 + $0x1b8] sm:$0xff] %v1478
                  %v1480 = vld [vmem:[%s1366 + $0x1c0] sm:$0xff]
                  %1481 = vst [vmem:[%s1367 + $0x1c0] sm:$0xff] %v1480
                  %v1482 = vld [vmem:[%s1366 + $0x1c8] sm:$0xff]
                  %1483 = vst [vmem:[%s1367 + $0x1c8] sm:$0xff] %v1482
                  %v1484 = vld [vmem:[%s1366 + $0x1d0] sm:$0xff]
                  %1485 = vst [vmem:[%s1367 + $0x1d0] sm:$0xff] %v1484
                  %v1486 = vld [vmem:[%s1366 + $0x1d8] sm:$0xff]
                  %1487 = vst [vmem:[%s1367 + $0x1d8] sm:$0xff] %v1486
                  %v1488 = vld [vmem:[%s1366 + $0x1e0] sm:$0xff]
                  %1489 = vst [vmem:[%s1367 + $0x1e0] sm:$0xff] %v1488
                  %v1490 = vld [vmem:[%s1366 + $0x1e8] sm:$0xff]
                  %1491 = vst [vmem:[%s1367 + $0x1e8] sm:$0xff] %v1490
                  %v1492 = vld [vmem:[%s1366 + $0x1f0] sm:$0xff]
                  %1493 = vst [vmem:[%s1367 + $0x1f0] sm:$0xff] %v1492
                  %v1494 = vld [vmem:[%s1366 + $0x1f8] sm:$0xff]
                  %1495 = vst [vmem:[%s1367 + $0x1f8] sm:$0xff] %v1494
                  %v1496 = vld [vmem:[%s1366 + $0x400] sm:$0xff]
                  %1497 = vst [vmem:[%s1367 + $0x200] sm:$0xff] %v1496
                  %v1498 = vld [vmem:[%s1366 + $0x408] sm:$0xff]
                  %1499 = vst [vmem:[%s1367 + $0x208] sm:$0xff] %v1498
                  %v1500 = vld [vmem:[%s1366 + $0x410] sm:$0xff]
                  %1501 = vst [vmem:[%s1367 + $0x210] sm:$0xff] %v1500
                  %v1502 = vld [vmem:[%s1366 + $0x418] sm:$0xff]
                  %1503 = vst [vmem:[%s1367 + $0x218] sm:$0xff] %v1502
                  %v1504 = vld [vmem:[%s1366 + $0x420] sm:$0xff]
                  %1505 = vst [vmem:[%s1367 + $0x220] sm:$0xff] %v1504
                  %v1506 = vld [vmem:[%s1366 + $0x428] sm:$0xff]
                  %1507 = vst [vmem:[%s1367 + $0x228] sm:$0xff] %v1506
                  %v1508 = vld [vmem:[%s1366 + $0x430] sm:$0xff]
                  %1509 = vst [vmem:[%s1367 + $0x230] sm:$0xff] %v1508
                  %v1510 = vld [vmem:[%s1366 + $0x438] sm:$0xff]
                  %1511 = vst [vmem:[%s1367 + $0x238] sm:$0xff] %v1510
                  %v1512 = vld [vmem:[%s1366 + $0x440] sm:$0xff]
                  %1513 = vst [vmem:[%s1367 + $0x240] sm:$0xff] %v1512
                  %v1514 = vld [vmem:[%s1366 + $0x448] sm:$0xff]
                  %1515 = vst [vmem:[%s1367 + $0x248] sm:$0xff] %v1514
                  %v1516 = vld [vmem:[%s1366 + $0x450] sm:$0xff]
                  %1517 = vst [vmem:[%s1367 + $0x250] sm:$0xff] %v1516
                  %v1518 = vld [vmem:[%s1366 + $0x458] sm:$0xff]
                  %1519 = vst [vmem:[%s1367 + $0x258] sm:$0xff] %v1518
                  %v1520 = vld [vmem:[%s1366 + $0x460] sm:$0xff]
                  %1521 = vst [vmem:[%s1367 + $0x260] sm:$0xff] %v1520
                  %v1522 = vld [vmem:[%s1366 + $0x468] sm:$0xff]
                  %1523 = vst [vmem:[%s1367 + $0x268] sm:$0xff] %v1522
                  %v1524 = vld [vmem:[%s1366 + $0x470] sm:$0xff]
                  %1525 = vst [vmem:[%s1367 + $0x270] sm:$0xff] %v1524
                  %v1526 = vld [vmem:[%s1366 + $0x478] sm:$0xff]
                  %1527 = vst [vmem:[%s1367 + $0x278] sm:$0xff] %v1526
                  %v1528 = vld [vmem:[%s1366 + $0x480] sm:$0xff]
                  %1529 = vst [vmem:[%s1367 + $0x280] sm:$0xff] %v1528
                  %v1530 = vld [vmem:[%s1366 + $0x488] sm:$0xff]
                  %1531 = vst [vmem:[%s1367 + $0x288] sm:$0xff] %v1530
                  %v1532 = vld [vmem:[%s1366 + $0x490] sm:$0xff]
                  %1533 = vst [vmem:[%s1367 + $0x290] sm:$0xff] %v1532
                  %v1534 = vld [vmem:[%s1366 + $0x498] sm:$0xff]
                  %1535 = vst [vmem:[%s1367 + $0x298] sm:$0xff] %v1534
                  %v1536 = vld [vmem:[%s1366 + $0x4a0] sm:$0xff]
                  %1537 = vst [vmem:[%s1367 + $0x2a0] sm:$0xff] %v1536
                  %v1538 = vld [vmem:[%s1366 + $0x4a8] sm:$0xff]
                  %1539 = vst [vmem:[%s1367 + $0x2a8] sm:$0xff] %v1538
                  %v1540 = vld [vmem:[%s1366 + $0x4b0] sm:$0xff]
                  %1541 = vst [vmem:[%s1367 + $0x2b0] sm:$0xff] %v1540
                  %v1542 = vld [vmem:[%s1366 + $0x4b8] sm:$0xff]
                  %1543 = vst [vmem:[%s1367 + $0x2b8] sm:$0xff] %v1542
                  %v1544 = vld [vmem:[%s1366 + $0x4c0] sm:$0xff]
                  %1545 = vst [vmem:[%s1367 + $0x2c0] sm:$0xff] %v1544
                  %v1546 = vld [vmem:[%s1366 + $0x4c8] sm:$0xff]
                  %1547 = vst [vmem:[%s1367 + $0x2c8] sm:$0xff] %v1546
                  %v1548 = vld [vmem:[%s1366 + $0x4d0] sm:$0xff]
                  %1549 = vst [vmem:[%s1367 + $0x2d0] sm:$0xff] %v1548
                  %v1550 = vld [vmem:[%s1366 + $0x4d8] sm:$0xff]
                  %1551 = vst [vmem:[%s1367 + $0x2d8] sm:$0xff] %v1550
                  %v1552 = vld [vmem:[%s1366 + $0x4e0] sm:$0xff]
                  %1553 = vst [vmem:[%s1367 + $0x2e0] sm:$0xff] %v1552
                  %v1554 = vld [vmem:[%s1366 + $0x4e8] sm:$0xff]
                  %1555 = vst [vmem:[%s1367 + $0x2e8] sm:$0xff] %v1554
                  %v1556 = vld [vmem:[%s1366 + $0x4f0] sm:$0xff]
                  %1557 = vst [vmem:[%s1367 + $0x2f0] sm:$0xff] %v1556
                  %v1558 = vld [vmem:[%s1366 + $0x4f8] sm:$0xff]
                  %1559 = vst [vmem:[%s1367 + $0x2f8] sm:$0xff] %v1558
                  %v1560 = vld [vmem:[%s1366 + $0x500] sm:$0xff]
                  %1561 = vst [vmem:[%s1367 + $0x300] sm:$0xff] %v1560
                  %v1562 = vld [vmem:[%s1366 + $0x508] sm:$0xff]
                  %1563 = vst [vmem:[%s1367 + $0x308] sm:$0xff] %v1562
                  %v1564 = vld [vmem:[%s1366 + $0x510] sm:$0xff]
                  %1565 = vst [vmem:[%s1367 + $0x310] sm:$0xff] %v1564
                  %v1566 = vld [vmem:[%s1366 + $0x518] sm:$0xff]
                  %1567 = vst [vmem:[%s1367 + $0x318] sm:$0xff] %v1566
                  %v1568 = vld [vmem:[%s1366 + $0x520] sm:$0xff]
                  %1569 = vst [vmem:[%s1367 + $0x320] sm:$0xff] %v1568
                  %v1570 = vld [vmem:[%s1366 + $0x528] sm:$0xff]
                  %1571 = vst [vmem:[%s1367 + $0x328] sm:$0xff] %v1570
                  %v1572 = vld [vmem:[%s1366 + $0x530] sm:$0xff]
                  %1573 = vst [vmem:[%s1367 + $0x330] sm:$0xff] %v1572
                  %v1574 = vld [vmem:[%s1366 + $0x538] sm:$0xff]
                  %1575 = vst [vmem:[%s1367 + $0x338] sm:$0xff] %v1574
                  %v1576 = vld [vmem:[%s1366 + $0x540] sm:$0xff]
                  %1577 = vst [vmem:[%s1367 + $0x340] sm:$0xff] %v1576
                  %v1578 = vld [vmem:[%s1366 + $0x548] sm:$0xff]
                  %1579 = vst [vmem:[%s1367 + $0x348] sm:$0xff] %v1578
                  %v1580 = vld [vmem:[%s1366 + $0x550] sm:$0xff]
                  %1581 = vst [vmem:[%s1367 + $0x350] sm:$0xff] %v1580
                  %v1582 = vld [vmem:[%s1366 + $0x558] sm:$0xff]
                  %1583 = vst [vmem:[%s1367 + $0x358] sm:$0xff] %v1582
                  %v1584 = vld [vmem:[%s1366 + $0x560] sm:$0xff]
                  %1585 = vst [vmem:[%s1367 + $0x360] sm:$0xff] %v1584
                  %v1586 = vld [vmem:[%s1366 + $0x568] sm:$0xff]
                  %1587 = vst [vmem:[%s1367 + $0x368] sm:$0xff] %v1586
                  %v1588 = vld [vmem:[%s1366 + $0x570] sm:$0xff]
                  %1589 = vst [vmem:[%s1367 + $0x370] sm:$0xff] %v1588
                  %v1590 = vld [vmem:[%s1366 + $0x578] sm:$0xff]
                  %1591 = vst [vmem:[%s1367 + $0x378] sm:$0xff] %v1590
                  %v1592 = vld [vmem:[%s1366 + $0x580] sm:$0xff]
                  %1593 = vst [vmem:[%s1367 + $0x380] sm:$0xff] %v1592
                  %v1594 = vld [vmem:[%s1366 + $0x588] sm:$0xff]
                  %1595 = vst [vmem:[%s1367 + $0x388] sm:$0xff] %v1594
                  %v1596 = vld [vmem:[%s1366 + $0x590] sm:$0xff]
                  %1597 = vst [vmem:[%s1367 + $0x390] sm:$0xff] %v1596
                  %v1598 = vld [vmem:[%s1366 + $0x598] sm:$0xff]
                  %1599 = vst [vmem:[%s1367 + $0x398] sm:$0xff] %v1598
                  %v1600 = vld [vmem:[%s1366 + $0x5a0] sm:$0xff]
                  %1601 = vst [vmem:[%s1367 + $0x3a0] sm:$0xff] %v1600
                  %v1602 = vld [vmem:[%s1366 + $0x5a8] sm:$0xff]
                  %1603 = vst [vmem:[%s1367 + $0x3a8] sm:$0xff] %v1602
                  %v1604 = vld [vmem:[%s1366 + $0x5b0] sm:$0xff]
                  %1605 = vst [vmem:[%s1367 + $0x3b0] sm:$0xff] %v1604
                  %v1606 = vld [vmem:[%s1366 + $0x5b8] sm:$0xff]
                  %1607 = vst [vmem:[%s1367 + $0x3b8] sm:$0xff] %v1606
                  %v1608 = vld [vmem:[%s1366 + $0x5c0] sm:$0xff]
                  %1609 = vst [vmem:[%s1367 + $0x3c0] sm:$0xff] %v1608
                  %v1610 = vld [vmem:[%s1366 + $0x5c8] sm:$0xff]
                  %1611 = vst [vmem:[%s1367 + $0x3c8] sm:$0xff] %v1610
                  %v1612 = vld [vmem:[%s1366 + $0x5d0] sm:$0xff]
                  %1613 = vst [vmem:[%s1367 + $0x3d0] sm:$0xff] %v1612
                  %v1614 = vld [vmem:[%s1366 + $0x5d8] sm:$0xff]
                  %1615 = vst [vmem:[%s1367 + $0x3d8] sm:$0xff] %v1614
                  %v1616 = vld [vmem:[%s1366 + $0x5e0] sm:$0xff]
                  %1617 = vst [vmem:[%s1367 + $0x3e0] sm:$0xff] %v1616
                  %v1618 = vld [vmem:[%s1366 + $0x5e8] sm:$0xff]
                  %1619 = vst [vmem:[%s1367 + $0x3e8] sm:$0xff] %v1618
                  %v1620 = vld [vmem:[%s1366 + $0x5f0] sm:$0xff]
                  %1621 = vst [vmem:[%s1367 + $0x3f0] sm:$0xff] %v1620
                  %v1622 = vld [vmem:[%s1366 + $0x5f8] sm:$0xff]
                  %1623 = vst [vmem:[%s1367 + $0x3f8] sm:$0xff] %v1622
                  %v1624 = vld [vmem:[%s1366 + $0x800] sm:$0xff]
                  %1625 = vst [vmem:[%s1367 + $0x400] sm:$0xff] %v1624
                  %v1626 = vld [vmem:[%s1366 + $0x808] sm:$0xff]
                  %1627 = vst [vmem:[%s1367 + $0x408] sm:$0xff] %v1626
                  %v1628 = vld [vmem:[%s1366 + $0x810] sm:$0xff]
                  %1629 = vst [vmem:[%s1367 + $0x410] sm:$0xff] %v1628
                  %v1630 = vld [vmem:[%s1366 + $0x818] sm:$0xff]
                  %1631 = vst [vmem:[%s1367 + $0x418] sm:$0xff] %v1630
                  %v1632 = vld [vmem:[%s1366 + $0x820] sm:$0xff]
                  %1633 = vst [vmem:[%s1367 + $0x420] sm:$0xff] %v1632
                  %v1634 = vld [vmem:[%s1366 + $0x828] sm:$0xff]
                  %1635 = vst [vmem:[%s1367 + $0x428] sm:$0xff] %v1634
                  %v1636 = vld [vmem:[%s1366 + $0x830] sm:$0xff]
                  %1637 = vst [vmem:[%s1367 + $0x430] sm:$0xff] %v1636
                  %v1638 = vld [vmem:[%s1366 + $0x838] sm:$0xff]
                  %1639 = vst [vmem:[%s1367 + $0x438] sm:$0xff] %v1638
                  %v1640 = vld [vmem:[%s1366 + $0x840] sm:$0xff]
                  %1641 = vst [vmem:[%s1367 + $0x440] sm:$0xff] %v1640
                  %v1642 = vld [vmem:[%s1366 + $0x848] sm:$0xff]
                  %1643 = vst [vmem:[%s1367 + $0x448] sm:$0xff] %v1642
                  %v1644 = vld [vmem:[%s1366 + $0x850] sm:$0xff]
                  %1645 = vst [vmem:[%s1367 + $0x450] sm:$0xff] %v1644
                  %v1646 = vld [vmem:[%s1366 + $0x858] sm:$0xff]
                  %1647 = vst [vmem:[%s1367 + $0x458] sm:$0xff] %v1646
                  %v1648 = vld [vmem:[%s1366 + $0x860] sm:$0xff]
                  %1649 = vst [vmem:[%s1367 + $0x460] sm:$0xff] %v1648
                  %v1650 = vld [vmem:[%s1366 + $0x868] sm:$0xff]
                  %1651 = vst [vmem:[%s1367 + $0x468] sm:$0xff] %v1650
                  %v1652 = vld [vmem:[%s1366 + $0x870] sm:$0xff]
                  %1653 = vst [vmem:[%s1367 + $0x470] sm:$0xff] %v1652
                  %v1654 = vld [vmem:[%s1366 + $0x878] sm:$0xff]
                  %1655 = vst [vmem:[%s1367 + $0x478] sm:$0xff] %v1654
                  %v1656 = vld [vmem:[%s1366 + $0x880] sm:$0xff]
                  %1657 = vst [vmem:[%s1367 + $0x480] sm:$0xff] %v1656
                  %v1658 = vld [vmem:[%s1366 + $0x888] sm:$0xff]
                  %1659 = vst [vmem:[%s1367 + $0x488] sm:$0xff] %v1658
                  %v1660 = vld [vmem:[%s1366 + $0x890] sm:$0xff]
                  %1661 = vst [vmem:[%s1367 + $0x490] sm:$0xff] %v1660
                  %v1662 = vld [vmem:[%s1366 + $0x898] sm:$0xff]
                  %1663 = vst [vmem:[%s1367 + $0x498] sm:$0xff] %v1662
                  %v1664 = vld [vmem:[%s1366 + $0x8a0] sm:$0xff]
                  %1665 = vst [vmem:[%s1367 + $0x4a0] sm:$0xff] %v1664
                  %v1666 = vld [vmem:[%s1366 + $0x8a8] sm:$0xff]
                  %1667 = vst [vmem:[%s1367 + $0x4a8] sm:$0xff] %v1666
                  %v1668 = vld [vmem:[%s1366 + $0x8b0] sm:$0xff]
                  %1669 = vst [vmem:[%s1367 + $0x4b0] sm:$0xff] %v1668
                  %v1670 = vld [vmem:[%s1366 + $0x8b8] sm:$0xff]
                  %1671 = vst [vmem:[%s1367 + $0x4b8] sm:$0xff] %v1670
                  %v1672 = vld [vmem:[%s1366 + $0x8c0] sm:$0xff]
                  %1673 = vst [vmem:[%s1367 + $0x4c0] sm:$0xff] %v1672
                  %v1674 = vld [vmem:[%s1366 + $0x8c8] sm:$0xff]
                  %1675 = vst [vmem:[%s1367 + $0x4c8] sm:$0xff] %v1674
                  %v1676 = vld [vmem:[%s1366 + $0x8d0] sm:$0xff]
                  %1677 = vst [vmem:[%s1367 + $0x4d0] sm:$0xff] %v1676
                  %v1678 = vld [vmem:[%s1366 + $0x8d8] sm:$0xff]
                  %1679 = vst [vmem:[%s1367 + $0x4d8] sm:$0xff] %v1678
                  %v1680 = vld [vmem:[%s1366 + $0x8e0] sm:$0xff]
                  %1681 = vst [vmem:[%s1367 + $0x4e0] sm:$0xff] %v1680
                  %v1682 = vld [vmem:[%s1366 + $0x8e8] sm:$0xff]
                  %1683 = vst [vmem:[%s1367 + $0x4e8] sm:$0xff] %v1682
                  %v1684 = vld [vmem:[%s1366 + $0x8f0] sm:$0xff]
                  %1685 = vst [vmem:[%s1367 + $0x4f0] sm:$0xff] %v1684
                  %v1686 = vld [vmem:[%s1366 + $0x8f8] sm:$0xff]
                  %1687 = vst [vmem:[%s1367 + $0x4f8] sm:$0xff] %v1686
                  %v1688 = vld [vmem:[%s1366 + $0x900] sm:$0xff]
                  %1689 = vst [vmem:[%s1367 + $0x500] sm:$0xff] %v1688
                  %v1690 = vld [vmem:[%s1366 + $0x908] sm:$0xff]
                  %1691 = vst [vmem:[%s1367 + $0x508] sm:$0xff] %v1690
                  %v1692 = vld [vmem:[%s1366 + $0x910] sm:$0xff]
                  %1693 = vst [vmem:[%s1367 + $0x510] sm:$0xff] %v1692
                  %v1694 = vld [vmem:[%s1366 + $0x918] sm:$0xff]
                  %1695 = vst [vmem:[%s1367 + $0x518] sm:$0xff] %v1694
                  %v1696 = vld [vmem:[%s1366 + $0x920] sm:$0xff]
                  %1697 = vst [vmem:[%s1367 + $0x520] sm:$0xff] %v1696
                  %v1698 = vld [vmem:[%s1366 + $0x928] sm:$0xff]
                  %1699 = vst [vmem:[%s1367 + $0x528] sm:$0xff] %v1698
                  %v1700 = vld [vmem:[%s1366 + $0x930] sm:$0xff]
                  %1701 = vst [vmem:[%s1367 + $0x530] sm:$0xff] %v1700
                  %v1702 = vld [vmem:[%s1366 + $0x938] sm:$0xff]
                  %1703 = vst [vmem:[%s1367 + $0x538] sm:$0xff] %v1702
                  %v1704 = vld [vmem:[%s1366 + $0x940] sm:$0xff]
                  %1705 = vst [vmem:[%s1367 + $0x540] sm:$0xff] %v1704
                  %v1706 = vld [vmem:[%s1366 + $0x948] sm:$0xff]
                  %1707 = vst [vmem:[%s1367 + $0x548] sm:$0xff] %v1706
                  %v1708 = vld [vmem:[%s1366 + $0x950] sm:$0xff]
                  %1709 = vst [vmem:[%s1367 + $0x550] sm:$0xff] %v1708
                  %v1710 = vld [vmem:[%s1366 + $0x958] sm:$0xff]
                  %1711 = vst [vmem:[%s1367 + $0x558] sm:$0xff] %v1710
                  %v1712 = vld [vmem:[%s1366 + $0x960] sm:$0xff]
                  %1713 = vst [vmem:[%s1367 + $0x560] sm:$0xff] %v1712
                  %v1714 = vld [vmem:[%s1366 + $0x968] sm:$0xff]
                  %1715 = vst [vmem:[%s1367 + $0x568] sm:$0xff] %v1714
                  %v1716 = vld [vmem:[%s1366 + $0x970] sm:$0xff]
                  %1717 = vst [vmem:[%s1367 + $0x570] sm:$0xff] %v1716
                  %v1718 = vld [vmem:[%s1366 + $0x978] sm:$0xff]
                  %1719 = vst [vmem:[%s1367 + $0x578] sm:$0xff] %v1718
                  %v1720 = vld [vmem:[%s1366 + $0x980] sm:$0xff]
                  %1721 = vst [vmem:[%s1367 + $0x580] sm:$0xff] %v1720
                  %v1722 = vld [vmem:[%s1366 + $0x988] sm:$0xff]
                  %1723 = vst [vmem:[%s1367 + $0x588] sm:$0xff] %v1722
                  %v1724 = vld [vmem:[%s1366 + $0x990] sm:$0xff]
                  %1725 = vst [vmem:[%s1367 + $0x590] sm:$0xff] %v1724
                  %v1726 = vld [vmem:[%s1366 + $0x998] sm:$0xff]
                  %1727 = vst [vmem:[%s1367 + $0x598] sm:$0xff] %v1726
                  %v1728 = vld [vmem:[%s1366 + $0x9a0] sm:$0xff]
                  %1729 = vst [vmem:[%s1367 + $0x5a0] sm:$0xff] %v1728
                  %v1730 = vld [vmem:[%s1366 + $0x9a8] sm:$0xff]
                  %1731 = vst [vmem:[%s1367 + $0x5a8] sm:$0xff] %v1730
                  %v1732 = vld [vmem:[%s1366 + $0x9b0] sm:$0xff]
                  %1733 = vst [vmem:[%s1367 + $0x5b0] sm:$0xff] %v1732
                  %v1734 = vld [vmem:[%s1366 + $0x9b8] sm:$0xff]
                  %1735 = vst [vmem:[%s1367 + $0x5b8] sm:$0xff] %v1734
                  %v1736 = vld [vmem:[%s1366 + $0x9c0] sm:$0xff]
                  %1737 = vst [vmem:[%s1367 + $0x5c0] sm:$0xff] %v1736
                  %v1738 = vld [vmem:[%s1366 + $0x9c8] sm:$0xff]
                  %1739 = vst [vmem:[%s1367 + $0x5c8] sm:$0xff] %v1738
                  %v1740 = vld [vmem:[%s1366 + $0x9d0] sm:$0xff]
                  %1741 = vst [vmem:[%s1367 + $0x5d0] sm:$0xff] %v1740
                  %v1742 = vld [vmem:[%s1366 + $0x9d8] sm:$0xff]
                  %1743 = vst [vmem:[%s1367 + $0x5d8] sm:$0xff] %v1742
                  %v1744 = vld [vmem:[%s1366 + $0x9e0] sm:$0xff]
                  %1745 = vst [vmem:[%s1367 + $0x5e0] sm:$0xff] %v1744
                  %v1746 = vld [vmem:[%s1366 + $0x9e8] sm:$0xff]
                  %1747 = vst [vmem:[%s1367 + $0x5e8] sm:$0xff] %v1746
                  %v1748 = vld [vmem:[%s1366 + $0x9f0] sm:$0xff]
                  %1749 = vst [vmem:[%s1367 + $0x5f0] sm:$0xff] %v1748
                  %v1750 = vld [vmem:[%s1366 + $0x9f8] sm:$0xff]
                  %1751 = vst [vmem:[%s1367 + $0x5f8] sm:$0xff] %v1750
                $region90: #{sphere_tracing_render.1} parent=84 // loop_footer
                  %s1365 = sadd.s32 1, %s1361
                $region91: #{sphere_tracing_render.1} parent=84 // loop_footer_branch
                  %1360 = sbr.rel target = $region87
                $region92: #{sphere_tracing_render.1} parent=84 // loop_exit
                  _
              $region85: #{sphere_tracing_render.1} parent=69 // pred_fallthru
                _
              // Predicated region
              $region93: #{sphere_tracing_render.1} parent=69 // pred_check
                _
              $region94: #{sphere_tracing_render.1} parent=69 // pred_check_branch
                %1753 = sbr.rel target = $region96
              $region95: #{sphere_tracing_render.1} parent=69 // pred_region
                _
              $region96: #{sphere_tracing_render.1} parent=69 // pred_fallthru
                _
            $region70: #{sphere_tracing_render.1} parent=65 // pred_fallthru
              _
            // Predicated region
            $region71: #{sphere_tracing_render.1} parent=65 // pred_check
              _
            $region72: #{sphere_tracing_render.1} parent=65 // pred_check_branch
              %963 = sbr.rel target = $region74
            $region73: #{sphere_tracing_render.1} parent=65 // pred_region
              %s965 = ssub.s32 256, 1
              loop: start=0, step=1, limit=1
              $region75: #{sphere_tracing_render.1} parent=73 // loop_pre_header
                _
              $region76: #{sphere_tracing_render.1} parent=73 // loop_header
                %s967 = sphi 0, %s971
                %p968 = scmp.ge.s32.totalorder %s967, 1
                %s972 = sphi %s957, %s957
                %s973 = sphi %s953, %s953
              $region77: #{sphere_tracing_render.1} parent=73 // loop_header_branch
                %970 = sbr.rel (%p968) target = $region81
              $region78: #{sphere_tracing_render.1} parent=73 // loop_body
                %v974 = vld [vmem:[%s972] sm:%s965]
                %975 = vst [vmem:[%s973] sm:%s965] %v974
                %v976 = vld [vmem:[%s972 + $0x8] sm:%s965]
                %977 = vst [vmem:[%s973 + $0x8] sm:%s965] %v976
                %v978 = vld [vmem:[%s972 + $0x10] sm:%s965]
                %979 = vst [vmem:[%s973 + $0x10] sm:%s965] %v978
                %v980 = vld [vmem:[%s972 + $0x18] sm:%s965]
                %981 = vst [vmem:[%s973 + $0x18] sm:%s965] %v980
                %v982 = vld [vmem:[%s972 + $0x20] sm:%s965]
                %983 = vst [vmem:[%s973 + $0x20] sm:%s965] %v982
                %v984 = vld [vmem:[%s972 + $0x28] sm:%s965]
                %985 = vst [vmem:[%s973 + $0x28] sm:%s965] %v984
                %v986 = vld [vmem:[%s972 + $0x30] sm:%s965]
                %987 = vst [vmem:[%s973 + $0x30] sm:%s965] %v986
                %v988 = vld [vmem:[%s972 + $0x38] sm:%s965]
                %989 = vst [vmem:[%s973 + $0x38] sm:%s965] %v988
                %v990 = vld [vmem:[%s972 + $0x40] sm:%s965]
                %991 = vst [vmem:[%s973 + $0x40] sm:%s965] %v990
                %v992 = vld [vmem:[%s972 + $0x48] sm:%s965]
                %993 = vst [vmem:[%s973 + $0x48] sm:%s965] %v992
                %v994 = vld [vmem:[%s972 + $0x50] sm:%s965]
                %995 = vst [vmem:[%s973 + $0x50] sm:%s965] %v994
                %v996 = vld [vmem:[%s972 + $0x58] sm:%s965]
                %997 = vst [vmem:[%s973 + $0x58] sm:%s965] %v996
                %v998 = vld [vmem:[%s972 + $0x60] sm:%s965]
                %999 = vst [vmem:[%s973 + $0x60] sm:%s965] %v998
                %v1000 = vld [vmem:[%s972 + $0x68] sm:%s965]
                %1001 = vst [vmem:[%s973 + $0x68] sm:%s965] %v1000
                %v1002 = vld [vmem:[%s972 + $0x70] sm:%s965]
                %1003 = vst [vmem:[%s973 + $0x70] sm:%s965] %v1002
                %v1004 = vld [vmem:[%s972 + $0x78] sm:%s965]
                %1005 = vst [vmem:[%s973 + $0x78] sm:%s965] %v1004
                %v1006 = vld [vmem:[%s972 + $0x80] sm:%s965]
                %1007 = vst [vmem:[%s973 + $0x80] sm:%s965] %v1006
                %v1008 = vld [vmem:[%s972 + $0x88] sm:%s965]
                %1009 = vst [vmem:[%s973 + $0x88] sm:%s965] %v1008
                %v1010 = vld [vmem:[%s972 + $0x90] sm:%s965]
                %1011 = vst [vmem:[%s973 + $0x90] sm:%s965] %v1010
                %v1012 = vld [vmem:[%s972 + $0x98] sm:%s965]
                %1013 = vst [vmem:[%s973 + $0x98] sm:%s965] %v1012
                %v1014 = vld [vmem:[%s972 + $0xa0] sm:%s965]
                %1015 = vst [vmem:[%s973 + $0xa0] sm:%s965] %v1014
                %v1016 = vld [vmem:[%s972 + $0xa8] sm:%s965]
                %1017 = vst [vmem:[%s973 + $0xa8] sm:%s965] %v1016
                %v1018 = vld [vmem:[%s972 + $0xb0] sm:%s965]
                %1019 = vst [vmem:[%s973 + $0xb0] sm:%s965] %v1018
                %v1020 = vld [vmem:[%s972 + $0xb8] sm:%s965]
                %1021 = vst [vmem:[%s973 + $0xb8] sm:%s965] %v1020
                %v1022 = vld [vmem:[%s972 + $0xc0] sm:%s965]
                %1023 = vst [vmem:[%s973 + $0xc0] sm:%s965] %v1022
                %v1024 = vld [vmem:[%s972 + $0xc8] sm:%s965]
                %1025 = vst [vmem:[%s973 + $0xc8] sm:%s965] %v1024
                %v1026 = vld [vmem:[%s972 + $0xd0] sm:%s965]
                %1027 = vst [vmem:[%s973 + $0xd0] sm:%s965] %v1026
                %v1028 = vld [vmem:[%s972 + $0xd8] sm:%s965]
                %1029 = vst [vmem:[%s973 + $0xd8] sm:%s965] %v1028
                %v1030 = vld [vmem:[%s972 + $0xe0] sm:%s965]
                %1031 = vst [vmem:[%s973 + $0xe0] sm:%s965] %v1030
                %v1032 = vld [vmem:[%s972 + $0xe8] sm:%s965]
                %1033 = vst [vmem:[%s973 + $0xe8] sm:%s965] %v1032
                %v1034 = vld [vmem:[%s972 + $0xf0] sm:%s965]
                %1035 = vst [vmem:[%s973 + $0xf0] sm:%s965] %v1034
                %v1036 = vld [vmem:[%s972 + $0xf8] sm:%s965]
                %1037 = vst [vmem:[%s973 + $0xf8] sm:%s965] %v1036
                %v1038 = vld [vmem:[%s972 + $0x100] sm:%s965]
                %1039 = vst [vmem:[%s973 + $0x100] sm:%s965] %v1038
                %v1040 = vld [vmem:[%s972 + $0x108] sm:%s965]
                %1041 = vst [vmem:[%s973 + $0x108] sm:%s965] %v1040
                %v1042 = vld [vmem:[%s972 + $0x110] sm:%s965]
                %1043 = vst [vmem:[%s973 + $0x110] sm:%s965] %v1042
                %v1044 = vld [vmem:[%s972 + $0x118] sm:%s965]
                %1045 = vst [vmem:[%s973 + $0x118] sm:%s965] %v1044
                %v1046 = vld [vmem:[%s972 + $0x120] sm:%s965]
                %1047 = vst [vmem:[%s973 + $0x120] sm:%s965] %v1046
                %v1048 = vld [vmem:[%s972 + $0x128] sm:%s965]
                %1049 = vst [vmem:[%s973 + $0x128] sm:%s965] %v1048
                %v1050 = vld [vmem:[%s972 + $0x130] sm:%s965]
                %1051 = vst [vmem:[%s973 + $0x130] sm:%s965] %v1050
                %v1052 = vld [vmem:[%s972 + $0x138] sm:%s965]
                %1053 = vst [vmem:[%s973 + $0x138] sm:%s965] %v1052
                %v1054 = vld [vmem:[%s972 + $0x140] sm:%s965]
                %1055 = vst [vmem:[%s973 + $0x140] sm:%s965] %v1054
                %v1056 = vld [vmem:[%s972 + $0x148] sm:%s965]
                %1057 = vst [vmem:[%s973 + $0x148] sm:%s965] %v1056
                %v1058 = vld [vmem:[%s972 + $0x150] sm:%s965]
                %1059 = vst [vmem:[%s973 + $0x150] sm:%s965] %v1058
                %v1060 = vld [vmem:[%s972 + $0x158] sm:%s965]
                %1061 = vst [vmem:[%s973 + $0x158] sm:%s965] %v1060
                %v1062 = vld [vmem:[%s972 + $0x160] sm:%s965]
                %1063 = vst [vmem:[%s973 + $0x160] sm:%s965] %v1062
                %v1064 = vld [vmem:[%s972 + $0x168] sm:%s965]
                %1065 = vst [vmem:[%s973 + $0x168] sm:%s965] %v1064
                %v1066 = vld [vmem:[%s972 + $0x170] sm:%s965]
                %1067 = vst [vmem:[%s973 + $0x170] sm:%s965] %v1066
                %v1068 = vld [vmem:[%s972 + $0x178] sm:%s965]
                %1069 = vst [vmem:[%s973 + $0x178] sm:%s965] %v1068
                %v1070 = vld [vmem:[%s972 + $0x180] sm:%s965]
                %1071 = vst [vmem:[%s973 + $0x180] sm:%s965] %v1070
                %v1072 = vld [vmem:[%s972 + $0x188] sm:%s965]
                %1073 = vst [vmem:[%s973 + $0x188] sm:%s965] %v1072
                %v1074 = vld [vmem:[%s972 + $0x190] sm:%s965]
                %1075 = vst [vmem:[%s973 + $0x190] sm:%s965] %v1074
                %v1076 = vld [vmem:[%s972 + $0x198] sm:%s965]
                %1077 = vst [vmem:[%s973 + $0x198] sm:%s965] %v1076
                %v1078 = vld [vmem:[%s972 + $0x1a0] sm:%s965]
                %1079 = vst [vmem:[%s973 + $0x1a0] sm:%s965] %v1078
                %v1080 = vld [vmem:[%s972 + $0x1a8] sm:%s965]
                %1081 = vst [vmem:[%s973 + $0x1a8] sm:%s965] %v1080
                %v1082 = vld [vmem:[%s972 + $0x1b0] sm:%s965]
                %1083 = vst [vmem:[%s973 + $0x1b0] sm:%s965] %v1082
                %v1084 = vld [vmem:[%s972 + $0x1b8] sm:%s965]
                %1085 = vst [vmem:[%s973 + $0x1b8] sm:%s965] %v1084
                %v1086 = vld [vmem:[%s972 + $0x1c0] sm:%s965]
                %1087 = vst [vmem:[%s973 + $0x1c0] sm:%s965] %v1086
                %v1088 = vld [vmem:[%s972 + $0x1c8] sm:%s965]
                %1089 = vst [vmem:[%s973 + $0x1c8] sm:%s965] %v1088
                %v1090 = vld [vmem:[%s972 + $0x1d0] sm:%s965]
                %1091 = vst [vmem:[%s973 + $0x1d0] sm:%s965] %v1090
                %v1092 = vld [vmem:[%s972 + $0x1d8] sm:%s965]
                %1093 = vst [vmem:[%s973 + $0x1d8] sm:%s965] %v1092
                %v1094 = vld [vmem:[%s972 + $0x1e0] sm:%s965]
                %1095 = vst [vmem:[%s973 + $0x1e0] sm:%s965] %v1094
                %v1096 = vld [vmem:[%s972 + $0x1e8] sm:%s965]
                %1097 = vst [vmem:[%s973 + $0x1e8] sm:%s965] %v1096
                %v1098 = vld [vmem:[%s972 + $0x1f0] sm:%s965]
                %1099 = vst [vmem:[%s973 + $0x1f0] sm:%s965] %v1098
                %v1100 = vld [vmem:[%s972 + $0x1f8] sm:%s965]
                %1101 = vst [vmem:[%s973 + $0x1f8] sm:%s965] %v1100
                %v1102 = vld [vmem:[%s972 + $0x400] sm:%s965]
                %1103 = vst [vmem:[%s973 + $0x200] sm:%s965] %v1102
                %v1104 = vld [vmem:[%s972 + $0x408] sm:%s965]
                %1105 = vst [vmem:[%s973 + $0x208] sm:%s965] %v1104
                %v1106 = vld [vmem:[%s972 + $0x410] sm:%s965]
                %1107 = vst [vmem:[%s973 + $0x210] sm:%s965] %v1106
                %v1108 = vld [vmem:[%s972 + $0x418] sm:%s965]
                %1109 = vst [vmem:[%s973 + $0x218] sm:%s965] %v1108
                %v1110 = vld [vmem:[%s972 + $0x420] sm:%s965]
                %1111 = vst [vmem:[%s973 + $0x220] sm:%s965] %v1110
                %v1112 = vld [vmem:[%s972 + $0x428] sm:%s965]
                %1113 = vst [vmem:[%s973 + $0x228] sm:%s965] %v1112
                %v1114 = vld [vmem:[%s972 + $0x430] sm:%s965]
                %1115 = vst [vmem:[%s973 + $0x230] sm:%s965] %v1114
                %v1116 = vld [vmem:[%s972 + $0x438] sm:%s965]
                %1117 = vst [vmem:[%s973 + $0x238] sm:%s965] %v1116
                %v1118 = vld [vmem:[%s972 + $0x440] sm:%s965]
                %1119 = vst [vmem:[%s973 + $0x240] sm:%s965] %v1118
                %v1120 = vld [vmem:[%s972 + $0x448] sm:%s965]
                %1121 = vst [vmem:[%s973 + $0x248] sm:%s965] %v1120
                %v1122 = vld [vmem:[%s972 + $0x450] sm:%s965]
                %1123 = vst [vmem:[%s973 + $0x250] sm:%s965] %v1122
                %v1124 = vld [vmem:[%s972 + $0x458] sm:%s965]
                %1125 = vst [vmem:[%s973 + $0x258] sm:%s965] %v1124
                %v1126 = vld [vmem:[%s972 + $0x460] sm:%s965]
                %1127 = vst [vmem:[%s973 + $0x260] sm:%s965] %v1126
                %v1128 = vld [vmem:[%s972 + $0x468] sm:%s965]
                %1129 = vst [vmem:[%s973 + $0x268] sm:%s965] %v1128
                %v1130 = vld [vmem:[%s972 + $0x470] sm:%s965]
                %1131 = vst [vmem:[%s973 + $0x270] sm:%s965] %v1130
                %v1132 = vld [vmem:[%s972 + $0x478] sm:%s965]
                %1133 = vst [vmem:[%s973 + $0x278] sm:%s965] %v1132
                %v1134 = vld [vmem:[%s972 + $0x480] sm:%s965]
                %1135 = vst [vmem:[%s973 + $0x280] sm:%s965] %v1134
                %v1136 = vld [vmem:[%s972 + $0x488] sm:%s965]
                %1137 = vst [vmem:[%s973 + $0x288] sm:%s965] %v1136
                %v1138 = vld [vmem:[%s972 + $0x490] sm:%s965]
                %1139 = vst [vmem:[%s973 + $0x290] sm:%s965] %v1138
                %v1140 = vld [vmem:[%s972 + $0x498] sm:%s965]
                %1141 = vst [vmem:[%s973 + $0x298] sm:%s965] %v1140
                %v1142 = vld [vmem:[%s972 + $0x4a0] sm:%s965]
                %1143 = vst [vmem:[%s973 + $0x2a0] sm:%s965] %v1142
                %v1144 = vld [vmem:[%s972 + $0x4a8] sm:%s965]
                %1145 = vst [vmem:[%s973 + $0x2a8] sm:%s965] %v1144
                %v1146 = vld [vmem:[%s972 + $0x4b0] sm:%s965]
                %1147 = vst [vmem:[%s973 + $0x2b0] sm:%s965] %v1146
                %v1148 = vld [vmem:[%s972 + $0x4b8] sm:%s965]
                %1149 = vst [vmem:[%s973 + $0x2b8] sm:%s965] %v1148
                %v1150 = vld [vmem:[%s972 + $0x4c0] sm:%s965]
                %1151 = vst [vmem:[%s973 + $0x2c0] sm:%s965] %v1150
                %v1152 = vld [vmem:[%s972 + $0x4c8] sm:%s965]
                %1153 = vst [vmem:[%s973 + $0x2c8] sm:%s965] %v1152
                %v1154 = vld [vmem:[%s972 + $0x4d0] sm:%s965]
                %1155 = vst [vmem:[%s973 + $0x2d0] sm:%s965] %v1154
                %v1156 = vld [vmem:[%s972 + $0x4d8] sm:%s965]
                %1157 = vst [vmem:[%s973 + $0x2d8] sm:%s965] %v1156
                %v1158 = vld [vmem:[%s972 + $0x4e0] sm:%s965]
                %1159 = vst [vmem:[%s973 + $0x2e0] sm:%s965] %v1158
                %v1160 = vld [vmem:[%s972 + $0x4e8] sm:%s965]
                %1161 = vst [vmem:[%s973 + $0x2e8] sm:%s965] %v1160
                %v1162 = vld [vmem:[%s972 + $0x4f0] sm:%s965]
                %1163 = vst [vmem:[%s973 + $0x2f0] sm:%s965] %v1162
                %v1164 = vld [vmem:[%s972 + $0x4f8] sm:%s965]
                %1165 = vst [vmem:[%s973 + $0x2f8] sm:%s965] %v1164
                %v1166 = vld [vmem:[%s972 + $0x500] sm:%s965]
                %1167 = vst [vmem:[%s973 + $0x300] sm:%s965] %v1166
                %v1168 = vld [vmem:[%s972 + $0x508] sm:%s965]
                %1169 = vst [vmem:[%s973 + $0x308] sm:%s965] %v1168
                %v1170 = vld [vmem:[%s972 + $0x510] sm:%s965]
                %1171 = vst [vmem:[%s973 + $0x310] sm:%s965] %v1170
                %v1172 = vld [vmem:[%s972 + $0x518] sm:%s965]
                %1173 = vst [vmem:[%s973 + $0x318] sm:%s965] %v1172
                %v1174 = vld [vmem:[%s972 + $0x520] sm:%s965]
                %1175 = vst [vmem:[%s973 + $0x320] sm:%s965] %v1174
                %v1176 = vld [vmem:[%s972 + $0x528] sm:%s965]
                %1177 = vst [vmem:[%s973 + $0x328] sm:%s965] %v1176
                %v1178 = vld [vmem:[%s972 + $0x530] sm:%s965]
                %1179 = vst [vmem:[%s973 + $0x330] sm:%s965] %v1178
                %v1180 = vld [vmem:[%s972 + $0x538] sm:%s965]
                %1181 = vst [vmem:[%s973 + $0x338] sm:%s965] %v1180
                %v1182 = vld [vmem:[%s972 + $0x540] sm:%s965]
                %1183 = vst [vmem:[%s973 + $0x340] sm:%s965] %v1182
                %v1184 = vld [vmem:[%s972 + $0x548] sm:%s965]
                %1185 = vst [vmem:[%s973 + $0x348] sm:%s965] %v1184
                %v1186 = vld [vmem:[%s972 + $0x550] sm:%s965]
                %1187 = vst [vmem:[%s973 + $0x350] sm:%s965] %v1186
                %v1188 = vld [vmem:[%s972 + $0x558] sm:%s965]
                %1189 = vst [vmem:[%s973 + $0x358] sm:%s965] %v1188
                %v1190 = vld [vmem:[%s972 + $0x560] sm:%s965]
                %1191 = vst [vmem:[%s973 + $0x360] sm:%s965] %v1190
                %v1192 = vld [vmem:[%s972 + $0x568] sm:%s965]
                %1193 = vst [vmem:[%s973 + $0x368] sm:%s965] %v1192
                %v1194 = vld [vmem:[%s972 + $0x570] sm:%s965]
                %1195 = vst [vmem:[%s973 + $0x370] sm:%s965] %v1194
                %v1196 = vld [vmem:[%s972 + $0x578] sm:%s965]
                %1197 = vst [vmem:[%s973 + $0x378] sm:%s965] %v1196
                %v1198 = vld [vmem:[%s972 + $0x580] sm:%s965]
                %1199 = vst [vmem:[%s973 + $0x380] sm:%s965] %v1198
                %v1200 = vld [vmem:[%s972 + $0x588] sm:%s965]
                %1201 = vst [vmem:[%s973 + $0x388] sm:%s965] %v1200
                %v1202 = vld [vmem:[%s972 + $0x590] sm:%s965]
                %1203 = vst [vmem:[%s973 + $0x390] sm:%s965] %v1202
                %v1204 = vld [vmem:[%s972 + $0x598] sm:%s965]
                %1205 = vst [vmem:[%s973 + $0x398] sm:%s965] %v1204
                %v1206 = vld [vmem:[%s972 + $0x5a0] sm:%s965]
                %1207 = vst [vmem:[%s973 + $0x3a0] sm:%s965] %v1206
                %v1208 = vld [vmem:[%s972 + $0x5a8] sm:%s965]
                %1209 = vst [vmem:[%s973 + $0x3a8] sm:%s965] %v1208
                %v1210 = vld [vmem:[%s972 + $0x5b0] sm:%s965]
                %1211 = vst [vmem:[%s973 + $0x3b0] sm:%s965] %v1210
                %v1212 = vld [vmem:[%s972 + $0x5b8] sm:%s965]
                %1213 = vst [vmem:[%s973 + $0x3b8] sm:%s965] %v1212
                %v1214 = vld [vmem:[%s972 + $0x5c0] sm:%s965]
                %1215 = vst [vmem:[%s973 + $0x3c0] sm:%s965] %v1214
                %v1216 = vld [vmem:[%s972 + $0x5c8] sm:%s965]
                %1217 = vst [vmem:[%s973 + $0x3c8] sm:%s965] %v1216
                %v1218 = vld [vmem:[%s972 + $0x5d0] sm:%s965]
                %1219 = vst [vmem:[%s973 + $0x3d0] sm:%s965] %v1218
                %v1220 = vld [vmem:[%s972 + $0x5d8] sm:%s965]
                %1221 = vst [vmem:[%s973 + $0x3d8] sm:%s965] %v1220
                %v1222 = vld [vmem:[%s972 + $0x5e0] sm:%s965]
                %1223 = vst [vmem:[%s973 + $0x3e0] sm:%s965] %v1222
                %v1224 = vld [vmem:[%s972 + $0x5e8] sm:%s965]
                %1225 = vst [vmem:[%s973 + $0x3e8] sm:%s965] %v1224
                %v1226 = vld [vmem:[%s972 + $0x5f0] sm:%s965]
                %1227 = vst [vmem:[%s973 + $0x3f0] sm:%s965] %v1226
                %v1228 = vld [vmem:[%s972 + $0x5f8] sm:%s965]
                %1229 = vst [vmem:[%s973 + $0x3f8] sm:%s965] %v1228
                %v1230 = vld [vmem:[%s972 + $0x800] sm:%s965]
                %1231 = vst [vmem:[%s973 + $0x400] sm:%s965] %v1230
                %v1232 = vld [vmem:[%s972 + $0x808] sm:%s965]
                %1233 = vst [vmem:[%s973 + $0x408] sm:%s965] %v1232
                %v1234 = vld [vmem:[%s972 + $0x810] sm:%s965]
                %1235 = vst [vmem:[%s973 + $0x410] sm:%s965] %v1234
                %v1236 = vld [vmem:[%s972 + $0x818] sm:%s965]
                %1237 = vst [vmem:[%s973 + $0x418] sm:%s965] %v1236
                %v1238 = vld [vmem:[%s972 + $0x820] sm:%s965]
                %1239 = vst [vmem:[%s973 + $0x420] sm:%s965] %v1238
                %v1240 = vld [vmem:[%s972 + $0x828] sm:%s965]
                %1241 = vst [vmem:[%s973 + $0x428] sm:%s965] %v1240
                %v1242 = vld [vmem:[%s972 + $0x830] sm:%s965]
                %1243 = vst [vmem:[%s973 + $0x430] sm:%s965] %v1242
                %v1244 = vld [vmem:[%s972 + $0x838] sm:%s965]
                %1245 = vst [vmem:[%s973 + $0x438] sm:%s965] %v1244
                %v1246 = vld [vmem:[%s972 + $0x840] sm:%s965]
                %1247 = vst [vmem:[%s973 + $0x440] sm:%s965] %v1246
                %v1248 = vld [vmem:[%s972 + $0x848] sm:%s965]
                %1249 = vst [vmem:[%s973 + $0x448] sm:%s965] %v1248
                %v1250 = vld [vmem:[%s972 + $0x850] sm:%s965]
                %1251 = vst [vmem:[%s973 + $0x450] sm:%s965] %v1250
                %v1252 = vld [vmem:[%s972 + $0x858] sm:%s965]
                %1253 = vst [vmem:[%s973 + $0x458] sm:%s965] %v1252
                %v1254 = vld [vmem:[%s972 + $0x860] sm:%s965]
                %1255 = vst [vmem:[%s973 + $0x460] sm:%s965] %v1254
                %v1256 = vld [vmem:[%s972 + $0x868] sm:%s965]
                %1257 = vst [vmem:[%s973 + $0x468] sm:%s965] %v1256
                %v1258 = vld [vmem:[%s972 + $0x870] sm:%s965]
                %1259 = vst [vmem:[%s973 + $0x470] sm:%s965] %v1258
                %v1260 = vld [vmem:[%s972 + $0x878] sm:%s965]
                %1261 = vst [vmem:[%s973 + $0x478] sm:%s965] %v1260
                %v1262 = vld [vmem:[%s972 + $0x880] sm:%s965]
                %1263 = vst [vmem:[%s973 + $0x480] sm:%s965] %v1262
                %v1264 = vld [vmem:[%s972 + $0x888] sm:%s965]
                %1265 = vst [vmem:[%s973 + $0x488] sm:%s965] %v1264
                %v1266 = vld [vmem:[%s972 + $0x890] sm:%s965]
                %1267 = vst [vmem:[%s973 + $0x490] sm:%s965] %v1266
                %v1268 = vld [vmem:[%s972 + $0x898] sm:%s965]
                %1269 = vst [vmem:[%s973 + $0x498] sm:%s965] %v1268
                %v1270 = vld [vmem:[%s972 + $0x8a0] sm:%s965]
                %1271 = vst [vmem:[%s973 + $0x4a0] sm:%s965] %v1270
                %v1272 = vld [vmem:[%s972 + $0x8a8] sm:%s965]
                %1273 = vst [vmem:[%s973 + $0x4a8] sm:%s965] %v1272
                %v1274 = vld [vmem:[%s972 + $0x8b0] sm:%s965]
                %1275 = vst [vmem:[%s973 + $0x4b0] sm:%s965] %v1274
                %v1276 = vld [vmem:[%s972 + $0x8b8] sm:%s965]
                %1277 = vst [vmem:[%s973 + $0x4b8] sm:%s965] %v1276
                %v1278 = vld [vmem:[%s972 + $0x8c0] sm:%s965]
                %1279 = vst [vmem:[%s973 + $0x4c0] sm:%s965] %v1278
                %v1280 = vld [vmem:[%s972 + $0x8c8] sm:%s965]
                %1281 = vst [vmem:[%s973 + $0x4c8] sm:%s965] %v1280
                %v1282 = vld [vmem:[%s972 + $0x8d0] sm:%s965]
                %1283 = vst [vmem:[%s973 + $0x4d0] sm:%s965] %v1282
                %v1284 = vld [vmem:[%s972 + $0x8d8] sm:%s965]
                %1285 = vst [vmem:[%s973 + $0x4d8] sm:%s965] %v1284
                %v1286 = vld [vmem:[%s972 + $0x8e0] sm:%s965]
                %1287 = vst [vmem:[%s973 + $0x4e0] sm:%s965] %v1286
                %v1288 = vld [vmem:[%s972 + $0x8e8] sm:%s965]
                %1289 = vst [vmem:[%s973 + $0x4e8] sm:%s965] %v1288
                %v1290 = vld [vmem:[%s972 + $0x8f0] sm:%s965]
                %1291 = vst [vmem:[%s973 + $0x4f0] sm:%s965] %v1290
                %v1292 = vld [vmem:[%s972 + $0x8f8] sm:%s965]
                %1293 = vst [vmem:[%s973 + $0x4f8] sm:%s965] %v1292
                %v1294 = vld [vmem:[%s972 + $0x900] sm:%s965]
                %1295 = vst [vmem:[%s973 + $0x500] sm:%s965] %v1294
                %v1296 = vld [vmem:[%s972 + $0x908] sm:%s965]
                %1297 = vst [vmem:[%s973 + $0x508] sm:%s965] %v1296
                %v1298 = vld [vmem:[%s972 + $0x910] sm:%s965]
                %1299 = vst [vmem:[%s973 + $0x510] sm:%s965] %v1298
                %v1300 = vld [vmem:[%s972 + $0x918] sm:%s965]
                %1301 = vst [vmem:[%s973 + $0x518] sm:%s965] %v1300
                %v1302 = vld [vmem:[%s972 + $0x920] sm:%s965]
                %1303 = vst [vmem:[%s973 + $0x520] sm:%s965] %v1302
                %v1304 = vld [vmem:[%s972 + $0x928] sm:%s965]
                %1305 = vst [vmem:[%s973 + $0x528] sm:%s965] %v1304
                %v1306 = vld [vmem:[%s972 + $0x930] sm:%s965]
                %1307 = vst [vmem:[%s973 + $0x530] sm:%s965] %v1306
                %v1308 = vld [vmem:[%s972 + $0x938] sm:%s965]
                %1309 = vst [vmem:[%s973 + $0x538] sm:%s965] %v1308
                %v1310 = vld [vmem:[%s972 + $0x940] sm:%s965]
                %1311 = vst [vmem:[%s973 + $0x540] sm:%s965] %v1310
                %v1312 = vld [vmem:[%s972 + $0x948] sm:%s965]
                %1313 = vst [vmem:[%s973 + $0x548] sm:%s965] %v1312
                %v1314 = vld [vmem:[%s972 + $0x950] sm:%s965]
                %1315 = vst [vmem:[%s973 + $0x550] sm:%s965] %v1314
                %v1316 = vld [vmem:[%s972 + $0x958] sm:%s965]
                %1317 = vst [vmem:[%s973 + $0x558] sm:%s965] %v1316
                %v1318 = vld [vmem:[%s972 + $0x960] sm:%s965]
                %1319 = vst [vmem:[%s973 + $0x560] sm:%s965] %v1318
                %v1320 = vld [vmem:[%s972 + $0x968] sm:%s965]
                %1321 = vst [vmem:[%s973 + $0x568] sm:%s965] %v1320
                %v1322 = vld [vmem:[%s972 + $0x970] sm:%s965]
                %1323 = vst [vmem:[%s973 + $0x570] sm:%s965] %v1322
                %v1324 = vld [vmem:[%s972 + $0x978] sm:%s965]
                %1325 = vst [vmem:[%s973 + $0x578] sm:%s965] %v1324
                %v1326 = vld [vmem:[%s972 + $0x980] sm:%s965]
                %1327 = vst [vmem:[%s973 + $0x580] sm:%s965] %v1326
                %v1328 = vld [vmem:[%s972 + $0x988] sm:%s965]
                %1329 = vst [vmem:[%s973 + $0x588] sm:%s965] %v1328
                %v1330 = vld [vmem:[%s972 + $0x990] sm:%s965]
                %1331 = vst [vmem:[%s973 + $0x590] sm:%s965] %v1330
                %v1332 = vld [vmem:[%s972 + $0x998] sm:%s965]
                %1333 = vst [vmem:[%s973 + $0x598] sm:%s965] %v1332
                %v1334 = vld [vmem:[%s972 + $0x9a0] sm:%s965]
                %1335 = vst [vmem:[%s973 + $0x5a0] sm:%s965] %v1334
                %v1336 = vld [vmem:[%s972 + $0x9a8] sm:%s965]
                %1337 = vst [vmem:[%s973 + $0x5a8] sm:%s965] %v1336
                %v1338 = vld [vmem:[%s972 + $0x9b0] sm:%s965]
                %1339 = vst [vmem:[%s973 + $0x5b0] sm:%s965] %v1338
                %v1340 = vld [vmem:[%s972 + $0x9b8] sm:%s965]
                %1341 = vst [vmem:[%s973 + $0x5b8] sm:%s965] %v1340
                %v1342 = vld [vmem:[%s972 + $0x9c0] sm:%s965]
                %1343 = vst [vmem:[%s973 + $0x5c0] sm:%s965] %v1342
                %v1344 = vld [vmem:[%s972 + $0x9c8] sm:%s965]
                %1345 = vst [vmem:[%s973 + $0x5c8] sm:%s965] %v1344
                %v1346 = vld [vmem:[%s972 + $0x9d0] sm:%s965]
                %1347 = vst [vmem:[%s973 + $0x5d0] sm:%s965] %v1346
                %v1348 = vld [vmem:[%s972 + $0x9d8] sm:%s965]
                %1349 = vst [vmem:[%s973 + $0x5d8] sm:%s965] %v1348
                %v1350 = vld [vmem:[%s972 + $0x9e0] sm:%s965]
                %1351 = vst [vmem:[%s973 + $0x5e0] sm:%s965] %v1350
                %v1352 = vld [vmem:[%s972 + $0x9e8] sm:%s965]
                %1353 = vst [vmem:[%s973 + $0x5e8] sm:%s965] %v1352
                %v1354 = vld [vmem:[%s972 + $0x9f0] sm:%s965]
                %1355 = vst [vmem:[%s973 + $0x5f0] sm:%s965] %v1354
                %v1356 = vld [vmem:[%s972 + $0x9f8] sm:%s965]
                %1357 = vst [vmem:[%s973 + $0x5f8] sm:%s965] %v1356
              $region79: #{sphere_tracing_render.1} parent=73 // loop_footer
                %s971 = sadd.s32 1, %s967
              $region80: #{sphere_tracing_render.1} parent=73 // loop_footer_branch
                %966 = sbr.rel target = $region76
              $region81: #{sphere_tracing_render.1} parent=73 // loop_exit
                _
            $region74: #{sphere_tracing_render.1} parent=65 // pred_fallthru
              _
          $region66: #{sphere_tracing_render.1} parent=61 // pred_fallthru
            _
          %1754 = vnop
        $region62: #{sphere_tracing_render.1} parent=19 // pred_fallthru
          _
      $region20: #{sphere_tracing_render.1} parent=5 // pred_fallthru
        _
      %p1755 = scmp.le.s32.totalorder 1, %s10
      %p1756 = scmp.lt.s32.totalorder %s10, 3
      %p1757 = pnand %p1755, %p1756
      %p1758 = pneg %p1757
      // Predicated region
      $region97: #{sphere_tracing_render.1} parent=5 // pred_check
        _
      $region98: #{sphere_tracing_render.1} parent=5 // pred_check_branch
        %1760 = sbr.rel (%p1757) target = $region100
      $region99: #{sphere_tracing_render.1} parent=5 // pred_region
        %s1761 = ssub.s32 %s10, 1
        // Predicated region
        $region101: #{sphere_tracing_render.1} parent=99 // pred_check
          %p1762 = pneg %p31
        $region102: #{sphere_tracing_render.1} parent=99 // pred_check_branch
          %1764 = sbr.rel (%p1762) target = $region104
        $region103: #{sphere_tracing_render.1} parent=99 // pred_region
          %1765 = dma.done [#allocation3], 16
        $region104: #{sphere_tracing_render.1} parent=99 // pred_fallthru
          _
        %s1766 = sand.u32 %s44, 1
        %s1767 = sand.u32 %s44, 1
        %s1768 = smul.addr %s1767, 1536
        %s1769 = scalar_lea.vmem [#allocation4], %s1768
        // Predicated region
        $region105: #{sphere_tracing_render.1} parent=99 // pred_check
          %p1770 = pneg %p57
        $region106: #{sphere_tracing_render.1} parent=99 // pred_check_branch
          %1772 = sbr.rel (%p1770) target = $region108
        $region107: #{sphere_tracing_render.1} parent=99 // pred_region
          _
        $region108: #{sphere_tracing_render.1} parent=99 // pred_fallthru
          _
        %s1773 = sand.u32 %s70, 1
        %s1774 = sand.u32 %s70, 1
        %s1775 = smul.addr %s1774, 1536
        %s1776 = scalar_lea.vmem [#allocation5], %s1775
        // Predicated region
        $region109: #{sphere_tracing_render.1} parent=99 // pred_check
          %p1777 = pneg %p83
        $region110: #{sphere_tracing_render.1} parent=99 // pred_check_branch
          %1779 = sbr.rel (%p1777) target = $region112
        $region111: #{sphere_tracing_render.1} parent=99 // pred_region
          _
        $region112: #{sphere_tracing_render.1} parent=99 // pred_fallthru
          _
        %1780 = sfence
        %p1781 = pneg %p31
        %p1782 = pneg %p28
        %s1783 = sand.u32 %s44, 1
        %s1784 = sand.u32 %s44, 1
        %s1785 = smul.addr %s1784, 1536
        %s1786 = scalar_lea.vmem [#allocation4], %s1785
        %p1787 = pneg %p57
        %p1788 = pneg %p54
        %s1789 = sand.u32 %s70, 1
        %s1790 = sand.u32 %s70, 1
        %s1791 = smul.addr %s1790, 1536
        %s1792 = scalar_lea.vmem [#allocation5], %s1791
        %p1793 = pneg %p83
        %p1794 = pneg %p80
        %p1795 = pneg %p109
        %p1796 = pneg %p106
        %s1797 = sand.u32 %s96, 1
        %s1798 = sand.u32 %s96, 1
        %s1799 = smul.addr %s1798, 1536
        %s1800 = scalar_lea.vmem [#allocation6], %s1799
        %s1801 = smul.u32 16, %s15
        %s1802 = smul.u32 16, %s15
        %s1803 = smul.u32 16, %s15
        %s1804 = sld [smem:[#allocation2]]
        %s1805 = sld [smem:[#allocation2 + $0x1]]
        %s1806 = sld [smem:[#allocation2 + $0x2]]
        %s1807 = sld [smem:[#allocation2 + $0x3]]
        %s1808 = sld [smem:[#allocation2 + $0x4]]
        %s1809 = sld [smem:[#allocation2 + $0x5]]
        %s1810 = sld [smem:[#allocation2 + $0x6]]
        %s1811 = sld [smem:[#allocation2 + $0x7]]
        %s1812 = sld [smem:[#allocation2 + $0x8]]
        %s1813 = sld [smem:[#allocation2 + $0x9]]
        %s1814 = sld [smem:[#allocation2 + $0xa]]
        %s1815 = sld [smem:[#allocation2 + $0xb]]
        %s1816 = sld [smem:[#allocation2 + $0xc]]
        %s1817 = sld [smem:[#allocation2 + $0xd]]
        %s1818 = sld [smem:[#allocation2 + $0xe]]
        %s1819 = sld [smem:[#allocation2 + $0xf]]
        loop: start=0, step=1, limit=16
        $region113: #{sphere_tracing_render.1} parent=99 // loop_pre_header
          _
        $region114: #{sphere_tracing_render.1} parent=99 // loop_header
          %s1821 = sphi 0, %s1825
          %p1822 = scmp.ge.s32.totalorder %s1821, 16
        $region115: #{sphere_tracing_render.1} parent=99 // loop_header_branch
          %1824 = sbr.rel (%p1822) target = $region119
        $region116: #{sphere_tracing_render.1} parent=99 // loop_body
          %s1826 = smul.u32 %s1821, 32
          %s1827 = scalar_lea.vmem %s1769, %s1826 [#allocation4]
          %v1828 = vld [vmem:[%s1827] sm:$0xff]
          %v1829 = vld [vmem:[%s1827 + $0x8] sm:$0xff]
          %v1830 = vld [vmem:[%s1827 + $0x10] sm:$0xff]
          %v1831 = vld [vmem:[%s1827 + $0x18] sm:$0xff]
          %s1832 = scalar_lea.vmem %s1769, 512 [#allocation4]
          %s1833 = scalar_lea.vmem %s1832, %s1826 [#allocation4]
          %v1834 = vld [vmem:[%s1833] sm:$0xff]
          %v1835 = vld [vmem:[%s1833 + $0x8] sm:$0xff]
          %v1836 = vld [vmem:[%s1833 + $0x10] sm:$0xff]
          %v1837 = vld [vmem:[%s1833 + $0x18] sm:$0xff]
          %s1838 = scalar_lea.vmem %s1769, 1024 [#allocation4]
          %s1839 = scalar_lea.vmem %s1838, %s1826 [#allocation4]
          %v1840 = vld [vmem:[%s1839] sm:$0xff]
          %v1841 = vld [vmem:[%s1839 + $0x8] sm:$0xff]
          %v1842 = vld [vmem:[%s1839 + $0x10] sm:$0xff]
          %v1843 = vld [vmem:[%s1839 + $0x18] sm:$0xff]
          %s1844 = scalar_lea.vmem %s1776, %s1826 [#allocation5]
          %v1845 = vld [vmem:[%s1844] sm:$0xff]
          %v1846 = vld [vmem:[%s1844 + $0x8] sm:$0xff]
          %v1847 = vld [vmem:[%s1844 + $0x10] sm:$0xff]
          %v1848 = vld [vmem:[%s1844 + $0x18] sm:$0xff]
          %s1849 = scalar_lea.vmem %s1776, 512 [#allocation5]
          %s1850 = scalar_lea.vmem %s1849, %s1826 [#allocation5]
          %v1851 = vld [vmem:[%s1850] sm:$0xff]
          %v1852 = vld [vmem:[%s1850 + $0x8] sm:$0xff]
          %v1853 = vld [vmem:[%s1850 + $0x10] sm:$0xff]
          %v1854 = vld [vmem:[%s1850 + $0x18] sm:$0xff]
          %s1855 = scalar_lea.vmem %s1776, 1024 [#allocation5]
          %s1856 = scalar_lea.vmem %s1855, %s1826 [#allocation5]
          %v1857 = vld [vmem:[%s1856] sm:$0xff]
          %v1858 = vld [vmem:[%s1856 + $0x8] sm:$0xff]
          %v1859 = vld [vmem:[%s1856 + $0x10] sm:$0xff]
          %v1860 = vld [vmem:[%s1856 + $0x18] sm:$0xff]
          %v1861 = vstv %s1804
          %v1862 = vsub.f32 %v1828, %v1861
          %v1863 = vsub.f32 %v1829, %v1861
          %v1864 = vsub.f32 %v1830, %v1861
          %v1865 = vsub.f32 %v1831, %v1861
          %v1866 = vstv %s1805
          %v1867 = vsub.f32 %v1834, %v1866
          %v1868 = vsub.f32 %v1835, %v1866
          %v1869 = vsub.f32 %v1836, %v1866
          %v1870 = vsub.f32 %v1837, %v1866
          %v1871 = vstv %s1806
          %v1872 = vsub.f32 %v1840, %v1871
          %v1873 = vsub.f32 %v1841, %v1871
          %v1874 = vsub.f32 %v1842, %v1871
          %v1875 = vsub.f32 %v1843, %v1871
          %v1876 = vmul.f32 %v1862, %v1862
          %v1877 = vmul.f32 %v1863, %v1863
          %v1878 = vmul.f32 %v1864, %v1864
          %v1879 = vmul.f32 %v1865, %v1865
          %v1880 = vmul.f32 %v1867, %v1867
          %v1881 = vmul.f32 %v1868, %v1868
          %v1882 = vmul.f32 %v1869, %v1869
          %v1883 = vmul.f32 %v1870, %v1870
          %v1884 = vadd.f32 %v1876, %v1880
          %v1885 = vadd.f32 %v1877, %v1881
          %v1886 = vadd.f32 %v1878, %v1882
          %v1887 = vadd.f32 %v1879, %v1883
          %v1888 = vmul.f32 %v1872, %v1872
          %v1889 = vmul.f32 %v1873, %v1873
          %v1890 = vmul.f32 %v1874, %v1874
          %v1891 = vmul.f32 %v1875, %v1875
          %v1892 = vadd.f32 %v1884, %v1888
          %v1893 = vadd.f32 %v1885, %v1889
          %v1894 = vadd.f32 %v1886, %v1890
          %v1895 = vadd.f32 %v1887, %v1891
          %v1896 = vmul.f32 %v1862, %v1845
          %v1897 = vmul.f32 %v1863, %v1846
          %v1898 = vmul.f32 %v1864, %v1847
          %v1899 = vmul.f32 %v1865, %v1848
          %v1900 = vmul.f32 %v1867, %v1851
          %v1901 = vmul.f32 %v1868, %v1852
          %v1902 = vmul.f32 %v1869, %v1853
          %v1903 = vmul.f32 %v1870, %v1854
          %v1904 = vadd.f32 %v1896, %v1900
          %v1905 = vadd.f32 %v1897, %v1901
          %v1906 = vadd.f32 %v1898, %v1902
          %v1907 = vadd.f32 %v1899, %v1903
          %v1908 = vmul.f32 %v1872, %v1857
          %v1909 = vmul.f32 %v1873, %v1858
          %v1910 = vmul.f32 %v1874, %v1859
          %v1911 = vmul.f32 %v1875, %v1860
          %v1912 = vadd.f32 %v1904, %v1908
          %v1913 = vadd.f32 %v1905, %v1909
          %v1914 = vadd.f32 %v1906, %v1910
          %v1915 = vadd.f32 %v1907, %v1911
          %v1916 = vmul.f32 %v1845, %v1845
          %v1917 = vmul.f32 %v1846, %v1846
          %v1918 = vmul.f32 %v1847, %v1847
          %v1919 = vmul.f32 %v1848, %v1848
          %v1920 = vmul.f32 %v1851, %v1851
          %v1921 = vmul.f32 %v1852, %v1852
          %v1922 = vmul.f32 %v1853, %v1853
          %v1923 = vmul.f32 %v1854, %v1854
          %v1924 = vadd.f32 %v1916, %v1920
          %v1925 = vadd.f32 %v1917, %v1921
          %v1926 = vadd.f32 %v1918, %v1922
          %v1927 = vadd.f32 %v1919, %v1923
          %v1928 = vmul.f32 %v1857, %v1857
          %v1929 = vmul.f32 %v1858, %v1858
          %v1930 = vmul.f32 %v1859, %v1859
          %v1931 = vmul.f32 %v1860, %v1860
          %v1932 = vadd.f32 %v1924, %v1928
          %v1933 = vadd.f32 %v1925, %v1929
          %v1934 = vadd.f32 %v1926, %v1930
          %v1935 = vadd.f32 %v1927, %v1931
          %v1936 = vrcp.pop %v1932
          %v1937 = vmul.f32 %v1912, %v1936
          %v1938 = vrcp.pop %v1933
          %v1939 = vmul.f32 %v1913, %v1938
          %v1940 = vrcp.pop %v1934
          %v1941 = vmul.f32 %v1914, %v1940
          %v1942 = vrcp.pop %v1935
          %v1943 = vmul.f32 %v1915, %v1942
          %v1944 = vmul.f32 %v1912, %v1937
          %v1945 = vmul.f32 %v1913, %v1939
          %v1946 = vmul.f32 %v1914, %v1941
          %v1947 = vmul.f32 %v1915, %v1943
          %v1948 = vsub.f32 %v1892, %v1944
          %v1949 = vsub.f32 %v1893, %v1945
          %v1950 = vsub.f32 %v1894, %v1946
          %v1951 = vsub.f32 %v1895, %v1947
          %v1952 = vstv %s1807
          %v1953 = vmul.f32 %v1932, %v1937
          %v1954 = vmul.f32 %v1933, %v1939
          %v1955 = vmul.f32 %v1934, %v1941
          %v1956 = vmul.f32 %v1935, %v1943
          %v1957 = vmul.f32 %v1953, %v1937
          %v1958 = vmul.f32 %v1954, %v1939
          %v1959 = vmul.f32 %v1955, %v1941
          %v1960 = vmul.f32 %v1956, %v1943
          %v1961 = vadd.f32 %v1957, %v1948
          %v1962 = vadd.f32 %v1958, %v1949
          %v1963 = vadd.f32 %v1959, %v1950
          %v1964 = vadd.f32 %v1960, %v1951
          %v1965 = vmax.f32 %v1961, 0.0
          %v1966 = vmax.f32 %v1962, 0.0
          %v1967 = vmax.f32 %v1963, 0.0
          %v1968 = vmax.f32 %v1964, 0.0
          %v1969 = vrsqrt.pop %v1965
          %v1970 = vmul.f32 %v1965, %v1969
          %vm1971 = vcmp.eq.f32.partialorder %v1965, inf
          %v1972 = vsel %vm1971, %v1965, %v1970
          %vm1973 = vcmp.eq.f32.partialorder %v1965, 0.0
          %v1974 = vand.u32 %v1965, 2147483648
          %v1975 = vsel %vm1973, %v1974, %v1972
          %v1976 = vrsqrt.pop %v1966
          %v1977 = vmul.f32 %v1966, %v1976
          %vm1978 = vcmp.eq.f32.partialorder %v1966, inf
          %v1979 = vsel %vm1978, %v1966, %v1977
          %vm1980 = vcmp.eq.f32.partialorder %v1966, 0.0
          %v1981 = vand.u32 %v1966, 2147483648
          %v1982 = vsel %vm1980, %v1981, %v1979
          %v1983 = vrsqrt.pop %v1967
          %v1984 = vmul.f32 %v1967, %v1983
          %vm1985 = vcmp.eq.f32.partialorder %v1967, inf
          %v1986 = vsel %vm1985, %v1967, %v1984
          %vm1987 = vcmp.eq.f32.partialorder %v1967, 0.0
          %v1988 = vand.u32 %v1967, 2147483648
          %v1989 = vsel %vm1987, %v1988, %v1986
          %v1990 = vrsqrt.pop %v1968
          %v1991 = vmul.f32 %v1968, %v1990
          %vm1992 = vcmp.eq.f32.partialorder %v1968, inf
          %v1993 = vsel %vm1992, %v1968, %v1991
          %vm1994 = vcmp.eq.f32.partialorder %v1968, 0.0
          %v1995 = vand.u32 %v1968, 2147483648
          %v1996 = vsel %vm1994, %v1995, %v1993
          %v1997 = vsub.f32 %v1975, %v1952
          %v1998 = vsub.f32 %v1982, %v1952
          %v1999 = vsub.f32 %v1989, %v1952
          %v2000 = vsub.f32 %v1996, %v1952
          %v2001 = vadd.f32 %v1937, %v1997
          %v2002 = vadd.f32 %v1939, %v1998
          %v2003 = vadd.f32 %v1941, %v1999
          %v2004 = vadd.f32 %v1943, %v2000
          %v2005 = vmul.f32 %v1932, %v2001
          %v2006 = vmul.f32 %v1933, %v2002
          %v2007 = vmul.f32 %v1934, %v2003
          %v2008 = vmul.f32 %v1935, %v2004
          %v2009 = vmul.f32 %v2005, %v2001
          %v2010 = vmul.f32 %v2006, %v2002
          %v2011 = vmul.f32 %v2007, %v2003
          %v2012 = vmul.f32 %v2008, %v2004
          %v2013 = vadd.f32 %v2009, %v1948
          %v2014 = vadd.f32 %v2010, %v1949
          %v2015 = vadd.f32 %v2011, %v1950
          %v2016 = vadd.f32 %v2012, %v1951
          %v2017 = vmax.f32 %v2013, 0.0
          %v2018 = vmax.f32 %v2014, 0.0
          %v2019 = vmax.f32 %v2015, 0.0
          %v2020 = vmax.f32 %v2016, 0.0
          %v2021 = vrsqrt.pop %v2017
          %v2022 = vmul.f32 %v2017, %v2021
          %vm2023 = vcmp.eq.f32.partialorder %v2017, inf
          %v2024 = vsel %vm2023, %v2017, %v2022
          %vm2025 = vcmp.eq.f32.partialorder %v2017, 0.0
          %v2026 = vand.u32 %v2017, 2147483648
          %v2027 = vsel %vm2025, %v2026, %v2024
          %v2028 = vrsqrt.pop %v2018
          %v2029 = vmul.f32 %v2018, %v2028
          %vm2030 = vcmp.eq.f32.partialorder %v2018, inf
          %v2031 = vsel %vm2030, %v2018, %v2029
          %vm2032 = vcmp.eq.f32.partialorder %v2018, 0.0
          %v2033 = vand.u32 %v2018, 2147483648
          %v2034 = vsel %vm2032, %v2033, %v2031
          %v2035 = vrsqrt.pop %v2019
          %v2036 = vmul.f32 %v2019, %v2035
          %vm2037 = vcmp.eq.f32.partialorder %v2019, inf
          %v2038 = vsel %vm2037, %v2019, %v2036
          %vm2039 = vcmp.eq.f32.partialorder %v2019, 0.0
          %v2040 = vand.u32 %v2019, 2147483648
          %v2041 = vsel %vm2039, %v2040, %v2038
          %v2042 = vrsqrt.pop %v2020
          %v2043 = vmul.f32 %v2020, %v2042
          %vm2044 = vcmp.eq.f32.partialorder %v2020, inf
          %v2045 = vsel %vm2044, %v2020, %v2043
          %vm2046 = vcmp.eq.f32.partialorder %v2020, 0.0
          %v2047 = vand.u32 %v2020, 2147483648
          %v2048 = vsel %vm2046, %v2047, %v2045
          %v2049 = vsub.f32 %v2027, %v1952
          %v2050 = vsub.f32 %v2034, %v1952
          %v2051 = vsub.f32 %v2041, %v1952
          %v2052 = vsub.f32 %v2048, %v1952
          %v2053 = vadd.f32 %v2001, %v2049
          %v2054 = vadd.f32 %v2002, %v2050
          %v2055 = vadd.f32 %v2003, %v2051
          %v2056 = vadd.f32 %v2004, %v2052
          %v2057 = vmul.f32 %v1932, %v2053
          %v2058 = vmul.f32 %v1933, %v2054
          %v2059 = vmul.f32 %v1934, %v2055
          %v2060 = vmul.f32 %v1935, %v2056
          %v2061 = vmul.f32 %v2057, %v2053
          %v2062 = vmul.f32 %v2058, %v2054
          %v2063 = vmul.f32 %v2059, %v2055
          %v2064 = vmul.f32 %v2060, %v2056
          %v2065 = vadd.f32 %v2061, %v1948
          %v2066 = vadd.f32 %v2062, %v1949
          %v2067 = vadd.f32 %v2063, %v1950
          %v2068 = vadd.f32 %v2064, %v1951
          %v2069 = vmax.f32 %v2065, 0.0
          %v2070 = vmax.f32 %v2066, 0.0
          %v2071 = vmax.f32 %v2067, 0.0
          %v2072 = vmax.f32 %v2068, 0.0
          %v2073 = vrsqrt.pop %v2069
          %v2074 = vmul.f32 %v2069, %v2073
          %vm2075 = vcmp.eq.f32.partialorder %v2069, inf
          %v2076 = vsel %vm2075, %v2069, %v2074
          %vm2077 = vcmp.eq.f32.partialorder %v2069, 0.0
          %v2078 = vand.u32 %v2069, 2147483648
          %v2079 = vsel %vm2077, %v2078, %v2076
          %v2080 = vrsqrt.pop %v2070
          %v2081 = vmul.f32 %v2070, %v2080
          %vm2082 = vcmp.eq.f32.partialorder %v2070, inf
          %v2083 = vsel %vm2082, %v2070, %v2081
          %vm2084 = vcmp.eq.f32.partialorder %v2070, 0.0
          %v2085 = vand.u32 %v2070, 2147483648
          %v2086 = vsel %vm2084, %v2085, %v2083
          %v2087 = vrsqrt.pop %v2071
          %v2088 = vmul.f32 %v2071, %v2087
          %vm2089 = vcmp.eq.f32.partialorder %v2071, inf
          %v2090 = vsel %vm2089, %v2071, %v2088
          %vm2091 = vcmp.eq.f32.partialorder %v2071, 0.0
          %v2092 = vand.u32 %v2071, 2147483648
          %v2093 = vsel %vm2091, %v2092, %v2090
          %v2094 = vrsqrt.pop %v2072
          %v2095 = vmul.f32 %v2072, %v2094
          %vm2096 = vcmp.eq.f32.partialorder %v2072, inf
          %v2097 = vsel %vm2096, %v2072, %v2095
          %vm2098 = vcmp.eq.f32.partialorder %v2072, 0.0
          %v2099 = vand.u32 %v2072, 2147483648
          %v2100 = vsel %vm2098, %v2099, %v2097
          %v2101 = vsub.f32 %v2079, %v1952
          %v2102 = vsub.f32 %v2086, %v1952
          %v2103 = vsub.f32 %v2093, %v1952
          %v2104 = vsub.f32 %v2100, %v1952
          %v2105 = vadd.f32 %v2053, %v2101
          %v2106 = vadd.f32 %v2054, %v2102
          %v2107 = vadd.f32 %v2055, %v2103
          %v2108 = vadd.f32 %v2056, %v2104
          %v2109 = vmul.f32 %v1932, %v2105
          %v2110 = vmul.f32 %v1933, %v2106
          %v2111 = vmul.f32 %v1934, %v2107
          %v2112 = vmul.f32 %v1935, %v2108
          %v2113 = vmul.f32 %v2109, %v2105
          %v2114 = vmul.f32 %v2110, %v2106
          %v2115 = vmul.f32 %v2111, %v2107
          %v2116 = vmul.f32 %v2112, %v2108
          %v2117 = vadd.f32 %v2113, %v1948
          %v2118 = vadd.f32 %v2114, %v1949
          %v2119 = vadd.f32 %v2115, %v1950
          %v2120 = vadd.f32 %v2116, %v1951
          %v2121 = vmax.f32 %v2117, 0.0
          %v2122 = vmax.f32 %v2118, 0.0
          %v2123 = vmax.f32 %v2119, 0.0
          %v2124 = vmax.f32 %v2120, 0.0
          %v2125 = vrsqrt.pop %v2121
          %v2126 = vmul.f32 %v2121, %v2125
          %vm2127 = vcmp.eq.f32.partialorder %v2121, inf
          %v2128 = vsel %vm2127, %v2121, %v2126
          %vm2129 = vcmp.eq.f32.partialorder %v2121, 0.0
          %v2130 = vand.u32 %v2121, 2147483648
          %v2131 = vsel %vm2129, %v2130, %v2128
          %v2132 = vrsqrt.pop %v2122
          %v2133 = vmul.f32 %v2122, %v2132
          %vm2134 = vcmp.eq.f32.partialorder %v2122, inf
          %v2135 = vsel %vm2134, %v2122, %v2133
          %vm2136 = vcmp.eq.f32.partialorder %v2122, 0.0
          %v2137 = vand.u32 %v2122, 2147483648
          %v2138 = vsel %vm2136, %v2137, %v2135
          %v2139 = vrsqrt.pop %v2123
          %v2140 = vmul.f32 %v2123, %v2139
          %vm2141 = vcmp.eq.f32.partialorder %v2123, inf
          %v2142 = vsel %vm2141, %v2123, %v2140
          %vm2143 = vcmp.eq.f32.partialorder %v2123, 0.0
          %v2144 = vand.u32 %v2123, 2147483648
          %v2145 = vsel %vm2143, %v2144, %v2142
          %v2146 = vrsqrt.pop %v2124
          %v2147 = vmul.f32 %v2124, %v2146
          %vm2148 = vcmp.eq.f32.partialorder %v2124, inf
          %v2149 = vsel %vm2148, %v2124, %v2147
          %vm2150 = vcmp.eq.f32.partialorder %v2124, 0.0
          %v2151 = vand.u32 %v2124, 2147483648
          %v2152 = vsel %vm2150, %v2151, %v2149
          %v2153 = vsub.f32 %v2131, %v1952
          %v2154 = vsub.f32 %v2138, %v1952
          %v2155 = vsub.f32 %v2145, %v1952
          %v2156 = vsub.f32 %v2152, %v1952
          %v2157 = vadd.f32 %v2105, %v2153
          %v2158 = vadd.f32 %v2106, %v2154
          %v2159 = vadd.f32 %v2107, %v2155
          %v2160 = vadd.f32 %v2108, %v2156
          %v2161 = vmul.f32 %v1932, %v2157
          %v2162 = vmul.f32 %v1933, %v2158
          %v2163 = vmul.f32 %v1934, %v2159
          %v2164 = vmul.f32 %v1935, %v2160
          %v2165 = vmul.f32 %v2161, %v2157
          %v2166 = vmul.f32 %v2162, %v2158
          %v2167 = vmul.f32 %v2163, %v2159
          %v2168 = vmul.f32 %v2164, %v2160
          %v2169 = vadd.f32 %v2165, %v1948
          %v2170 = vadd.f32 %v2166, %v1949
          %v2171 = vadd.f32 %v2167, %v1950
          %v2172 = vadd.f32 %v2168, %v1951
          %v2173 = vmax.f32 %v2169, 0.0
          %v2174 = vmax.f32 %v2170, 0.0
          %v2175 = vmax.f32 %v2171, 0.0
          %v2176 = vmax.f32 %v2172, 0.0
          %v2177 = vrsqrt.pop %v2173
          %v2178 = vmul.f32 %v2173, %v2177
          %vm2179 = vcmp.eq.f32.partialorder %v2173, inf
          %v2180 = vsel %vm2179, %v2173, %v2178
          %vm2181 = vcmp.eq.f32.partialorder %v2173, 0.0
          %v2182 = vand.u32 %v2173, 2147483648
          %v2183 = vsel %vm2181, %v2182, %v2180
          %v2184 = vrsqrt.pop %v2174
          %v2185 = vmul.f32 %v2174, %v2184
          %vm2186 = vcmp.eq.f32.partialorder %v2174, inf
          %v2187 = vsel %vm2186, %v2174, %v2185
          %vm2188 = vcmp.eq.f32.partialorder %v2174, 0.0
          %v2189 = vand.u32 %v2174, 2147483648
          %v2190 = vsel %vm2188, %v2189, %v2187
          %v2191 = vrsqrt.pop %v2175
          %v2192 = vmul.f32 %v2175, %v2191
          %vm2193 = vcmp.eq.f32.partialorder %v2175, inf
          %v2194 = vsel %vm2193, %v2175, %v2192
          %vm2195 = vcmp.eq.f32.partialorder %v2175, 0.0
          %v2196 = vand.u32 %v2175, 2147483648
          %v2197 = vsel %vm2195, %v2196, %v2194
          %v2198 = vrsqrt.pop %v2176
          %v2199 = vmul.f32 %v2176, %v2198
          %vm2200 = vcmp.eq.f32.partialorder %v2176, inf
          %v2201 = vsel %vm2200, %v2176, %v2199
          %vm2202 = vcmp.eq.f32.partialorder %v2176, 0.0
          %v2203 = vand.u32 %v2176, 2147483648
          %v2204 = vsel %vm2202, %v2203, %v2201
          %v2205 = vsub.f32 %v2183, %v1952
          %v2206 = vsub.f32 %v2190, %v1952
          %v2207 = vsub.f32 %v2197, %v1952
          %v2208 = vsub.f32 %v2204, %v1952
          %v2209 = vadd.f32 %v2157, %v2205
          %v2210 = vadd.f32 %v2158, %v2206
          %v2211 = vadd.f32 %v2159, %v2207
          %v2212 = vadd.f32 %v2160, %v2208
          %v2213 = vmul.f32 %v1932, %v2209
          %v2214 = vmul.f32 %v1933, %v2210
          %v2215 = vmul.f32 %v1934, %v2211
          %v2216 = vmul.f32 %v1935, %v2212
          %v2217 = vmul.f32 %v2213, %v2209
          %v2218 = vmul.f32 %v2214, %v2210
          %v2219 = vmul.f32 %v2215, %v2211
          %v2220 = vmul.f32 %v2216, %v2212
          %v2221 = vadd.f32 %v2217, %v1948
          %v2222 = vadd.f32 %v2218, %v1949
          %v2223 = vadd.f32 %v2219, %v1950
          %v2224 = vadd.f32 %v2220, %v1951
          %v2225 = vmax.f32 %v2221, 0.0
          %v2226 = vmax.f32 %v2222, 0.0
          %v2227 = vmax.f32 %v2223, 0.0
          %v2228 = vmax.f32 %v2224, 0.0
          %v2229 = vrsqrt.pop %v2225
          %v2230 = vmul.f32 %v2225, %v2229
          %vm2231 = vcmp.eq.f32.partialorder %v2225, inf
          %v2232 = vsel %vm2231, %v2225, %v2230
          %vm2233 = vcmp.eq.f32.partialorder %v2225, 0.0
          %v2234 = vand.u32 %v2225, 2147483648
          %v2235 = vsel %vm2233, %v2234, %v2232
          %v2236 = vrsqrt.pop %v2226
          %v2237 = vmul.f32 %v2226, %v2236
          %vm2238 = vcmp.eq.f32.partialorder %v2226, inf
          %v2239 = vsel %vm2238, %v2226, %v2237
          %vm2240 = vcmp.eq.f32.partialorder %v2226, 0.0
          %v2241 = vand.u32 %v2226, 2147483648
          %v2242 = vsel %vm2240, %v2241, %v2239
          %v2243 = vrsqrt.pop %v2227
          %v2244 = vmul.f32 %v2227, %v2243
          %vm2245 = vcmp.eq.f32.partialorder %v2227, inf
          %v2246 = vsel %vm2245, %v2227, %v2244
          %vm2247 = vcmp.eq.f32.partialorder %v2227, 0.0
          %v2248 = vand.u32 %v2227, 2147483648
          %v2249 = vsel %vm2247, %v2248, %v2246
          %v2250 = vrsqrt.pop %v2228
          %v2251 = vmul.f32 %v2228, %v2250
          %vm2252 = vcmp.eq.f32.partialorder %v2228, inf
          %v2253 = vsel %vm2252, %v2228, %v2251
          %vm2254 = vcmp.eq.f32.partialorder %v2228, 0.0
          %v2255 = vand.u32 %v2228, 2147483648
          %v2256 = vsel %vm2254, %v2255, %v2253
          %v2257 = vsub.f32 %v2235, %v1952
          %v2258 = vsub.f32 %v2242, %v1952
          %v2259 = vsub.f32 %v2249, %v1952
          %v2260 = vsub.f32 %v2256, %v1952
          %v2261 = vadd.f32 %v2209, %v2257
          %v2262 = vadd.f32 %v2210, %v2258
          %v2263 = vadd.f32 %v2211, %v2259
          %v2264 = vadd.f32 %v2212, %v2260
          %v2265 = vmul.f32 %v1932, %v2261
          %v2266 = vmul.f32 %v1933, %v2262
          %v2267 = vmul.f32 %v1934, %v2263
          %v2268 = vmul.f32 %v1935, %v2264
          %v2269 = vmul.f32 %v2265, %v2261
          %v2270 = vmul.f32 %v2266, %v2262
          %v2271 = vmul.f32 %v2267, %v2263
          %v2272 = vmul.f32 %v2268, %v2264
          %v2273 = vadd.f32 %v2269, %v1948
          %v2274 = vadd.f32 %v2270, %v1949
          %v2275 = vadd.f32 %v2271, %v1950
          %v2276 = vadd.f32 %v2272, %v1951
          %v2277 = vmax.f32 %v2273, 0.0
          %v2278 = vmax.f32 %v2274, 0.0
          %v2279 = vmax.f32 %v2275, 0.0
          %v2280 = vmax.f32 %v2276, 0.0
          %v2281 = vrsqrt.pop %v2277
          %v2282 = vmul.f32 %v2277, %v2281
          %vm2283 = vcmp.eq.f32.partialorder %v2277, inf
          %v2284 = vsel %vm2283, %v2277, %v2282
          %vm2285 = vcmp.eq.f32.partialorder %v2277, 0.0
          %v2286 = vand.u32 %v2277, 2147483648
          %v2287 = vsel %vm2285, %v2286, %v2284
          %v2288 = vrsqrt.pop %v2278
          %v2289 = vmul.f32 %v2278, %v2288
          %vm2290 = vcmp.eq.f32.partialorder %v2278, inf
          %v2291 = vsel %vm2290, %v2278, %v2289
          %vm2292 = vcmp.eq.f32.partialorder %v2278, 0.0
          %v2293 = vand.u32 %v2278, 2147483648
          %v2294 = vsel %vm2292, %v2293, %v2291
          %v2295 = vrsqrt.pop %v2279
          %v2296 = vmul.f32 %v2279, %v2295
          %vm2297 = vcmp.eq.f32.partialorder %v2279, inf
          %v2298 = vsel %vm2297, %v2279, %v2296
          %vm2299 = vcmp.eq.f32.partialorder %v2279, 0.0
          %v2300 = vand.u32 %v2279, 2147483648
          %v2301 = vsel %vm2299, %v2300, %v2298
          %v2302 = vrsqrt.pop %v2280
          %v2303 = vmul.f32 %v2280, %v2302
          %vm2304 = vcmp.eq.f32.partialorder %v2280, inf
          %v2305 = vsel %vm2304, %v2280, %v2303
          %vm2306 = vcmp.eq.f32.partialorder %v2280, 0.0
          %v2307 = vand.u32 %v2280, 2147483648
          %v2308 = vsel %vm2306, %v2307, %v2305
          %v2309 = vsub.f32 %v2287, %v1952
          %v2310 = vsub.f32 %v2294, %v1952
          %v2311 = vsub.f32 %v2301, %v1952
          %v2312 = vsub.f32 %v2308, %v1952
          %v2313 = vadd.f32 %v2261, %v2309
          %v2314 = vadd.f32 %v2262, %v2310
          %v2315 = vadd.f32 %v2263, %v2311
          %v2316 = vadd.f32 %v2264, %v2312
          %v2317 = vmul.f32 %v1932, %v2313
          %v2318 = vmul.f32 %v1933, %v2314
          %v2319 = vmul.f32 %v1934, %v2315
          %v2320 = vmul.f32 %v1935, %v2316
          %v2321 = vmul.f32 %v2317, %v2313
          %v2322 = vmul.f32 %v2318, %v2314
          %v2323 = vmul.f32 %v2319, %v2315
          %v2324 = vmul.f32 %v2320, %v2316
          %v2325 = vadd.f32 %v2321, %v1948
          %v2326 = vadd.f32 %v2322, %v1949
          %v2327 = vadd.f32 %v2323, %v1950
          %v2328 = vadd.f32 %v2324, %v1951
          %v2329 = vmax.f32 %v2325, 0.0
          %v2330 = vmax.f32 %v2326, 0.0
          %v2331 = vmax.f32 %v2327, 0.0
          %v2332 = vmax.f32 %v2328, 0.0
          %v2333 = vrsqrt.pop %v2329
          %v2334 = vmul.f32 %v2329, %v2333
          %vm2335 = vcmp.eq.f32.partialorder %v2329, inf
          %v2336 = vsel %vm2335, %v2329, %v2334
          %vm2337 = vcmp.eq.f32.partialorder %v2329, 0.0
          %v2338 = vand.u32 %v2329, 2147483648
          %v2339 = vsel %vm2337, %v2338, %v2336
          %v2340 = vrsqrt.pop %v2330
          %v2341 = vmul.f32 %v2330, %v2340
          %vm2342 = vcmp.eq.f32.partialorder %v2330, inf
          %v2343 = vsel %vm2342, %v2330, %v2341
          %vm2344 = vcmp.eq.f32.partialorder %v2330, 0.0
          %v2345 = vand.u32 %v2330, 2147483648
          %v2346 = vsel %vm2344, %v2345, %v2343
          %v2347 = vrsqrt.pop %v2331
          %v2348 = vmul.f32 %v2331, %v2347
          %vm2349 = vcmp.eq.f32.partialorder %v2331, inf
          %v2350 = vsel %vm2349, %v2331, %v2348
          %vm2351 = vcmp.eq.f32.partialorder %v2331, 0.0
          %v2352 = vand.u32 %v2331, 2147483648
          %v2353 = vsel %vm2351, %v2352, %v2350
          %v2354 = vrsqrt.pop %v2332
          %v2355 = vmul.f32 %v2332, %v2354
          %vm2356 = vcmp.eq.f32.partialorder %v2332, inf
          %v2357 = vsel %vm2356, %v2332, %v2355
          %vm2358 = vcmp.eq.f32.partialorder %v2332, 0.0
          %v2359 = vand.u32 %v2332, 2147483648
          %v2360 = vsel %vm2358, %v2359, %v2357
          %v2361 = vsub.f32 %v2339, %v1952
          %v2362 = vsub.f32 %v2346, %v1952
          %v2363 = vsub.f32 %v2353, %v1952
          %v2364 = vsub.f32 %v2360, %v1952
          %v2365 = vadd.f32 %v2313, %v2361
          %v2366 = vadd.f32 %v2314, %v2362
          %v2367 = vadd.f32 %v2315, %v2363
          %v2368 = vadd.f32 %v2316, %v2364
          %v2369 = vmul.f32 %v1932, %v2365
          %v2370 = vmul.f32 %v1933, %v2366
          %v2371 = vmul.f32 %v1934, %v2367
          %v2372 = vmul.f32 %v1935, %v2368
          %v2373 = vmul.f32 %v2369, %v2365
          %v2374 = vmul.f32 %v2370, %v2366
          %v2375 = vmul.f32 %v2371, %v2367
          %v2376 = vmul.f32 %v2372, %v2368
          %v2377 = vadd.f32 %v2373, %v1948
          %v2378 = vadd.f32 %v2374, %v1949
          %v2379 = vadd.f32 %v2375, %v1950
          %v2380 = vadd.f32 %v2376, %v1951
          %v2381 = vmax.f32 %v2377, 0.0
          %v2382 = vmax.f32 %v2378, 0.0
          %v2383 = vmax.f32 %v2379, 0.0
          %v2384 = vmax.f32 %v2380, 0.0
          %v2385 = vrsqrt.pop %v2381
          %v2386 = vmul.f32 %v2381, %v2385
          %vm2387 = vcmp.eq.f32.partialorder %v2381, inf
          %v2388 = vsel %vm2387, %v2381, %v2386
          %vm2389 = vcmp.eq.f32.partialorder %v2381, 0.0
          %v2390 = vand.u32 %v2381, 2147483648
          %v2391 = vsel %vm2389, %v2390, %v2388
          %v2392 = vrsqrt.pop %v2382
          %v2393 = vmul.f32 %v2382, %v2392
          %vm2394 = vcmp.eq.f32.partialorder %v2382, inf
          %v2395 = vsel %vm2394, %v2382, %v2393
          %vm2396 = vcmp.eq.f32.partialorder %v2382, 0.0
          %v2397 = vand.u32 %v2382, 2147483648
          %v2398 = vsel %vm2396, %v2397, %v2395
          %v2399 = vrsqrt.pop %v2383
          %v2400 = vmul.f32 %v2383, %v2399
          %vm2401 = vcmp.eq.f32.partialorder %v2383, inf
          %v2402 = vsel %vm2401, %v2383, %v2400
          %vm2403 = vcmp.eq.f32.partialorder %v2383, 0.0
          %v2404 = vand.u32 %v2383, 2147483648
          %v2405 = vsel %vm2403, %v2404, %v2402
          %v2406 = vrsqrt.pop %v2384
          %v2407 = vmul.f32 %v2384, %v2406
          %vm2408 = vcmp.eq.f32.partialorder %v2384, inf
          %v2409 = vsel %vm2408, %v2384, %v2407
          %vm2410 = vcmp.eq.f32.partialorder %v2384, 0.0
          %v2411 = vand.u32 %v2384, 2147483648
          %v2412 = vsel %vm2410, %v2411, %v2409
          %v2413 = vsub.f32 %v2391, %v1952
          %v2414 = vsub.f32 %v2398, %v1952
          %v2415 = vsub.f32 %v2405, %v1952
          %v2416 = vsub.f32 %v2412, %v1952
          %v2417 = vadd.f32 %v2365, %v2413
          %v2418 = vadd.f32 %v2366, %v2414
          %v2419 = vadd.f32 %v2367, %v2415
          %v2420 = vadd.f32 %v2368, %v2416
          %v2421 = vmul.f32 %v1932, %v2417
          %v2422 = vmul.f32 %v1933, %v2418
          %v2423 = vmul.f32 %v1934, %v2419
          %v2424 = vmul.f32 %v1935, %v2420
          %v2425 = vmul.f32 %v2421, %v2417
          %v2426 = vmul.f32 %v2422, %v2418
          %v2427 = vmul.f32 %v2423, %v2419
          %v2428 = vmul.f32 %v2424, %v2420
          %v2429 = vadd.f32 %v2425, %v1948
          %v2430 = vadd.f32 %v2426, %v1949
          %v2431 = vadd.f32 %v2427, %v1950
          %v2432 = vadd.f32 %v2428, %v1951
          %v2433 = vmax.f32 %v2429, 0.0
          %v2434 = vmax.f32 %v2430, 0.0
          %v2435 = vmax.f32 %v2431, 0.0
          %v2436 = vmax.f32 %v2432, 0.0
          %v2437 = vrsqrt.pop %v2433
          %v2438 = vmul.f32 %v2433, %v2437
          %vm2439 = vcmp.eq.f32.partialorder %v2433, inf
          %v2440 = vsel %vm2439, %v2433, %v2438
          %vm2441 = vcmp.eq.f32.partialorder %v2433, 0.0
          %v2442 = vand.u32 %v2433, 2147483648
          %v2443 = vsel %vm2441, %v2442, %v2440
          %v2444 = vrsqrt.pop %v2434
          %v2445 = vmul.f32 %v2434, %v2444
          %vm2446 = vcmp.eq.f32.partialorder %v2434, inf
          %v2447 = vsel %vm2446, %v2434, %v2445
          %vm2448 = vcmp.eq.f32.partialorder %v2434, 0.0
          %v2449 = vand.u32 %v2434, 2147483648
          %v2450 = vsel %vm2448, %v2449, %v2447
          %v2451 = vrsqrt.pop %v2435
          %v2452 = vmul.f32 %v2435, %v2451
          %vm2453 = vcmp.eq.f32.partialorder %v2435, inf
          %v2454 = vsel %vm2453, %v2435, %v2452
          %vm2455 = vcmp.eq.f32.partialorder %v2435, 0.0
          %v2456 = vand.u32 %v2435, 2147483648
          %v2457 = vsel %vm2455, %v2456, %v2454
          %v2458 = vrsqrt.pop %v2436
          %v2459 = vmul.f32 %v2436, %v2458
          %vm2460 = vcmp.eq.f32.partialorder %v2436, inf
          %v2461 = vsel %vm2460, %v2436, %v2459
          %vm2462 = vcmp.eq.f32.partialorder %v2436, 0.0
          %v2463 = vand.u32 %v2436, 2147483648
          %v2464 = vsel %vm2462, %v2463, %v2461
          %v2465 = vsub.f32 %v2443, %v1952
          %v2466 = vsub.f32 %v2450, %v1952
          %v2467 = vsub.f32 %v2457, %v1952
          %v2468 = vsub.f32 %v2464, %v1952
          %v2469 = vadd.f32 %v2417, %v2465
          %v2470 = vadd.f32 %v2418, %v2466
          %v2471 = vadd.f32 %v2419, %v2467
          %v2472 = vadd.f32 %v2420, %v2468
          %v2473 = vmul.f32 %v1932, %v2469
          %v2474 = vmul.f32 %v1933, %v2470
          %v2475 = vmul.f32 %v1934, %v2471
          %v2476 = vmul.f32 %v1935, %v2472
          %v2477 = vmul.f32 %v2473, %v2469
          %v2478 = vmul.f32 %v2474, %v2470
          %v2479 = vmul.f32 %v2475, %v2471
          %v2480 = vmul.f32 %v2476, %v2472
          %v2481 = vadd.f32 %v2477, %v1948
          %v2482 = vadd.f32 %v2478, %v1949
          %v2483 = vadd.f32 %v2479, %v1950
          %v2484 = vadd.f32 %v2480, %v1951
          %v2485 = vmax.f32 %v2481, 0.0
          %v2486 = vmax.f32 %v2482, 0.0
          %v2487 = vmax.f32 %v2483, 0.0
          %v2488 = vmax.f32 %v2484, 0.0
          %v2489 = vrsqrt.pop %v2485
          %v2490 = vmul.f32 %v2485, %v2489
          %vm2491 = vcmp.eq.f32.partialorder %v2485, inf
          %v2492 = vsel %vm2491, %v2485, %v2490
          %vm2493 = vcmp.eq.f32.partialorder %v2485, 0.0
          %v2494 = vand.u32 %v2485, 2147483648
          %v2495 = vsel %vm2493, %v2494, %v2492
          %v2496 = vrsqrt.pop %v2486
          %v2497 = vmul.f32 %v2486, %v2496
          %vm2498 = vcmp.eq.f32.partialorder %v2486, inf
          %v2499 = vsel %vm2498, %v2486, %v2497
          %vm2500 = vcmp.eq.f32.partialorder %v2486, 0.0
          %v2501 = vand.u32 %v2486, 2147483648
          %v2502 = vsel %vm2500, %v2501, %v2499
          %v2503 = vrsqrt.pop %v2487
          %v2504 = vmul.f32 %v2487, %v2503
          %vm2505 = vcmp.eq.f32.partialorder %v2487, inf
          %v2506 = vsel %vm2505, %v2487, %v2504
          %vm2507 = vcmp.eq.f32.partialorder %v2487, 0.0
          %v2508 = vand.u32 %v2487, 2147483648
          %v2509 = vsel %vm2507, %v2508, %v2506
          %v2510 = vrsqrt.pop %v2488
          %v2511 = vmul.f32 %v2488, %v2510
          %vm2512 = vcmp.eq.f32.partialorder %v2488, inf
          %v2513 = vsel %vm2512, %v2488, %v2511
          %vm2514 = vcmp.eq.f32.partialorder %v2488, 0.0
          %v2515 = vand.u32 %v2488, 2147483648
          %v2516 = vsel %vm2514, %v2515, %v2513
          %v2517 = vsub.f32 %v2495, %v1952
          %v2518 = vsub.f32 %v2502, %v1952
          %v2519 = vsub.f32 %v2509, %v1952
          %v2520 = vsub.f32 %v2516, %v1952
          %v2521 = vadd.f32 %v2469, %v2517
          %v2522 = vadd.f32 %v2470, %v2518
          %v2523 = vadd.f32 %v2471, %v2519
          %v2524 = vadd.f32 %v2472, %v2520
          %v2525 = vmul.f32 %v1932, %v2521
          %v2526 = vmul.f32 %v1933, %v2522
          %v2527 = vmul.f32 %v1934, %v2523
          %v2528 = vmul.f32 %v1935, %v2524
          %v2529 = vmul.f32 %v2525, %v2521
          %v2530 = vmul.f32 %v2526, %v2522
          %v2531 = vmul.f32 %v2527, %v2523
          %v2532 = vmul.f32 %v2528, %v2524
          %v2533 = vadd.f32 %v2529, %v1948
          %v2534 = vadd.f32 %v2530, %v1949
          %v2535 = vadd.f32 %v2531, %v1950
          %v2536 = vadd.f32 %v2532, %v1951
          %v2537 = vmax.f32 %v2533, 0.0
          %v2538 = vmax.f32 %v2534, 0.0
          %v2539 = vmax.f32 %v2535, 0.0
          %v2540 = vmax.f32 %v2536, 0.0
          %v2541 = vrsqrt.pop %v2537
          %v2542 = vmul.f32 %v2537, %v2541
          %vm2543 = vcmp.eq.f32.partialorder %v2537, inf
          %v2544 = vsel %vm2543, %v2537, %v2542
          %vm2545 = vcmp.eq.f32.partialorder %v2537, 0.0
          %v2546 = vand.u32 %v2537, 2147483648
          %v2547 = vsel %vm2545, %v2546, %v2544
          %v2548 = vrsqrt.pop %v2538
          %v2549 = vmul.f32 %v2538, %v2548
          %vm2550 = vcmp.eq.f32.partialorder %v2538, inf
          %v2551 = vsel %vm2550, %v2538, %v2549
          %vm2552 = vcmp.eq.f32.partialorder %v2538, 0.0
          %v2553 = vand.u32 %v2538, 2147483648
          %v2554 = vsel %vm2552, %v2553, %v2551
          %v2555 = vrsqrt.pop %v2539
          %v2556 = vmul.f32 %v2539, %v2555
          %vm2557 = vcmp.eq.f32.partialorder %v2539, inf
          %v2558 = vsel %vm2557, %v2539, %v2556
          %vm2559 = vcmp.eq.f32.partialorder %v2539, 0.0
          %v2560 = vand.u32 %v2539, 2147483648
          %v2561 = vsel %vm2559, %v2560, %v2558
          %v2562 = vrsqrt.pop %v2540
          %v2563 = vmul.f32 %v2540, %v2562
          %vm2564 = vcmp.eq.f32.partialorder %v2540, inf
          %v2565 = vsel %vm2564, %v2540, %v2563
          %vm2566 = vcmp.eq.f32.partialorder %v2540, 0.0
          %v2567 = vand.u32 %v2540, 2147483648
          %v2568 = vsel %vm2566, %v2567, %v2565
          %v2569 = vsub.f32 %v2547, %v1952
          %v2570 = vsub.f32 %v2554, %v1952
          %v2571 = vsub.f32 %v2561, %v1952
          %v2572 = vsub.f32 %v2568, %v1952
          %v2573 = vadd.f32 %v2521, %v2569
          %v2574 = vadd.f32 %v2522, %v2570
          %v2575 = vadd.f32 %v2523, %v2571
          %v2576 = vadd.f32 %v2524, %v2572
          %v2577 = vmul.f32 %v1932, %v2573
          %v2578 = vmul.f32 %v1933, %v2574
          %v2579 = vmul.f32 %v1934, %v2575
          %v2580 = vmul.f32 %v1935, %v2576
          %v2581 = vmul.f32 %v2577, %v2573
          %v2582 = vmul.f32 %v2578, %v2574
          %v2583 = vmul.f32 %v2579, %v2575
          %v2584 = vmul.f32 %v2580, %v2576
          %v2585 = vadd.f32 %v2581, %v1948
          %v2586 = vadd.f32 %v2582, %v1949
          %v2587 = vadd.f32 %v2583, %v1950
          %v2588 = vadd.f32 %v2584, %v1951
          %v2589 = vmax.f32 %v2585, 0.0
          %v2590 = vmax.f32 %v2586, 0.0
          %v2591 = vmax.f32 %v2587, 0.0
          %v2592 = vmax.f32 %v2588, 0.0
          %v2593 = vrsqrt.pop %v2589
          %v2594 = vmul.f32 %v2589, %v2593
          %vm2595 = vcmp.eq.f32.partialorder %v2589, inf
          %v2596 = vsel %vm2595, %v2589, %v2594
          %vm2597 = vcmp.eq.f32.partialorder %v2589, 0.0
          %v2598 = vand.u32 %v2589, 2147483648
          %v2599 = vsel %vm2597, %v2598, %v2596
          %v2600 = vrsqrt.pop %v2590
          %v2601 = vmul.f32 %v2590, %v2600
          %vm2602 = vcmp.eq.f32.partialorder %v2590, inf
          %v2603 = vsel %vm2602, %v2590, %v2601
          %vm2604 = vcmp.eq.f32.partialorder %v2590, 0.0
          %v2605 = vand.u32 %v2590, 2147483648
          %v2606 = vsel %vm2604, %v2605, %v2603
          %v2607 = vrsqrt.pop %v2591
          %v2608 = vmul.f32 %v2591, %v2607
          %vm2609 = vcmp.eq.f32.partialorder %v2591, inf
          %v2610 = vsel %vm2609, %v2591, %v2608
          %vm2611 = vcmp.eq.f32.partialorder %v2591, 0.0
          %v2612 = vand.u32 %v2591, 2147483648
          %v2613 = vsel %vm2611, %v2612, %v2610
          %v2614 = vrsqrt.pop %v2592
          %v2615 = vmul.f32 %v2592, %v2614
          %vm2616 = vcmp.eq.f32.partialorder %v2592, inf
          %v2617 = vsel %vm2616, %v2592, %v2615
          %vm2618 = vcmp.eq.f32.partialorder %v2592, 0.0
          %v2619 = vand.u32 %v2592, 2147483648
          %v2620 = vsel %vm2618, %v2619, %v2617
          %v2621 = vsub.f32 %v2599, %v1952
          %v2622 = vsub.f32 %v2606, %v1952
          %v2623 = vsub.f32 %v2613, %v1952
          %v2624 = vsub.f32 %v2620, %v1952
          %v2625 = vadd.f32 %v2573, %v2621
          %v2626 = vadd.f32 %v2574, %v2622
          %v2627 = vadd.f32 %v2575, %v2623
          %v2628 = vadd.f32 %v2576, %v2624
          %v2629 = vmul.f32 %v1932, %v2625
          %v2630 = vmul.f32 %v1933, %v2626
          %v2631 = vmul.f32 %v1934, %v2627
          %v2632 = vmul.f32 %v1935, %v2628
          %v2633 = vmul.f32 %v2629, %v2625
          %v2634 = vmul.f32 %v2630, %v2626
          %v2635 = vmul.f32 %v2631, %v2627
          %v2636 = vmul.f32 %v2632, %v2628
          %v2637 = vadd.f32 %v2633, %v1948
          %v2638 = vadd.f32 %v2634, %v1949
          %v2639 = vadd.f32 %v2635, %v1950
          %v2640 = vadd.f32 %v2636, %v1951
          %v2641 = vmax.f32 %v2637, 0.0
          %v2642 = vmax.f32 %v2638, 0.0
          %v2643 = vmax.f32 %v2639, 0.0
          %v2644 = vmax.f32 %v2640, 0.0
          %v2645 = vrsqrt.pop %v2641
          %v2646 = vmul.f32 %v2641, %v2645
          %vm2647 = vcmp.eq.f32.partialorder %v2641, inf
          %v2648 = vsel %vm2647, %v2641, %v2646
          %vm2649 = vcmp.eq.f32.partialorder %v2641, 0.0
          %v2650 = vand.u32 %v2641, 2147483648
          %v2651 = vsel %vm2649, %v2650, %v2648
          %v2652 = vrsqrt.pop %v2642
          %v2653 = vmul.f32 %v2642, %v2652
          %vm2654 = vcmp.eq.f32.partialorder %v2642, inf
          %v2655 = vsel %vm2654, %v2642, %v2653
          %vm2656 = vcmp.eq.f32.partialorder %v2642, 0.0
          %v2657 = vand.u32 %v2642, 2147483648
          %v2658 = vsel %vm2656, %v2657, %v2655
          %v2659 = vrsqrt.pop %v2643
          %v2660 = vmul.f32 %v2643, %v2659
          %vm2661 = vcmp.eq.f32.partialorder %v2643, inf
          %v2662 = vsel %vm2661, %v2643, %v2660
          %vm2663 = vcmp.eq.f32.partialorder %v2643, 0.0
          %v2664 = vand.u32 %v2643, 2147483648
          %v2665 = vsel %vm2663, %v2664, %v2662
          %v2666 = vrsqrt.pop %v2644
          %v2667 = vmul.f32 %v2644, %v2666
          %vm2668 = vcmp.eq.f32.partialorder %v2644, inf
          %v2669 = vsel %vm2668, %v2644, %v2667
          %vm2670 = vcmp.eq.f32.partialorder %v2644, 0.0
          %v2671 = vand.u32 %v2644, 2147483648
          %v2672 = vsel %vm2670, %v2671, %v2669
          %v2673 = vsub.f32 %v2651, %v1952
          %v2674 = vsub.f32 %v2658, %v1952
          %v2675 = vsub.f32 %v2665, %v1952
          %v2676 = vsub.f32 %v2672, %v1952
          %v2677 = vadd.f32 %v2625, %v2673
          %v2678 = vadd.f32 %v2626, %v2674
          %v2679 = vadd.f32 %v2627, %v2675
          %v2680 = vadd.f32 %v2628, %v2676
          %v2681 = vmul.f32 %v1932, %v2677
          %v2682 = vmul.f32 %v1933, %v2678
          %v2683 = vmul.f32 %v1934, %v2679
          %v2684 = vmul.f32 %v1935, %v2680
          %v2685 = vmul.f32 %v2681, %v2677
          %v2686 = vmul.f32 %v2682, %v2678
          %v2687 = vmul.f32 %v2683, %v2679
          %v2688 = vmul.f32 %v2684, %v2680
          %v2689 = vadd.f32 %v2685, %v1948
          %v2690 = vadd.f32 %v2686, %v1949
          %v2691 = vadd.f32 %v2687, %v1950
          %v2692 = vadd.f32 %v2688, %v1951
          %v2693 = vmax.f32 %v2689, 0.0
          %v2694 = vmax.f32 %v2690, 0.0
          %v2695 = vmax.f32 %v2691, 0.0
          %v2696 = vmax.f32 %v2692, 0.0
          %v2697 = vrsqrt.pop %v2693
          %v2698 = vmul.f32 %v2693, %v2697
          %vm2699 = vcmp.eq.f32.partialorder %v2693, inf
          %v2700 = vsel %vm2699, %v2693, %v2698
          %vm2701 = vcmp.eq.f32.partialorder %v2693, 0.0
          %v2702 = vand.u32 %v2693, 2147483648
          %v2703 = vsel %vm2701, %v2702, %v2700
          %v2704 = vrsqrt.pop %v2694
          %v2705 = vmul.f32 %v2694, %v2704
          %vm2706 = vcmp.eq.f32.partialorder %v2694, inf
          %v2707 = vsel %vm2706, %v2694, %v2705
          %vm2708 = vcmp.eq.f32.partialorder %v2694, 0.0
          %v2709 = vand.u32 %v2694, 2147483648
          %v2710 = vsel %vm2708, %v2709, %v2707
          %v2711 = vrsqrt.pop %v2695
          %v2712 = vmul.f32 %v2695, %v2711
          %vm2713 = vcmp.eq.f32.partialorder %v2695, inf
          %v2714 = vsel %vm2713, %v2695, %v2712
          %vm2715 = vcmp.eq.f32.partialorder %v2695, 0.0
          %v2716 = vand.u32 %v2695, 2147483648
          %v2717 = vsel %vm2715, %v2716, %v2714
          %v2718 = vrsqrt.pop %v2696
          %v2719 = vmul.f32 %v2696, %v2718
          %vm2720 = vcmp.eq.f32.partialorder %v2696, inf
          %v2721 = vsel %vm2720, %v2696, %v2719
          %vm2722 = vcmp.eq.f32.partialorder %v2696, 0.0
          %v2723 = vand.u32 %v2696, 2147483648
          %v2724 = vsel %vm2722, %v2723, %v2721
          %v2725 = vsub.f32 %v2703, %v1952
          %v2726 = vsub.f32 %v2710, %v1952
          %v2727 = vsub.f32 %v2717, %v1952
          %v2728 = vsub.f32 %v2724, %v1952
          %v2729 = vadd.f32 %v2677, %v2725
          %v2730 = vadd.f32 %v2678, %v2726
          %v2731 = vadd.f32 %v2679, %v2727
          %v2732 = vadd.f32 %v2680, %v2728
          %v2733 = vmul.f32 %v1932, %v2729
          %v2734 = vmul.f32 %v1933, %v2730
          %v2735 = vmul.f32 %v1934, %v2731
          %v2736 = vmul.f32 %v1935, %v2732
          %v2737 = vmul.f32 %v2733, %v2729
          %v2738 = vmul.f32 %v2734, %v2730
          %v2739 = vmul.f32 %v2735, %v2731
          %v2740 = vmul.f32 %v2736, %v2732
          %v2741 = vadd.f32 %v2737, %v1948
          %v2742 = vadd.f32 %v2738, %v1949
          %v2743 = vadd.f32 %v2739, %v1950
          %v2744 = vadd.f32 %v2740, %v1951
          %v2745 = vmax.f32 %v2741, 0.0
          %v2746 = vmax.f32 %v2742, 0.0
          %v2747 = vmax.f32 %v2743, 0.0
          %v2748 = vmax.f32 %v2744, 0.0
          %v2749 = vrsqrt.pop %v2745
          %v2750 = vmul.f32 %v2745, %v2749
          %vm2751 = vcmp.eq.f32.partialorder %v2745, inf
          %v2752 = vsel %vm2751, %v2745, %v2750
          %vm2753 = vcmp.eq.f32.partialorder %v2745, 0.0
          %v2754 = vand.u32 %v2745, 2147483648
          %v2755 = vsel %vm2753, %v2754, %v2752
          %v2756 = vrsqrt.pop %v2746
          %v2757 = vmul.f32 %v2746, %v2756
          %vm2758 = vcmp.eq.f32.partialorder %v2746, inf
          %v2759 = vsel %vm2758, %v2746, %v2757
          %vm2760 = vcmp.eq.f32.partialorder %v2746, 0.0
          %v2761 = vand.u32 %v2746, 2147483648
          %v2762 = vsel %vm2760, %v2761, %v2759
          %v2763 = vrsqrt.pop %v2747
          %v2764 = vmul.f32 %v2747, %v2763
          %vm2765 = vcmp.eq.f32.partialorder %v2747, inf
          %v2766 = vsel %vm2765, %v2747, %v2764
          %vm2767 = vcmp.eq.f32.partialorder %v2747, 0.0
          %v2768 = vand.u32 %v2747, 2147483648
          %v2769 = vsel %vm2767, %v2768, %v2766
          %v2770 = vrsqrt.pop %v2748
          %v2771 = vmul.f32 %v2748, %v2770
          %vm2772 = vcmp.eq.f32.partialorder %v2748, inf
          %v2773 = vsel %vm2772, %v2748, %v2771
          %vm2774 = vcmp.eq.f32.partialorder %v2748, 0.0
          %v2775 = vand.u32 %v2748, 2147483648
          %v2776 = vsel %vm2774, %v2775, %v2773
          %v2777 = vsub.f32 %v2755, %v1952
          %v2778 = vsub.f32 %v2762, %v1952
          %v2779 = vsub.f32 %v2769, %v1952
          %v2780 = vsub.f32 %v2776, %v1952
          %v2781 = vadd.f32 %v2729, %v2777
          %v2782 = vadd.f32 %v2730, %v2778
          %v2783 = vadd.f32 %v2731, %v2779
          %v2784 = vadd.f32 %v2732, %v2780
          %v2785 = vmul.f32 %v1932, %v2781
          %v2786 = vmul.f32 %v1933, %v2782
          %v2787 = vmul.f32 %v1934, %v2783
          %v2788 = vmul.f32 %v1935, %v2784
          %v2789 = vmul.f32 %v2785, %v2781
          %v2790 = vmul.f32 %v2786, %v2782
          %v2791 = vmul.f32 %v2787, %v2783
          %v2792 = vmul.f32 %v2788, %v2784
          %v2793 = vadd.f32 %v2789, %v1948
          %v2794 = vadd.f32 %v2790, %v1949
          %v2795 = vadd.f32 %v2791, %v1950
          %v2796 = vadd.f32 %v2792, %v1951
          %v2797 = vmax.f32 %v2793, 0.0
          %v2798 = vmax.f32 %v2794, 0.0
          %v2799 = vmax.f32 %v2795, 0.0
          %v2800 = vmax.f32 %v2796, 0.0
          %v2801 = vrsqrt.pop %v2797
          %v2802 = vmul.f32 %v2797, %v2801
          %vm2803 = vcmp.eq.f32.partialorder %v2797, inf
          %v2804 = vsel %vm2803, %v2797, %v2802
          %vm2805 = vcmp.eq.f32.partialorder %v2797, 0.0
          %v2806 = vand.u32 %v2797, 2147483648
          %v2807 = vsel %vm2805, %v2806, %v2804
          %v2808 = vrsqrt.pop %v2798
          %v2809 = vmul.f32 %v2798, %v2808
          %vm2810 = vcmp.eq.f32.partialorder %v2798, inf
          %v2811 = vsel %vm2810, %v2798, %v2809
          %vm2812 = vcmp.eq.f32.partialorder %v2798, 0.0
          %v2813 = vand.u32 %v2798, 2147483648
          %v2814 = vsel %vm2812, %v2813, %v2811
          %v2815 = vrsqrt.pop %v2799
          %v2816 = vmul.f32 %v2799, %v2815
          %vm2817 = vcmp.eq.f32.partialorder %v2799, inf
          %v2818 = vsel %vm2817, %v2799, %v2816
          %vm2819 = vcmp.eq.f32.partialorder %v2799, 0.0
          %v2820 = vand.u32 %v2799, 2147483648
          %v2821 = vsel %vm2819, %v2820, %v2818
          %v2822 = vrsqrt.pop %v2800
          %v2823 = vmul.f32 %v2800, %v2822
          %vm2824 = vcmp.eq.f32.partialorder %v2800, inf
          %v2825 = vsel %vm2824, %v2800, %v2823
          %vm2826 = vcmp.eq.f32.partialorder %v2800, 0.0
          %v2827 = vand.u32 %v2800, 2147483648
          %v2828 = vsel %vm2826, %v2827, %v2825
          %v2829 = vsub.f32 %v2807, %v1952
          %v2830 = vsub.f32 %v2814, %v1952
          %v2831 = vsub.f32 %v2821, %v1952
          %v2832 = vsub.f32 %v2828, %v1952
          %v2833 = vadd.f32 %v2781, %v2829
          %v2834 = vadd.f32 %v2782, %v2830
          %v2835 = vadd.f32 %v2783, %v2831
          %v2836 = vadd.f32 %v2784, %v2832
          %v2837 = vmul.f32 %v1932, %v2833
          %v2838 = vmul.f32 %v1933, %v2834
          %v2839 = vmul.f32 %v1934, %v2835
          %v2840 = vmul.f32 %v1935, %v2836
          %v2841 = vmul.f32 %v2837, %v2833
          %v2842 = vmul.f32 %v2838, %v2834
          %v2843 = vmul.f32 %v2839, %v2835
          %v2844 = vmul.f32 %v2840, %v2836
          %v2845 = vadd.f32 %v2841, %v1948
          %v2846 = vadd.f32 %v2842, %v1949
          %v2847 = vadd.f32 %v2843, %v1950
          %v2848 = vadd.f32 %v2844, %v1951
          %v2849 = vmax.f32 %v2845, 0.0
          %v2850 = vmax.f32 %v2846, 0.0
          %v2851 = vmax.f32 %v2847, 0.0
          %v2852 = vmax.f32 %v2848, 0.0
          %v2853 = vrsqrt.pop %v2849
          %v2854 = vmul.f32 %v2849, %v2853
          %vm2855 = vcmp.eq.f32.partialorder %v2849, inf
          %v2856 = vsel %vm2855, %v2849, %v2854
          %vm2857 = vcmp.eq.f32.partialorder %v2849, 0.0
          %v2858 = vand.u32 %v2849, 2147483648
          %v2859 = vsel %vm2857, %v2858, %v2856
          %v2860 = vrsqrt.pop %v2850
          %v2861 = vmul.f32 %v2850, %v2860
          %vm2862 = vcmp.eq.f32.partialorder %v2850, inf
          %v2863 = vsel %vm2862, %v2850, %v2861
          %vm2864 = vcmp.eq.f32.partialorder %v2850, 0.0
          %v2865 = vand.u32 %v2850, 2147483648
          %v2866 = vsel %vm2864, %v2865, %v2863
          %v2867 = vrsqrt.pop %v2851
          %v2868 = vmul.f32 %v2851, %v2867
          %vm2869 = vcmp.eq.f32.partialorder %v2851, inf
          %v2870 = vsel %vm2869, %v2851, %v2868
          %vm2871 = vcmp.eq.f32.partialorder %v2851, 0.0
          %v2872 = vand.u32 %v2851, 2147483648
          %v2873 = vsel %vm2871, %v2872, %v2870
          %v2874 = vrsqrt.pop %v2852
          %v2875 = vmul.f32 %v2852, %v2874
          %vm2876 = vcmp.eq.f32.partialorder %v2852, inf
          %v2877 = vsel %vm2876, %v2852, %v2875
          %vm2878 = vcmp.eq.f32.partialorder %v2852, 0.0
          %v2879 = vand.u32 %v2852, 2147483648
          %v2880 = vsel %vm2878, %v2879, %v2877
          %v2881 = vsub.f32 %v2859, %v1952
          %v2882 = vsub.f32 %v2866, %v1952
          %v2883 = vsub.f32 %v2873, %v1952
          %v2884 = vsub.f32 %v2880, %v1952
          %v2885 = vadd.f32 %v2833, %v2881
          %v2886 = vadd.f32 %v2834, %v2882
          %v2887 = vadd.f32 %v2835, %v2883
          %v2888 = vadd.f32 %v2836, %v2884
          %v2889 = vmul.f32 %v1932, %v2885
          %v2890 = vmul.f32 %v1933, %v2886
          %v2891 = vmul.f32 %v1934, %v2887
          %v2892 = vmul.f32 %v1935, %v2888
          %v2893 = vmul.f32 %v2889, %v2885
          %v2894 = vmul.f32 %v2890, %v2886
          %v2895 = vmul.f32 %v2891, %v2887
          %v2896 = vmul.f32 %v2892, %v2888
          %v2897 = vadd.f32 %v2893, %v1948
          %v2898 = vadd.f32 %v2894, %v1949
          %v2899 = vadd.f32 %v2895, %v1950
          %v2900 = vadd.f32 %v2896, %v1951
          %v2901 = vmax.f32 %v2897, 0.0
          %v2902 = vmax.f32 %v2898, 0.0
          %v2903 = vmax.f32 %v2899, 0.0
          %v2904 = vmax.f32 %v2900, 0.0
          %v2905 = vrsqrt.pop %v2901
          %v2906 = vmul.f32 %v2901, %v2905
          %vm2907 = vcmp.eq.f32.partialorder %v2901, inf
          %v2908 = vsel %vm2907, %v2901, %v2906
          %vm2909 = vcmp.eq.f32.partialorder %v2901, 0.0
          %v2910 = vand.u32 %v2901, 2147483648
          %v2911 = vsel %vm2909, %v2910, %v2908
          %v2912 = vrsqrt.pop %v2902
          %v2913 = vmul.f32 %v2902, %v2912
          %vm2914 = vcmp.eq.f32.partialorder %v2902, inf
          %v2915 = vsel %vm2914, %v2902, %v2913
          %vm2916 = vcmp.eq.f32.partialorder %v2902, 0.0
          %v2917 = vand.u32 %v2902, 2147483648
          %v2918 = vsel %vm2916, %v2917, %v2915
          %v2919 = vrsqrt.pop %v2903
          %v2920 = vmul.f32 %v2903, %v2919
          %vm2921 = vcmp.eq.f32.partialorder %v2903, inf
          %v2922 = vsel %vm2921, %v2903, %v2920
          %vm2923 = vcmp.eq.f32.partialorder %v2903, 0.0
          %v2924 = vand.u32 %v2903, 2147483648
          %v2925 = vsel %vm2923, %v2924, %v2922
          %v2926 = vrsqrt.pop %v2904
          %v2927 = vmul.f32 %v2904, %v2926
          %vm2928 = vcmp.eq.f32.partialorder %v2904, inf
          %v2929 = vsel %vm2928, %v2904, %v2927
          %vm2930 = vcmp.eq.f32.partialorder %v2904, 0.0
          %v2931 = vand.u32 %v2904, 2147483648
          %v2932 = vsel %vm2930, %v2931, %v2929
          %v2933 = vsub.f32 %v2911, %v1952
          %v2934 = vsub.f32 %v2918, %v1952
          %v2935 = vsub.f32 %v2925, %v1952
          %v2936 = vsub.f32 %v2932, %v1952
          %v2937 = vadd.f32 %v2885, %v2933
          %v2938 = vadd.f32 %v2886, %v2934
          %v2939 = vadd.f32 %v2887, %v2935
          %v2940 = vadd.f32 %v2888, %v2936
          %v2941 = vmul.f32 %v1932, %v2937
          %v2942 = vmul.f32 %v1933, %v2938
          %v2943 = vmul.f32 %v1934, %v2939
          %v2944 = vmul.f32 %v1935, %v2940
          %v2945 = vmul.f32 %v2941, %v2937
          %v2946 = vmul.f32 %v2942, %v2938
          %v2947 = vmul.f32 %v2943, %v2939
          %v2948 = vmul.f32 %v2944, %v2940
          %v2949 = vadd.f32 %v2945, %v1948
          %v2950 = vadd.f32 %v2946, %v1949
          %v2951 = vadd.f32 %v2947, %v1950
          %v2952 = vadd.f32 %v2948, %v1951
          %v2953 = vmax.f32 %v2949, 0.0
          %v2954 = vmax.f32 %v2950, 0.0
          %v2955 = vmax.f32 %v2951, 0.0
          %v2956 = vmax.f32 %v2952, 0.0
          %v2957 = vrsqrt.pop %v2953
          %v2958 = vmul.f32 %v2953, %v2957
          %vm2959 = vcmp.eq.f32.partialorder %v2953, inf
          %v2960 = vsel %vm2959, %v2953, %v2958
          %vm2961 = vcmp.eq.f32.partialorder %v2953, 0.0
          %v2962 = vand.u32 %v2953, 2147483648
          %v2963 = vsel %vm2961, %v2962, %v2960
          %v2964 = vrsqrt.pop %v2954
          %v2965 = vmul.f32 %v2954, %v2964
          %vm2966 = vcmp.eq.f32.partialorder %v2954, inf
          %v2967 = vsel %vm2966, %v2954, %v2965
          %vm2968 = vcmp.eq.f32.partialorder %v2954, 0.0
          %v2969 = vand.u32 %v2954, 2147483648
          %v2970 = vsel %vm2968, %v2969, %v2967
          %v2971 = vrsqrt.pop %v2955
          %v2972 = vmul.f32 %v2955, %v2971
          %vm2973 = vcmp.eq.f32.partialorder %v2955, inf
          %v2974 = vsel %vm2973, %v2955, %v2972
          %vm2975 = vcmp.eq.f32.partialorder %v2955, 0.0
          %v2976 = vand.u32 %v2955, 2147483648
          %v2977 = vsel %vm2975, %v2976, %v2974
          %v2978 = vrsqrt.pop %v2956
          %v2979 = vmul.f32 %v2956, %v2978
          %vm2980 = vcmp.eq.f32.partialorder %v2956, inf
          %v2981 = vsel %vm2980, %v2956, %v2979
          %vm2982 = vcmp.eq.f32.partialorder %v2956, 0.0
          %v2983 = vand.u32 %v2956, 2147483648
          %v2984 = vsel %vm2982, %v2983, %v2981
          %v2985 = vsub.f32 %v2963, %v1952
          %v2986 = vsub.f32 %v2970, %v1952
          %v2987 = vsub.f32 %v2977, %v1952
          %v2988 = vsub.f32 %v2984, %v1952
          %v2989 = vadd.f32 %v2937, %v2985
          %v2990 = vadd.f32 %v2938, %v2986
          %v2991 = vadd.f32 %v2939, %v2987
          %v2992 = vadd.f32 %v2940, %v2988
          %v2993 = vmul.f32 %v1932, %v2989
          %v2994 = vmul.f32 %v1933, %v2990
          %v2995 = vmul.f32 %v1934, %v2991
          %v2996 = vmul.f32 %v1935, %v2992
          %v2997 = vmul.f32 %v2993, %v2989
          %v2998 = vmul.f32 %v2994, %v2990
          %v2999 = vmul.f32 %v2995, %v2991
          %v3000 = vmul.f32 %v2996, %v2992
          %v3001 = vadd.f32 %v2997, %v1948
          %v3002 = vadd.f32 %v2998, %v1949
          %v3003 = vadd.f32 %v2999, %v1950
          %v3004 = vadd.f32 %v3000, %v1951
          %v3005 = vmax.f32 %v3001, 0.0
          %v3006 = vmax.f32 %v3002, 0.0
          %v3007 = vmax.f32 %v3003, 0.0
          %v3008 = vmax.f32 %v3004, 0.0
          %v3009 = vrsqrt.pop %v3005
          %v3010 = vmul.f32 %v3005, %v3009
          %vm3011 = vcmp.eq.f32.partialorder %v3005, inf
          %v3012 = vsel %vm3011, %v3005, %v3010
          %vm3013 = vcmp.eq.f32.partialorder %v3005, 0.0
          %v3014 = vand.u32 %v3005, 2147483648
          %v3015 = vsel %vm3013, %v3014, %v3012
          %v3016 = vrsqrt.pop %v3006
          %v3017 = vmul.f32 %v3006, %v3016
          %vm3018 = vcmp.eq.f32.partialorder %v3006, inf
          %v3019 = vsel %vm3018, %v3006, %v3017
          %vm3020 = vcmp.eq.f32.partialorder %v3006, 0.0
          %v3021 = vand.u32 %v3006, 2147483648
          %v3022 = vsel %vm3020, %v3021, %v3019
          %v3023 = vrsqrt.pop %v3007
          %v3024 = vmul.f32 %v3007, %v3023
          %vm3025 = vcmp.eq.f32.partialorder %v3007, inf
          %v3026 = vsel %vm3025, %v3007, %v3024
          %vm3027 = vcmp.eq.f32.partialorder %v3007, 0.0
          %v3028 = vand.u32 %v3007, 2147483648
          %v3029 = vsel %vm3027, %v3028, %v3026
          %v3030 = vrsqrt.pop %v3008
          %v3031 = vmul.f32 %v3008, %v3030
          %vm3032 = vcmp.eq.f32.partialorder %v3008, inf
          %v3033 = vsel %vm3032, %v3008, %v3031
          %vm3034 = vcmp.eq.f32.partialorder %v3008, 0.0
          %v3035 = vand.u32 %v3008, 2147483648
          %v3036 = vsel %vm3034, %v3035, %v3033
          %v3037 = vsub.f32 %v3015, %v1952
          %v3038 = vsub.f32 %v3022, %v1952
          %v3039 = vsub.f32 %v3029, %v1952
          %v3040 = vsub.f32 %v3036, %v1952
          %v3041 = vadd.f32 %v2989, %v3037
          %v3042 = vadd.f32 %v2990, %v3038
          %v3043 = vadd.f32 %v2991, %v3039
          %v3044 = vadd.f32 %v2992, %v3040
          %v3045 = vmul.f32 %v1932, %v3041
          %v3046 = vmul.f32 %v1933, %v3042
          %v3047 = vmul.f32 %v1934, %v3043
          %v3048 = vmul.f32 %v1935, %v3044
          %v3049 = vmul.f32 %v3045, %v3041
          %v3050 = vmul.f32 %v3046, %v3042
          %v3051 = vmul.f32 %v3047, %v3043
          %v3052 = vmul.f32 %v3048, %v3044
          %v3053 = vadd.f32 %v3049, %v1948
          %v3054 = vadd.f32 %v3050, %v1949
          %v3055 = vadd.f32 %v3051, %v1950
          %v3056 = vadd.f32 %v3052, %v1951
          %v3057 = vmax.f32 %v3053, 0.0
          %v3058 = vmax.f32 %v3054, 0.0
          %v3059 = vmax.f32 %v3055, 0.0
          %v3060 = vmax.f32 %v3056, 0.0
          %v3061 = vrsqrt.pop %v3057
          %v3062 = vmul.f32 %v3057, %v3061
          %vm3063 = vcmp.eq.f32.partialorder %v3057, inf
          %v3064 = vsel %vm3063, %v3057, %v3062
          %vm3065 = vcmp.eq.f32.partialorder %v3057, 0.0
          %v3066 = vand.u32 %v3057, 2147483648
          %v3067 = vsel %vm3065, %v3066, %v3064
          %v3068 = vrsqrt.pop %v3058
          %v3069 = vmul.f32 %v3058, %v3068
          %vm3070 = vcmp.eq.f32.partialorder %v3058, inf
          %v3071 = vsel %vm3070, %v3058, %v3069
          %vm3072 = vcmp.eq.f32.partialorder %v3058, 0.0
          %v3073 = vand.u32 %v3058, 2147483648
          %v3074 = vsel %vm3072, %v3073, %v3071
          %v3075 = vrsqrt.pop %v3059
          %v3076 = vmul.f32 %v3059, %v3075
          %vm3077 = vcmp.eq.f32.partialorder %v3059, inf
          %v3078 = vsel %vm3077, %v3059, %v3076
          %vm3079 = vcmp.eq.f32.partialorder %v3059, 0.0
          %v3080 = vand.u32 %v3059, 2147483648
          %v3081 = vsel %vm3079, %v3080, %v3078
          %v3082 = vrsqrt.pop %v3060
          %v3083 = vmul.f32 %v3060, %v3082
          %vm3084 = vcmp.eq.f32.partialorder %v3060, inf
          %v3085 = vsel %vm3084, %v3060, %v3083
          %vm3086 = vcmp.eq.f32.partialorder %v3060, 0.0
          %v3087 = vand.u32 %v3060, 2147483648
          %v3088 = vsel %vm3086, %v3087, %v3085
          %v3089 = vsub.f32 %v3067, %v1952
          %v3090 = vsub.f32 %v3074, %v1952
          %v3091 = vsub.f32 %v3081, %v1952
          %v3092 = vsub.f32 %v3088, %v1952
          %v3093 = vadd.f32 %v3041, %v3089
          %v3094 = vadd.f32 %v3042, %v3090
          %v3095 = vadd.f32 %v3043, %v3091
          %v3096 = vadd.f32 %v3044, %v3092
          %v3097 = vmul.f32 %v1932, %v3093
          %v3098 = vmul.f32 %v1933, %v3094
          %v3099 = vmul.f32 %v1934, %v3095
          %v3100 = vmul.f32 %v1935, %v3096
          %v3101 = vmul.f32 %v3097, %v3093
          %v3102 = vmul.f32 %v3098, %v3094
          %v3103 = vmul.f32 %v3099, %v3095
          %v3104 = vmul.f32 %v3100, %v3096
          %v3105 = vadd.f32 %v3101, %v1948
          %v3106 = vadd.f32 %v3102, %v1949
          %v3107 = vadd.f32 %v3103, %v1950
          %v3108 = vadd.f32 %v3104, %v1951
          %v3109 = vmax.f32 %v3105, 0.0
          %v3110 = vmax.f32 %v3106, 0.0
          %v3111 = vmax.f32 %v3107, 0.0
          %v3112 = vmax.f32 %v3108, 0.0
          %v3113 = vrsqrt.pop %v3109
          %v3114 = vmul.f32 %v3109, %v3113
          %vm3115 = vcmp.eq.f32.partialorder %v3109, inf
          %v3116 = vsel %vm3115, %v3109, %v3114
          %vm3117 = vcmp.eq.f32.partialorder %v3109, 0.0
          %v3118 = vand.u32 %v3109, 2147483648
          %v3119 = vsel %vm3117, %v3118, %v3116
          %v3120 = vrsqrt.pop %v3110
          %v3121 = vmul.f32 %v3110, %v3120
          %vm3122 = vcmp.eq.f32.partialorder %v3110, inf
          %v3123 = vsel %vm3122, %v3110, %v3121
          %vm3124 = vcmp.eq.f32.partialorder %v3110, 0.0
          %v3125 = vand.u32 %v3110, 2147483648
          %v3126 = vsel %vm3124, %v3125, %v3123
          %v3127 = vrsqrt.pop %v3111
          %v3128 = vmul.f32 %v3111, %v3127
          %vm3129 = vcmp.eq.f32.partialorder %v3111, inf
          %v3130 = vsel %vm3129, %v3111, %v3128
          %vm3131 = vcmp.eq.f32.partialorder %v3111, 0.0
          %v3132 = vand.u32 %v3111, 2147483648
          %v3133 = vsel %vm3131, %v3132, %v3130
          %v3134 = vrsqrt.pop %v3112
          %v3135 = vmul.f32 %v3112, %v3134
          %vm3136 = vcmp.eq.f32.partialorder %v3112, inf
          %v3137 = vsel %vm3136, %v3112, %v3135
          %vm3138 = vcmp.eq.f32.partialorder %v3112, 0.0
          %v3139 = vand.u32 %v3112, 2147483648
          %v3140 = vsel %vm3138, %v3139, %v3137
          %v3141 = vsub.f32 %v3119, %v1952
          %v3142 = vsub.f32 %v3126, %v1952
          %v3143 = vsub.f32 %v3133, %v1952
          %v3144 = vsub.f32 %v3140, %v1952
          %v3145 = vadd.f32 %v3093, %v3141
          %v3146 = vadd.f32 %v3094, %v3142
          %v3147 = vadd.f32 %v3095, %v3143
          %v3148 = vadd.f32 %v3096, %v3144
          %v3149 = vmul.f32 %v1932, %v3145
          %v3150 = vmul.f32 %v1933, %v3146
          %v3151 = vmul.f32 %v1934, %v3147
          %v3152 = vmul.f32 %v1935, %v3148
          %v3153 = vmul.f32 %v3149, %v3145
          %v3154 = vmul.f32 %v3150, %v3146
          %v3155 = vmul.f32 %v3151, %v3147
          %v3156 = vmul.f32 %v3152, %v3148
          %v3157 = vadd.f32 %v3153, %v1948
          %v3158 = vadd.f32 %v3154, %v1949
          %v3159 = vadd.f32 %v3155, %v1950
          %v3160 = vadd.f32 %v3156, %v1951
          %v3161 = vmax.f32 %v3157, 0.0
          %v3162 = vmax.f32 %v3158, 0.0
          %v3163 = vmax.f32 %v3159, 0.0
          %v3164 = vmax.f32 %v3160, 0.0
          %v3165 = vrsqrt.pop %v3161
          %v3166 = vmul.f32 %v3161, %v3165
          %vm3167 = vcmp.eq.f32.partialorder %v3161, inf
          %v3168 = vsel %vm3167, %v3161, %v3166
          %vm3169 = vcmp.eq.f32.partialorder %v3161, 0.0
          %v3170 = vand.u32 %v3161, 2147483648
          %v3171 = vsel %vm3169, %v3170, %v3168
          %v3172 = vrsqrt.pop %v3162
          %v3173 = vmul.f32 %v3162, %v3172
          %vm3174 = vcmp.eq.f32.partialorder %v3162, inf
          %v3175 = vsel %vm3174, %v3162, %v3173
          %vm3176 = vcmp.eq.f32.partialorder %v3162, 0.0
          %v3177 = vand.u32 %v3162, 2147483648
          %v3178 = vsel %vm3176, %v3177, %v3175
          %v3179 = vrsqrt.pop %v3163
          %v3180 = vmul.f32 %v3163, %v3179
          %vm3181 = vcmp.eq.f32.partialorder %v3163, inf
          %v3182 = vsel %vm3181, %v3163, %v3180
          %vm3183 = vcmp.eq.f32.partialorder %v3163, 0.0
          %v3184 = vand.u32 %v3163, 2147483648
          %v3185 = vsel %vm3183, %v3184, %v3182
          %v3186 = vrsqrt.pop %v3164
          %v3187 = vmul.f32 %v3164, %v3186
          %vm3188 = vcmp.eq.f32.partialorder %v3164, inf
          %v3189 = vsel %vm3188, %v3164, %v3187
          %vm3190 = vcmp.eq.f32.partialorder %v3164, 0.0
          %v3191 = vand.u32 %v3164, 2147483648
          %v3192 = vsel %vm3190, %v3191, %v3189
          %v3193 = vsub.f32 %v3171, %v1952
          %v3194 = vsub.f32 %v3178, %v1952
          %v3195 = vsub.f32 %v3185, %v1952
          %v3196 = vsub.f32 %v3192, %v1952
          %v3197 = vadd.f32 %v3145, %v3193
          %v3198 = vadd.f32 %v3146, %v3194
          %v3199 = vadd.f32 %v3147, %v3195
          %v3200 = vadd.f32 %v3148, %v3196
          %v3201 = vmul.f32 %v1932, %v3197
          %v3202 = vmul.f32 %v1933, %v3198
          %v3203 = vmul.f32 %v1934, %v3199
          %v3204 = vmul.f32 %v1935, %v3200
          %v3205 = vmul.f32 %v3201, %v3197
          %v3206 = vmul.f32 %v3202, %v3198
          %v3207 = vmul.f32 %v3203, %v3199
          %v3208 = vmul.f32 %v3204, %v3200
          %v3209 = vadd.f32 %v3205, %v1948
          %v3210 = vadd.f32 %v3206, %v1949
          %v3211 = vadd.f32 %v3207, %v1950
          %v3212 = vadd.f32 %v3208, %v1951
          %v3213 = vmax.f32 %v3209, 0.0
          %v3214 = vmax.f32 %v3210, 0.0
          %v3215 = vmax.f32 %v3211, 0.0
          %v3216 = vmax.f32 %v3212, 0.0
          %v3217 = vrsqrt.pop %v3213
          %v3218 = vmul.f32 %v3213, %v3217
          %vm3219 = vcmp.eq.f32.partialorder %v3213, inf
          %v3220 = vsel %vm3219, %v3213, %v3218
          %vm3221 = vcmp.eq.f32.partialorder %v3213, 0.0
          %v3222 = vand.u32 %v3213, 2147483648
          %v3223 = vsel %vm3221, %v3222, %v3220
          %v3224 = vrsqrt.pop %v3214
          %v3225 = vmul.f32 %v3214, %v3224
          %vm3226 = vcmp.eq.f32.partialorder %v3214, inf
          %v3227 = vsel %vm3226, %v3214, %v3225
          %vm3228 = vcmp.eq.f32.partialorder %v3214, 0.0
          %v3229 = vand.u32 %v3214, 2147483648
          %v3230 = vsel %vm3228, %v3229, %v3227
          %v3231 = vrsqrt.pop %v3215
          %v3232 = vmul.f32 %v3215, %v3231
          %vm3233 = vcmp.eq.f32.partialorder %v3215, inf
          %v3234 = vsel %vm3233, %v3215, %v3232
          %vm3235 = vcmp.eq.f32.partialorder %v3215, 0.0
          %v3236 = vand.u32 %v3215, 2147483648
          %v3237 = vsel %vm3235, %v3236, %v3234
          %v3238 = vrsqrt.pop %v3216
          %v3239 = vmul.f32 %v3216, %v3238
          %vm3240 = vcmp.eq.f32.partialorder %v3216, inf
          %v3241 = vsel %vm3240, %v3216, %v3239
          %vm3242 = vcmp.eq.f32.partialorder %v3216, 0.0
          %v3243 = vand.u32 %v3216, 2147483648
          %v3244 = vsel %vm3242, %v3243, %v3241
          %v3245 = vsub.f32 %v3223, %v1952
          %v3246 = vsub.f32 %v3230, %v1952
          %v3247 = vsub.f32 %v3237, %v1952
          %v3248 = vsub.f32 %v3244, %v1952
          %v3249 = vadd.f32 %v3197, %v3245
          %v3250 = vadd.f32 %v3198, %v3246
          %v3251 = vadd.f32 %v3199, %v3247
          %v3252 = vadd.f32 %v3200, %v3248
          %v3253 = vmul.f32 %v1932, %v3249
          %v3254 = vmul.f32 %v1933, %v3250
          %v3255 = vmul.f32 %v1934, %v3251
          %v3256 = vmul.f32 %v1935, %v3252
          %v3257 = vmul.f32 %v3253, %v3249
          %v3258 = vmul.f32 %v3254, %v3250
          %v3259 = vmul.f32 %v3255, %v3251
          %v3260 = vmul.f32 %v3256, %v3252
          %v3261 = vadd.f32 %v3257, %v1948
          %v3262 = vadd.f32 %v3258, %v1949
          %v3263 = vadd.f32 %v3259, %v1950
          %v3264 = vadd.f32 %v3260, %v1951
          %v3265 = vmax.f32 %v3261, 0.0
          %v3266 = vmax.f32 %v3262, 0.0
          %v3267 = vmax.f32 %v3263, 0.0
          %v3268 = vmax.f32 %v3264, 0.0
          %v3269 = vrsqrt.pop %v3265
          %v3270 = vmul.f32 %v3265, %v3269
          %vm3271 = vcmp.eq.f32.partialorder %v3265, inf
          %v3272 = vsel %vm3271, %v3265, %v3270
          %vm3273 = vcmp.eq.f32.partialorder %v3265, 0.0
          %v3274 = vand.u32 %v3265, 2147483648
          %v3275 = vsel %vm3273, %v3274, %v3272
          %v3276 = vrsqrt.pop %v3266
          %v3277 = vmul.f32 %v3266, %v3276
          %vm3278 = vcmp.eq.f32.partialorder %v3266, inf
          %v3279 = vsel %vm3278, %v3266, %v3277
          %vm3280 = vcmp.eq.f32.partialorder %v3266, 0.0
          %v3281 = vand.u32 %v3266, 2147483648
          %v3282 = vsel %vm3280, %v3281, %v3279
          %v3283 = vrsqrt.pop %v3267
          %v3284 = vmul.f32 %v3267, %v3283
          %vm3285 = vcmp.eq.f32.partialorder %v3267, inf
          %v3286 = vsel %vm3285, %v3267, %v3284
          %vm3287 = vcmp.eq.f32.partialorder %v3267, 0.0
          %v3288 = vand.u32 %v3267, 2147483648
          %v3289 = vsel %vm3287, %v3288, %v3286
          %v3290 = vrsqrt.pop %v3268
          %v3291 = vmul.f32 %v3268, %v3290
          %vm3292 = vcmp.eq.f32.partialorder %v3268, inf
          %v3293 = vsel %vm3292, %v3268, %v3291
          %vm3294 = vcmp.eq.f32.partialorder %v3268, 0.0
          %v3295 = vand.u32 %v3268, 2147483648
          %v3296 = vsel %vm3294, %v3295, %v3293
          %v3297 = vsub.f32 %v3275, %v1952
          %v3298 = vsub.f32 %v3282, %v1952
          %v3299 = vsub.f32 %v3289, %v1952
          %v3300 = vsub.f32 %v3296, %v1952
          %v3301 = vadd.f32 %v3249, %v3297
          %v3302 = vadd.f32 %v3250, %v3298
          %v3303 = vadd.f32 %v3251, %v3299
          %v3304 = vadd.f32 %v3252, %v3300
          %v3305 = vmul.f32 %v1932, %v3301
          %v3306 = vmul.f32 %v1933, %v3302
          %v3307 = vmul.f32 %v1934, %v3303
          %v3308 = vmul.f32 %v1935, %v3304
          %v3309 = vmul.f32 %v3305, %v3301
          %v3310 = vmul.f32 %v3306, %v3302
          %v3311 = vmul.f32 %v3307, %v3303
          %v3312 = vmul.f32 %v3308, %v3304
          %v3313 = vadd.f32 %v3309, %v1948
          %v3314 = vadd.f32 %v3310, %v1949
          %v3315 = vadd.f32 %v3311, %v1950
          %v3316 = vadd.f32 %v3312, %v1951
          %v3317 = vmax.f32 %v3313, 0.0
          %v3318 = vmax.f32 %v3314, 0.0
          %v3319 = vmax.f32 %v3315, 0.0
          %v3320 = vmax.f32 %v3316, 0.0
          %v3321 = vrsqrt.pop %v3317
          %v3322 = vmul.f32 %v3317, %v3321
          %vm3323 = vcmp.eq.f32.partialorder %v3317, inf
          %v3324 = vsel %vm3323, %v3317, %v3322
          %vm3325 = vcmp.eq.f32.partialorder %v3317, 0.0
          %v3326 = vand.u32 %v3317, 2147483648
          %v3327 = vsel %vm3325, %v3326, %v3324
          %v3328 = vrsqrt.pop %v3318
          %v3329 = vmul.f32 %v3318, %v3328
          %vm3330 = vcmp.eq.f32.partialorder %v3318, inf
          %v3331 = vsel %vm3330, %v3318, %v3329
          %vm3332 = vcmp.eq.f32.partialorder %v3318, 0.0
          %v3333 = vand.u32 %v3318, 2147483648
          %v3334 = vsel %vm3332, %v3333, %v3331
          %v3335 = vrsqrt.pop %v3319
          %v3336 = vmul.f32 %v3319, %v3335
          %vm3337 = vcmp.eq.f32.partialorder %v3319, inf
          %v3338 = vsel %vm3337, %v3319, %v3336
          %vm3339 = vcmp.eq.f32.partialorder %v3319, 0.0
          %v3340 = vand.u32 %v3319, 2147483648
          %v3341 = vsel %vm3339, %v3340, %v3338
          %v3342 = vrsqrt.pop %v3320
          %v3343 = vmul.f32 %v3320, %v3342
          %vm3344 = vcmp.eq.f32.partialorder %v3320, inf
          %v3345 = vsel %vm3344, %v3320, %v3343
          %vm3346 = vcmp.eq.f32.partialorder %v3320, 0.0
          %v3347 = vand.u32 %v3320, 2147483648
          %v3348 = vsel %vm3346, %v3347, %v3345
          %v3349 = vsub.f32 %v3327, %v1952
          %v3350 = vsub.f32 %v3334, %v1952
          %v3351 = vsub.f32 %v3341, %v1952
          %v3352 = vsub.f32 %v3348, %v1952
          %v3353 = vadd.f32 %v3301, %v3349
          %v3354 = vadd.f32 %v3302, %v3350
          %v3355 = vadd.f32 %v3303, %v3351
          %v3356 = vadd.f32 %v3304, %v3352
          %v3357 = vmul.f32 %v1932, %v3353
          %v3358 = vmul.f32 %v1933, %v3354
          %v3359 = vmul.f32 %v1934, %v3355
          %v3360 = vmul.f32 %v1935, %v3356
          %v3361 = vmul.f32 %v3357, %v3353
          %v3362 = vmul.f32 %v3358, %v3354
          %v3363 = vmul.f32 %v3359, %v3355
          %v3364 = vmul.f32 %v3360, %v3356
          %v3365 = vadd.f32 %v3361, %v1948
          %v3366 = vadd.f32 %v3362, %v1949
          %v3367 = vadd.f32 %v3363, %v1950
          %v3368 = vadd.f32 %v3364, %v1951
          %v3369 = vmax.f32 %v3365, 0.0
          %v3370 = vmax.f32 %v3366, 0.0
          %v3371 = vmax.f32 %v3367, 0.0
          %v3372 = vmax.f32 %v3368, 0.0
          %v3373 = vrsqrt.pop %v3369
          %v3374 = vmul.f32 %v3369, %v3373
          %vm3375 = vcmp.eq.f32.partialorder %v3369, inf
          %v3376 = vsel %vm3375, %v3369, %v3374
          %vm3377 = vcmp.eq.f32.partialorder %v3369, 0.0
          %v3378 = vand.u32 %v3369, 2147483648
          %v3379 = vsel %vm3377, %v3378, %v3376
          %v3380 = vrsqrt.pop %v3370
          %v3381 = vmul.f32 %v3370, %v3380
          %vm3382 = vcmp.eq.f32.partialorder %v3370, inf
          %v3383 = vsel %vm3382, %v3370, %v3381
          %vm3384 = vcmp.eq.f32.partialorder %v3370, 0.0
          %v3385 = vand.u32 %v3370, 2147483648
          %v3386 = vsel %vm3384, %v3385, %v3383
          %v3387 = vrsqrt.pop %v3371
          %v3388 = vmul.f32 %v3371, %v3387
          %vm3389 = vcmp.eq.f32.partialorder %v3371, inf
          %v3390 = vsel %vm3389, %v3371, %v3388
          %vm3391 = vcmp.eq.f32.partialorder %v3371, 0.0
          %v3392 = vand.u32 %v3371, 2147483648
          %v3393 = vsel %vm3391, %v3392, %v3390
          %v3394 = vrsqrt.pop %v3372
          %v3395 = vmul.f32 %v3372, %v3394
          %vm3396 = vcmp.eq.f32.partialorder %v3372, inf
          %v3397 = vsel %vm3396, %v3372, %v3395
          %vm3398 = vcmp.eq.f32.partialorder %v3372, 0.0
          %v3399 = vand.u32 %v3372, 2147483648
          %v3400 = vsel %vm3398, %v3399, %v3397
          %v3401 = vsub.f32 %v3379, %v1952
          %v3402 = vsub.f32 %v3386, %v1952
          %v3403 = vsub.f32 %v3393, %v1952
          %v3404 = vsub.f32 %v3400, %v1952
          %v3405 = vadd.f32 %v3353, %v3401
          %v3406 = vadd.f32 %v3354, %v3402
          %v3407 = vadd.f32 %v3355, %v3403
          %v3408 = vadd.f32 %v3356, %v3404
          %v3409 = vmul.f32 %v1932, %v3405
          %v3410 = vmul.f32 %v1933, %v3406
          %v3411 = vmul.f32 %v1934, %v3407
          %v3412 = vmul.f32 %v1935, %v3408
          %v3413 = vmul.f32 %v3409, %v3405
          %v3414 = vmul.f32 %v3410, %v3406
          %v3415 = vmul.f32 %v3411, %v3407
          %v3416 = vmul.f32 %v3412, %v3408
          %v3417 = vadd.f32 %v3413, %v1948
          %v3418 = vadd.f32 %v3414, %v1949
          %v3419 = vadd.f32 %v3415, %v1950
          %v3420 = vadd.f32 %v3416, %v1951
          %v3421 = vmax.f32 %v3417, 0.0
          %v3422 = vmax.f32 %v3418, 0.0
          %v3423 = vmax.f32 %v3419, 0.0
          %v3424 = vmax.f32 %v3420, 0.0
          %v3425 = vrsqrt.pop %v3421
          %v3426 = vmul.f32 %v3421, %v3425
          %vm3427 = vcmp.eq.f32.partialorder %v3421, inf
          %v3428 = vsel %vm3427, %v3421, %v3426
          %vm3429 = vcmp.eq.f32.partialorder %v3421, 0.0
          %v3430 = vand.u32 %v3421, 2147483648
          %v3431 = vsel %vm3429, %v3430, %v3428
          %v3432 = vrsqrt.pop %v3422
          %v3433 = vmul.f32 %v3422, %v3432
          %vm3434 = vcmp.eq.f32.partialorder %v3422, inf
          %v3435 = vsel %vm3434, %v3422, %v3433
          %vm3436 = vcmp.eq.f32.partialorder %v3422, 0.0
          %v3437 = vand.u32 %v3422, 2147483648
          %v3438 = vsel %vm3436, %v3437, %v3435
          %v3439 = vrsqrt.pop %v3423
          %v3440 = vmul.f32 %v3423, %v3439
          %vm3441 = vcmp.eq.f32.partialorder %v3423, inf
          %v3442 = vsel %vm3441, %v3423, %v3440
          %vm3443 = vcmp.eq.f32.partialorder %v3423, 0.0
          %v3444 = vand.u32 %v3423, 2147483648
          %v3445 = vsel %vm3443, %v3444, %v3442
          %v3446 = vrsqrt.pop %v3424
          %v3447 = vmul.f32 %v3424, %v3446
          %vm3448 = vcmp.eq.f32.partialorder %v3424, inf
          %v3449 = vsel %vm3448, %v3424, %v3447
          %vm3450 = vcmp.eq.f32.partialorder %v3424, 0.0
          %v3451 = vand.u32 %v3424, 2147483648
          %v3452 = vsel %vm3450, %v3451, %v3449
          %v3453 = vsub.f32 %v3431, %v1952
          %v3454 = vsub.f32 %v3438, %v1952
          %v3455 = vsub.f32 %v3445, %v1952
          %v3456 = vsub.f32 %v3452, %v1952
          %v3457 = vadd.f32 %v3405, %v3453
          %v3458 = vadd.f32 %v3406, %v3454
          %v3459 = vadd.f32 %v3407, %v3455
          %v3460 = vadd.f32 %v3408, %v3456
          %v3461 = vmul.f32 %v1932, %v3457
          %v3462 = vmul.f32 %v1933, %v3458
          %v3463 = vmul.f32 %v1934, %v3459
          %v3464 = vmul.f32 %v1935, %v3460
          %v3465 = vmul.f32 %v3461, %v3457
          %v3466 = vmul.f32 %v3462, %v3458
          %v3467 = vmul.f32 %v3463, %v3459
          %v3468 = vmul.f32 %v3464, %v3460
          %v3469 = vadd.f32 %v3465, %v1948
          %v3470 = vadd.f32 %v3466, %v1949
          %v3471 = vadd.f32 %v3467, %v1950
          %v3472 = vadd.f32 %v3468, %v1951
          %v3473 = vmax.f32 %v3469, 0.0
          %v3474 = vmax.f32 %v3470, 0.0
          %v3475 = vmax.f32 %v3471, 0.0
          %v3476 = vmax.f32 %v3472, 0.0
          %v3477 = vrsqrt.pop %v3473
          %v3478 = vmul.f32 %v3473, %v3477
          %vm3479 = vcmp.eq.f32.partialorder %v3473, inf
          %v3480 = vsel %vm3479, %v3473, %v3478
          %vm3481 = vcmp.eq.f32.partialorder %v3473, 0.0
          %v3482 = vand.u32 %v3473, 2147483648
          %v3483 = vsel %vm3481, %v3482, %v3480
          %v3484 = vrsqrt.pop %v3474
          %v3485 = vmul.f32 %v3474, %v3484
          %vm3486 = vcmp.eq.f32.partialorder %v3474, inf
          %v3487 = vsel %vm3486, %v3474, %v3485
          %vm3488 = vcmp.eq.f32.partialorder %v3474, 0.0
          %v3489 = vand.u32 %v3474, 2147483648
          %v3490 = vsel %vm3488, %v3489, %v3487
          %v3491 = vrsqrt.pop %v3475
          %v3492 = vmul.f32 %v3475, %v3491
          %vm3493 = vcmp.eq.f32.partialorder %v3475, inf
          %v3494 = vsel %vm3493, %v3475, %v3492
          %vm3495 = vcmp.eq.f32.partialorder %v3475, 0.0
          %v3496 = vand.u32 %v3475, 2147483648
          %v3497 = vsel %vm3495, %v3496, %v3494
          %v3498 = vrsqrt.pop %v3476
          %v3499 = vmul.f32 %v3476, %v3498
          %vm3500 = vcmp.eq.f32.partialorder %v3476, inf
          %v3501 = vsel %vm3500, %v3476, %v3499
          %vm3502 = vcmp.eq.f32.partialorder %v3476, 0.0
          %v3503 = vand.u32 %v3476, 2147483648
          %v3504 = vsel %vm3502, %v3503, %v3501
          %v3505 = vsub.f32 %v3483, %v1952
          %v3506 = vsub.f32 %v3490, %v1952
          %v3507 = vsub.f32 %v3497, %v1952
          %v3508 = vsub.f32 %v3504, %v1952
          %v3509 = vadd.f32 %v3457, %v3505
          %v3510 = vadd.f32 %v3458, %v3506
          %v3511 = vadd.f32 %v3459, %v3507
          %v3512 = vadd.f32 %v3460, %v3508
          %v3513 = vmul.f32 %v1932, %v3509
          %v3514 = vmul.f32 %v1933, %v3510
          %v3515 = vmul.f32 %v1934, %v3511
          %v3516 = vmul.f32 %v1935, %v3512
          %v3517 = vmul.f32 %v3513, %v3509
          %v3518 = vmul.f32 %v3514, %v3510
          %v3519 = vmul.f32 %v3515, %v3511
          %v3520 = vmul.f32 %v3516, %v3512
          %v3521 = vadd.f32 %v3517, %v1948
          %v3522 = vadd.f32 %v3518, %v1949
          %v3523 = vadd.f32 %v3519, %v1950
          %v3524 = vadd.f32 %v3520, %v1951
          %v3525 = vmax.f32 %v3521, 0.0
          %v3526 = vmax.f32 %v3522, 0.0
          %v3527 = vmax.f32 %v3523, 0.0
          %v3528 = vmax.f32 %v3524, 0.0
          %v3529 = vrsqrt.pop %v3525
          %v3530 = vmul.f32 %v3525, %v3529
          %vm3531 = vcmp.eq.f32.partialorder %v3525, inf
          %v3532 = vsel %vm3531, %v3525, %v3530
          %vm3533 = vcmp.eq.f32.partialorder %v3525, 0.0
          %v3534 = vand.u32 %v3525, 2147483648
          %v3535 = vsel %vm3533, %v3534, %v3532
          %v3536 = vrsqrt.pop %v3526
          %v3537 = vmul.f32 %v3526, %v3536
          %vm3538 = vcmp.eq.f32.partialorder %v3526, inf
          %v3539 = vsel %vm3538, %v3526, %v3537
          %vm3540 = vcmp.eq.f32.partialorder %v3526, 0.0
          %v3541 = vand.u32 %v3526, 2147483648
          %v3542 = vsel %vm3540, %v3541, %v3539
          %v3543 = vrsqrt.pop %v3527
          %v3544 = vmul.f32 %v3527, %v3543
          %vm3545 = vcmp.eq.f32.partialorder %v3527, inf
          %v3546 = vsel %vm3545, %v3527, %v3544
          %vm3547 = vcmp.eq.f32.partialorder %v3527, 0.0
          %v3548 = vand.u32 %v3527, 2147483648
          %v3549 = vsel %vm3547, %v3548, %v3546
          %v3550 = vrsqrt.pop %v3528
          %v3551 = vmul.f32 %v3528, %v3550
          %vm3552 = vcmp.eq.f32.partialorder %v3528, inf
          %v3553 = vsel %vm3552, %v3528, %v3551
          %vm3554 = vcmp.eq.f32.partialorder %v3528, 0.0
          %v3555 = vand.u32 %v3528, 2147483648
          %v3556 = vsel %vm3554, %v3555, %v3553
          %v3557 = vsub.f32 %v3535, %v1952
          %v3558 = vsub.f32 %v3542, %v1952
          %v3559 = vsub.f32 %v3549, %v1952
          %v3560 = vsub.f32 %v3556, %v1952
          %v3561 = vadd.f32 %v3509, %v3557
          %v3562 = vadd.f32 %v3510, %v3558
          %v3563 = vadd.f32 %v3511, %v3559
          %v3564 = vadd.f32 %v3512, %v3560
          %v3565 = vmul.f32 %v1932, %v3561
          %v3566 = vmul.f32 %v1933, %v3562
          %v3567 = vmul.f32 %v1934, %v3563
          %v3568 = vmul.f32 %v1935, %v3564
          %v3569 = vmul.f32 %v3565, %v3561
          %v3570 = vmul.f32 %v3566, %v3562
          %v3571 = vmul.f32 %v3567, %v3563
          %v3572 = vmul.f32 %v3568, %v3564
          %v3573 = vadd.f32 %v3569, %v1948
          %v3574 = vadd.f32 %v3570, %v1949
          %v3575 = vadd.f32 %v3571, %v1950
          %v3576 = vadd.f32 %v3572, %v1951
          %v3577 = vmax.f32 %v3573, 0.0
          %v3578 = vmax.f32 %v3574, 0.0
          %v3579 = vmax.f32 %v3575, 0.0
          %v3580 = vmax.f32 %v3576, 0.0
          %v3581 = vrsqrt.pop %v3577
          %v3582 = vmul.f32 %v3577, %v3581
          %vm3583 = vcmp.eq.f32.partialorder %v3577, inf
          %v3584 = vsel %vm3583, %v3577, %v3582
          %vm3585 = vcmp.eq.f32.partialorder %v3577, 0.0
          %v3586 = vand.u32 %v3577, 2147483648
          %v3587 = vsel %vm3585, %v3586, %v3584
          %v3588 = vrsqrt.pop %v3578
          %v3589 = vmul.f32 %v3578, %v3588
          %vm3590 = vcmp.eq.f32.partialorder %v3578, inf
          %v3591 = vsel %vm3590, %v3578, %v3589
          %vm3592 = vcmp.eq.f32.partialorder %v3578, 0.0
          %v3593 = vand.u32 %v3578, 2147483648
          %v3594 = vsel %vm3592, %v3593, %v3591
          %v3595 = vrsqrt.pop %v3579
          %v3596 = vmul.f32 %v3579, %v3595
          %vm3597 = vcmp.eq.f32.partialorder %v3579, inf
          %v3598 = vsel %vm3597, %v3579, %v3596
          %vm3599 = vcmp.eq.f32.partialorder %v3579, 0.0
          %v3600 = vand.u32 %v3579, 2147483648
          %v3601 = vsel %vm3599, %v3600, %v3598
          %v3602 = vrsqrt.pop %v3580
          %v3603 = vmul.f32 %v3580, %v3602
          %vm3604 = vcmp.eq.f32.partialorder %v3580, inf
          %v3605 = vsel %vm3604, %v3580, %v3603
          %vm3606 = vcmp.eq.f32.partialorder %v3580, 0.0
          %v3607 = vand.u32 %v3580, 2147483648
          %v3608 = vsel %vm3606, %v3607, %v3605
          %v3609 = vsub.f32 %v3587, %v1952
          %v3610 = vsub.f32 %v3594, %v1952
          %v3611 = vsub.f32 %v3601, %v1952
          %v3612 = vsub.f32 %v3608, %v1952
          %v3613 = vadd.f32 %v3561, %v3609
          %v3614 = vadd.f32 %v3562, %v3610
          %v3615 = vadd.f32 %v3563, %v3611
          %v3616 = vadd.f32 %v3564, %v3612
          %vm3617 = vcmp.lt.f32.partialorder %v3609, 0.0001
          %vm3618 = vcmp.lt.f32.partialorder %v3610, 0.0001
          %vm3619 = vcmp.lt.f32.partialorder %v3611, 0.0001
          %vm3620 = vcmp.lt.f32.partialorder %v3612, 0.0001
          %v3621 = vsub.f32 %v3613, %v1937
          %v3622 = vsub.f32 %v3614, %v1939
          %v3623 = vsub.f32 %v3615, %v1941
          %v3624 = vsub.f32 %v3616, %v1943
          %v3625 = vmul.f32 %v3621, %v1845
          %v3626 = vmul.f32 %v3622, %v1846
          %v3627 = vmul.f32 %v3623, %v1847
          %v3628 = vmul.f32 %v3624, %v1848
          %v3629 = vadd.f32 %v1828, %v3625
          %v3630 = vadd.f32 %v1829, %v3626
          %v3631 = vadd.f32 %v1830, %v3627
          %v3632 = vadd.f32 %v1831, %v3628
          %v3633 = vmul.f32 %v3621, %v1851
          %v3634 = vmul.f32 %v3622, %v1852
          %v3635 = vmul.f32 %v3623, %v1853
          %v3636 = vmul.f32 %v3624, %v1854
          %v3637 = vadd.f32 %v1834, %v3633
          %v3638 = vadd.f32 %v1835, %v3634
          %v3639 = vadd.f32 %v1836, %v3635
          %v3640 = vadd.f32 %v1837, %v3636
          %v3641 = vmul.f32 %v3621, %v1857
          %v3642 = vmul.f32 %v3622, %v1858
          %v3643 = vmul.f32 %v3623, %v1859
          %v3644 = vmul.f32 %v3624, %v1860
          %v3645 = vadd.f32 %v1840, %v3641
          %v3646 = vadd.f32 %v1841, %v3642
          %v3647 = vadd.f32 %v1842, %v3643
          %v3648 = vadd.f32 %v1843, %v3644
          %v3649 = vstv %s1808
          %v3650 = vmul.f32 %v3649, %v3629
          %v3651 = vmul.f32 %v3649, %v3630
          %v3652 = vmul.f32 %v3649, %v3631
          %v3653 = vmul.f32 %v3649, %v3632
          %v3654 = vstv %s1809
          %v3655 = vmul.f32 %v3654, %v3637
          %v3656 = vmul.f32 %v3654, %v3638
          %v3657 = vmul.f32 %v3654, %v3639
          %v3658 = vmul.f32 %v3654, %v3640
          %v3659 = vadd.f32 %v3650, %v3655
          %v3660 = vadd.f32 %v3651, %v3656
          %v3661 = vadd.f32 %v3652, %v3657
          %v3662 = vadd.f32 %v3653, %v3658
          %v3663 = vstv %s1810
          %v3664 = vmul.f32 %v3663, %v3645
          %v3665 = vmul.f32 %v3663, %v3646
          %v3666 = vmul.f32 %v3663, %v3647
          %v3667 = vmul.f32 %v3663, %v3648
          %v3668 = vadd.f32 %v3659, %v3664
          %v3669 = vadd.f32 %v3660, %v3665
          %v3670 = vadd.f32 %v3661, %v3666
          %v3671 = vadd.f32 %v3662, %v3667
          %v3672 = vstv %s1817
          %v3673 = vadd.f32 %v3668, %v3672
          %v3674 = vadd.f32 %v3669, %v3672
          %v3675 = vadd.f32 %v3670, %v3672
          %v3676 = vadd.f32 %v3671, %v3672
          %v3677 = vxor.u32 %v3673, 2147483648
          %v3678 = vxor.u32 %v3674, 2147483648
          %v3679 = vxor.u32 %v3675, 2147483648
          %v3680 = vxor.u32 %v3676, 2147483648
          %v3681 = vmul.f32 %v3677, 1.442695
          %v3682 = vpow.pop %v3681
          %v3683 = vmul.f32 %v3678, 1.442695
          %v3684 = vpow.pop %v3683
          %v3685 = vmul.f32 %v3679, 1.442695
          %v3686 = vpow.pop %v3685
          %v3687 = vmul.f32 %v3680, 1.442695
          %v3688 = vpow.pop %v3687
          %v3689 = vadd.f32 %v3682, 1.0
          %v3690 = vadd.f32 %v3684, 1.0
          %v3691 = vadd.f32 %v3686, 1.0
          %v3692 = vadd.f32 %v3688, 1.0
          %v3693 = vrcp.pop %v3689
          %v3694 = vmul.f32 1.0, %v3693
          %v3695 = vrcp.pop %v3690
          %v3696 = vmul.f32 1.0, %v3695
          %v3697 = vrcp.pop %v3691
          %v3698 = vmul.f32 1.0, %v3697
          %v3699 = vrcp.pop %v3692
          %v3700 = vmul.f32 1.0, %v3699
          %v3701 = vstv %s1811
          %v3702 = vmul.f32 %v3701, %v3629
          %v3703 = vmul.f32 %v3701, %v3630
          %v3704 = vmul.f32 %v3701, %v3631
          %v3705 = vmul.f32 %v3701, %v3632
          %v3706 = vstv %s1812
          %v3707 = vmul.f32 %v3706, %v3637
          %v3708 = vmul.f32 %v3706, %v3638
          %v3709 = vmul.f32 %v3706, %v3639
          %v3710 = vmul.f32 %v3706, %v3640
          %v3711 = vadd.f32 %v3702, %v3707
          %v3712 = vadd.f32 %v3703, %v3708
          %v3713 = vadd.f32 %v3704, %v3709
          %v3714 = vadd.f32 %v3705, %v3710
          %v3715 = vstv %s1813
          %v3716 = vmul.f32 %v3715, %v3645
          %v3717 = vmul.f32 %v3715, %v3646
          %v3718 = vmul.f32 %v3715, %v3647
          %v3719 = vmul.f32 %v3715, %v3648
          %v3720 = vadd.f32 %v3711, %v3716
          %v3721 = vadd.f32 %v3712, %v3717
          %v3722 = vadd.f32 %v3713, %v3718
          %v3723 = vadd.f32 %v3714, %v3719
          %v3724 = vstv %s1818
          %v3725 = vadd.f32 %v3720, %v3724
          %v3726 = vadd.f32 %v3721, %v3724
          %v3727 = vadd.f32 %v3722, %v3724
          %v3728 = vadd.f32 %v3723, %v3724
          %v3729 = vxor.u32 %v3725, 2147483648
          %v3730 = vxor.u32 %v3726, 2147483648
          %v3731 = vxor.u32 %v3727, 2147483648
          %v3732 = vxor.u32 %v3728, 2147483648
          %v3733 = vmul.f32 %v3729, 1.442695
          %v3734 = vpow.pop %v3733
          %v3735 = vmul.f32 %v3730, 1.442695
          %v3736 = vpow.pop %v3735
          %v3737 = vmul.f32 %v3731, 1.442695
          %v3738 = vpow.pop %v3737
          %v3739 = vmul.f32 %v3732, 1.442695
          %v3740 = vpow.pop %v3739
          %v3741 = vadd.f32 %v3734, 1.0
          %v3742 = vadd.f32 %v3736, 1.0
          %v3743 = vadd.f32 %v3738, 1.0
          %v3744 = vadd.f32 %v3740, 1.0
          %v3745 = vrcp.pop %v3741
          %v3746 = vmul.f32 1.0, %v3745
          %v3747 = vrcp.pop %v3742
          %v3748 = vmul.f32 1.0, %v3747
          %v3749 = vrcp.pop %v3743
          %v3750 = vmul.f32 1.0, %v3749
          %v3751 = vrcp.pop %v3744
          %v3752 = vmul.f32 1.0, %v3751
          %v3753 = vstv %s1814
          %v3754 = vmul.f32 %v3753, %v3629
          %v3755 = vmul.f32 %v3753, %v3630
          %v3756 = vmul.f32 %v3753, %v3631
          %v3757 = vmul.f32 %v3753, %v3632
          %v3758 = vstv %s1815
          %v3759 = vmul.f32 %v3758, %v3637
          %v3760 = vmul.f32 %v3758, %v3638
          %v3761 = vmul.f32 %v3758, %v3639
          %v3762 = vmul.f32 %v3758, %v3640
          %v3763 = vadd.f32 %v3754, %v3759
          %v3764 = vadd.f32 %v3755, %v3760
          %v3765 = vadd.f32 %v3756, %v3761
          %v3766 = vadd.f32 %v3757, %v3762
          %v3767 = vstv %s1816
          %v3768 = vmul.f32 %v3767, %v3645
          %v3769 = vmul.f32 %v3767, %v3646
          %v3770 = vmul.f32 %v3767, %v3647
          %v3771 = vmul.f32 %v3767, %v3648
          %v3772 = vadd.f32 %v3763, %v3768
          %v3773 = vadd.f32 %v3764, %v3769
          %v3774 = vadd.f32 %v3765, %v3770
          %v3775 = vadd.f32 %v3766, %v3771
          %v3776 = vstv %s1819
          %v3777 = vadd.f32 %v3772, %v3776
          %v3778 = vadd.f32 %v3773, %v3776
          %v3779 = vadd.f32 %v3774, %v3776
          %v3780 = vadd.f32 %v3775, %v3776
          %v3781 = vxor.u32 %v3777, 2147483648
          %v3782 = vxor.u32 %v3778, 2147483648
          %v3783 = vxor.u32 %v3779, 2147483648
          %v3784 = vxor.u32 %v3780, 2147483648
          %v3785 = vmul.f32 %v3781, 1.442695
          %v3786 = vpow.pop %v3785
          %v3787 = vmul.f32 %v3782, 1.442695
          %v3788 = vpow.pop %v3787
          %v3789 = vmul.f32 %v3783, 1.442695
          %v3790 = vpow.pop %v3789
          %v3791 = vmul.f32 %v3784, 1.442695
          %v3792 = vpow.pop %v3791
          %v3793 = vadd.f32 %v3786, 1.0
          %v3794 = vadd.f32 %v3788, 1.0
          %v3795 = vadd.f32 %v3790, 1.0
          %v3796 = vadd.f32 %v3792, 1.0
          %v3797 = vrcp.pop %v3793
          %v3798 = vmul.f32 1.0, %v3797
          %v3799 = vrcp.pop %v3794
          %v3800 = vmul.f32 1.0, %v3799
          %v3801 = vrcp.pop %v3795
          %v3802 = vmul.f32 1.0, %v3801
          %v3803 = vrcp.pop %v3796
          %v3804 = vmul.f32 1.0, %v3803
          %v3805 = vsel %vm3617, %v3694, 0.0
          %v3806 = vsel %vm3618, %v3696, 0.0
          %v3807 = vsel %vm3619, %v3698, 0.0
          %v3808 = vsel %vm3620, %v3700, 0.0
          %s3809 = scalar_lea.vmem %s1800, %s1826 [#allocation6]
          %3810 = vst [vmem:[%s3809] sm:$0xff] %v3805
          %3811 = vst [vmem:[%s3809 + $0x8] sm:$0xff] %v3806
          %3812 = vst [vmem:[%s3809 + $0x10] sm:$0xff] %v3807
          %3813 = vst [vmem:[%s3809 + $0x18] sm:$0xff] %v3808
          %v3814 = vsel %vm3617, %v3746, 0.0
          %v3815 = vsel %vm3618, %v3748, 0.0
          %v3816 = vsel %vm3619, %v3750, 0.0
          %v3817 = vsel %vm3620, %v3752, 0.0
          %s3818 = scalar_lea.vmem %s1800, 512 [#allocation6]
          %s3819 = scalar_lea.vmem %s3818, %s1826 [#allocation6]
          %3820 = vst [vmem:[%s3819] sm:$0xff] %v3814
          %3821 = vst [vmem:[%s3819 + $0x8] sm:$0xff] %v3815
          %3822 = vst [vmem:[%s3819 + $0x10] sm:$0xff] %v3816
          %3823 = vst [vmem:[%s3819 + $0x18] sm:$0xff] %v3817
          %v3824 = vsel %vm3617, %v3798, 0.0
          %v3825 = vsel %vm3618, %v3800, 0.0
          %v3826 = vsel %vm3619, %v3802, 0.0
          %v3827 = vsel %vm3620, %v3804, 0.0
          %s3828 = scalar_lea.vmem %s1800, 1024 [#allocation6]
          %s3829 = scalar_lea.vmem %s3828, %s1826 [#allocation6]
          %3830 = vst [vmem:[%s3829] sm:$0xff] %v3824
          %3831 = vst [vmem:[%s3829 + $0x8] sm:$0xff] %v3825
          %3832 = vst [vmem:[%s3829 + $0x10] sm:$0xff] %v3826
          %3833 = vst [vmem:[%s3829 + $0x18] sm:$0xff] %v3827
        $region117: #{sphere_tracing_render.1} parent=99 // loop_footer
          %s1825 = sadd.s32 1, %s1821
        $region118: #{sphere_tracing_render.1} parent=99 // loop_footer_branch
          %1820 = sbr.rel target = $region114
        $region119: #{sphere_tracing_render.1} parent=99 // loop_exit
          _
        %s3834 = sand.u32 %s96, 1
        %s3835 = sand.u32 %s96, 1
        %s3836 = smul.addr %s3835, 1536
        %s3837 = scalar_lea.vmem [#allocation6], %s3836
        // Predicated region
        $region120: #{sphere_tracing_render.1} parent=99 // pred_check
          %p3838 = pneg %p106
        $region121: #{sphere_tracing_render.1} parent=99 // pred_check_branch
          %3840 = sbr.rel (%p3838) target = $region123
        $region122: #{sphere_tracing_render.1} parent=99 // pred_region
          %s3841 = smul.u32 16, %s15
          %s3842 = smul.addr %s3841, 4
          %s3843 = smul.addr %s3842, 8
          %s3844 = scalar_lea.vmem %s3, %s3843
          // Predicated region
          $region124: #{sphere_tracing_render.1} parent=122 // pred_check
            _
          $region125: #{sphere_tracing_render.1} parent=122 // pred_check_branch
            %3846 = sbr.rel (0) target = $region127
          $region126: #{sphere_tracing_render.1} parent=122 // pred_region
            // Predicated region
            $region128: #{sphere_tracing_render.1} parent=126 // pred_check
              _
            $region129: #{sphere_tracing_render.1} parent=126 // pred_check_branch
              %3848 = sbr.rel (0) target = $region131
            $region130: #{sphere_tracing_render.1} parent=126 // pred_region
              // Predicated region
              $region143: #{sphere_tracing_render.1} parent=130 // pred_check
                _
              $region144: #{sphere_tracing_render.1} parent=130 // pred_check_branch
                %4246 = sbr.rel (0) target = $region146
              $region145: #{sphere_tracing_render.1} parent=130 // pred_region
                loop: start=0, step=1, limit=1
                $region147: #{sphere_tracing_render.1} parent=145 // loop_pre_header
                  _
                $region148: #{sphere_tracing_render.1} parent=145 // loop_header
                  %s4248 = sphi 0, %s4252
                  %p4249 = scmp.ge.s32.totalorder %s4248, 1
                  %s4253 = sphi %s3837, %s3837
                  %s4254 = sphi %s3844, %s3844
                $region149: #{sphere_tracing_render.1} parent=145 // loop_header_branch
                  %4251 = sbr.rel (%p4249) target = $region153
                $region150: #{sphere_tracing_render.1} parent=145 // loop_body
                  %v4255 = vld [vmem:[%s4253] sm:$0xff]
                  %4256 = vst [vmem:[%s4254] sm:$0xff] %v4255
                  %v4257 = vld [vmem:[%s4253 + $0x8] sm:$0xff]
                  %4258 = vst [vmem:[%s4254 + $0x8] sm:$0xff] %v4257
                  %v4259 = vld [vmem:[%s4253 + $0x10] sm:$0xff]
                  %4260 = vst [vmem:[%s4254 + $0x10] sm:$0xff] %v4259
                  %v4261 = vld [vmem:[%s4253 + $0x18] sm:$0xff]
                  %4262 = vst [vmem:[%s4254 + $0x18] sm:$0xff] %v4261
                  %v4263 = vld [vmem:[%s4253 + $0x20] sm:$0xff]
                  %4264 = vst [vmem:[%s4254 + $0x20] sm:$0xff] %v4263
                  %v4265 = vld [vmem:[%s4253 + $0x28] sm:$0xff]
                  %4266 = vst [vmem:[%s4254 + $0x28] sm:$0xff] %v4265
                  %v4267 = vld [vmem:[%s4253 + $0x30] sm:$0xff]
                  %4268 = vst [vmem:[%s4254 + $0x30] sm:$0xff] %v4267
                  %v4269 = vld [vmem:[%s4253 + $0x38] sm:$0xff]
                  %4270 = vst [vmem:[%s4254 + $0x38] sm:$0xff] %v4269
                  %v4271 = vld [vmem:[%s4253 + $0x40] sm:$0xff]
                  %4272 = vst [vmem:[%s4254 + $0x40] sm:$0xff] %v4271
                  %v4273 = vld [vmem:[%s4253 + $0x48] sm:$0xff]
                  %4274 = vst [vmem:[%s4254 + $0x48] sm:$0xff] %v4273
                  %v4275 = vld [vmem:[%s4253 + $0x50] sm:$0xff]
                  %4276 = vst [vmem:[%s4254 + $0x50] sm:$0xff] %v4275
                  %v4277 = vld [vmem:[%s4253 + $0x58] sm:$0xff]
                  %4278 = vst [vmem:[%s4254 + $0x58] sm:$0xff] %v4277
                  %v4279 = vld [vmem:[%s4253 + $0x60] sm:$0xff]
                  %4280 = vst [vmem:[%s4254 + $0x60] sm:$0xff] %v4279
                  %v4281 = vld [vmem:[%s4253 + $0x68] sm:$0xff]
                  %4282 = vst [vmem:[%s4254 + $0x68] sm:$0xff] %v4281
                  %v4283 = vld [vmem:[%s4253 + $0x70] sm:$0xff]
                  %4284 = vst [vmem:[%s4254 + $0x70] sm:$0xff] %v4283
                  %v4285 = vld [vmem:[%s4253 + $0x78] sm:$0xff]
                  %4286 = vst [vmem:[%s4254 + $0x78] sm:$0xff] %v4285
                  %v4287 = vld [vmem:[%s4253 + $0x80] sm:$0xff]
                  %4288 = vst [vmem:[%s4254 + $0x80] sm:$0xff] %v4287
                  %v4289 = vld [vmem:[%s4253 + $0x88] sm:$0xff]
                  %4290 = vst [vmem:[%s4254 + $0x88] sm:$0xff] %v4289
                  %v4291 = vld [vmem:[%s4253 + $0x90] sm:$0xff]
                  %4292 = vst [vmem:[%s4254 + $0x90] sm:$0xff] %v4291
                  %v4293 = vld [vmem:[%s4253 + $0x98] sm:$0xff]
                  %4294 = vst [vmem:[%s4254 + $0x98] sm:$0xff] %v4293
                  %v4295 = vld [vmem:[%s4253 + $0xa0] sm:$0xff]
                  %4296 = vst [vmem:[%s4254 + $0xa0] sm:$0xff] %v4295
                  %v4297 = vld [vmem:[%s4253 + $0xa8] sm:$0xff]
                  %4298 = vst [vmem:[%s4254 + $0xa8] sm:$0xff] %v4297
                  %v4299 = vld [vmem:[%s4253 + $0xb0] sm:$0xff]
                  %4300 = vst [vmem:[%s4254 + $0xb0] sm:$0xff] %v4299
                  %v4301 = vld [vmem:[%s4253 + $0xb8] sm:$0xff]
                  %4302 = vst [vmem:[%s4254 + $0xb8] sm:$0xff] %v4301
                  %v4303 = vld [vmem:[%s4253 + $0xc0] sm:$0xff]
                  %4304 = vst [vmem:[%s4254 + $0xc0] sm:$0xff] %v4303
                  %v4305 = vld [vmem:[%s4253 + $0xc8] sm:$0xff]
                  %4306 = vst [vmem:[%s4254 + $0xc8] sm:$0xff] %v4305
                  %v4307 = vld [vmem:[%s4253 + $0xd0] sm:$0xff]
                  %4308 = vst [vmem:[%s4254 + $0xd0] sm:$0xff] %v4307
                  %v4309 = vld [vmem:[%s4253 + $0xd8] sm:$0xff]
                  %4310 = vst [vmem:[%s4254 + $0xd8] sm:$0xff] %v4309
                  %v4311 = vld [vmem:[%s4253 + $0xe0] sm:$0xff]
                  %4312 = vst [vmem:[%s4254 + $0xe0] sm:$0xff] %v4311
                  %v4313 = vld [vmem:[%s4253 + $0xe8] sm:$0xff]
                  %4314 = vst [vmem:[%s4254 + $0xe8] sm:$0xff] %v4313
                  %v4315 = vld [vmem:[%s4253 + $0xf0] sm:$0xff]
                  %4316 = vst [vmem:[%s4254 + $0xf0] sm:$0xff] %v4315
                  %v4317 = vld [vmem:[%s4253 + $0xf8] sm:$0xff]
                  %4318 = vst [vmem:[%s4254 + $0xf8] sm:$0xff] %v4317
                  %v4319 = vld [vmem:[%s4253 + $0x100] sm:$0xff]
                  %4320 = vst [vmem:[%s4254 + $0x100] sm:$0xff] %v4319
                  %v4321 = vld [vmem:[%s4253 + $0x108] sm:$0xff]
                  %4322 = vst [vmem:[%s4254 + $0x108] sm:$0xff] %v4321
                  %v4323 = vld [vmem:[%s4253 + $0x110] sm:$0xff]
                  %4324 = vst [vmem:[%s4254 + $0x110] sm:$0xff] %v4323
                  %v4325 = vld [vmem:[%s4253 + $0x118] sm:$0xff]
                  %4326 = vst [vmem:[%s4254 + $0x118] sm:$0xff] %v4325
                  %v4327 = vld [vmem:[%s4253 + $0x120] sm:$0xff]
                  %4328 = vst [vmem:[%s4254 + $0x120] sm:$0xff] %v4327
                  %v4329 = vld [vmem:[%s4253 + $0x128] sm:$0xff]
                  %4330 = vst [vmem:[%s4254 + $0x128] sm:$0xff] %v4329
                  %v4331 = vld [vmem:[%s4253 + $0x130] sm:$0xff]
                  %4332 = vst [vmem:[%s4254 + $0x130] sm:$0xff] %v4331
                  %v4333 = vld [vmem:[%s4253 + $0x138] sm:$0xff]
                  %4334 = vst [vmem:[%s4254 + $0x138] sm:$0xff] %v4333
                  %v4335 = vld [vmem:[%s4253 + $0x140] sm:$0xff]
                  %4336 = vst [vmem:[%s4254 + $0x140] sm:$0xff] %v4335
                  %v4337 = vld [vmem:[%s4253 + $0x148] sm:$0xff]
                  %4338 = vst [vmem:[%s4254 + $0x148] sm:$0xff] %v4337
                  %v4339 = vld [vmem:[%s4253 + $0x150] sm:$0xff]
                  %4340 = vst [vmem:[%s4254 + $0x150] sm:$0xff] %v4339
                  %v4341 = vld [vmem:[%s4253 + $0x158] sm:$0xff]
                  %4342 = vst [vmem:[%s4254 + $0x158] sm:$0xff] %v4341
                  %v4343 = vld [vmem:[%s4253 + $0x160] sm:$0xff]
                  %4344 = vst [vmem:[%s4254 + $0x160] sm:$0xff] %v4343
                  %v4345 = vld [vmem:[%s4253 + $0x168] sm:$0xff]
                  %4346 = vst [vmem:[%s4254 + $0x168] sm:$0xff] %v4345
                  %v4347 = vld [vmem:[%s4253 + $0x170] sm:$0xff]
                  %4348 = vst [vmem:[%s4254 + $0x170] sm:$0xff] %v4347
                  %v4349 = vld [vmem:[%s4253 + $0x178] sm:$0xff]
                  %4350 = vst [vmem:[%s4254 + $0x178] sm:$0xff] %v4349
                  %v4351 = vld [vmem:[%s4253 + $0x180] sm:$0xff]
                  %4352 = vst [vmem:[%s4254 + $0x180] sm:$0xff] %v4351
                  %v4353 = vld [vmem:[%s4253 + $0x188] sm:$0xff]
                  %4354 = vst [vmem:[%s4254 + $0x188] sm:$0xff] %v4353
                  %v4355 = vld [vmem:[%s4253 + $0x190] sm:$0xff]
                  %4356 = vst [vmem:[%s4254 + $0x190] sm:$0xff] %v4355
                  %v4357 = vld [vmem:[%s4253 + $0x198] sm:$0xff]
                  %4358 = vst [vmem:[%s4254 + $0x198] sm:$0xff] %v4357
                  %v4359 = vld [vmem:[%s4253 + $0x1a0] sm:$0xff]
                  %4360 = vst [vmem:[%s4254 + $0x1a0] sm:$0xff] %v4359
                  %v4361 = vld [vmem:[%s4253 + $0x1a8] sm:$0xff]
                  %4362 = vst [vmem:[%s4254 + $0x1a8] sm:$0xff] %v4361
                  %v4363 = vld [vmem:[%s4253 + $0x1b0] sm:$0xff]
                  %4364 = vst [vmem:[%s4254 + $0x1b0] sm:$0xff] %v4363
                  %v4365 = vld [vmem:[%s4253 + $0x1b8] sm:$0xff]
                  %4366 = vst [vmem:[%s4254 + $0x1b8] sm:$0xff] %v4365
                  %v4367 = vld [vmem:[%s4253 + $0x1c0] sm:$0xff]
                  %4368 = vst [vmem:[%s4254 + $0x1c0] sm:$0xff] %v4367
                  %v4369 = vld [vmem:[%s4253 + $0x1c8] sm:$0xff]
                  %4370 = vst [vmem:[%s4254 + $0x1c8] sm:$0xff] %v4369
                  %v4371 = vld [vmem:[%s4253 + $0x1d0] sm:$0xff]
                  %4372 = vst [vmem:[%s4254 + $0x1d0] sm:$0xff] %v4371
                  %v4373 = vld [vmem:[%s4253 + $0x1d8] sm:$0xff]
                  %4374 = vst [vmem:[%s4254 + $0x1d8] sm:$0xff] %v4373
                  %v4375 = vld [vmem:[%s4253 + $0x1e0] sm:$0xff]
                  %4376 = vst [vmem:[%s4254 + $0x1e0] sm:$0xff] %v4375
                  %v4377 = vld [vmem:[%s4253 + $0x1e8] sm:$0xff]
                  %4378 = vst [vmem:[%s4254 + $0x1e8] sm:$0xff] %v4377
                  %v4379 = vld [vmem:[%s4253 + $0x1f0] sm:$0xff]
                  %4380 = vst [vmem:[%s4254 + $0x1f0] sm:$0xff] %v4379
                  %v4381 = vld [vmem:[%s4253 + $0x1f8] sm:$0xff]
                  %4382 = vst [vmem:[%s4254 + $0x1f8] sm:$0xff] %v4381
                  %v4383 = vld [vmem:[%s4253 + $0x200] sm:$0xff]
                  %4384 = vst [vmem:[%s4254 + $0x400] sm:$0xff] %v4383
                  %v4385 = vld [vmem:[%s4253 + $0x208] sm:$0xff]
                  %4386 = vst [vmem:[%s4254 + $0x408] sm:$0xff] %v4385
                  %v4387 = vld [vmem:[%s4253 + $0x210] sm:$0xff]
                  %4388 = vst [vmem:[%s4254 + $0x410] sm:$0xff] %v4387
                  %v4389 = vld [vmem:[%s4253 + $0x218] sm:$0xff]
                  %4390 = vst [vmem:[%s4254 + $0x418] sm:$0xff] %v4389
                  %v4391 = vld [vmem:[%s4253 + $0x220] sm:$0xff]
                  %4392 = vst [vmem:[%s4254 + $0x420] sm:$0xff] %v4391
                  %v4393 = vld [vmem:[%s4253 + $0x228] sm:$0xff]
                  %4394 = vst [vmem:[%s4254 + $0x428] sm:$0xff] %v4393
                  %v4395 = vld [vmem:[%s4253 + $0x230] sm:$0xff]
                  %4396 = vst [vmem:[%s4254 + $0x430] sm:$0xff] %v4395
                  %v4397 = vld [vmem:[%s4253 + $0x238] sm:$0xff]
                  %4398 = vst [vmem:[%s4254 + $0x438] sm:$0xff] %v4397
                  %v4399 = vld [vmem:[%s4253 + $0x240] sm:$0xff]
                  %4400 = vst [vmem:[%s4254 + $0x440] sm:$0xff] %v4399
                  %v4401 = vld [vmem:[%s4253 + $0x248] sm:$0xff]
                  %4402 = vst [vmem:[%s4254 + $0x448] sm:$0xff] %v4401
                  %v4403 = vld [vmem:[%s4253 + $0x250] sm:$0xff]
                  %4404 = vst [vmem:[%s4254 + $0x450] sm:$0xff] %v4403
                  %v4405 = vld [vmem:[%s4253 + $0x258] sm:$0xff]
                  %4406 = vst [vmem:[%s4254 + $0x458] sm:$0xff] %v4405
                  %v4407 = vld [vmem:[%s4253 + $0x260] sm:$0xff]
                  %4408 = vst [vmem:[%s4254 + $0x460] sm:$0xff] %v4407
                  %v4409 = vld [vmem:[%s4253 + $0x268] sm:$0xff]
                  %4410 = vst [vmem:[%s4254 + $0x468] sm:$0xff] %v4409
                  %v4411 = vld [vmem:[%s4253 + $0x270] sm:$0xff]
                  %4412 = vst [vmem:[%s4254 + $0x470] sm:$0xff] %v4411
                  %v4413 = vld [vmem:[%s4253 + $0x278] sm:$0xff]
                  %4414 = vst [vmem:[%s4254 + $0x478] sm:$0xff] %v4413
                  %v4415 = vld [vmem:[%s4253 + $0x280] sm:$0xff]
                  %4416 = vst [vmem:[%s4254 + $0x480] sm:$0xff] %v4415
                  %v4417 = vld [vmem:[%s4253 + $0x288] sm:$0xff]
                  %4418 = vst [vmem:[%s4254 + $0x488] sm:$0xff] %v4417
                  %v4419 = vld [vmem:[%s4253 + $0x290] sm:$0xff]
                  %4420 = vst [vmem:[%s4254 + $0x490] sm:$0xff] %v4419
                  %v4421 = vld [vmem:[%s4253 + $0x298] sm:$0xff]
                  %4422 = vst [vmem:[%s4254 + $0x498] sm:$0xff] %v4421
                  %v4423 = vld [vmem:[%s4253 + $0x2a0] sm:$0xff]
                  %4424 = vst [vmem:[%s4254 + $0x4a0] sm:$0xff] %v4423
                  %v4425 = vld [vmem:[%s4253 + $0x2a8] sm:$0xff]
                  %4426 = vst [vmem:[%s4254 + $0x4a8] sm:$0xff] %v4425
                  %v4427 = vld [vmem:[%s4253 + $0x2b0] sm:$0xff]
                  %4428 = vst [vmem:[%s4254 + $0x4b0] sm:$0xff] %v4427
                  %v4429 = vld [vmem:[%s4253 + $0x2b8] sm:$0xff]
                  %4430 = vst [vmem:[%s4254 + $0x4b8] sm:$0xff] %v4429
                  %v4431 = vld [vmem:[%s4253 + $0x2c0] sm:$0xff]
                  %4432 = vst [vmem:[%s4254 + $0x4c0] sm:$0xff] %v4431
                  %v4433 = vld [vmem:[%s4253 + $0x2c8] sm:$0xff]
                  %4434 = vst [vmem:[%s4254 + $0x4c8] sm:$0xff] %v4433
                  %v4435 = vld [vmem:[%s4253 + $0x2d0] sm:$0xff]
                  %4436 = vst [vmem:[%s4254 + $0x4d0] sm:$0xff] %v4435
                  %v4437 = vld [vmem:[%s4253 + $0x2d8] sm:$0xff]
                  %4438 = vst [vmem:[%s4254 + $0x4d8] sm:$0xff] %v4437
                  %v4439 = vld [vmem:[%s4253 + $0x2e0] sm:$0xff]
                  %4440 = vst [vmem:[%s4254 + $0x4e0] sm:$0xff] %v4439
                  %v4441 = vld [vmem:[%s4253 + $0x2e8] sm:$0xff]
                  %4442 = vst [vmem:[%s4254 + $0x4e8] sm:$0xff] %v4441
                  %v4443 = vld [vmem:[%s4253 + $0x2f0] sm:$0xff]
                  %4444 = vst [vmem:[%s4254 + $0x4f0] sm:$0xff] %v4443
                  %v4445 = vld [vmem:[%s4253 + $0x2f8] sm:$0xff]
                  %4446 = vst [vmem:[%s4254 + $0x4f8] sm:$0xff] %v4445
                  %v4447 = vld [vmem:[%s4253 + $0x300] sm:$0xff]
                  %4448 = vst [vmem:[%s4254 + $0x500] sm:$0xff] %v4447
                  %v4449 = vld [vmem:[%s4253 + $0x308] sm:$0xff]
                  %4450 = vst [vmem:[%s4254 + $0x508] sm:$0xff] %v4449
                  %v4451 = vld [vmem:[%s4253 + $0x310] sm:$0xff]
                  %4452 = vst [vmem:[%s4254 + $0x510] sm:$0xff] %v4451
                  %v4453 = vld [vmem:[%s4253 + $0x318] sm:$0xff]
                  %4454 = vst [vmem:[%s4254 + $0x518] sm:$0xff] %v4453
                  %v4455 = vld [vmem:[%s4253 + $0x320] sm:$0xff]
                  %4456 = vst [vmem:[%s4254 + $0x520] sm:$0xff] %v4455
                  %v4457 = vld [vmem:[%s4253 + $0x328] sm:$0xff]
                  %4458 = vst [vmem:[%s4254 + $0x528] sm:$0xff] %v4457
                  %v4459 = vld [vmem:[%s4253 + $0x330] sm:$0xff]
                  %4460 = vst [vmem:[%s4254 + $0x530] sm:$0xff] %v4459
                  %v4461 = vld [vmem:[%s4253 + $0x338] sm:$0xff]
                  %4462 = vst [vmem:[%s4254 + $0x538] sm:$0xff] %v4461
                  %v4463 = vld [vmem:[%s4253 + $0x340] sm:$0xff]
                  %4464 = vst [vmem:[%s4254 + $0x540] sm:$0xff] %v4463
                  %v4465 = vld [vmem:[%s4253 + $0x348] sm:$0xff]
                  %4466 = vst [vmem:[%s4254 + $0x548] sm:$0xff] %v4465
                  %v4467 = vld [vmem:[%s4253 + $0x350] sm:$0xff]
                  %4468 = vst [vmem:[%s4254 + $0x550] sm:$0xff] %v4467
                  %v4469 = vld [vmem:[%s4253 + $0x358] sm:$0xff]
                  %4470 = vst [vmem:[%s4254 + $0x558] sm:$0xff] %v4469
                  %v4471 = vld [vmem:[%s4253 + $0x360] sm:$0xff]
                  %4472 = vst [vmem:[%s4254 + $0x560] sm:$0xff] %v4471
                  %v4473 = vld [vmem:[%s4253 + $0x368] sm:$0xff]
                  %4474 = vst [vmem:[%s4254 + $0x568] sm:$0xff] %v4473
                  %v4475 = vld [vmem:[%s4253 + $0x370] sm:$0xff]
                  %4476 = vst [vmem:[%s4254 + $0x570] sm:$0xff] %v4475
                  %v4477 = vld [vmem:[%s4253 + $0x378] sm:$0xff]
                  %4478 = vst [vmem:[%s4254 + $0x578] sm:$0xff] %v4477
                  %v4479 = vld [vmem:[%s4253 + $0x380] sm:$0xff]
                  %4480 = vst [vmem:[%s4254 + $0x580] sm:$0xff] %v4479
                  %v4481 = vld [vmem:[%s4253 + $0x388] sm:$0xff]
                  %4482 = vst [vmem:[%s4254 + $0x588] sm:$0xff] %v4481
                  %v4483 = vld [vmem:[%s4253 + $0x390] sm:$0xff]
                  %4484 = vst [vmem:[%s4254 + $0x590] sm:$0xff] %v4483
                  %v4485 = vld [vmem:[%s4253 + $0x398] sm:$0xff]
                  %4486 = vst [vmem:[%s4254 + $0x598] sm:$0xff] %v4485
                  %v4487 = vld [vmem:[%s4253 + $0x3a0] sm:$0xff]
                  %4488 = vst [vmem:[%s4254 + $0x5a0] sm:$0xff] %v4487
                  %v4489 = vld [vmem:[%s4253 + $0x3a8] sm:$0xff]
                  %4490 = vst [vmem:[%s4254 + $0x5a8] sm:$0xff] %v4489
                  %v4491 = vld [vmem:[%s4253 + $0x3b0] sm:$0xff]
                  %4492 = vst [vmem:[%s4254 + $0x5b0] sm:$0xff] %v4491
                  %v4493 = vld [vmem:[%s4253 + $0x3b8] sm:$0xff]
                  %4494 = vst [vmem:[%s4254 + $0x5b8] sm:$0xff] %v4493
                  %v4495 = vld [vmem:[%s4253 + $0x3c0] sm:$0xff]
                  %4496 = vst [vmem:[%s4254 + $0x5c0] sm:$0xff] %v4495
                  %v4497 = vld [vmem:[%s4253 + $0x3c8] sm:$0xff]
                  %4498 = vst [vmem:[%s4254 + $0x5c8] sm:$0xff] %v4497
                  %v4499 = vld [vmem:[%s4253 + $0x3d0] sm:$0xff]
                  %4500 = vst [vmem:[%s4254 + $0x5d0] sm:$0xff] %v4499
                  %v4501 = vld [vmem:[%s4253 + $0x3d8] sm:$0xff]
                  %4502 = vst [vmem:[%s4254 + $0x5d8] sm:$0xff] %v4501
                  %v4503 = vld [vmem:[%s4253 + $0x3e0] sm:$0xff]
                  %4504 = vst [vmem:[%s4254 + $0x5e0] sm:$0xff] %v4503
                  %v4505 = vld [vmem:[%s4253 + $0x3e8] sm:$0xff]
                  %4506 = vst [vmem:[%s4254 + $0x5e8] sm:$0xff] %v4505
                  %v4507 = vld [vmem:[%s4253 + $0x3f0] sm:$0xff]
                  %4508 = vst [vmem:[%s4254 + $0x5f0] sm:$0xff] %v4507
                  %v4509 = vld [vmem:[%s4253 + $0x3f8] sm:$0xff]
                  %4510 = vst [vmem:[%s4254 + $0x5f8] sm:$0xff] %v4509
                  %v4511 = vld [vmem:[%s4253 + $0x400] sm:$0xff]
                  %4512 = vst [vmem:[%s4254 + $0x800] sm:$0xff] %v4511
                  %v4513 = vld [vmem:[%s4253 + $0x408] sm:$0xff]
                  %4514 = vst [vmem:[%s4254 + $0x808] sm:$0xff] %v4513
                  %v4515 = vld [vmem:[%s4253 + $0x410] sm:$0xff]
                  %4516 = vst [vmem:[%s4254 + $0x810] sm:$0xff] %v4515
                  %v4517 = vld [vmem:[%s4253 + $0x418] sm:$0xff]
                  %4518 = vst [vmem:[%s4254 + $0x818] sm:$0xff] %v4517
                  %v4519 = vld [vmem:[%s4253 + $0x420] sm:$0xff]
                  %4520 = vst [vmem:[%s4254 + $0x820] sm:$0xff] %v4519
                  %v4521 = vld [vmem:[%s4253 + $0x428] sm:$0xff]
                  %4522 = vst [vmem:[%s4254 + $0x828] sm:$0xff] %v4521
                  %v4523 = vld [vmem:[%s4253 + $0x430] sm:$0xff]
                  %4524 = vst [vmem:[%s4254 + $0x830] sm:$0xff] %v4523
                  %v4525 = vld [vmem:[%s4253 + $0x438] sm:$0xff]
                  %4526 = vst [vmem:[%s4254 + $0x838] sm:$0xff] %v4525
                  %v4527 = vld [vmem:[%s4253 + $0x440] sm:$0xff]
                  %4528 = vst [vmem:[%s4254 + $0x840] sm:$0xff] %v4527
                  %v4529 = vld [vmem:[%s4253 + $0x448] sm:$0xff]
                  %4530 = vst [vmem:[%s4254 + $0x848] sm:$0xff] %v4529
                  %v4531 = vld [vmem:[%s4253 + $0x450] sm:$0xff]
                  %4532 = vst [vmem:[%s4254 + $0x850] sm:$0xff] %v4531
                  %v4533 = vld [vmem:[%s4253 + $0x458] sm:$0xff]
                  %4534 = vst [vmem:[%s4254 + $0x858] sm:$0xff] %v4533
                  %v4535 = vld [vmem:[%s4253 + $0x460] sm:$0xff]
                  %4536 = vst [vmem:[%s4254 + $0x860] sm:$0xff] %v4535
                  %v4537 = vld [vmem:[%s4253 + $0x468] sm:$0xff]
                  %4538 = vst [vmem:[%s4254 + $0x868] sm:$0xff] %v4537
                  %v4539 = vld [vmem:[%s4253 + $0x470] sm:$0xff]
                  %4540 = vst [vmem:[%s4254 + $0x870] sm:$0xff] %v4539
                  %v4541 = vld [vmem:[%s4253 + $0x478] sm:$0xff]
                  %4542 = vst [vmem:[%s4254 + $0x878] sm:$0xff] %v4541
                  %v4543 = vld [vmem:[%s4253 + $0x480] sm:$0xff]
                  %4544 = vst [vmem:[%s4254 + $0x880] sm:$0xff] %v4543
                  %v4545 = vld [vmem:[%s4253 + $0x488] sm:$0xff]
                  %4546 = vst [vmem:[%s4254 + $0x888] sm:$0xff] %v4545
                  %v4547 = vld [vmem:[%s4253 + $0x490] sm:$0xff]
                  %4548 = vst [vmem:[%s4254 + $0x890] sm:$0xff] %v4547
                  %v4549 = vld [vmem:[%s4253 + $0x498] sm:$0xff]
                  %4550 = vst [vmem:[%s4254 + $0x898] sm:$0xff] %v4549
                  %v4551 = vld [vmem:[%s4253 + $0x4a0] sm:$0xff]
                  %4552 = vst [vmem:[%s4254 + $0x8a0] sm:$0xff] %v4551
                  %v4553 = vld [vmem:[%s4253 + $0x4a8] sm:$0xff]
                  %4554 = vst [vmem:[%s4254 + $0x8a8] sm:$0xff] %v4553
                  %v4555 = vld [vmem:[%s4253 + $0x4b0] sm:$0xff]
                  %4556 = vst [vmem:[%s4254 + $0x8b0] sm:$0xff] %v4555
                  %v4557 = vld [vmem:[%s4253 + $0x4b8] sm:$0xff]
                  %4558 = vst [vmem:[%s4254 + $0x8b8] sm:$0xff] %v4557
                  %v4559 = vld [vmem:[%s4253 + $0x4c0] sm:$0xff]
                  %4560 = vst [vmem:[%s4254 + $0x8c0] sm:$0xff] %v4559
                  %v4561 = vld [vmem:[%s4253 + $0x4c8] sm:$0xff]
                  %4562 = vst [vmem:[%s4254 + $0x8c8] sm:$0xff] %v4561
                  %v4563 = vld [vmem:[%s4253 + $0x4d0] sm:$0xff]
                  %4564 = vst [vmem:[%s4254 + $0x8d0] sm:$0xff] %v4563
                  %v4565 = vld [vmem:[%s4253 + $0x4d8] sm:$0xff]
                  %4566 = vst [vmem:[%s4254 + $0x8d8] sm:$0xff] %v4565
                  %v4567 = vld [vmem:[%s4253 + $0x4e0] sm:$0xff]
                  %4568 = vst [vmem:[%s4254 + $0x8e0] sm:$0xff] %v4567
                  %v4569 = vld [vmem:[%s4253 + $0x4e8] sm:$0xff]
                  %4570 = vst [vmem:[%s4254 + $0x8e8] sm:$0xff] %v4569
                  %v4571 = vld [vmem:[%s4253 + $0x4f0] sm:$0xff]
                  %4572 = vst [vmem:[%s4254 + $0x8f0] sm:$0xff] %v4571
                  %v4573 = vld [vmem:[%s4253 + $0x4f8] sm:$0xff]
                  %4574 = vst [vmem:[%s4254 + $0x8f8] sm:$0xff] %v4573
                  %v4575 = vld [vmem:[%s4253 + $0x500] sm:$0xff]
                  %4576 = vst [vmem:[%s4254 + $0x900] sm:$0xff] %v4575
                  %v4577 = vld [vmem:[%s4253 + $0x508] sm:$0xff]
                  %4578 = vst [vmem:[%s4254 + $0x908] sm:$0xff] %v4577
                  %v4579 = vld [vmem:[%s4253 + $0x510] sm:$0xff]
                  %4580 = vst [vmem:[%s4254 + $0x910] sm:$0xff] %v4579
                  %v4581 = vld [vmem:[%s4253 + $0x518] sm:$0xff]
                  %4582 = vst [vmem:[%s4254 + $0x918] sm:$0xff] %v4581
                  %v4583 = vld [vmem:[%s4253 + $0x520] sm:$0xff]
                  %4584 = vst [vmem:[%s4254 + $0x920] sm:$0xff] %v4583
                  %v4585 = vld [vmem:[%s4253 + $0x528] sm:$0xff]
                  %4586 = vst [vmem:[%s4254 + $0x928] sm:$0xff] %v4585
                  %v4587 = vld [vmem:[%s4253 + $0x530] sm:$0xff]
                  %4588 = vst [vmem:[%s4254 + $0x930] sm:$0xff] %v4587
                  %v4589 = vld [vmem:[%s4253 + $0x538] sm:$0xff]
                  %4590 = vst [vmem:[%s4254 + $0x938] sm:$0xff] %v4589
                  %v4591 = vld [vmem:[%s4253 + $0x540] sm:$0xff]
                  %4592 = vst [vmem:[%s4254 + $0x940] sm:$0xff] %v4591
                  %v4593 = vld [vmem:[%s4253 + $0x548] sm:$0xff]
                  %4594 = vst [vmem:[%s4254 + $0x948] sm:$0xff] %v4593
                  %v4595 = vld [vmem:[%s4253 + $0x550] sm:$0xff]
                  %4596 = vst [vmem:[%s4254 + $0x950] sm:$0xff] %v4595
                  %v4597 = vld [vmem:[%s4253 + $0x558] sm:$0xff]
                  %4598 = vst [vmem:[%s4254 + $0x958] sm:$0xff] %v4597
                  %v4599 = vld [vmem:[%s4253 + $0x560] sm:$0xff]
                  %4600 = vst [vmem:[%s4254 + $0x960] sm:$0xff] %v4599
                  %v4601 = vld [vmem:[%s4253 + $0x568] sm:$0xff]
                  %4602 = vst [vmem:[%s4254 + $0x968] sm:$0xff] %v4601
                  %v4603 = vld [vmem:[%s4253 + $0x570] sm:$0xff]
                  %4604 = vst [vmem:[%s4254 + $0x970] sm:$0xff] %v4603
                  %v4605 = vld [vmem:[%s4253 + $0x578] sm:$0xff]
                  %4606 = vst [vmem:[%s4254 + $0x978] sm:$0xff] %v4605
                  %v4607 = vld [vmem:[%s4253 + $0x580] sm:$0xff]
                  %4608 = vst [vmem:[%s4254 + $0x980] sm:$0xff] %v4607
                  %v4609 = vld [vmem:[%s4253 + $0x588] sm:$0xff]
                  %4610 = vst [vmem:[%s4254 + $0x988] sm:$0xff] %v4609
                  %v4611 = vld [vmem:[%s4253 + $0x590] sm:$0xff]
                  %4612 = vst [vmem:[%s4254 + $0x990] sm:$0xff] %v4611
                  %v4613 = vld [vmem:[%s4253 + $0x598] sm:$0xff]
                  %4614 = vst [vmem:[%s4254 + $0x998] sm:$0xff] %v4613
                  %v4615 = vld [vmem:[%s4253 + $0x5a0] sm:$0xff]
                  %4616 = vst [vmem:[%s4254 + $0x9a0] sm:$0xff] %v4615
                  %v4617 = vld [vmem:[%s4253 + $0x5a8] sm:$0xff]
                  %4618 = vst [vmem:[%s4254 + $0x9a8] sm:$0xff] %v4617
                  %v4619 = vld [vmem:[%s4253 + $0x5b0] sm:$0xff]
                  %4620 = vst [vmem:[%s4254 + $0x9b0] sm:$0xff] %v4619
                  %v4621 = vld [vmem:[%s4253 + $0x5b8] sm:$0xff]
                  %4622 = vst [vmem:[%s4254 + $0x9b8] sm:$0xff] %v4621
                  %v4623 = vld [vmem:[%s4253 + $0x5c0] sm:$0xff]
                  %4624 = vst [vmem:[%s4254 + $0x9c0] sm:$0xff] %v4623
                  %v4625 = vld [vmem:[%s4253 + $0x5c8] sm:$0xff]
                  %4626 = vst [vmem:[%s4254 + $0x9c8] sm:$0xff] %v4625
                  %v4627 = vld [vmem:[%s4253 + $0x5d0] sm:$0xff]
                  %4628 = vst [vmem:[%s4254 + $0x9d0] sm:$0xff] %v4627
                  %v4629 = vld [vmem:[%s4253 + $0x5d8] sm:$0xff]
                  %4630 = vst [vmem:[%s4254 + $0x9d8] sm:$0xff] %v4629
                  %v4631 = vld [vmem:[%s4253 + $0x5e0] sm:$0xff]
                  %4632 = vst [vmem:[%s4254 + $0x9e0] sm:$0xff] %v4631
                  %v4633 = vld [vmem:[%s4253 + $0x5e8] sm:$0xff]
                  %4634 = vst [vmem:[%s4254 + $0x9e8] sm:$0xff] %v4633
                  %v4635 = vld [vmem:[%s4253 + $0x5f0] sm:$0xff]
                  %4636 = vst [vmem:[%s4254 + $0x9f0] sm:$0xff] %v4635
                  %v4637 = vld [vmem:[%s4253 + $0x5f8] sm:$0xff]
                  %4638 = vst [vmem:[%s4254 + $0x9f8] sm:$0xff] %v4637
                $region151: #{sphere_tracing_render.1} parent=145 // loop_footer
                  %s4252 = sadd.s32 1, %s4248
                $region152: #{sphere_tracing_render.1} parent=145 // loop_footer_branch
                  %4247 = sbr.rel target = $region148
                $region153: #{sphere_tracing_render.1} parent=145 // loop_exit
                  _
              $region146: #{sphere_tracing_render.1} parent=130 // pred_fallthru
                _
              // Predicated region
              $region154: #{sphere_tracing_render.1} parent=130 // pred_check
                _
              $region155: #{sphere_tracing_render.1} parent=130 // pred_check_branch
                %4640 = sbr.rel target = $region157
              $region156: #{sphere_tracing_render.1} parent=130 // pred_region
                _
              $region157: #{sphere_tracing_render.1} parent=130 // pred_fallthru
                _
            $region131: #{sphere_tracing_render.1} parent=126 // pred_fallthru
              _
            // Predicated region
            $region132: #{sphere_tracing_render.1} parent=126 // pred_check
              _
            $region133: #{sphere_tracing_render.1} parent=126 // pred_check_branch
              %3850 = sbr.rel target = $region135
            $region134: #{sphere_tracing_render.1} parent=126 // pred_region
              %s3852 = ssub.s32 256, 1
              loop: start=0, step=1, limit=1
              $region136: #{sphere_tracing_render.1} parent=134 // loop_pre_header
                _
              $region137: #{sphere_tracing_render.1} parent=134 // loop_header
                %s3854 = sphi 0, %s3858
                %p3855 = scmp.ge.s32.totalorder %s3854, 1
                %s3859 = sphi %s3837, %s3837
                %s3860 = sphi %s3844, %s3844
              $region138: #{sphere_tracing_render.1} parent=134 // loop_header_branch
                %3857 = sbr.rel (%p3855) target = $region142
              $region139: #{sphere_tracing_render.1} parent=134 // loop_body
                %v3861 = vld [vmem:[%s3859] sm:%s3852]
                %3862 = vst [vmem:[%s3860] sm:%s3852] %v3861
                %v3863 = vld [vmem:[%s3859 + $0x8] sm:%s3852]
                %3864 = vst [vmem:[%s3860 + $0x8] sm:%s3852] %v3863
                %v3865 = vld [vmem:[%s3859 + $0x10] sm:%s3852]
                %3866 = vst [vmem:[%s3860 + $0x10] sm:%s3852] %v3865
                %v3867 = vld [vmem:[%s3859 + $0x18] sm:%s3852]
                %3868 = vst [vmem:[%s3860 + $0x18] sm:%s3852] %v3867
                %v3869 = vld [vmem:[%s3859 + $0x20] sm:%s3852]
                %3870 = vst [vmem:[%s3860 + $0x20] sm:%s3852] %v3869
                %v3871 = vld [vmem:[%s3859 + $0x28] sm:%s3852]
                %3872 = vst [vmem:[%s3860 + $0x28] sm:%s3852] %v3871
                %v3873 = vld [vmem:[%s3859 + $0x30] sm:%s3852]
                %3874 = vst [vmem:[%s3860 + $0x30] sm:%s3852] %v3873
                %v3875 = vld [vmem:[%s3859 + $0x38] sm:%s3852]
                %3876 = vst [vmem:[%s3860 + $0x38] sm:%s3852] %v3875
                %v3877 = vld [vmem:[%s3859 + $0x40] sm:%s3852]
                %3878 = vst [vmem:[%s3860 + $0x40] sm:%s3852] %v3877
                %v3879 = vld [vmem:[%s3859 + $0x48] sm:%s3852]
                %3880 = vst [vmem:[%s3860 + $0x48] sm:%s3852] %v3879
                %v3881 = vld [vmem:[%s3859 + $0x50] sm:%s3852]
                %3882 = vst [vmem:[%s3860 + $0x50] sm:%s3852] %v3881
                %v3883 = vld [vmem:[%s3859 + $0x58] sm:%s3852]
                %3884 = vst [vmem:[%s3860 + $0x58] sm:%s3852] %v3883
                %v3885 = vld [vmem:[%s3859 + $0x60] sm:%s3852]
                %3886 = vst [vmem:[%s3860 + $0x60] sm:%s3852] %v3885
                %v3887 = vld [vmem:[%s3859 + $0x68] sm:%s3852]
                %3888 = vst [vmem:[%s3860 + $0x68] sm:%s3852] %v3887
                %v3889 = vld [vmem:[%s3859 + $0x70] sm:%s3852]
                %3890 = vst [vmem:[%s3860 + $0x70] sm:%s3852] %v3889
                %v3891 = vld [vmem:[%s3859 + $0x78] sm:%s3852]
                %3892 = vst [vmem:[%s3860 + $0x78] sm:%s3852] %v3891
                %v3893 = vld [vmem:[%s3859 + $0x80] sm:%s3852]
                %3894 = vst [vmem:[%s3860 + $0x80] sm:%s3852] %v3893
                %v3895 = vld [vmem:[%s3859 + $0x88] sm:%s3852]
                %3896 = vst [vmem:[%s3860 + $0x88] sm:%s3852] %v3895
                %v3897 = vld [vmem:[%s3859 + $0x90] sm:%s3852]
                %3898 = vst [vmem:[%s3860 + $0x90] sm:%s3852] %v3897
                %v3899 = vld [vmem:[%s3859 + $0x98] sm:%s3852]
                %3900 = vst [vmem:[%s3860 + $0x98] sm:%s3852] %v3899
                %v3901 = vld [vmem:[%s3859 + $0xa0] sm:%s3852]
                %3902 = vst [vmem:[%s3860 + $0xa0] sm:%s3852] %v3901
                %v3903 = vld [vmem:[%s3859 + $0xa8] sm:%s3852]
                %3904 = vst [vmem:[%s3860 + $0xa8] sm:%s3852] %v3903
                %v3905 = vld [vmem:[%s3859 + $0xb0] sm:%s3852]
                %3906 = vst [vmem:[%s3860 + $0xb0] sm:%s3852] %v3905
                %v3907 = vld [vmem:[%s3859 + $0xb8] sm:%s3852]
                %3908 = vst [vmem:[%s3860 + $0xb8] sm:%s3852] %v3907
                %v3909 = vld [vmem:[%s3859 + $0xc0] sm:%s3852]
                %3910 = vst [vmem:[%s3860 + $0xc0] sm:%s3852] %v3909
                %v3911 = vld [vmem:[%s3859 + $0xc8] sm:%s3852]
                %3912 = vst [vmem:[%s3860 + $0xc8] sm:%s3852] %v3911
                %v3913 = vld [vmem:[%s3859 + $0xd0] sm:%s3852]
                %3914 = vst [vmem:[%s3860 + $0xd0] sm:%s3852] %v3913
                %v3915 = vld [vmem:[%s3859 + $0xd8] sm:%s3852]
                %3916 = vst [vmem:[%s3860 + $0xd8] sm:%s3852] %v3915
                %v3917 = vld [vmem:[%s3859 + $0xe0] sm:%s3852]
                %3918 = vst [vmem:[%s3860 + $0xe0] sm:%s3852] %v3917
                %v3919 = vld [vmem:[%s3859 + $0xe8] sm:%s3852]
                %3920 = vst [vmem:[%s3860 + $0xe8] sm:%s3852] %v3919
                %v3921 = vld [vmem:[%s3859 + $0xf0] sm:%s3852]
                %3922 = vst [vmem:[%s3860 + $0xf0] sm:%s3852] %v3921
                %v3923 = vld [vmem:[%s3859 + $0xf8] sm:%s3852]
                %3924 = vst [vmem:[%s3860 + $0xf8] sm:%s3852] %v3923
                %v3925 = vld [vmem:[%s3859 + $0x100] sm:%s3852]
                %3926 = vst [vmem:[%s3860 + $0x100] sm:%s3852] %v3925
                %v3927 = vld [vmem:[%s3859 + $0x108] sm:%s3852]
                %3928 = vst [vmem:[%s3860 + $0x108] sm:%s3852] %v3927
                %v3929 = vld [vmem:[%s3859 + $0x110] sm:%s3852]
                %3930 = vst [vmem:[%s3860 + $0x110] sm:%s3852] %v3929
                %v3931 = vld [vmem:[%s3859 + $0x118] sm:%s3852]
                %3932 = vst [vmem:[%s3860 + $0x118] sm:%s3852] %v3931
                %v3933 = vld [vmem:[%s3859 + $0x120] sm:%s3852]
                %3934 = vst [vmem:[%s3860 + $0x120] sm:%s3852] %v3933
                %v3935 = vld [vmem:[%s3859 + $0x128] sm:%s3852]
                %3936 = vst [vmem:[%s3860 + $0x128] sm:%s3852] %v3935
                %v3937 = vld [vmem:[%s3859 + $0x130] sm:%s3852]
                %3938 = vst [vmem:[%s3860 + $0x130] sm:%s3852] %v3937
                %v3939 = vld [vmem:[%s3859 + $0x138] sm:%s3852]
                %3940 = vst [vmem:[%s3860 + $0x138] sm:%s3852] %v3939
                %v3941 = vld [vmem:[%s3859 + $0x140] sm:%s3852]
                %3942 = vst [vmem:[%s3860 + $0x140] sm:%s3852] %v3941
                %v3943 = vld [vmem:[%s3859 + $0x148] sm:%s3852]
                %3944 = vst [vmem:[%s3860 + $0x148] sm:%s3852] %v3943
                %v3945 = vld [vmem:[%s3859 + $0x150] sm:%s3852]
                %3946 = vst [vmem:[%s3860 + $0x150] sm:%s3852] %v3945
                %v3947 = vld [vmem:[%s3859 + $0x158] sm:%s3852]
                %3948 = vst [vmem:[%s3860 + $0x158] sm:%s3852] %v3947
                %v3949 = vld [vmem:[%s3859 + $0x160] sm:%s3852]
                %3950 = vst [vmem:[%s3860 + $0x160] sm:%s3852] %v3949
                %v3951 = vld [vmem:[%s3859 + $0x168] sm:%s3852]
                %3952 = vst [vmem:[%s3860 + $0x168] sm:%s3852] %v3951
                %v3953 = vld [vmem:[%s3859 + $0x170] sm:%s3852]
                %3954 = vst [vmem:[%s3860 + $0x170] sm:%s3852] %v3953
                %v3955 = vld [vmem:[%s3859 + $0x178] sm:%s3852]
                %3956 = vst [vmem:[%s3860 + $0x178] sm:%s3852] %v3955
                %v3957 = vld [vmem:[%s3859 + $0x180] sm:%s3852]
                %3958 = vst [vmem:[%s3860 + $0x180] sm:%s3852] %v3957
                %v3959 = vld [vmem:[%s3859 + $0x188] sm:%s3852]
                %3960 = vst [vmem:[%s3860 + $0x188] sm:%s3852] %v3959
                %v3961 = vld [vmem:[%s3859 + $0x190] sm:%s3852]
                %3962 = vst [vmem:[%s3860 + $0x190] sm:%s3852] %v3961
                %v3963 = vld [vmem:[%s3859 + $0x198] sm:%s3852]
                %3964 = vst [vmem:[%s3860 + $0x198] sm:%s3852] %v3963
                %v3965 = vld [vmem:[%s3859 + $0x1a0] sm:%s3852]
                %3966 = vst [vmem:[%s3860 + $0x1a0] sm:%s3852] %v3965
                %v3967 = vld [vmem:[%s3859 + $0x1a8] sm:%s3852]
                %3968 = vst [vmem:[%s3860 + $0x1a8] sm:%s3852] %v3967
                %v3969 = vld [vmem:[%s3859 + $0x1b0] sm:%s3852]
                %3970 = vst [vmem:[%s3860 + $0x1b0] sm:%s3852] %v3969
                %v3971 = vld [vmem:[%s3859 + $0x1b8] sm:%s3852]
                %3972 = vst [vmem:[%s3860 + $0x1b8] sm:%s3852] %v3971
                %v3973 = vld [vmem:[%s3859 + $0x1c0] sm:%s3852]
                %3974 = vst [vmem:[%s3860 + $0x1c0] sm:%s3852] %v3973
                %v3975 = vld [vmem:[%s3859 + $0x1c8] sm:%s3852]
                %3976 = vst [vmem:[%s3860 + $0x1c8] sm:%s3852] %v3975
                %v3977 = vld [vmem:[%s3859 + $0x1d0] sm:%s3852]
                %3978 = vst [vmem:[%s3860 + $0x1d0] sm:%s3852] %v3977
                %v3979 = vld [vmem:[%s3859 + $0x1d8] sm:%s3852]
                %3980 = vst [vmem:[%s3860 + $0x1d8] sm:%s3852] %v3979
                %v3981 = vld [vmem:[%s3859 + $0x1e0] sm:%s3852]
                %3982 = vst [vmem:[%s3860 + $0x1e0] sm:%s3852] %v3981
                %v3983 = vld [vmem:[%s3859 + $0x1e8] sm:%s3852]
                %3984 = vst [vmem:[%s3860 + $0x1e8] sm:%s3852] %v3983
                %v3985 = vld [vmem:[%s3859 + $0x1f0] sm:%s3852]
                %3986 = vst [vmem:[%s3860 + $0x1f0] sm:%s3852] %v3985
                %v3987 = vld [vmem:[%s3859 + $0x1f8] sm:%s3852]
                %3988 = vst [vmem:[%s3860 + $0x1f8] sm:%s3852] %v3987
                %v3989 = vld [vmem:[%s3859 + $0x200] sm:%s3852]
                %3990 = vst [vmem:[%s3860 + $0x400] sm:%s3852] %v3989
                %v3991 = vld [vmem:[%s3859 + $0x208] sm:%s3852]
                %3992 = vst [vmem:[%s3860 + $0x408] sm:%s3852] %v3991
                %v3993 = vld [vmem:[%s3859 + $0x210] sm:%s3852]
                %3994 = vst [vmem:[%s3860 + $0x410] sm:%s3852] %v3993
                %v3995 = vld [vmem:[%s3859 + $0x218] sm:%s3852]
                %3996 = vst [vmem:[%s3860 + $0x418] sm:%s3852] %v3995
                %v3997 = vld [vmem:[%s3859 + $0x220] sm:%s3852]
                %3998 = vst [vmem:[%s3860 + $0x420] sm:%s3852] %v3997
                %v3999 = vld [vmem:[%s3859 + $0x228] sm:%s3852]
                %4000 = vst [vmem:[%s3860 + $0x428] sm:%s3852] %v3999
                %v4001 = vld [vmem:[%s3859 + $0x230] sm:%s3852]
                %4002 = vst [vmem:[%s3860 + $0x430] sm:%s3852] %v4001
                %v4003 = vld [vmem:[%s3859 + $0x238] sm:%s3852]
                %4004 = vst [vmem:[%s3860 + $0x438] sm:%s3852] %v4003
                %v4005 = vld [vmem:[%s3859 + $0x240] sm:%s3852]
                %4006 = vst [vmem:[%s3860 + $0x440] sm:%s3852] %v4005
                %v4007 = vld [vmem:[%s3859 + $0x248] sm:%s3852]
                %4008 = vst [vmem:[%s3860 + $0x448] sm:%s3852] %v4007
                %v4009 = vld [vmem:[%s3859 + $0x250] sm:%s3852]
                %4010 = vst [vmem:[%s3860 + $0x450] sm:%s3852] %v4009
                %v4011 = vld [vmem:[%s3859 + $0x258] sm:%s3852]
                %4012 = vst [vmem:[%s3860 + $0x458] sm:%s3852] %v4011
                %v4013 = vld [vmem:[%s3859 + $0x260] sm:%s3852]
                %4014 = vst [vmem:[%s3860 + $0x460] sm:%s3852] %v4013
                %v4015 = vld [vmem:[%s3859 + $0x268] sm:%s3852]
                %4016 = vst [vmem:[%s3860 + $0x468] sm:%s3852] %v4015
                %v4017 = vld [vmem:[%s3859 + $0x270] sm:%s3852]
                %4018 = vst [vmem:[%s3860 + $0x470] sm:%s3852] %v4017
                %v4019 = vld [vmem:[%s3859 + $0x278] sm:%s3852]
                %4020 = vst [vmem:[%s3860 + $0x478] sm:%s3852] %v4019
                %v4021 = vld [vmem:[%s3859 + $0x280] sm:%s3852]
                %4022 = vst [vmem:[%s3860 + $0x480] sm:%s3852] %v4021
                %v4023 = vld [vmem:[%s3859 + $0x288] sm:%s3852]
                %4024 = vst [vmem:[%s3860 + $0x488] sm:%s3852] %v4023
                %v4025 = vld [vmem:[%s3859 + $0x290] sm:%s3852]
                %4026 = vst [vmem:[%s3860 + $0x490] sm:%s3852] %v4025
                %v4027 = vld [vmem:[%s3859 + $0x298] sm:%s3852]
                %4028 = vst [vmem:[%s3860 + $0x498] sm:%s3852] %v4027
                %v4029 = vld [vmem:[%s3859 + $0x2a0] sm:%s3852]
                %4030 = vst [vmem:[%s3860 + $0x4a0] sm:%s3852] %v4029
                %v4031 = vld [vmem:[%s3859 + $0x2a8] sm:%s3852]
                %4032 = vst [vmem:[%s3860 + $0x4a8] sm:%s3852] %v4031
                %v4033 = vld [vmem:[%s3859 + $0x2b0] sm:%s3852]
                %4034 = vst [vmem:[%s3860 + $0x4b0] sm:%s3852] %v4033
                %v4035 = vld [vmem:[%s3859 + $0x2b8] sm:%s3852]
                %4036 = vst [vmem:[%s3860 + $0x4b8] sm:%s3852] %v4035
                %v4037 = vld [vmem:[%s3859 + $0x2c0] sm:%s3852]
                %4038 = vst [vmem:[%s3860 + $0x4c0] sm:%s3852] %v4037
                %v4039 = vld [vmem:[%s3859 + $0x2c8] sm:%s3852]
                %4040 = vst [vmem:[%s3860 + $0x4c8] sm:%s3852] %v4039
                %v4041 = vld [vmem:[%s3859 + $0x2d0] sm:%s3852]
                %4042 = vst [vmem:[%s3860 + $0x4d0] sm:%s3852] %v4041
                %v4043 = vld [vmem:[%s3859 + $0x2d8] sm:%s3852]
                %4044 = vst [vmem:[%s3860 + $0x4d8] sm:%s3852] %v4043
                %v4045 = vld [vmem:[%s3859 + $0x2e0] sm:%s3852]
                %4046 = vst [vmem:[%s3860 + $0x4e0] sm:%s3852] %v4045
                %v4047 = vld [vmem:[%s3859 + $0x2e8] sm:%s3852]
                %4048 = vst [vmem:[%s3860 + $0x4e8] sm:%s3852] %v4047
                %v4049 = vld [vmem:[%s3859 + $0x2f0] sm:%s3852]
                %4050 = vst [vmem:[%s3860 + $0x4f0] sm:%s3852] %v4049
                %v4051 = vld [vmem:[%s3859 + $0x2f8] sm:%s3852]
                %4052 = vst [vmem:[%s3860 + $0x4f8] sm:%s3852] %v4051
                %v4053 = vld [vmem:[%s3859 + $0x300] sm:%s3852]
                %4054 = vst [vmem:[%s3860 + $0x500] sm:%s3852] %v4053
                %v4055 = vld [vmem:[%s3859 + $0x308] sm:%s3852]
                %4056 = vst [vmem:[%s3860 + $0x508] sm:%s3852] %v4055
                %v4057 = vld [vmem:[%s3859 + $0x310] sm:%s3852]
                %4058 = vst [vmem:[%s3860 + $0x510] sm:%s3852] %v4057
                %v4059 = vld [vmem:[%s3859 + $0x318] sm:%s3852]
                %4060 = vst [vmem:[%s3860 + $0x518] sm:%s3852] %v4059
                %v4061 = vld [vmem:[%s3859 + $0x320] sm:%s3852]
                %4062 = vst [vmem:[%s3860 + $0x520] sm:%s3852] %v4061
                %v4063 = vld [vmem:[%s3859 + $0x328] sm:%s3852]
                %4064 = vst [vmem:[%s3860 + $0x528] sm:%s3852] %v4063
                %v4065 = vld [vmem:[%s3859 + $0x330] sm:%s3852]
                %4066 = vst [vmem:[%s3860 + $0x530] sm:%s3852] %v4065
                %v4067 = vld [vmem:[%s3859 + $0x338] sm:%s3852]
                %4068 = vst [vmem:[%s3860 + $0x538] sm:%s3852] %v4067
                %v4069 = vld [vmem:[%s3859 + $0x340] sm:%s3852]
                %4070 = vst [vmem:[%s3860 + $0x540] sm:%s3852] %v4069
                %v4071 = vld [vmem:[%s3859 + $0x348] sm:%s3852]
                %4072 = vst [vmem:[%s3860 + $0x548] sm:%s3852] %v4071
                %v4073 = vld [vmem:[%s3859 + $0x350] sm:%s3852]
                %4074 = vst [vmem:[%s3860 + $0x550] sm:%s3852] %v4073
                %v4075 = vld [vmem:[%s3859 + $0x358] sm:%s3852]
                %4076 = vst [vmem:[%s3860 + $0x558] sm:%s3852] %v4075
                %v4077 = vld [vmem:[%s3859 + $0x360] sm:%s3852]
                %4078 = vst [vmem:[%s3860 + $0x560] sm:%s3852] %v4077
                %v4079 = vld [vmem:[%s3859 + $0x368] sm:%s3852]
                %4080 = vst [vmem:[%s3860 + $0x568] sm:%s3852] %v4079
                %v4081 = vld [vmem:[%s3859 + $0x370] sm:%s3852]
                %4082 = vst [vmem:[%s3860 + $0x570] sm:%s3852] %v4081
                %v4083 = vld [vmem:[%s3859 + $0x378] sm:%s3852]
                %4084 = vst [vmem:[%s3860 + $0x578] sm:%s3852] %v4083
                %v4085 = vld [vmem:[%s3859 + $0x380] sm:%s3852]
                %4086 = vst [vmem:[%s3860 + $0x580] sm:%s3852] %v4085
                %v4087 = vld [vmem:[%s3859 + $0x388] sm:%s3852]
                %4088 = vst [vmem:[%s3860 + $0x588] sm:%s3852] %v4087
                %v4089 = vld [vmem:[%s3859 + $0x390] sm:%s3852]
                %4090 = vst [vmem:[%s3860 + $0x590] sm:%s3852] %v4089
                %v4091 = vld [vmem:[%s3859 + $0x398] sm:%s3852]
                %4092 = vst [vmem:[%s3860 + $0x598] sm:%s3852] %v4091
                %v4093 = vld [vmem:[%s3859 + $0x3a0] sm:%s3852]
                %4094 = vst [vmem:[%s3860 + $0x5a0] sm:%s3852] %v4093
                %v4095 = vld [vmem:[%s3859 + $0x3a8] sm:%s3852]
                %4096 = vst [vmem:[%s3860 + $0x5a8] sm:%s3852] %v4095
                %v4097 = vld [vmem:[%s3859 + $0x3b0] sm:%s3852]
                %4098 = vst [vmem:[%s3860 + $0x5b0] sm:%s3852] %v4097
                %v4099 = vld [vmem:[%s3859 + $0x3b8] sm:%s3852]
                %4100 = vst [vmem:[%s3860 + $0x5b8] sm:%s3852] %v4099
                %v4101 = vld [vmem:[%s3859 + $0x3c0] sm:%s3852]
                %4102 = vst [vmem:[%s3860 + $0x5c0] sm:%s3852] %v4101
                %v4103 = vld [vmem:[%s3859 + $0x3c8] sm:%s3852]
                %4104 = vst [vmem:[%s3860 + $0x5c8] sm:%s3852] %v4103
                %v4105 = vld [vmem:[%s3859 + $0x3d0] sm:%s3852]
                %4106 = vst [vmem:[%s3860 + $0x5d0] sm:%s3852] %v4105
                %v4107 = vld [vmem:[%s3859 + $0x3d8] sm:%s3852]
                %4108 = vst [vmem:[%s3860 + $0x5d8] sm:%s3852] %v4107
                %v4109 = vld [vmem:[%s3859 + $0x3e0] sm:%s3852]
                %4110 = vst [vmem:[%s3860 + $0x5e0] sm:%s3852] %v4109
                %v4111 = vld [vmem:[%s3859 + $0x3e8] sm:%s3852]
                %4112 = vst [vmem:[%s3860 + $0x5e8] sm:%s3852] %v4111
                %v4113 = vld [vmem:[%s3859 + $0x3f0] sm:%s3852]
                %4114 = vst [vmem:[%s3860 + $0x5f0] sm:%s3852] %v4113
                %v4115 = vld [vmem:[%s3859 + $0x3f8] sm:%s3852]
                %4116 = vst [vmem:[%s3860 + $0x5f8] sm:%s3852] %v4115
                %v4117 = vld [vmem:[%s3859 + $0x400] sm:%s3852]
                %4118 = vst [vmem:[%s3860 + $0x800] sm:%s3852] %v4117
                %v4119 = vld [vmem:[%s3859 + $0x408] sm:%s3852]
                %4120 = vst [vmem:[%s3860 + $0x808] sm:%s3852] %v4119
                %v4121 = vld [vmem:[%s3859 + $0x410] sm:%s3852]
                %4122 = vst [vmem:[%s3860 + $0x810] sm:%s3852] %v4121
                %v4123 = vld [vmem:[%s3859 + $0x418] sm:%s3852]
                %4124 = vst [vmem:[%s3860 + $0x818] sm:%s3852] %v4123
                %v4125 = vld [vmem:[%s3859 + $0x420] sm:%s3852]
                %4126 = vst [vmem:[%s3860 + $0x820] sm:%s3852] %v4125
                %v4127 = vld [vmem:[%s3859 + $0x428] sm:%s3852]
                %4128 = vst [vmem:[%s3860 + $0x828] sm:%s3852] %v4127
                %v4129 = vld [vmem:[%s3859 + $0x430] sm:%s3852]
                %4130 = vst [vmem:[%s3860 + $0x830] sm:%s3852] %v4129
                %v4131 = vld [vmem:[%s3859 + $0x438] sm:%s3852]
                %4132 = vst [vmem:[%s3860 + $0x838] sm:%s3852] %v4131
                %v4133 = vld [vmem:[%s3859 + $0x440] sm:%s3852]
                %4134 = vst [vmem:[%s3860 + $0x840] sm:%s3852] %v4133
                %v4135 = vld [vmem:[%s3859 + $0x448] sm:%s3852]
                %4136 = vst [vmem:[%s3860 + $0x848] sm:%s3852] %v4135
                %v4137 = vld [vmem:[%s3859 + $0x450] sm:%s3852]
                %4138 = vst [vmem:[%s3860 + $0x850] sm:%s3852] %v4137
                %v4139 = vld [vmem:[%s3859 + $0x458] sm:%s3852]
                %4140 = vst [vmem:[%s3860 + $0x858] sm:%s3852] %v4139
                %v4141 = vld [vmem:[%s3859 + $0x460] sm:%s3852]
                %4142 = vst [vmem:[%s3860 + $0x860] sm:%s3852] %v4141
                %v4143 = vld [vmem:[%s3859 + $0x468] sm:%s3852]
                %4144 = vst [vmem:[%s3860 + $0x868] sm:%s3852] %v4143
                %v4145 = vld [vmem:[%s3859 + $0x470] sm:%s3852]
                %4146 = vst [vmem:[%s3860 + $0x870] sm:%s3852] %v4145
                %v4147 = vld [vmem:[%s3859 + $0x478] sm:%s3852]
                %4148 = vst [vmem:[%s3860 + $0x878] sm:%s3852] %v4147
                %v4149 = vld [vmem:[%s3859 + $0x480] sm:%s3852]
                %4150 = vst [vmem:[%s3860 + $0x880] sm:%s3852] %v4149
                %v4151 = vld [vmem:[%s3859 + $0x488] sm:%s3852]
                %4152 = vst [vmem:[%s3860 + $0x888] sm:%s3852] %v4151
                %v4153 = vld [vmem:[%s3859 + $0x490] sm:%s3852]
                %4154 = vst [vmem:[%s3860 + $0x890] sm:%s3852] %v4153
                %v4155 = vld [vmem:[%s3859 + $0x498] sm:%s3852]
                %4156 = vst [vmem:[%s3860 + $0x898] sm:%s3852] %v4155
                %v4157 = vld [vmem:[%s3859 + $0x4a0] sm:%s3852]
                %4158 = vst [vmem:[%s3860 + $0x8a0] sm:%s3852] %v4157
                %v4159 = vld [vmem:[%s3859 + $0x4a8] sm:%s3852]
                %4160 = vst [vmem:[%s3860 + $0x8a8] sm:%s3852] %v4159
                %v4161 = vld [vmem:[%s3859 + $0x4b0] sm:%s3852]
                %4162 = vst [vmem:[%s3860 + $0x8b0] sm:%s3852] %v4161
                %v4163 = vld [vmem:[%s3859 + $0x4b8] sm:%s3852]
                %4164 = vst [vmem:[%s3860 + $0x8b8] sm:%s3852] %v4163
                %v4165 = vld [vmem:[%s3859 + $0x4c0] sm:%s3852]
                %4166 = vst [vmem:[%s3860 + $0x8c0] sm:%s3852] %v4165
                %v4167 = vld [vmem:[%s3859 + $0x4c8] sm:%s3852]
                %4168 = vst [vmem:[%s3860 + $0x8c8] sm:%s3852] %v4167
                %v4169 = vld [vmem:[%s3859 + $0x4d0] sm:%s3852]
                %4170 = vst [vmem:[%s3860 + $0x8d0] sm:%s3852] %v4169
                %v4171 = vld [vmem:[%s3859 + $0x4d8] sm:%s3852]
                %4172 = vst [vmem:[%s3860 + $0x8d8] sm:%s3852] %v4171
                %v4173 = vld [vmem:[%s3859 + $0x4e0] sm:%s3852]
                %4174 = vst [vmem:[%s3860 + $0x8e0] sm:%s3852] %v4173
                %v4175 = vld [vmem:[%s3859 + $0x4e8] sm:%s3852]
                %4176 = vst [vmem:[%s3860 + $0x8e8] sm:%s3852] %v4175
                %v4177 = vld [vmem:[%s3859 + $0x4f0] sm:%s3852]
                %4178 = vst [vmem:[%s3860 + $0x8f0] sm:%s3852] %v4177
                %v4179 = vld [vmem:[%s3859 + $0x4f8] sm:%s3852]
                %4180 = vst [vmem:[%s3860 + $0x8f8] sm:%s3852] %v4179
                %v4181 = vld [vmem:[%s3859 + $0x500] sm:%s3852]
                %4182 = vst [vmem:[%s3860 + $0x900] sm:%s3852] %v4181
                %v4183 = vld [vmem:[%s3859 + $0x508] sm:%s3852]
                %4184 = vst [vmem:[%s3860 + $0x908] sm:%s3852] %v4183
                %v4185 = vld [vmem:[%s3859 + $0x510] sm:%s3852]
                %4186 = vst [vmem:[%s3860 + $0x910] sm:%s3852] %v4185
                %v4187 = vld [vmem:[%s3859 + $0x518] sm:%s3852]
                %4188 = vst [vmem:[%s3860 + $0x918] sm:%s3852] %v4187
                %v4189 = vld [vmem:[%s3859 + $0x520] sm:%s3852]
                %4190 = vst [vmem:[%s3860 + $0x920] sm:%s3852] %v4189
                %v4191 = vld [vmem:[%s3859 + $0x528] sm:%s3852]
                %4192 = vst [vmem:[%s3860 + $0x928] sm:%s3852] %v4191
                %v4193 = vld [vmem:[%s3859 + $0x530] sm:%s3852]
                %4194 = vst [vmem:[%s3860 + $0x930] sm:%s3852] %v4193
                %v4195 = vld [vmem:[%s3859 + $0x538] sm:%s3852]
                %4196 = vst [vmem:[%s3860 + $0x938] sm:%s3852] %v4195
                %v4197 = vld [vmem:[%s3859 + $0x540] sm:%s3852]
                %4198 = vst [vmem:[%s3860 + $0x940] sm:%s3852] %v4197
                %v4199 = vld [vmem:[%s3859 + $0x548] sm:%s3852]
                %4200 = vst [vmem:[%s3860 + $0x948] sm:%s3852] %v4199
                %v4201 = vld [vmem:[%s3859 + $0x550] sm:%s3852]
                %4202 = vst [vmem:[%s3860 + $0x950] sm:%s3852] %v4201
                %v4203 = vld [vmem:[%s3859 + $0x558] sm:%s3852]
                %4204 = vst [vmem:[%s3860 + $0x958] sm:%s3852] %v4203
                %v4205 = vld [vmem:[%s3859 + $0x560] sm:%s3852]
                %4206 = vst [vmem:[%s3860 + $0x960] sm:%s3852] %v4205
                %v4207 = vld [vmem:[%s3859 + $0x568] sm:%s3852]
                %4208 = vst [vmem:[%s3860 + $0x968] sm:%s3852] %v4207
                %v4209 = vld [vmem:[%s3859 + $0x570] sm:%s3852]
                %4210 = vst [vmem:[%s3860 + $0x970] sm:%s3852] %v4209
                %v4211 = vld [vmem:[%s3859 + $0x578] sm:%s3852]
                %4212 = vst [vmem:[%s3860 + $0x978] sm:%s3852] %v4211
                %v4213 = vld [vmem:[%s3859 + $0x580] sm:%s3852]
                %4214 = vst [vmem:[%s3860 + $0x980] sm:%s3852] %v4213
                %v4215 = vld [vmem:[%s3859 + $0x588] sm:%s3852]
                %4216 = vst [vmem:[%s3860 + $0x988] sm:%s3852] %v4215
                %v4217 = vld [vmem:[%s3859 + $0x590] sm:%s3852]
                %4218 = vst [vmem:[%s3860 + $0x990] sm:%s3852] %v4217
                %v4219 = vld [vmem:[%s3859 + $0x598] sm:%s3852]
                %4220 = vst [vmem:[%s3860 + $0x998] sm:%s3852] %v4219
                %v4221 = vld [vmem:[%s3859 + $0x5a0] sm:%s3852]
                %4222 = vst [vmem:[%s3860 + $0x9a0] sm:%s3852] %v4221
                %v4223 = vld [vmem:[%s3859 + $0x5a8] sm:%s3852]
                %4224 = vst [vmem:[%s3860 + $0x9a8] sm:%s3852] %v4223
                %v4225 = vld [vmem:[%s3859 + $0x5b0] sm:%s3852]
                %4226 = vst [vmem:[%s3860 + $0x9b0] sm:%s3852] %v4225
                %v4227 = vld [vmem:[%s3859 + $0x5b8] sm:%s3852]
                %4228 = vst [vmem:[%s3860 + $0x9b8] sm:%s3852] %v4227
                %v4229 = vld [vmem:[%s3859 + $0x5c0] sm:%s3852]
                %4230 = vst [vmem:[%s3860 + $0x9c0] sm:%s3852] %v4229
                %v4231 = vld [vmem:[%s3859 + $0x5c8] sm:%s3852]
                %4232 = vst [vmem:[%s3860 + $0x9c8] sm:%s3852] %v4231
                %v4233 = vld [vmem:[%s3859 + $0x5d0] sm:%s3852]
                %4234 = vst [vmem:[%s3860 + $0x9d0] sm:%s3852] %v4233
                %v4235 = vld [vmem:[%s3859 + $0x5d8] sm:%s3852]
                %4236 = vst [vmem:[%s3860 + $0x9d8] sm:%s3852] %v4235
                %v4237 = vld [vmem:[%s3859 + $0x5e0] sm:%s3852]
                %4238 = vst [vmem:[%s3860 + $0x9e0] sm:%s3852] %v4237
                %v4239 = vld [vmem:[%s3859 + $0x5e8] sm:%s3852]
                %4240 = vst [vmem:[%s3860 + $0x9e8] sm:%s3852] %v4239
                %v4241 = vld [vmem:[%s3859 + $0x5f0] sm:%s3852]
                %4242 = vst [vmem:[%s3860 + $0x9f0] sm:%s3852] %v4241
                %v4243 = vld [vmem:[%s3859 + $0x5f8] sm:%s3852]
                %4244 = vst [vmem:[%s3860 + $0x9f8] sm:%s3852] %v4243
              $region140: #{sphere_tracing_render.1} parent=134 // loop_footer
                %s3858 = sadd.s32 1, %s3854
              $region141: #{sphere_tracing_render.1} parent=134 // loop_footer_branch
                %3853 = sbr.rel target = $region137
              $region142: #{sphere_tracing_render.1} parent=134 // loop_exit
                _
            $region135: #{sphere_tracing_render.1} parent=126 // pred_fallthru
              _
          $region127: #{sphere_tracing_render.1} parent=122 // pred_fallthru
            _
          %4641 = vnop
        $region123: #{sphere_tracing_render.1} parent=99 // pred_fallthru
          _
      $region100: #{sphere_tracing_render.1} parent=5 // pred_fallthru
        _
      %p4642 = scmp.le.s32.totalorder 2, %s10
      // Predicated region
      $region158: #{sphere_tracing_render.1} parent=5 // pred_check
        %p4643 = pneg %p4642
      $region159: #{sphere_tracing_render.1} parent=5 // pred_check_branch
        %4645 = sbr.rel (%p4643) target = $region161
      $region160: #{sphere_tracing_render.1} parent=5 // pred_region
        %s4646 = ssub.s32 %s10, 2
        // Predicated region
        $region162: #{sphere_tracing_render.1} parent=160 // pred_check
          %p4647 = pneg %p112
        $region163: #{sphere_tracing_render.1} parent=160 // pred_check_branch
          %4649 = sbr.rel (%p4647) target = $region165
        $region164: #{sphere_tracing_render.1} parent=160 // pred_region
          %s4650 = sand.u32 %s97, 1
          %s4651 = sand.u32 %s97, 1
          %s4652 = smul.addr %s4651, 1536
          %s4653 = scalar_lea.vmem [#allocation6], %s4652
        $region165: #{sphere_tracing_render.1} parent=160 // pred_fallthru
          _
      $region161: #{sphere_tracing_render.1} parent=5 // pred_fallthru
        _
    $region6: #{sphere_tracing_render.1} parent=1 // loop_footer
      %s14 = sadd.s32 1, %s10
    $region7: #{sphere_tracing_render.1} parent=1 // loop_footer_branch
      %9 = sbr.rel target = $region3
    $region8: #{sphere_tracing_render.1} parent=1 // loop_exit
      _
    %4654 = vsyncpa [#allocation3], 1
    %s4655 = scalar_lea.sflag [#allocation3], 1
    %4656 = vsyncpa %s4655, 1

</llo_original>
